<compile_context>
chip_gen: v5e
topology: v5e:2x2
jax: 0.10.0
libtpu: 0.0.40
codegen_flags: <defaults>
</compile_context>

<pallas_src>
import functools

import jax
import jax.numpy as jnp
from jax.experimental import pallas as pl
from jax.experimental.pallas import tpu as pltpu


# ----------------------------------------------------------------------------
# Fused kernel: conv3x3 -> BatchNorm(batch stats) -> LeakyReLU -> conv3x3 ->
#               LeakyReLU, all in VMEM, lane-dense HBM I/O.
# ----------------------------------------------------------------------------
def _residual_block_kernel(x_ref, w1_ref, b1_ref, g_ref, be_ref, w2_ref, b2_ref,
                           o_ref, xp_s, yp_s, *, H, W, eps, slope):
    # x_ref : (N, Cin, HW)     NCHW input, spatial flattened (lane-dense loads)
    # w1_ref: (9, Cin, Cout)   tap-major 3x3 filters (HWIO flattened)
    # w2_ref: (9, Cout, Cout)
    # b1/b2/g/be refs: (1, Cout)
    # o_ref : (N, Cout, HW)    NCHW output, spatial flattened (lane-dense stores)
    # xp_s  : (N, H+2, W+2, Cin)  padded channels-last scratch for conv1 input
    # yp_s  : (N, H+2, W+2, Cout) padded channels-last scratch for conv2 input
    N, Cin, HW = x_ref.shape
    Cout = w1_ref.shape[-1]
    taps = [(kh, kw) for kh in range(3) for kw in range(3)]

    # Zero the padded scratches; the 1-pixel border that is never overwritten
    # provides the conv zero-padding.
    xp_s[...] = jnp.zeros_like(xp_s)
    yp_s[...] = jnp.zeros_like(yp_s)

    # Stage the NCHW input into the padded channels-last scratch (in-kernel
    # 2D transpose; keeps HBM layout NCHW / lane-dense).
    for n in range(N):
        xn = x_ref[n]                                        # (Cin, HW)
        xp_s[n, 1:1 + H, 1:1 + W, :] = xn.T.reshape(H, W, Cin)

    # ---- Conv1: 9 accumulated (HW, Cin) x (Cin, Cout) MXU matmuls per image ----
    y_pre = []
    for n in range(N):
        acc = jnp.zeros((HW, Cout), jnp.float32)
        for t, (kh, kw) in enumerate(taps):
            xs = xp_s[n, kh:kh + H, kw:kw + W, :].reshape(HW, Cin)
            acc = acc + jnp.dot(xs, w1_ref[t], preferred_element_type=jnp.float32)
        y_pre.append(acc + b1_ref[...])                      # (HW, Cout)

    # ---- Fused BatchNorm2d (batch stats, biased var, eps) + LeakyReLU(0.2) ----
    cnt = float(N * HW)
    mean = sum(jnp.sum(a, axis=0, keepdims=True) for a in y_pre) / cnt        # (1, Cout)
    var = sum(jnp.sum((a - mean) ** 2, axis=0, keepdims=True) for a in y_pre) / cnt
    scale = jax.lax.rsqrt(var + eps) * g_ref[...]                             # (1, Cout)
    for n in range(N):
        yn = (y_pre[n] - mean) * scale + be_ref[...]
        yn = jnp.where(yn >= 0, yn, slope * yn)
        yp_s[n, 1:1 + H, 1:1 + W, :] = yn.reshape(H, W, Cout)

    # ---- Conv2 + bias + LeakyReLU, stored lane-dense as (Cout, HW) ----
    for n in range(N):
        acc = jnp.zeros((HW, Cout), jnp.float32)
        for t, (kh, kw) in enumerate(taps):
            ys = yp_s[n, kh:kh + H, kw:kw + W, :].reshape(HW, Cout)
            acc = acc + jnp.dot(ys, w2_ref[t], preferred_element_type=jnp.float32)
        z = acc + b2_ref[...]
        z = jnp.where(z >= 0, z, slope * z)
        o_ref[n] = z.T.astype(o_ref.dtype)                   # (Cout, HW), lane-dense


# ----------------------------------------------------------------------------
# Wrapper: NCHW in, NCHW out; only free (contiguous) reshapes outside the kernel.
# ----------------------------------------------------------------------------
def residual_block_forward(x_nchw, params):
    w1, b1, g1, be1, w2, b2 = params                 # w in HWIO
    N, Cin, H, W = x_nchw.shape
    Cout = w1.shape[-1]
    HW = H * W

    x_flat = x_nchw.reshape(N, Cin, HW)              # free reshape, stays NCHW
    w1_t = w1.reshape(9, Cin, Cout)                  # HWIO -> (tap, Cin, Cout)
    w2_t = w2.reshape(9, Cout, Cout)

    kern = functools.partial(_residual_block_kernel, H=H, W=W, eps=1e-5, slope=0.2)
    out = pl.pallas_call(
        kern,
        out_shape=jax.ShapeDtypeStruct((N, Cout, HW), jnp.float32),
        scratch_shapes=[
            pltpu.VMEM((N, H + 2, W + 2, Cin), jnp.float32),    # padded conv1 input
            pltpu.VMEM((N, H + 2, W + 2, Cout), jnp.float32),   # padded conv2 input
        ],
    )(x_flat, w1_t, b1.reshape(1, Cout), g1.reshape(1, Cout),
      be1.reshape(1, Cout), w2_t, b2.reshape(1, Cout))
    return out.reshape(N, Cout, H, W)                # free reshape back to NCHW


# ----------------------------------------------------------------------------
# Pure-JAX reference for validation
# ----------------------------------------------------------------------------
def _reference(x_nchw, params):
    w1, b1, g1, be1, w2, b2 = params
    x = jnp.transpose(x_nchw, (0, 2, 3, 1))
    dn = ("NHWC", "HWIO", "NHWC")
    y = jax.lax.conv_general_dilated(x, w1, (1, 1), ((1, 1), (1, 1)),
                                     dimension_numbers=dn) + b1
    mean = jnp.mean(y, axis=(0, 1, 2), keepdims=True)
    var = jnp.mean((y - mean) ** 2, axis=(0, 1, 2), keepdims=True)
    y = (y - mean) * jax.lax.rsqrt(var + 1e-5) * g1 + be1
    y = jnp.where(y >= 0, y, 0.2 * y)
    z = jax.lax.conv_general_dilated(y, w2, (1, 1), ((1, 1), (1, 1)),
                                     dimension_numbers=dn) + b2
    z = jnp.where(z >= 0, z, 0.2 * z)
    return jnp.transpose(z, (0, 3, 1, 2))


if __name__ == "__main__":
    # Small shapes consistent with the module: batch=2, Cin=4, Cout=8, 16x16.
    N, Cin, Cout, H, W = 2, 4, 8, 16, 16

    key = jax.random.PRNGKey(0)
    kx, kw1, kb1, kw2, kb2 = jax.random.split(key, 5)

    x = jax.random.normal(kx, (N, Cin, H, W), jnp.float32)

    # Deterministic parameter init (shapes per the module's __init__).
    w1 = 0.1 * jax.random.normal(kw1, (3, 3, Cin, Cout), jnp.float32)   # HWIO
    b1 = 0.1 * jax.random.normal(kb1, (Cout,), jnp.float32)
    g1 = jnp.ones((Cout,), jnp.float32)    # BatchNorm2d weight default
    be1 = jnp.zeros((Cout,), jnp.float32)  # BatchNorm2d bias default
    w2 = 0.1 * jax.random.normal(kw2, (3, 3, Cout, Cout), jnp.float32)  # HWIO
    b2 = 0.1 * jax.random.normal(kb2, (Cout,), jnp.float32)
    params = (w1, b1, g1, be1, w2, b2)

    out = jax.jit(residual_block_forward)(x, params)
    out = jax.block_until_ready(out)

    ref = _reference(x, params)
    assert out.shape == (N, Cout, H, W)
    assert jnp.allclose(out, ref, rtol=1e-4, atol=1e-4), "mismatch vs JAX reference"

    print("KERNEL_OK")
</pallas_src>

<mosaic_0001>
module attributes {stable_mosaic.version = 11 : i64} {
  func.func @_residual_block_kernel(%arg0: memref<2x4x256xf32, #tpu.memory_space<vmem>>, %arg1: memref<9x4x8xf32, #tpu.memory_space<vmem>>, %arg2: memref<1x8xf32, #tpu.memory_space<vmem>>, %arg3: memref<1x8xf32, #tpu.memory_space<vmem>>, %arg4: memref<1x8xf32, #tpu.memory_space<vmem>>, %arg5: memref<9x8x8xf32, #tpu.memory_space<vmem>>, %arg6: memref<1x8xf32, #tpu.memory_space<vmem>>, %arg7: memref<2x8x256xf32, #tpu.memory_space<vmem>>, %arg8: memref<2x18x18x4xf32, #tpu.memory_space<vmem>>, %arg9: memref<2x18x18x8xf32, #tpu.memory_space<vmem>>) attributes {dimension_semantics = [], scalar_prefetch = 0 : i64, scratch_operands = 2 : i64, tpu.core_type = #tpu.core_type<tc>} {
    %cst = arith.constant 0.000000e+00 : f32
    %0 = vector.broadcast %cst : f32 to vector<2x18x18x4xf32>
    %c0 = arith.constant 0 : index
    %c0_0 = arith.constant 0 : index
    %c0_1 = arith.constant 0 : index
    %c0_2 = arith.constant 0 : index
    %1 = vector.load %arg8[%c0, %c0_0, %c0_1, %c0_2] : memref<2x18x18x4xf32, #tpu.memory_space<vmem>>, vector<2x18x18x4xf32>
    tpu.vector_store %arg8[%c0, %c0_0, %c0_1, %c0_2], %0 {strides = array<i32>} : memref<2x18x18x4xf32, #tpu.memory_space<vmem>>, vector<2x18x18x4xf32>,
    %cst_3 = arith.constant 0.000000e+00 : f32
    %2 = vector.broadcast %cst_3 : f32 to vector<2x18x18x8xf32>
    %c0_4 = arith.constant 0 : index
    %c0_5 = arith.constant 0 : index
    %c0_6 = arith.constant 0 : index
    %c0_7 = arith.constant 0 : index
    %3 = vector.load %arg9[%c0_4, %c0_5, %c0_6, %c0_7] : memref<2x18x18x8xf32, #tpu.memory_space<vmem>>, vector<2x18x18x8xf32>
    tpu.vector_store %arg9[%c0_4, %c0_5, %c0_6, %c0_7], %2 {strides = array<i32>} : memref<2x18x18x8xf32, #tpu.memory_space<vmem>>, vector<2x18x18x8xf32>,
    %c0_8 = arith.constant 0 : index
    %c0_9 = arith.constant 0 : index
    %c0_10 = arith.constant 0 : index
    %4 = vector.load %arg0[%c0_8, %c0_9, %c0_10] : memref<2x4x256xf32, #tpu.memory_space<vmem>>, vector<1x4x256xf32>
    %5 = vector.shape_cast %4 : vector<1x4x256xf32> to vector<4x256xf32>
    %6 = tpu.transpose %5, [1, 0] : vector<4x256xf32> -> vector<256x4xf32>
    %7 = vector.shape_cast %6 : vector<256x4xf32> to vector<16x16x4xf32>
    %c0_11 = arith.constant 0 : index
    %c1 = arith.constant 1 : index
    %c1_12 = arith.constant 1 : index
    %c0_13 = arith.constant 0 : index
    %8 = vector.load %arg8[%c0_11, %c1, %c1_12, %c0_13] : memref<2x18x18x4xf32, #tpu.memory_space<vmem>>, vector<1x16x16x4xf32>
    %9 = vector.shape_cast %8 : vector<1x16x16x4xf32> to vector<16x16x4xf32>
    %10 = vector.shape_cast %7 : vector<16x16x4xf32> to vector<1x16x16x4xf32>
    tpu.vector_store %arg8[%c0_11, %c1, %c1_12, %c0_13], %10 {strides = array<i32>} : memref<2x18x18x4xf32, #tpu.memory_space<vmem>>, vector<1x16x16x4xf32>,
    %c1_14 = arith.constant 1 : index
    %c0_15 = arith.constant 0 : index
    %c0_16 = arith.constant 0 : index
    %11 = vector.load %arg0[%c1_14, %c0_15, %c0_16] : memref<2x4x256xf32, #tpu.memory_space<vmem>>, vector<1x4x256xf32>
    %12 = vector.shape_cast %11 : vector<1x4x256xf32> to vector<4x256xf32>
    %13 = tpu.transpose %12, [1, 0] : vector<4x256xf32> -> vector<256x4xf32>
    %14 = vector.shape_cast %13 : vector<256x4xf32> to vector<16x16x4xf32>
    %c1_17 = arith.constant 1 : index
    %c1_18 = arith.constant 1 : index
    %c1_19 = arith.constant 1 : index
    %c0_20 = arith.constant 0 : index
    %15 = vector.load %arg8[%c1_17, %c1_18, %c1_19, %c0_20] : memref<2x18x18x4xf32, #tpu.memory_space<vmem>>, vector<1x16x16x4xf32>
    %16 = vector.shape_cast %15 : vector<1x16x16x4xf32> to vector<16x16x4xf32>
    %17 = vector.shape_cast %14 : vector<16x16x4xf32> to vector<1x16x16x4xf32>
    tpu.vector_store %arg8[%c1_17, %c1_18, %c1_19, %c0_20], %17 {strides = array<i32>} : memref<2x18x18x4xf32, #tpu.memory_space<vmem>>, vector<1x16x16x4xf32>,
    %cst_21 = arith.constant 0.000000e+00 : f32
    %18 = vector.broadcast %cst_21 : f32 to vector<256x8xf32>
    %c0_22 = arith.constant 0 : index
    %c0_23 = arith.constant 0 : index
    %c0_24 = arith.constant 0 : index
    %c0_25 = arith.constant 0 : index
    %19 = vector.load %arg8[%c0_22, %c0_23, %c0_24, %c0_25] : memref<2x18x18x4xf32, #tpu.memory_space<vmem>>, vector<1x16x16x4xf32>
    %20 = vector.shape_cast %19 : vector<1x16x16x4xf32> to vector<16x16x4xf32>
    %21 = vector.shape_cast %20 : vector<16x16x4xf32> to vector<256x4xf32>
    %c0_26 = arith.constant 0 : index
    %c0_27 = arith.constant 0 : index
    %c0_28 = arith.constant 0 : index
    %22 = vector.load %arg1[%c0_26, %c0_27, %c0_28] : memref<9x4x8xf32, #tpu.memory_space<vmem>>, vector<1x4x8xf32>
    %23 = vector.shape_cast %22 : vector<1x4x8xf32> to vector<4x8xf32>
    %cst_29 = arith.constant dense<0.000000e+00> : vector<256x8xf32>
    %24 = tpu.matmul %21, %23, %cst_29 {dimension_numbers = #tpu.dot_dimension_numbers<[1], [0], [0], [1], [0, 0, 1, 1], [], []>} : vector<256x4xf32>, vector<4x8xf32>, vector<256x8xf32> -> vector<256x8xf32>
    %25 = arith.addf %18, %24 : vector<256x8xf32>
    %c0_30 = arith.constant 0 : index
    %c0_31 = arith.constant 0 : index
    %c1_32 = arith.constant 1 : index
    %c0_33 = arith.constant 0 : index
    %26 = vector.load %arg8[%c0_30, %c0_31, %c1_32, %c0_33] : memref<2x18x18x4xf32, #tpu.memory_space<vmem>>, vector<1x16x16x4xf32>
    %27 = vector.shape_cast %26 : vector<1x16x16x4xf32> to vector<16x16x4xf32>
    %28 = vector.shape_cast %27 : vector<16x16x4xf32> to vector<256x4xf32>
    %c1_34 = arith.constant 1 : index
    %c0_35 = arith.constant 0 : index
    %c0_36 = arith.constant 0 : index
    %29 = vector.load %arg1[%c1_34, %c0_35, %c0_36] : memref<9x4x8xf32, #tpu.memory_space<vmem>>, vector<1x4x8xf32>
    %30 = vector.shape_cast %29 : vector<1x4x8xf32> to vector<4x8xf32>
    %cst_37 = arith.constant dense<0.000000e+00> : vector<256x8xf32>
    %31 = tpu.matmul %28, %30, %cst_37 {dimension_numbers = #tpu.dot_dimension_numbers<[1], [0], [0], [1], [0, 0, 1, 1], [], []>} : vector<256x4xf32>, vector<4x8xf32>, vector<256x8xf32> -> vector<256x8xf32>
    %32 = arith.addf %25, %31 : vector<256x8xf32>
    %c0_38 = arith.constant 0 : index
    %c0_39 = arith.constant 0 : index
    %c2 = arith.constant 2 : index
    %c0_40 = arith.constant 0 : index
    %33 = vector.load %arg8[%c0_38, %c0_39, %c2, %c0_40] : memref<2x18x18x4xf32, #tpu.memory_space<vmem>>, vector<1x16x16x4xf32>
    %34 = vector.shape_cast %33 : vector<1x16x16x4xf32> to vector<16x16x4xf32>
    %35 = vector.shape_cast %34 : vector<16x16x4xf32> to vector<256x4xf32>
    %c2_41 = arith.constant 2 : index
    %c0_42 = arith.constant 0 : index
    %c0_43 = arith.constant 0 : index
    %36 = vector.load %arg1[%c2_41, %c0_42, %c0_43] : memref<9x4x8xf32, #tpu.memory_space<vmem>>, vector<1x4x8xf32>
    %37 = vector.shape_cast %36 : vector<1x4x8xf32> to vector<4x8xf32>
    %cst_44 = arith.constant dense<0.000000e+00> : vector<256x8xf32>
    %38 = tpu.matmul %35, %37, %cst_44 {dimension_numbers = #tpu.dot_dimension_numbers<[1], [0], [0], [1], [0, 0, 1, 1], [], []>} : vector<256x4xf32>, vector<4x8xf32>, vector<256x8xf32> -> vector<256x8xf32>
    %39 = arith.addf %32, %38 : vector<256x8xf32>
    %c0_45 = arith.constant 0 : index
    %c1_46 = arith.constant 1 : index
    %c0_47 = arith.constant 0 : index
    %c0_48 = arith.constant 0 : index
    %40 = vector.load %arg8[%c0_45, %c1_46, %c0_47, %c0_48] : memref<2x18x18x4xf32, #tpu.memory_space<vmem>>, vector<1x16x16x4xf32>
    %41 = vector.shape_cast %40 : vector<1x16x16x4xf32> to vector<16x16x4xf32>
    %42 = vector.shape_cast %41 : vector<16x16x4xf32> to vector<256x4xf32>
    %c3 = arith.constant 3 : index
    %c0_49 = arith.constant 0 : index
    %c0_50 = arith.constant 0 : index
    %43 = vector.load %arg1[%c3, %c0_49, %c0_50] : memref<9x4x8xf32, #tpu.memory_space<vmem>>, vector<1x4x8xf32>
    %44 = vector.shape_cast %43 : vector<1x4x8xf32> to vector<4x8xf32>
    %cst_51 = arith.constant dense<0.000000e+00> : vector<256x8xf32>
    %45 = tpu.matmul %42, %44, %cst_51 {dimension_numbers = #tpu.dot_dimension_numbers<[1], [0], [0], [1], [0, 0, 1, 1], [], []>} : vector<256x4xf32>, vector<4x8xf32>, vector<256x8xf32> -> vector<256x8xf32>
    %46 = arith.addf %39, %45 : vector<256x8xf32>
    %c0_52 = arith.constant 0 : index
    %c1_53 = arith.constant 1 : index
    %c1_54 = arith.constant 1 : index
    %c0_55 = arith.constant 0 : index
    %47 = vector.load %arg8[%c0_52, %c1_53, %c1_54, %c0_55] : memref<2x18x18x4xf32, #tpu.memory_space<vmem>>, vector<1x16x16x4xf32>
    %48 = vector.shape_cast %47 : vector<1x16x16x4xf32> to vector<16x16x4xf32>
    %49 = vector.shape_cast %48 : vector<16x16x4xf32> to vector<256x4xf32>
    %c4 = arith.constant 4 : index
    %c0_56 = arith.constant 0 : index
    %c0_57 = arith.constant 0 : index
    %50 = vector.load %arg1[%c4, %c0_56, %c0_57] : memref<9x4x8xf32, #tpu.memory_space<vmem>>, vector<1x4x8xf32>
    %51 = vector.shape_cast %50 : vector<1x4x8xf32> to vector<4x8xf32>
    %cst_58 = arith.constant dense<0.000000e+00> : vector<256x8xf32>
    %52 = tpu.matmul %49, %51, %cst_58 {dimension_numbers = #tpu.dot_dimension_numbers<[1], [0], [0], [1], [0, 0, 1, 1], [], []>} : vector<256x4xf32>, vector<4x8xf32>, vector<256x8xf32> -> vector<256x8xf32>
    %53 = arith.addf %46, %52 : vector<256x8xf32>
    %c0_59 = arith.constant 0 : index
    %c1_60 = arith.constant 1 : index
    %c2_61 = arith.constant 2 : index
    %c0_62 = arith.constant 0 : index
    %54 = vector.load %arg8[%c0_59, %c1_60, %c2_61, %c0_62] : memref<2x18x18x4xf32, #tpu.memory_space<vmem>>, vector<1x16x16x4xf32>
    %55 = vector.shape_cast %54 : vector<1x16x16x4xf32> to vector<16x16x4xf32>
    %56 = vector.shape_cast %55 : vector<16x16x4xf32> to vector<256x4xf32>
    %c5 = arith.constant 5 : index
    %c0_63 = arith.constant 0 : index
    %c0_64 = arith.constant 0 : index
    %57 = vector.load %arg1[%c5, %c0_63, %c0_64] : memref<9x4x8xf32, #tpu.memory_space<vmem>>, vector<1x4x8xf32>
    %58 = vector.shape_cast %57 : vector<1x4x8xf32> to vector<4x8xf32>
    %cst_65 = arith.constant dense<0.000000e+00> : vector<256x8xf32>
    %59 = tpu.matmul %56, %58, %cst_65 {dimension_numbers = #tpu.dot_dimension_numbers<[1], [0], [0], [1], [0, 0, 1, 1], [], []>} : vector<256x4xf32>, vector<4x8xf32>, vector<256x8xf32> -> vector<256x8xf32>
    %60 = arith.addf %53, %59 : vector<256x8xf32>
    %c0_66 = arith.constant 0 : index
    %c2_67 = arith.constant 2 : index
    %c0_68 = arith.constant 0 : index
    %c0_69 = arith.constant 0 : index
    %61 = vector.load %arg8[%c0_66, %c2_67, %c0_68, %c0_69] : memref<2x18x18x4xf32, #tpu.memory_space<vmem>>, vector<1x16x16x4xf32>
    %62 = vector.shape_cast %61 : vector<1x16x16x4xf32> to vector<16x16x4xf32>
    %63 = vector.shape_cast %62 : vector<16x16x4xf32> to vector<256x4xf32>
    %c6 = arith.constant 6 : index
    %c0_70 = arith.constant 0 : index
    %c0_71 = arith.constant 0 : index
    %64 = vector.load %arg1[%c6, %c0_70, %c0_71] : memref<9x4x8xf32, #tpu.memory_space<vmem>>, vector<1x4x8xf32>
    %65 = vector.shape_cast %64 : vector<1x4x8xf32> to vector<4x8xf32>
    %cst_72 = arith.constant dense<0.000000e+00> : vector<256x8xf32>
    %66 = tpu.matmul %63, %65, %cst_72 {dimension_numbers = #tpu.dot_dimension_numbers<[1], [0], [0], [1], [0, 0, 1, 1], [], []>} : vector<256x4xf32>, vector<4x8xf32>, vector<256x8xf32> -> vector<256x8xf32>
    %67 = arith.addf %60, %66 : vector<256x8xf32>
    %c0_73 = arith.constant 0 : index
    %c2_74 = arith.constant 2 : index
    %c1_75 = arith.constant 1 : index
    %c0_76 = arith.constant 0 : index
    %68 = vector.load %arg8[%c0_73, %c2_74, %c1_75, %c0_76] : memref<2x18x18x4xf32, #tpu.memory_space<vmem>>, vector<1x16x16x4xf32>
    %69 = vector.shape_cast %68 : vector<1x16x16x4xf32> to vector<16x16x4xf32>
    %70 = vector.shape_cast %69 : vector<16x16x4xf32> to vector<256x4xf32>
    %c7 = arith.constant 7 : index
    %c0_77 = arith.constant 0 : index
    %c0_78 = arith.constant 0 : index
    %71 = vector.load %arg1[%c7, %c0_77, %c0_78] : memref<9x4x8xf32, #tpu.memory_space<vmem>>, vector<1x4x8xf32>
    %72 = vector.shape_cast %71 : vector<1x4x8xf32> to vector<4x8xf32>
    %cst_79 = arith.constant dense<0.000000e+00> : vector<256x8xf32>
    %73 = tpu.matmul %70, %72, %cst_79 {dimension_numbers = #tpu.dot_dimension_numbers<[1], [0], [0], [1], [0, 0, 1, 1], [], []>} : vector<256x4xf32>, vector<4x8xf32>, vector<256x8xf32> -> vector<256x8xf32>
    %74 = arith.addf %67, %73 : vector<256x8xf32>
    %c0_80 = arith.constant 0 : index
    %c2_81 = arith.constant 2 : index
    %c2_82 = arith.constant 2 : index
    %c0_83 = arith.constant 0 : index
    %75 = vector.load %arg8[%c0_80, %c2_81, %c2_82, %c0_83] : memref<2x18x18x4xf32, #tpu.memory_space<vmem>>, vector<1x16x16x4xf32>
    %76 = vector.shape_cast %75 : vector<1x16x16x4xf32> to vector<16x16x4xf32>
    %77 = vector.shape_cast %76 : vector<16x16x4xf32> to vector<256x4xf32>
    %c8 = arith.constant 8 : index
    %c0_84 = arith.constant 0 : index
    %c0_85 = arith.constant 0 : index
    %78 = vector.load %arg1[%c8, %c0_84, %c0_85] : memref<9x4x8xf32, #tpu.memory_space<vmem>>, vector<1x4x8xf32>
    %79 = vector.shape_cast %78 : vector<1x4x8xf32> to vector<4x8xf32>
    %cst_86 = arith.constant dense<0.000000e+00> : vector<256x8xf32>
    %80 = tpu.matmul %77, %79, %cst_86 {dimension_numbers = #tpu.dot_dimension_numbers<[1], [0], [0], [1], [0, 0, 1, 1], [], []>} : vector<256x4xf32>, vector<4x8xf32>, vector<256x8xf32> -> vector<256x8xf32>
    %81 = arith.addf %74, %80 : vector<256x8xf32>
    %c0_87 = arith.constant 0 : index
    %c0_88 = arith.constant 0 : index
    %82 = vector.load %arg2[%c0_87, %c0_88] : memref<1x8xf32, #tpu.memory_space<vmem>>, vector<1x8xf32>
    %83 = vector.broadcast %82 : vector<1x8xf32> to vector<256x8xf32>
    %84 = arith.addf %81, %83 : vector<256x8xf32>
    %cst_89 = arith.constant 0.000000e+00 : f32
    %85 = vector.broadcast %cst_89 : f32 to vector<256x8xf32>
    %c1_90 = arith.constant 1 : index
    %c0_91 = arith.constant 0 : index
    %c0_92 = arith.constant 0 : index
    %c0_93 = arith.constant 0 : index
    %86 = vector.load %arg8[%c1_90, %c0_91, %c0_92, %c0_93] : memref<2x18x18x4xf32, #tpu.memory_space<vmem>>, vector<1x16x16x4xf32>
    %87 = vector.shape_cast %86 : vector<1x16x16x4xf32> to vector<16x16x4xf32>
    %88 = vector.shape_cast %87 : vector<16x16x4xf32> to vector<256x4xf32>
    %c0_94 = arith.constant 0 : index
    %c0_95 = arith.constant 0 : index
    %c0_96 = arith.constant 0 : index
    %89 = vector.load %arg1[%c0_94, %c0_95, %c0_96] : memref<9x4x8xf32, #tpu.memory_space<vmem>>, vector<1x4x8xf32>
    %90 = vector.shape_cast %89 : vector<1x4x8xf32> to vector<4x8xf32>
    %cst_97 = arith.constant dense<0.000000e+00> : vector<256x8xf32>
    %91 = tpu.matmul %88, %90, %cst_97 {dimension_numbers = #tpu.dot_dimension_numbers<[1], [0], [0], [1], [0, 0, 1, 1], [], []>} : vector<256x4xf32>, vector<4x8xf32>, vector<256x8xf32> -> vector<256x8xf32>
    %92 = arith.addf %85, %91 : vector<256x8xf32>
    %c1_98 = arith.constant 1 : index
    %c0_99 = arith.constant 0 : index
    %c1_100 = arith.constant 1 : index
    %c0_101 = arith.constant 0 : index
    %93 = vector.load %arg8[%c1_98, %c0_99, %c1_100, %c0_101] : memref<2x18x18x4xf32, #tpu.memory_space<vmem>>, vector<1x16x16x4xf32>
    %94 = vector.shape_cast %93 : vector<1x16x16x4xf32> to vector<16x16x4xf32>
    %95 = vector.shape_cast %94 : vector<16x16x4xf32> to vector<256x4xf32>
    %c1_102 = arith.constant 1 : index
    %c0_103 = arith.constant 0 : index
    %c0_104 = arith.constant 0 : index
    %96 = vector.load %arg1[%c1_102, %c0_103, %c0_104] : memref<9x4x8xf32, #tpu.memory_space<vmem>>, vector<1x4x8xf32>
    %97 = vector.shape_cast %96 : vector<1x4x8xf32> to vector<4x8xf32>
    %cst_105 = arith.constant dense<0.000000e+00> : vector<256x8xf32>
    %98 = tpu.matmul %95, %97, %cst_105 {dimension_numbers = #tpu.dot_dimension_numbers<[1], [0], [0], [1], [0, 0, 1, 1], [], []>} : vector<256x4xf32>, vector<4x8xf32>, vector<256x8xf32> -> vector<256x8xf32>
    %99 = arith.addf %92, %98 : vector<256x8xf32>
    %c1_106 = arith.constant 1 : index
    %c0_107 = arith.constant 0 : index
    %c2_108 = arith.constant 2 : index
    %c0_109 = arith.constant 0 : index
    %100 = vector.load %arg8[%c1_106, %c0_107, %c2_108, %c0_109] : memref<2x18x18x4xf32, #tpu.memory_space<vmem>>, vector<1x16x16x4xf32>
    %101 = vector.shape_cast %100 : vector<1x16x16x4xf32> to vector<16x16x4xf32>
    %102 = vector.shape_cast %101 : vector<16x16x4xf32> to vector<256x4xf32>
    %c2_110 = arith.constant 2 : index
    %c0_111 = arith.constant 0 : index
    %c0_112 = arith.constant 0 : index
    %103 = vector.load %arg1[%c2_110, %c0_111, %c0_112] : memref<9x4x8xf32, #tpu.memory_space<vmem>>, vector<1x4x8xf32>
    %104 = vector.shape_cast %103 : vector<1x4x8xf32> to vector<4x8xf32>
    %cst_113 = arith.constant dense<0.000000e+00> : vector<256x8xf32>
    %105 = tpu.matmul %102, %104, %cst_113 {dimension_numbers = #tpu.dot_dimension_numbers<[1], [0], [0], [1], [0, 0, 1, 1], [], []>} : vector<256x4xf32>, vector<4x8xf32>, vector<256x8xf32> -> vector<256x8xf32>
    %106 = arith.addf %99, %105 : vector<256x8xf32>
    %c1_114 = arith.constant 1 : index
    %c1_115 = arith.constant 1 : index
    %c0_116 = arith.constant 0 : index
    %c0_117 = arith.constant 0 : index
    %107 = vector.load %arg8[%c1_114, %c1_115, %c0_116, %c0_117] : memref<2x18x18x4xf32, #tpu.memory_space<vmem>>, vector<1x16x16x4xf32>
    %108 = vector.shape_cast %107 : vector<1x16x16x4xf32> to vector<16x16x4xf32>
    %109 = vector.shape_cast %108 : vector<16x16x4xf32> to vector<256x4xf32>
    %c3_118 = arith.constant 3 : index
    %c0_119 = arith.constant 0 : index
    %c0_120 = arith.constant 0 : index
    %110 = vector.load %arg1[%c3_118, %c0_119, %c0_120] : memref<9x4x8xf32, #tpu.memory_space<vmem>>, vector<1x4x8xf32>
    %111 = vector.shape_cast %110 : vector<1x4x8xf32> to vector<4x8xf32>
    %cst_121 = arith.constant dense<0.000000e+00> : vector<256x8xf32>
    %112 = tpu.matmul %109, %111, %cst_121 {dimension_numbers = #tpu.dot_dimension_numbers<[1], [0], [0], [1], [0, 0, 1, 1], [], []>} : vector<256x4xf32>, vector<4x8xf32>, vector<256x8xf32> -> vector<256x8xf32>
    %113 = arith.addf %106, %112 : vector<256x8xf32>
    %c1_122 = arith.constant 1 : index
    %c1_123 = arith.constant 1 : index
    %c1_124 = arith.constant 1 : index
    %c0_125 = arith.constant 0 : index
    %114 = vector.load %arg8[%c1_122, %c1_123, %c1_124, %c0_125] : memref<2x18x18x4xf32, #tpu.memory_space<vmem>>, vector<1x16x16x4xf32>
    %115 = vector.shape_cast %114 : vector<1x16x16x4xf32> to vector<16x16x4xf32>
    %116 = vector.shape_cast %115 : vector<16x16x4xf32> to vector<256x4xf32>
    %c4_126 = arith.constant 4 : index
    %c0_127 = arith.constant 0 : index
    %c0_128 = arith.constant 0 : index
    %117 = vector.load %arg1[%c4_126, %c0_127, %c0_128] : memref<9x4x8xf32, #tpu.memory_space<vmem>>, vector<1x4x8xf32>
    %118 = vector.shape_cast %117 : vector<1x4x8xf32> to vector<4x8xf32>
    %cst_129 = arith.constant dense<0.000000e+00> : vector<256x8xf32>
    %119 = tpu.matmul %116, %118, %cst_129 {dimension_numbers = #tpu.dot_dimension_numbers<[1], [0], [0], [1], [0, 0, 1, 1], [], []>} : vector<256x4xf32>, vector<4x8xf32>, vector<256x8xf32> -> vector<256x8xf32>
    %120 = arith.addf %113, %119 : vector<256x8xf32>
    %c1_130 = arith.constant 1 : index
    %c1_131 = arith.constant 1 : index
    %c2_132 = arith.constant 2 : index
    %c0_133 = arith.constant 0 : index
    %121 = vector.load %arg8[%c1_130, %c1_131, %c2_132, %c0_133] : memref<2x18x18x4xf32, #tpu.memory_space<vmem>>, vector<1x16x16x4xf32>
    %122 = vector.shape_cast %121 : vector<1x16x16x4xf32> to vector<16x16x4xf32>
    %123 = vector.shape_cast %122 : vector<16x16x4xf32> to vector<256x4xf32>
    %c5_134 = arith.constant 5 : index
    %c0_135 = arith.constant 0 : index
    %c0_136 = arith.constant 0 : index
    %124 = vector.load %arg1[%c5_134, %c0_135, %c0_136] : memref<9x4x8xf32, #tpu.memory_space<vmem>>, vector<1x4x8xf32>
    %125 = vector.shape_cast %124 : vector<1x4x8xf32> to vector<4x8xf32>
    %cst_137 = arith.constant dense<0.000000e+00> : vector<256x8xf32>
    %126 = tpu.matmul %123, %125, %cst_137 {dimension_numbers = #tpu.dot_dimension_numbers<[1], [0], [0], [1], [0, 0, 1, 1], [], []>} : vector<256x4xf32>, vector<4x8xf32>, vector<256x8xf32> -> vector<256x8xf32>
    %127 = arith.addf %120, %126 : vector<256x8xf32>
    %c1_138 = arith.constant 1 : index
    %c2_139 = arith.constant 2 : index
    %c0_140 = arith.constant 0 : index
    %c0_141 = arith.constant 0 : index
    %128 = vector.load %arg8[%c1_138, %c2_139, %c0_140, %c0_141] : memref<2x18x18x4xf32, #tpu.memory_space<vmem>>, vector<1x16x16x4xf32>
    %129 = vector.shape_cast %128 : vector<1x16x16x4xf32> to vector<16x16x4xf32>
    %130 = vector.shape_cast %129 : vector<16x16x4xf32> to vector<256x4xf32>
    %c6_142 = arith.constant 6 : index
    %c0_143 = arith.constant 0 : index
    %c0_144 = arith.constant 0 : index
    %131 = vector.load %arg1[%c6_142, %c0_143, %c0_144] : memref<9x4x8xf32, #tpu.memory_space<vmem>>, vector<1x4x8xf32>
    %132 = vector.shape_cast %131 : vector<1x4x8xf32> to vector<4x8xf32>
    %cst_145 = arith.constant dense<0.000000e+00> : vector<256x8xf32>
    %133 = tpu.matmul %130, %132, %cst_145 {dimension_numbers = #tpu.dot_dimension_numbers<[1], [0], [0], [1], [0, 0, 1, 1], [], []>} : vector<256x4xf32>, vector<4x8xf32>, vector<256x8xf32> -> vector<256x8xf32>
    %134 = arith.addf %127, %133 : vector<256x8xf32>
    %c1_146 = arith.constant 1 : index
    %c2_147 = arith.constant 2 : index
    %c1_148 = arith.constant 1 : index
    %c0_149 = arith.constant 0 : index
    %135 = vector.load %arg8[%c1_146, %c2_147, %c1_148, %c0_149] : memref<2x18x18x4xf32, #tpu.memory_space<vmem>>, vector<1x16x16x4xf32>
    %136 = vector.shape_cast %135 : vector<1x16x16x4xf32> to vector<16x16x4xf32>
    %137 = vector.shape_cast %136 : vector<16x16x4xf32> to vector<256x4xf32>
    %c7_150 = arith.constant 7 : index
    %c0_151 = arith.constant 0 : index
    %c0_152 = arith.constant 0 : index
    %138 = vector.load %arg1[%c7_150, %c0_151, %c0_152] : memref<9x4x8xf32, #tpu.memory_space<vmem>>, vector<1x4x8xf32>
    %139 = vector.shape_cast %138 : vector<1x4x8xf32> to vector<4x8xf32>
    %cst_153 = arith.constant dense<0.000000e+00> : vector<256x8xf32>
    %140 = tpu.matmul %137, %139, %cst_153 {dimension_numbers = #tpu.dot_dimension_numbers<[1], [0], [0], [1], [0, 0, 1, 1], [], []>} : vector<256x4xf32>, vector<4x8xf32>, vector<256x8xf32> -> vector<256x8xf32>
    %141 = arith.addf %134, %140 : vector<256x8xf32>
    %c1_154 = arith.constant 1 : index
    %c2_155 = arith.constant 2 : index
    %c2_156 = arith.constant 2 : index
    %c0_157 = arith.constant 0 : index
    %142 = vector.load %arg8[%c1_154, %c2_155, %c2_156, %c0_157] : memref<2x18x18x4xf32, #tpu.memory_space<vmem>>, vector<1x16x16x4xf32>
    %143 = vector.shape_cast %142 : vector<1x16x16x4xf32> to vector<16x16x4xf32>
    %144 = vector.shape_cast %143 : vector<16x16x4xf32> to vector<256x4xf32>
    %c8_158 = arith.constant 8 : index
    %c0_159 = arith.constant 0 : index
    %c0_160 = arith.constant 0 : index
    %145 = vector.load %arg1[%c8_158, %c0_159, %c0_160] : memref<9x4x8xf32, #tpu.memory_space<vmem>>, vector<1x4x8xf32>
    %146 = vector.shape_cast %145 : vector<1x4x8xf32> to vector<4x8xf32>
    %cst_161 = arith.constant dense<0.000000e+00> : vector<256x8xf32>
    %147 = tpu.matmul %144, %146, %cst_161 {dimension_numbers = #tpu.dot_dimension_numbers<[1], [0], [0], [1], [0, 0, 1, 1], [], []>} : vector<256x4xf32>, vector<4x8xf32>, vector<256x8xf32> -> vector<256x8xf32>
    %148 = arith.addf %141, %147 : vector<256x8xf32>
    %c0_162 = arith.constant 0 : index
    %c0_163 = arith.constant 0 : index
    %149 = vector.load %arg2[%c0_162, %c0_163] : memref<1x8xf32, #tpu.memory_space<vmem>>, vector<1x8xf32>
    %150 = vector.broadcast %149 : vector<1x8xf32> to vector<256x8xf32>
    %151 = arith.addf %148, %150 : vector<256x8xf32>
    %cst_164 = arith.constant dense<0.000000e+00> : vector<8xf32>
    %152 = vector.multi_reduction <add>, %84, %cst_164 [0] : vector<256x8xf32> to vector<8xf32>
    %153 = vector.shape_cast %152 : vector<8xf32> to vector<1x8xf32>
    %cst_165 = arith.constant 0.000000e+00 : f32
    %154 = vector.broadcast %cst_165 : f32 to vector<1x8xf32>
    %155 = arith.addf %154, %153 : vector<1x8xf32>
    %cst_166 = arith.constant dense<0.000000e+00> : vector<8xf32>
    %156 = vector.multi_reduction <add>, %151, %cst_166 [0] : vector<256x8xf32> to vector<8xf32>
    %157 = vector.shape_cast %156 : vector<8xf32> to vector<1x8xf32>
    %158 = arith.addf %155, %157 : vector<1x8xf32>
    %cst_167 = arith.constant 5.120000e+02 : f32
    %159 = vector.broadcast %cst_167 : f32 to vector<1x8xf32>
    %160 = arith.divf %158, %159 : vector<1x8xf32>
    %161 = vector.broadcast %160 : vector<1x8xf32> to vector<256x8xf32>
    %162 = arith.subf %84, %161 : vector<256x8xf32>
    %163 = arith.mulf %162, %162 : vector<256x8xf32>
    %cst_168 = arith.constant dense<0.000000e+00> : vector<8xf32>
    %164 = vector.multi_reduction <add>, %163, %cst_168 [0] : vector<256x8xf32> to vector<8xf32>
    %165 = vector.shape_cast %164 : vector<8xf32> to vector<1x8xf32>
    %cst_169 = arith.constant 0.000000e+00 : f32
    %166 = vector.broadcast %cst_169 : f32 to vector<1x8xf32>
    %167 = arith.addf %166, %165 : vector<1x8xf32>
    %168 = vector.broadcast %160 : vector<1x8xf32> to vector<256x8xf32>
    %169 = arith.subf %151, %168 : vector<256x8xf32>
    %170 = arith.mulf %169, %169 : vector<256x8xf32>
    %cst_170 = arith.constant dense<0.000000e+00> : vector<8xf32>
    %171 = vector.multi_reduction <add>, %170, %cst_170 [0] : vector<256x8xf32> to vector<8xf32>
    %172 = vector.shape_cast %171 : vector<8xf32> to vector<1x8xf32>
    %173 = arith.addf %167, %172 : vector<1x8xf32>
    %cst_171 = arith.constant 5.120000e+02 : f32
    %174 = vector.broadcast %cst_171 : f32 to vector<1x8xf32>
    %175 = arith.divf %173, %174 : vector<1x8xf32>
    %cst_172 = arith.constant 9.99999974E-6 : f32
    %176 = vector.broadcast %cst_172 : f32 to vector<1x8xf32>
    %177 = arith.addf %175, %176 : vector<1x8xf32>
    %178 = math.rsqrt %177 : vector<1x8xf32>
    %c0_173 = arith.constant 0 : index
    %c0_174 = arith.constant 0 : index
    %179 = vector.load %arg3[%c0_173, %c0_174] : memref<1x8xf32, #tpu.memory_space<vmem>>, vector<1x8xf32>
    %180 = arith.mulf %178, %179 : vector<1x8xf32>
    %181 = vector.broadcast %160 : vector<1x8xf32> to vector<256x8xf32>
    %182 = arith.subf %84, %181 : vector<256x8xf32>
    %183 = vector.broadcast %180 : vector<1x8xf32> to vector<256x8xf32>
    %184 = arith.mulf %182, %183 : vector<256x8xf32>
    %c0_175 = arith.constant 0 : index
    %c0_176 = arith.constant 0 : index
    %185 = vector.load %arg4[%c0_175, %c0_176] : memref<1x8xf32, #tpu.memory_space<vmem>>, vector<1x8xf32>
    %186 = vector.broadcast %185 : vector<1x8xf32> to vector<256x8xf32>
    %187 = arith.addf %184, %186 : vector<256x8xf32>
    %cst_177 = arith.constant 0.000000e+00 : f32
    %188 = vector.broadcast %cst_177 : f32 to vector<256x8xf32>
    %189 = arith.cmpf oge, %187, %188 : vector<256x8xf32>
    %cst_178 = arith.constant 2.000000e-01 : f32
    %190 = vector.broadcast %cst_178 : f32 to vector<256x8xf32>
    %191 = arith.mulf %190, %187 : vector<256x8xf32>
    %192 = arith.select %189, %187, %191 : vector<256x8xi1>, vector<256x8xf32>
    %193 = vector.shape_cast %192 : vector<256x8xf32> to vector<16x16x8xf32>
    %c0_179 = arith.constant 0 : index
    %c1_180 = arith.constant 1 : index
    %c1_181 = arith.constant 1 : index
    %c0_182 = arith.constant 0 : index
    %194 = vector.load %arg9[%c0_179, %c1_180, %c1_181, %c0_182] : memref<2x18x18x8xf32, #tpu.memory_space<vmem>>, vector<1x16x16x8xf32>
    %195 = vector.shape_cast %194 : vector<1x16x16x8xf32> to vector<16x16x8xf32>
    %196 = vector.shape_cast %193 : vector<16x16x8xf32> to vector<1x16x16x8xf32>
    tpu.vector_store %arg9[%c0_179, %c1_180, %c1_181, %c0_182], %196 {strides = array<i32>} : memref<2x18x18x8xf32, #tpu.memory_space<vmem>>, vector<1x16x16x8xf32>,
    %197 = vector.broadcast %160 : vector<1x8xf32> to vector<256x8xf32>
    %198 = arith.subf %151, %197 : vector<256x8xf32>
    %199 = vector.broadcast %180 : vector<1x8xf32> to vector<256x8xf32>
    %200 = arith.mulf %198, %199 : vector<256x8xf32>
    %c0_183 = arith.constant 0 : index
    %c0_184 = arith.constant 0 : index
    %201 = vector.load %arg4[%c0_183, %c0_184] : memref<1x8xf32, #tpu.memory_space<vmem>>, vector<1x8xf32>
    %202 = vector.broadcast %201 : vector<1x8xf32> to vector<256x8xf32>
    %203 = arith.addf %200, %202 : vector<256x8xf32>
    %cst_185 = arith.constant 0.000000e+00 : f32
    %204 = vector.broadcast %cst_185 : f32 to vector<256x8xf32>
    %205 = arith.cmpf oge, %203, %204 : vector<256x8xf32>
    %cst_186 = arith.constant 2.000000e-01 : f32
    %206 = vector.broadcast %cst_186 : f32 to vector<256x8xf32>
    %207 = arith.mulf %206, %203 : vector<256x8xf32>
    %208 = arith.select %205, %203, %207 : vector<256x8xi1>, vector<256x8xf32>
    %209 = vector.shape_cast %208 : vector<256x8xf32> to vector<16x16x8xf32>
    %c1_187 = arith.constant 1 : index
    %c1_188 = arith.constant 1 : index
    %c1_189 = arith.constant 1 : index
    %c0_190 = arith.constant 0 : index
    %210 = vector.load %arg9[%c1_187, %c1_188, %c1_189, %c0_190] : memref<2x18x18x8xf32, #tpu.memory_space<vmem>>, vector<1x16x16x8xf32>
    %211 = vector.shape_cast %210 : vector<1x16x16x8xf32> to vector<16x16x8xf32>
    %212 = vector.shape_cast %209 : vector<16x16x8xf32> to vector<1x16x16x8xf32>
    tpu.vector_store %arg9[%c1_187, %c1_188, %c1_189, %c0_190], %212 {strides = array<i32>} : memref<2x18x18x8xf32, #tpu.memory_space<vmem>>, vector<1x16x16x8xf32>,
    %cst_191 = arith.constant 0.000000e+00 : f32
    %213 = vector.broadcast %cst_191 : f32 to vector<256x8xf32>
    %c0_192 = arith.constant 0 : index
    %c0_193 = arith.constant 0 : index
    %c0_194 = arith.constant 0 : index
    %c0_195 = arith.constant 0 : index
    %214 = vector.load %arg9[%c0_192, %c0_193, %c0_194, %c0_195] : memref<2x18x18x8xf32, #tpu.memory_space<vmem>>, vector<1x16x16x8xf32>
    %215 = vector.shape_cast %214 : vector<1x16x16x8xf32> to vector<16x16x8xf32>
    %216 = vector.shape_cast %215 : vector<16x16x8xf32> to vector<256x8xf32>
    %c0_196 = arith.constant 0 : index
    %c0_197 = arith.constant 0 : index
    %c0_198 = arith.constant 0 : index
    %217 = vector.load %arg5[%c0_196, %c0_197, %c0_198] : memref<9x8x8xf32, #tpu.memory_space<vmem>>, vector<1x8x8xf32>
    %218 = vector.shape_cast %217 : vector<1x8x8xf32> to vector<8x8xf32>
    %cst_199 = arith.constant dense<0.000000e+00> : vector<256x8xf32>
    %219 = tpu.matmul %216, %218, %cst_199 {dimension_numbers = #tpu.dot_dimension_numbers<[1], [0], [0], [1], [0, 0, 1, 1], [], []>} : vector<256x8xf32>, vector<8x8xf32>, vector<256x8xf32> -> vector<256x8xf32>
    %220 = arith.addf %213, %219 : vector<256x8xf32>
    %c0_200 = arith.constant 0 : index
    %c0_201 = arith.constant 0 : index
    %c1_202 = arith.constant 1 : index
    %c0_203 = arith.constant 0 : index
    %221 = vector.load %arg9[%c0_200, %c0_201, %c1_202, %c0_203] : memref<2x18x18x8xf32, #tpu.memory_space<vmem>>, vector<1x16x16x8xf32>
    %222 = vector.shape_cast %221 : vector<1x16x16x8xf32> to vector<16x16x8xf32>
    %223 = vector.shape_cast %222 : vector<16x16x8xf32> to vector<256x8xf32>
    %c1_204 = arith.constant 1 : index
    %c0_205 = arith.constant 0 : index
    %c0_206 = arith.constant 0 : index
    %224 = vector.load %arg5[%c1_204, %c0_205, %c0_206] : memref<9x8x8xf32, #tpu.memory_space<vmem>>, vector<1x8x8xf32>
    %225 = vector.shape_cast %224 : vector<1x8x8xf32> to vector<8x8xf32>
    %cst_207 = arith.constant dense<0.000000e+00> : vector<256x8xf32>
    %226 = tpu.matmul %223, %225, %cst_207 {dimension_numbers = #tpu.dot_dimension_numbers<[1], [0], [0], [1], [0, 0, 1, 1], [], []>} : vector<256x8xf32>, vector<8x8xf32>, vector<256x8xf32> -> vector<256x8xf32>
    %227 = arith.addf %220, %226 : vector<256x8xf32>
    %c0_208 = arith.constant 0 : index
    %c0_209 = arith.constant 0 : index
    %c2_210 = arith.constant 2 : index
    %c0_211 = arith.constant 0 : index
    %228 = vector.load %arg9[%c0_208, %c0_209, %c2_210, %c0_211] : memref<2x18x18x8xf32, #tpu.memory_space<vmem>>, vector<1x16x16x8xf32>
    %229 = vector.shape_cast %228 : vector<1x16x16x8xf32> to vector<16x16x8xf32>
    %230 = vector.shape_cast %229 : vector<16x16x8xf32> to vector<256x8xf32>
    %c2_212 = arith.constant 2 : index
    %c0_213 = arith.constant 0 : index
    %c0_214 = arith.constant 0 : index
    %231 = vector.load %arg5[%c2_212, %c0_213, %c0_214] : memref<9x8x8xf32, #tpu.memory_space<vmem>>, vector<1x8x8xf32>
    %232 = vector.shape_cast %231 : vector<1x8x8xf32> to vector<8x8xf32>
    %cst_215 = arith.constant dense<0.000000e+00> : vector<256x8xf32>
    %233 = tpu.matmul %230, %232, %cst_215 {dimension_numbers = #tpu.dot_dimension_numbers<[1], [0], [0], [1], [0, 0, 1, 1], [], []>} : vector<256x8xf32>, vector<8x8xf32>, vector<256x8xf32> -> vector<256x8xf32>
    %234 = arith.addf %227, %233 : vector<256x8xf32>
    %c0_216 = arith.constant 0 : index
    %c1_217 = arith.constant 1 : index
    %c0_218 = arith.constant 0 : index
    %c0_219 = arith.constant 0 : index
    %235 = vector.load %arg9[%c0_216, %c1_217, %c0_218, %c0_219] : memref<2x18x18x8xf32, #tpu.memory_space<vmem>>, vector<1x16x16x8xf32>
    %236 = vector.shape_cast %235 : vector<1x16x16x8xf32> to vector<16x16x8xf32>
    %237 = vector.shape_cast %236 : vector<16x16x8xf32> to vector<256x8xf32>
    %c3_220 = arith.constant 3 : index
    %c0_221 = arith.constant 0 : index
    %c0_222 = arith.constant 0 : index
    %238 = vector.load %arg5[%c3_220, %c0_221, %c0_222] : memref<9x8x8xf32, #tpu.memory_space<vmem>>, vector<1x8x8xf32>
    %239 = vector.shape_cast %238 : vector<1x8x8xf32> to vector<8x8xf32>
    %cst_223 = arith.constant dense<0.000000e+00> : vector<256x8xf32>
    %240 = tpu.matmul %237, %239, %cst_223 {dimension_numbers = #tpu.dot_dimension_numbers<[1], [0], [0], [1], [0, 0, 1, 1], [], []>} : vector<256x8xf32>, vector<8x8xf32>, vector<256x8xf32> -> vector<256x8xf32>
    %241 = arith.addf %234, %240 : vector<256x8xf32>
    %c0_224 = arith.constant 0 : index
    %c1_225 = arith.constant 1 : index
    %c1_226 = arith.constant 1 : index
    %c0_227 = arith.constant 0 : index
    %242 = vector.load %arg9[%c0_224, %c1_225, %c1_226, %c0_227] : memref<2x18x18x8xf32, #tpu.memory_space<vmem>>, vector<1x16x16x8xf32>
    %243 = vector.shape_cast %242 : vector<1x16x16x8xf32> to vector<16x16x8xf32>
    %244 = vector.shape_cast %243 : vector<16x16x8xf32> to vector<256x8xf32>
    %c4_228 = arith.constant 4 : index
    %c0_229 = arith.constant 0 : index
    %c0_230 = arith.constant 0 : index
    %245 = vector.load %arg5[%c4_228, %c0_229, %c0_230] : memref<9x8x8xf32, #tpu.memory_space<vmem>>, vector<1x8x8xf32>
    %246 = vector.shape_cast %245 : vector<1x8x8xf32> to vector<8x8xf32>
    %cst_231 = arith.constant dense<0.000000e+00> : vector<256x8xf32>
    %247 = tpu.matmul %244, %246, %cst_231 {dimension_numbers = #tpu.dot_dimension_numbers<[1], [0], [0], [1], [0, 0, 1, 1], [], []>} : vector<256x8xf32>, vector<8x8xf32>, vector<256x8xf32> -> vector<256x8xf32>
    %248 = arith.addf %241, %247 : vector<256x8xf32>
    %c0_232 = arith.constant 0 : index
    %c1_233 = arith.constant 1 : index
    %c2_234 = arith.constant 2 : index
    %c0_235 = arith.constant 0 : index
    %249 = vector.load %arg9[%c0_232, %c1_233, %c2_234, %c0_235] : memref<2x18x18x8xf32, #tpu.memory_space<vmem>>, vector<1x16x16x8xf32>
    %250 = vector.shape_cast %249 : vector<1x16x16x8xf32> to vector<16x16x8xf32>
    %251 = vector.shape_cast %250 : vector<16x16x8xf32> to vector<256x8xf32>
    %c5_236 = arith.constant 5 : index
    %c0_237 = arith.constant 0 : index
    %c0_238 = arith.constant 0 : index
    %252 = vector.load %arg5[%c5_236, %c0_237, %c0_238] : memref<9x8x8xf32, #tpu.memory_space<vmem>>, vector<1x8x8xf32>
    %253 = vector.shape_cast %252 : vector<1x8x8xf32> to vector<8x8xf32>
    %cst_239 = arith.constant dense<0.000000e+00> : vector<256x8xf32>
    %254 = tpu.matmul %251, %253, %cst_239 {dimension_numbers = #tpu.dot_dimension_numbers<[1], [0], [0], [1], [0, 0, 1, 1], [], []>} : vector<256x8xf32>, vector<8x8xf32>, vector<256x8xf32> -> vector<256x8xf32>
    %255 = arith.addf %248, %254 : vector<256x8xf32>
    %c0_240 = arith.constant 0 : index
    %c2_241 = arith.constant 2 : index
    %c0_242 = arith.constant 0 : index
    %c0_243 = arith.constant 0 : index
    %256 = vector.load %arg9[%c0_240, %c2_241, %c0_242, %c0_243] : memref<2x18x18x8xf32, #tpu.memory_space<vmem>>, vector<1x16x16x8xf32>
    %257 = vector.shape_cast %256 : vector<1x16x16x8xf32> to vector<16x16x8xf32>
    %258 = vector.shape_cast %257 : vector<16x16x8xf32> to vector<256x8xf32>
    %c6_244 = arith.constant 6 : index
    %c0_245 = arith.constant 0 : index
    %c0_246 = arith.constant 0 : index
    %259 = vector.load %arg5[%c6_244, %c0_245, %c0_246] : memref<9x8x8xf32, #tpu.memory_space<vmem>>, vector<1x8x8xf32>
    %260 = vector.shape_cast %259 : vector<1x8x8xf32> to vector<8x8xf32>
    %cst_247 = arith.constant dense<0.000000e+00> : vector<256x8xf32>
    %261 = tpu.matmul %258, %260, %cst_247 {dimension_numbers = #tpu.dot_dimension_numbers<[1], [0], [0], [1], [0, 0, 1, 1], [], []>} : vector<256x8xf32>, vector<8x8xf32>, vector<256x8xf32> -> vector<256x8xf32>
    %262 = arith.addf %255, %261 : vector<256x8xf32>
    %c0_248 = arith.constant 0 : index
    %c2_249 = arith.constant 2 : index
    %c1_250 = arith.constant 1 : index
    %c0_251 = arith.constant 0 : index
    %263 = vector.load %arg9[%c0_248, %c2_249, %c1_250, %c0_251] : memref<2x18x18x8xf32, #tpu.memory_space<vmem>>, vector<1x16x16x8xf32>
    %264 = vector.shape_cast %263 : vector<1x16x16x8xf32> to vector<16x16x8xf32>
    %265 = vector.shape_cast %264 : vector<16x16x8xf32> to vector<256x8xf32>
    %c7_252 = arith.constant 7 : index
    %c0_253 = arith.constant 0 : index
    %c0_254 = arith.constant 0 : index
    %266 = vector.load %arg5[%c7_252, %c0_253, %c0_254] : memref<9x8x8xf32, #tpu.memory_space<vmem>>, vector<1x8x8xf32>
    %267 = vector.shape_cast %266 : vector<1x8x8xf32> to vector<8x8xf32>
    %cst_255 = arith.constant dense<0.000000e+00> : vector<256x8xf32>
    %268 = tpu.matmul %265, %267, %cst_255 {dimension_numbers = #tpu.dot_dimension_numbers<[1], [0], [0], [1], [0, 0, 1, 1], [], []>} : vector<256x8xf32>, vector<8x8xf32>, vector<256x8xf32> -> vector<256x8xf32>
    %269 = arith.addf %262, %268 : vector<256x8xf32>
    %c0_256 = arith.constant 0 : index
    %c2_257 = arith.constant 2 : index
    %c2_258 = arith.constant 2 : index
    %c0_259 = arith.constant 0 : index
    %270 = vector.load %arg9[%c0_256, %c2_257, %c2_258, %c0_259] : memref<2x18x18x8xf32, #tpu.memory_space<vmem>>, vector<1x16x16x8xf32>
    %271 = vector.shape_cast %270 : vector<1x16x16x8xf32> to vector<16x16x8xf32>
    %272 = vector.shape_cast %271 : vector<16x16x8xf32> to vector<256x8xf32>
    %c8_260 = arith.constant 8 : index
    %c0_261 = arith.constant 0 : index
    %c0_262 = arith.constant 0 : index
    %273 = vector.load %arg5[%c8_260, %c0_261, %c0_262] : memref<9x8x8xf32, #tpu.memory_space<vmem>>, vector<1x8x8xf32>
    %274 = vector.shape_cast %273 : vector<1x8x8xf32> to vector<8x8xf32>
    %cst_263 = arith.constant dense<0.000000e+00> : vector<256x8xf32>
    %275 = tpu.matmul %272, %274, %cst_263 {dimension_numbers = #tpu.dot_dimension_numbers<[1], [0], [0], [1], [0, 0, 1, 1], [], []>} : vector<256x8xf32>, vector<8x8xf32>, vector<256x8xf32> -> vector<256x8xf32>
    %276 = arith.addf %269, %275 : vector<256x8xf32>
    %c0_264 = arith.constant 0 : index
    %c0_265 = arith.constant 0 : index
    %277 = vector.load %arg6[%c0_264, %c0_265] : memref<1x8xf32, #tpu.memory_space<vmem>>, vector<1x8xf32>
    %278 = vector.broadcast %277 : vector<1x8xf32> to vector<256x8xf32>
    %279 = arith.addf %276, %278 : vector<256x8xf32>
    %cst_266 = arith.constant 0.000000e+00 : f32
    %280 = vector.broadcast %cst_266 : f32 to vector<256x8xf32>
    %281 = arith.cmpf oge, %279, %280 : vector<256x8xf32>
    %cst_267 = arith.constant 2.000000e-01 : f32
    %282 = vector.broadcast %cst_267 : f32 to vector<256x8xf32>
    %283 = arith.mulf %282, %279 : vector<256x8xf32>
    %284 = arith.select %281, %279, %283 : vector<256x8xi1>, vector<256x8xf32>
    %285 = tpu.transpose %284, [1, 0] : vector<256x8xf32> -> vector<8x256xf32>
    %c0_268 = arith.constant 0 : index
    %c0_269 = arith.constant 0 : index
    %c0_270 = arith.constant 0 : index
    %286 = vector.load %arg7[%c0_268, %c0_269, %c0_270] : memref<2x8x256xf32, #tpu.memory_space<vmem>>, vector<1x8x256xf32>
    %287 = vector.shape_cast %286 : vector<1x8x256xf32> to vector<8x256xf32>
    %288 = vector.shape_cast %285 : vector<8x256xf32> to vector<1x8x256xf32>
    tpu.vector_store %arg7[%c0_268, %c0_269, %c0_270], %288 {strides = array<i32>} : memref<2x8x256xf32, #tpu.memory_space<vmem>>, vector<1x8x256xf32>,
    %cst_271 = arith.constant 0.000000e+00 : f32
    %289 = vector.broadcast %cst_271 : f32 to vector<256x8xf32>
    %c1_272 = arith.constant 1 : index
    %c0_273 = arith.constant 0 : index
    %c0_274 = arith.constant 0 : index
    %c0_275 = arith.constant 0 : index
    %290 = vector.load %arg9[%c1_272, %c0_273, %c0_274, %c0_275] : memref<2x18x18x8xf32, #tpu.memory_space<vmem>>, vector<1x16x16x8xf32>
    %291 = vector.shape_cast %290 : vector<1x16x16x8xf32> to vector<16x16x8xf32>
    %292 = vector.shape_cast %291 : vector<16x16x8xf32> to vector<256x8xf32>
    %c0_276 = arith.constant 0 : index
    %c0_277 = arith.constant 0 : index
    %c0_278 = arith.constant 0 : index
    %293 = vector.load %arg5[%c0_276, %c0_277, %c0_278] : memref<9x8x8xf32, #tpu.memory_space<vmem>>, vector<1x8x8xf32>
    %294 = vector.shape_cast %293 : vector<1x8x8xf32> to vector<8x8xf32>
    %cst_279 = arith.constant dense<0.000000e+00> : vector<256x8xf32>
    %295 = tpu.matmul %292, %294, %cst_279 {dimension_numbers = #tpu.dot_dimension_numbers<[1], [0], [0], [1], [0, 0, 1, 1], [], []>} : vector<256x8xf32>, vector<8x8xf32>, vector<256x8xf32> -> vector<256x8xf32>
    %296 = arith.addf %289, %295 : vector<256x8xf32>
    %c1_280 = arith.constant 1 : index
    %c0_281 = arith.constant 0 : index
    %c1_282 = arith.constant 1 : index
    %c0_283 = arith.constant 0 : index
    %297 = vector.load %arg9[%c1_280, %c0_281, %c1_282, %c0_283] : memref<2x18x18x8xf32, #tpu.memory_space<vmem>>, vector<1x16x16x8xf32>
    %298 = vector.shape_cast %297 : vector<1x16x16x8xf32> to vector<16x16x8xf32>
    %299 = vector.shape_cast %298 : vector<16x16x8xf32> to vector<256x8xf32>
    %c1_284 = arith.constant 1 : index
    %c0_285 = arith.constant 0 : index
    %c0_286 = arith.constant 0 : index
    %300 = vector.load %arg5[%c1_284, %c0_285, %c0_286] : memref<9x8x8xf32, #tpu.memory_space<vmem>>, vector<1x8x8xf32>
    %301 = vector.shape_cast %300 : vector<1x8x8xf32> to vector<8x8xf32>
    %cst_287 = arith.constant dense<0.000000e+00> : vector<256x8xf32>
    %302 = tpu.matmul %299, %301, %cst_287 {dimension_numbers = #tpu.dot_dimension_numbers<[1], [0], [0], [1], [0, 0, 1, 1], [], []>} : vector<256x8xf32>, vector<8x8xf32>, vector<256x8xf32> -> vector<256x8xf32>
    %303 = arith.addf %296, %302 : vector<256x8xf32>
    %c1_288 = arith.constant 1 : index
    %c0_289 = arith.constant 0 : index
    %c2_290 = arith.constant 2 : index
    %c0_291 = arith.constant 0 : index
    %304 = vector.load %arg9[%c1_288, %c0_289, %c2_290, %c0_291] : memref<2x18x18x8xf32, #tpu.memory_space<vmem>>, vector<1x16x16x8xf32>
    %305 = vector.shape_cast %304 : vector<1x16x16x8xf32> to vector<16x16x8xf32>
    %306 = vector.shape_cast %305 : vector<16x16x8xf32> to vector<256x8xf32>
    %c2_292 = arith.constant 2 : index
    %c0_293 = arith.constant 0 : index
    %c0_294 = arith.constant 0 : index
    %307 = vector.load %arg5[%c2_292, %c0_293, %c0_294] : memref<9x8x8xf32, #tpu.memory_space<vmem>>, vector<1x8x8xf32>
    %308 = vector.shape_cast %307 : vector<1x8x8xf32> to vector<8x8xf32>
    %cst_295 = arith.constant dense<0.000000e+00> : vector<256x8xf32>
    %309 = tpu.matmul %306, %308, %cst_295 {dimension_numbers = #tpu.dot_dimension_numbers<[1], [0], [0], [1], [0, 0, 1, 1], [], []>} : vector<256x8xf32>, vector<8x8xf32>, vector<256x8xf32> -> vector<256x8xf32>
    %310 = arith.addf %303, %309 : vector<256x8xf32>
    %c1_296 = arith.constant 1 : index
    %c1_297 = arith.constant 1 : index
    %c0_298 = arith.constant 0 : index
    %c0_299 = arith.constant 0 : index
    %311 = vector.load %arg9[%c1_296, %c1_297, %c0_298, %c0_299] : memref<2x18x18x8xf32, #tpu.memory_space<vmem>>, vector<1x16x16x8xf32>
    %312 = vector.shape_cast %311 : vector<1x16x16x8xf32> to vector<16x16x8xf32>
    %313 = vector.shape_cast %312 : vector<16x16x8xf32> to vector<256x8xf32>
    %c3_300 = arith.constant 3 : index
    %c0_301 = arith.constant 0 : index
    %c0_302 = arith.constant 0 : index
    %314 = vector.load %arg5[%c3_300, %c0_301, %c0_302] : memref<9x8x8xf32, #tpu.memory_space<vmem>>, vector<1x8x8xf32>
    %315 = vector.shape_cast %314 : vector<1x8x8xf32> to vector<8x8xf32>
    %cst_303 = arith.constant dense<0.000000e+00> : vector<256x8xf32>
    %316 = tpu.matmul %313, %315, %cst_303 {dimension_numbers = #tpu.dot_dimension_numbers<[1], [0], [0], [1], [0, 0, 1, 1], [], []>} : vector<256x8xf32>, vector<8x8xf32>, vector<256x8xf32> -> vector<256x8xf32>
    %317 = arith.addf %310, %316 : vector<256x8xf32>
    %c1_304 = arith.constant 1 : index
    %c1_305 = arith.constant 1 : index
    %c1_306 = arith.constant 1 : index
    %c0_307 = arith.constant 0 : index
    %318 = vector.load %arg9[%c1_304, %c1_305, %c1_306, %c0_307] : memref<2x18x18x8xf32, #tpu.memory_space<vmem>>, vector<1x16x16x8xf32>
    %319 = vector.shape_cast %318 : vector<1x16x16x8xf32> to vector<16x16x8xf32>
    %320 = vector.shape_cast %319 : vector<16x16x8xf32> to vector<256x8xf32>
    %c4_308 = arith.constant 4 : index
    %c0_309 = arith.constant 0 : index
    %c0_310 = arith.constant 0 : index
    %321 = vector.load %arg5[%c4_308, %c0_309, %c0_310] : memref<9x8x8xf32, #tpu.memory_space<vmem>>, vector<1x8x8xf32>
    %322 = vector.shape_cast %321 : vector<1x8x8xf32> to vector<8x8xf32>
    %cst_311 = arith.constant dense<0.000000e+00> : vector<256x8xf32>
    %323 = tpu.matmul %320, %322, %cst_311 {dimension_numbers = #tpu.dot_dimension_numbers<[1], [0], [0], [1], [0, 0, 1, 1], [], []>} : vector<256x8xf32>, vector<8x8xf32>, vector<256x8xf32> -> vector<256x8xf32>
    %324 = arith.addf %317, %323 : vector<256x8xf32>
    %c1_312 = arith.constant 1 : index
    %c1_313 = arith.constant 1 : index
    %c2_314 = arith.constant 2 : index
    %c0_315 = arith.constant 0 : index
    %325 = vector.load %arg9[%c1_312, %c1_313, %c2_314, %c0_315] : memref<2x18x18x8xf32, #tpu.memory_space<vmem>>, vector<1x16x16x8xf32>
    %326 = vector.shape_cast %325 : vector<1x16x16x8xf32> to vector<16x16x8xf32>
    %327 = vector.shape_cast %326 : vector<16x16x8xf32> to vector<256x8xf32>
    %c5_316 = arith.constant 5 : index
    %c0_317 = arith.constant 0 : index
    %c0_318 = arith.constant 0 : index
    %328 = vector.load %arg5[%c5_316, %c0_317, %c0_318] : memref<9x8x8xf32, #tpu.memory_space<vmem>>, vector<1x8x8xf32>
    %329 = vector.shape_cast %328 : vector<1x8x8xf32> to vector<8x8xf32>
    %cst_319 = arith.constant dense<0.000000e+00> : vector<256x8xf32>
    %330 = tpu.matmul %327, %329, %cst_319 {dimension_numbers = #tpu.dot_dimension_numbers<[1], [0], [0], [1], [0, 0, 1, 1], [], []>} : vector<256x8xf32>, vector<8x8xf32>, vector<256x8xf32> -> vector<256x8xf32>
    %331 = arith.addf %324, %330 : vector<256x8xf32>
    %c1_320 = arith.constant 1 : index
    %c2_321 = arith.constant 2 : index
    %c0_322 = arith.constant 0 : index
    %c0_323 = arith.constant 0 : index
    %332 = vector.load %arg9[%c1_320, %c2_321, %c0_322, %c0_323] : memref<2x18x18x8xf32, #tpu.memory_space<vmem>>, vector<1x16x16x8xf32>
    %333 = vector.shape_cast %332 : vector<1x16x16x8xf32> to vector<16x16x8xf32>
    %334 = vector.shape_cast %333 : vector<16x16x8xf32> to vector<256x8xf32>
    %c6_324 = arith.constant 6 : index
    %c0_325 = arith.constant 0 : index
    %c0_326 = arith.constant 0 : index
    %335 = vector.load %arg5[%c6_324, %c0_325, %c0_326] : memref<9x8x8xf32, #tpu.memory_space<vmem>>, vector<1x8x8xf32>
    %336 = vector.shape_cast %335 : vector<1x8x8xf32> to vector<8x8xf32>
    %cst_327 = arith.constant dense<0.000000e+00> : vector<256x8xf32>
    %337 = tpu.matmul %334, %336, %cst_327 {dimension_numbers = #tpu.dot_dimension_numbers<[1], [0], [0], [1], [0, 0, 1, 1], [], []>} : vector<256x8xf32>, vector<8x8xf32>, vector<256x8xf32> -> vector<256x8xf32>
    %338 = arith.addf %331, %337 : vector<256x8xf32>
    %c1_328 = arith.constant 1 : index
    %c2_329 = arith.constant 2 : index
    %c1_330 = arith.constant 1 : index
    %c0_331 = arith.constant 0 : index
    %339 = vector.load %arg9[%c1_328, %c2_329, %c1_330, %c0_331] : memref<2x18x18x8xf32, #tpu.memory_space<vmem>>, vector<1x16x16x8xf32>
    %340 = vector.shape_cast %339 : vector<1x16x16x8xf32> to vector<16x16x8xf32>
    %341 = vector.shape_cast %340 : vector<16x16x8xf32> to vector<256x8xf32>
    %c7_332 = arith.constant 7 : index
    %c0_333 = arith.constant 0 : index
    %c0_334 = arith.constant 0 : index
    %342 = vector.load %arg5[%c7_332, %c0_333, %c0_334] : memref<9x8x8xf32, #tpu.memory_space<vmem>>, vector<1x8x8xf32>
    %343 = vector.shape_cast %342 : vector<1x8x8xf32> to vector<8x8xf32>
    %cst_335 = arith.constant dense<0.000000e+00> : vector<256x8xf32>
    %344 = tpu.matmul %341, %343, %cst_335 {dimension_numbers = #tpu.dot_dimension_numbers<[1], [0], [0], [1], [0, 0, 1, 1], [], []>} : vector<256x8xf32>, vector<8x8xf32>, vector<256x8xf32> -> vector<256x8xf32>
    %345 = arith.addf %338, %344 : vector<256x8xf32>
    %c1_336 = arith.constant 1 : index
    %c2_337 = arith.constant 2 : index
    %c2_338 = arith.constant 2 : index
    %c0_339 = arith.constant 0 : index
    %346 = vector.load %arg9[%c1_336, %c2_337, %c2_338, %c0_339] : memref<2x18x18x8xf32, #tpu.memory_space<vmem>>, vector<1x16x16x8xf32>
    %347 = vector.shape_cast %346 : vector<1x16x16x8xf32> to vector<16x16x8xf32>
    %348 = vector.shape_cast %347 : vector<16x16x8xf32> to vector<256x8xf32>
    %c8_340 = arith.constant 8 : index
    %c0_341 = arith.constant 0 : index
    %c0_342 = arith.constant 0 : index
    %349 = vector.load %arg5[%c8_340, %c0_341, %c0_342] : memref<9x8x8xf32, #tpu.memory_space<vmem>>, vector<1x8x8xf32>
    %350 = vector.shape_cast %349 : vector<1x8x8xf32> to vector<8x8xf32>
    %cst_343 = arith.constant dense<0.000000e+00> : vector<256x8xf32>
    %351 = tpu.matmul %348, %350, %cst_343 {dimension_numbers = #tpu.dot_dimension_numbers<[1], [0], [0], [1], [0, 0, 1, 1], [], []>} : vector<256x8xf32>, vector<8x8xf32>, vector<256x8xf32> -> vector<256x8xf32>
    %352 = arith.addf %345, %351 : vector<256x8xf32>
    %c0_344 = arith.constant 0 : index
    %c0_345 = arith.constant 0 : index
    %353 = vector.load %arg6[%c0_344, %c0_345] : memref<1x8xf32, #tpu.memory_space<vmem>>, vector<1x8xf32>
    %354 = vector.broadcast %353 : vector<1x8xf32> to vector<256x8xf32>
    %355 = arith.addf %352, %354 : vector<256x8xf32>
    %cst_346 = arith.constant 0.000000e+00 : f32
    %356 = vector.broadcast %cst_346 : f32 to vector<256x8xf32>
    %357 = arith.cmpf oge, %355, %356 : vector<256x8xf32>
    %cst_347 = arith.constant 2.000000e-01 : f32
    %358 = vector.broadcast %cst_347 : f32 to vector<256x8xf32>
    %359 = arith.mulf %358, %355 : vector<256x8xf32>
    %360 = arith.select %357, %355, %359 : vector<256x8xi1>, vector<256x8xf32>
    %361 = tpu.transpose %360, [1, 0] : vector<256x8xf32> -> vector<8x256xf32>
    %c1_348 = arith.constant 1 : index
    %c0_349 = arith.constant 0 : index
    %c0_350 = arith.constant 0 : index
    %362 = vector.load %arg7[%c1_348, %c0_349, %c0_350] : memref<2x8x256xf32, #tpu.memory_space<vmem>>, vector<1x8x256xf32>
    %363 = vector.shape_cast %362 : vector<1x8x256xf32> to vector<8x256xf32>
    %364 = vector.shape_cast %361 : vector<8x256xf32> to vector<1x8x256xf32>
    tpu.vector_store %arg7[%c1_348, %c0_349, %c0_350], %364 {strides = array<i32>} : memref<2x8x256xf32, #tpu.memory_space<vmem>>, vector<1x8x256xf32>,
    return
  }
}

</mosaic_0001>

<llo_original>
// kernel: residual_block_forward.1
$region0: #{residual_block_forward.1}
  #allocation0 [shape = 'u32[]', space=smem, size = 0x4, offset = 0x4, fixed_abs, tag = 'smem constant byte address 0x4 - core index']
  #allocation1 [shape = 'u32[72,128]{1,0:T(1,128)}', space=vmem, size = 0x9000, scoped, tag = 'internal scratch']
  #allocation2 [shape = 'f32[2,18,18,4]{3,2,1,0:T(8,128)}', space=vmem, size = 0x6c000, scoped, tag = 'scratch operand']
  #allocation3 [shape = 'f32[2,18,18,8]{3,2,1,0:T(8,128)}', space=vmem, size = 0x6c000, scoped, tag = 'scratch operand']
  %s0 = inlined_call_operand.vmem [shape: f32[2,4,256], index: 0, kind: input, shape index: {}]
  %s1 = inlined_call_operand.vmem [shape: f32[9,4,8], index: 1, kind: input, shape index: {}]
  %s2 = inlined_call_operand.vmem [shape: f32[1,8], index: 2, kind: input, shape index: {}]
  %s3 = inlined_call_operand.vmem [shape: f32[1,8], index: 3, kind: input, shape index: {}]
  %s4 = inlined_call_operand.vmem [shape: f32[1,8], index: 4, kind: input, shape index: {}]
  %s5 = inlined_call_operand.vmem [shape: f32[9,8,8], index: 5, kind: input, shape index: {}]
  %s6 = inlined_call_operand.vmem [shape: f32[1,8], index: 6, kind: input, shape index: {}]
  %s7 = inlined_call_operand.vmem [shape: f32[2,8,256], index: 7, kind: output, shape index: {}]
  %s8 = sld [smem:[#allocation0]]
  $region38: #{residual_block_forward.1} parent=0
    _
  %s10 = ssub.s32 1, %s8
  %s11 = scalar_select 0, %s10, %s8
  // Predicated region
  $region2: #{residual_block_forward.1} parent=0 // pred_check
    _
  $region3: #{residual_block_forward.1} parent=0 // pred_check_branch
    %13 = sbr.rel (0) target = $region5
  $region4: #{residual_block_forward.1} parent=0 // pred_region
    _
  $region5: #{residual_block_forward.1} parent=0 // pred_fallthru
    _
  // Predicated region
  $region6: #{residual_block_forward.1} parent=0 // pred_check
    _
  $region7: #{residual_block_forward.1} parent=0 // pred_check_branch
    %15 = sbr.rel (0) target = $region9
  $region8: #{residual_block_forward.1} parent=0 // pred_region
    _
  $region9: #{residual_block_forward.1} parent=0 // pred_fallthru
    _
  // Predicated region
  $region10: #{residual_block_forward.1} parent=0 // pred_check
    _
  $region11: #{residual_block_forward.1} parent=0 // pred_check_branch
    %17 = sbr.rel (0) target = $region13
  $region12: #{residual_block_forward.1} parent=0 // pred_region
    _
  $region13: #{residual_block_forward.1} parent=0 // pred_fallthru
    _
  // Predicated region
  $region14: #{residual_block_forward.1} parent=0 // pred_check
    _
  $region15: #{residual_block_forward.1} parent=0 // pred_check_branch
    %19 = sbr.rel (0) target = $region17
  $region16: #{residual_block_forward.1} parent=0 // pred_region
    _
  $region17: #{residual_block_forward.1} parent=0 // pred_fallthru
    _
  // Predicated region
  $region18: #{residual_block_forward.1} parent=0 // pred_check
    _
  $region19: #{residual_block_forward.1} parent=0 // pred_check_branch
    %21 = sbr.rel (0) target = $region21
  $region20: #{residual_block_forward.1} parent=0 // pred_region
    _
  $region21: #{residual_block_forward.1} parent=0 // pred_fallthru
    _
  // Predicated region
  $region22: #{residual_block_forward.1} parent=0 // pred_check
    _
  $region23: #{residual_block_forward.1} parent=0 // pred_check_branch
    %23 = sbr.rel (0) target = $region25
  $region24: #{residual_block_forward.1} parent=0 // pred_region
    _
  $region25: #{residual_block_forward.1} parent=0 // pred_fallthru
    _
  // Predicated region
  $region26: #{residual_block_forward.1} parent=0 // pred_check
    _
  $region27: #{residual_block_forward.1} parent=0 // pred_check_branch
    %25 = sbr.rel (0) target = $region29
  $region28: #{residual_block_forward.1} parent=0 // pred_region
    _
  $region29: #{residual_block_forward.1} parent=0 // pred_fallthru
    _
  %vm26 = vcmask 31744
  %27 = vst.msk [vmem:[#allocation2] sm:$0xff] %vm26, 0.0
  %28 = vst.msk [vmem:[#allocation2 + $0x8] sm:$0xff] %vm26, 0.0
  %vm29 = vcmask 25600
  %30 = vst.msk [vmem:[#allocation2 + $0x10] sm:$0x3] %vm29, 0.0
  %31 = vst.msk [vmem:[#allocation2 + $0x18] sm:$0xff] %vm26, 0.0
  %32 = vst.msk [vmem:[#allocation2 + $0x20] sm:$0xff] %vm26, 0.0
  %33 = vst.msk [vmem:[#allocation2 + $0x28] sm:$0x3] %vm29, 0.0
  %34 = vst.msk [vmem:[#allocation2 + $0x30] sm:$0xff] %vm26, 0.0
  %35 = vst.msk [vmem:[#allocation2 + $0x38] sm:$0xff] %vm26, 0.0
  %36 = vst.msk [vmem:[#allocation2 + $0x40] sm:$0x3] %vm29, 0.0
  %37 = vst.msk [vmem:[#allocation2 + $0x48] sm:$0xff] %vm26, 0.0
  %38 = vst.msk [vmem:[#allocation2 + $0x50] sm:$0xff] %vm26, 0.0
  %39 = vst.msk [vmem:[#allocation2 + $0x58] sm:$0x3] %vm29, 0.0
  %40 = vst.msk [vmem:[#allocation2 + $0x60] sm:$0xff] %vm26, 0.0
  %41 = vst.msk [vmem:[#allocation2 + $0x68] sm:$0xff] %vm26, 0.0
  %42 = vst.msk [vmem:[#allocation2 + $0x70] sm:$0x3] %vm29, 0.0
  %43 = vst.msk [vmem:[#allocation2 + $0x78] sm:$0xff] %vm26, 0.0
  %44 = vst.msk [vmem:[#allocation2 + $0x80] sm:$0xff] %vm26, 0.0
  %45 = vst.msk [vmem:[#allocation2 + $0x88] sm:$0x3] %vm29, 0.0
  %46 = vst.msk [vmem:[#allocation2 + $0x90] sm:$0xff] %vm26, 0.0
  %47 = vst.msk [vmem:[#allocation2 + $0x98] sm:$0xff] %vm26, 0.0
  %48 = vst.msk [vmem:[#allocation2 + $0xa0] sm:$0x3] %vm29, 0.0
  %49 = vst.msk [vmem:[#allocation2 + $0xa8] sm:$0xff] %vm26, 0.0
  %50 = vst.msk [vmem:[#allocation2 + $0xb0] sm:$0xff] %vm26, 0.0
  %51 = vst.msk [vmem:[#allocation2 + $0xb8] sm:$0x3] %vm29, 0.0
  %52 = vst.msk [vmem:[#allocation2 + $0xc0] sm:$0xff] %vm26, 0.0
  %53 = vst.msk [vmem:[#allocation2 + $0xc8] sm:$0xff] %vm26, 0.0
  %54 = vst.msk [vmem:[#allocation2 + $0xd0] sm:$0x3] %vm29, 0.0
  %55 = vst.msk [vmem:[#allocation2 + $0xd8] sm:$0xff] %vm26, 0.0
  %56 = vst.msk [vmem:[#allocation2 + $0xe0] sm:$0xff] %vm26, 0.0
  %57 = vst.msk [vmem:[#allocation2 + $0xe8] sm:$0x3] %vm29, 0.0
  %58 = vst.msk [vmem:[#allocation2 + $0xf0] sm:$0xff] %vm26, 0.0
  %59 = vst.msk [vmem:[#allocation2 + $0xf8] sm:$0xff] %vm26, 0.0
  %60 = vst.msk [vmem:[#allocation2 + $0x100] sm:$0x3] %vm29, 0.0
  %61 = vst.msk [vmem:[#allocation2 + $0x108] sm:$0xff] %vm26, 0.0
  %62 = vst.msk [vmem:[#allocation2 + $0x110] sm:$0xff] %vm26, 0.0
  %63 = vst.msk [vmem:[#allocation2 + $0x118] sm:$0x3] %vm29, 0.0
  %64 = vst.msk [vmem:[#allocation2 + $0x120] sm:$0xff] %vm26, 0.0
  %65 = vst.msk [vmem:[#allocation2 + $0x128] sm:$0xff] %vm26, 0.0
  %66 = vst.msk [vmem:[#allocation2 + $0x130] sm:$0x3] %vm29, 0.0
  %67 = vst.msk [vmem:[#allocation2 + $0x138] sm:$0xff] %vm26, 0.0
  %68 = vst.msk [vmem:[#allocation2 + $0x140] sm:$0xff] %vm26, 0.0
  %69 = vst.msk [vmem:[#allocation2 + $0x148] sm:$0x3] %vm29, 0.0
  %70 = vst.msk [vmem:[#allocation2 + $0x150] sm:$0xff] %vm26, 0.0
  %71 = vst.msk [vmem:[#allocation2 + $0x158] sm:$0xff] %vm26, 0.0
  %72 = vst.msk [vmem:[#allocation2 + $0x160] sm:$0x3] %vm29, 0.0
  %73 = vst.msk [vmem:[#allocation2 + $0x168] sm:$0xff] %vm26, 0.0
  %74 = vst.msk [vmem:[#allocation2 + $0x170] sm:$0xff] %vm26, 0.0
  %75 = vst.msk [vmem:[#allocation2 + $0x178] sm:$0x3] %vm29, 0.0
  %76 = vst.msk [vmem:[#allocation2 + $0x180] sm:$0xff] %vm26, 0.0
  %77 = vst.msk [vmem:[#allocation2 + $0x188] sm:$0xff] %vm26, 0.0
  %78 = vst.msk [vmem:[#allocation2 + $0x190] sm:$0x3] %vm29, 0.0
  %79 = vst.msk [vmem:[#allocation2 + $0x198] sm:$0xff] %vm26, 0.0
  %80 = vst.msk [vmem:[#allocation2 + $0x1a0] sm:$0xff] %vm26, 0.0
  %81 = vst.msk [vmem:[#allocation2 + $0x1a8] sm:$0x3] %vm29, 0.0
  %82 = vst.msk [vmem:[#allocation2 + $0x1b0] sm:$0xff] %vm26, 0.0
  %83 = vst.msk [vmem:[#allocation2 + $0x1b8] sm:$0xff] %vm26, 0.0
  %84 = vst.msk [vmem:[#allocation2 + $0x1c0] sm:$0x3] %vm29, 0.0
  %85 = vst.msk [vmem:[#allocation2 + $0x1c8] sm:$0xff] %vm26, 0.0
  %86 = vst.msk [vmem:[#allocation2 + $0x1d0] sm:$0xff] %vm26, 0.0
  %87 = vst.msk [vmem:[#allocation2 + $0x1d8] sm:$0x3] %vm29, 0.0
  %88 = vst.msk [vmem:[#allocation2 + $0x1e0] sm:$0xff] %vm26, 0.0
  %89 = vst.msk [vmem:[#allocation2 + $0x1e8] sm:$0xff] %vm26, 0.0
  %90 = vst.msk [vmem:[#allocation2 + $0x1f0] sm:$0x3] %vm29, 0.0
  %91 = vst.msk [vmem:[#allocation2 + $0x1f8] sm:$0xff] %vm26, 0.0
  %92 = vst.msk [vmem:[#allocation2 + $0x200] sm:$0xff] %vm26, 0.0
  %93 = vst.msk [vmem:[#allocation2 + $0x208] sm:$0x3] %vm29, 0.0
  %94 = vst.msk [vmem:[#allocation2 + $0x210] sm:$0xff] %vm26, 0.0
  %95 = vst.msk [vmem:[#allocation2 + $0x218] sm:$0xff] %vm26, 0.0
  %96 = vst.msk [vmem:[#allocation2 + $0x220] sm:$0x3] %vm29, 0.0
  %97 = vst.msk [vmem:[#allocation2 + $0x228] sm:$0xff] %vm26, 0.0
  %98 = vst.msk [vmem:[#allocation2 + $0x230] sm:$0xff] %vm26, 0.0
  %99 = vst.msk [vmem:[#allocation2 + $0x238] sm:$0x3] %vm29, 0.0
  %100 = vst.msk [vmem:[#allocation2 + $0x240] sm:$0xff] %vm26, 0.0
  %101 = vst.msk [vmem:[#allocation2 + $0x248] sm:$0xff] %vm26, 0.0
  %102 = vst.msk [vmem:[#allocation2 + $0x250] sm:$0x3] %vm29, 0.0
  %103 = vst.msk [vmem:[#allocation2 + $0x258] sm:$0xff] %vm26, 0.0
  %104 = vst.msk [vmem:[#allocation2 + $0x260] sm:$0xff] %vm26, 0.0
  %105 = vst.msk [vmem:[#allocation2 + $0x268] sm:$0x3] %vm29, 0.0
  %106 = vst.msk [vmem:[#allocation2 + $0x270] sm:$0xff] %vm26, 0.0
  %107 = vst.msk [vmem:[#allocation2 + $0x278] sm:$0xff] %vm26, 0.0
  %108 = vst.msk [vmem:[#allocation2 + $0x280] sm:$0x3] %vm29, 0.0
  %109 = vst.msk [vmem:[#allocation2 + $0x288] sm:$0xff] %vm26, 0.0
  %110 = vst.msk [vmem:[#allocation2 + $0x290] sm:$0xff] %vm26, 0.0
  %111 = vst.msk [vmem:[#allocation2 + $0x298] sm:$0x3] %vm29, 0.0
  %112 = vst.msk [vmem:[#allocation2 + $0x2a0] sm:$0xff] %vm26, 0.0
  %113 = vst.msk [vmem:[#allocation2 + $0x2a8] sm:$0xff] %vm26, 0.0
  %114 = vst.msk [vmem:[#allocation2 + $0x2b0] sm:$0x3] %vm29, 0.0
  %115 = vst.msk [vmem:[#allocation2 + $0x2b8] sm:$0xff] %vm26, 0.0
  %116 = vst.msk [vmem:[#allocation2 + $0x2c0] sm:$0xff] %vm26, 0.0
  %117 = vst.msk [vmem:[#allocation2 + $0x2c8] sm:$0x3] %vm29, 0.0
  %118 = vst.msk [vmem:[#allocation2 + $0x2d0] sm:$0xff] %vm26, 0.0
  %119 = vst.msk [vmem:[#allocation2 + $0x2d8] sm:$0xff] %vm26, 0.0
  %120 = vst.msk [vmem:[#allocation2 + $0x2e0] sm:$0x3] %vm29, 0.0
  %121 = vst.msk [vmem:[#allocation2 + $0x2e8] sm:$0xff] %vm26, 0.0
  %122 = vst.msk [vmem:[#allocation2 + $0x2f0] sm:$0xff] %vm26, 0.0
  %123 = vst.msk [vmem:[#allocation2 + $0x2f8] sm:$0x3] %vm29, 0.0
  %124 = vst.msk [vmem:[#allocation2 + $0x300] sm:$0xff] %vm26, 0.0
  %125 = vst.msk [vmem:[#allocation2 + $0x308] sm:$0xff] %vm26, 0.0
  %126 = vst.msk [vmem:[#allocation2 + $0x310] sm:$0x3] %vm29, 0.0
  %127 = vst.msk [vmem:[#allocation2 + $0x318] sm:$0xff] %vm26, 0.0
  %128 = vst.msk [vmem:[#allocation2 + $0x320] sm:$0xff] %vm26, 0.0
  %129 = vst.msk [vmem:[#allocation2 + $0x328] sm:$0x3] %vm29, 0.0
  %130 = vst.msk [vmem:[#allocation2 + $0x330] sm:$0xff] %vm26, 0.0
  %131 = vst.msk [vmem:[#allocation2 + $0x338] sm:$0xff] %vm26, 0.0
  %132 = vst.msk [vmem:[#allocation2 + $0x340] sm:$0x3] %vm29, 0.0
  %133 = vst.msk [vmem:[#allocation2 + $0x348] sm:$0xff] %vm26, 0.0
  %134 = vst.msk [vmem:[#allocation2 + $0x350] sm:$0xff] %vm26, 0.0
  %135 = vst.msk [vmem:[#allocation2 + $0x358] sm:$0x3] %vm29, 0.0
  %vm136 = vcmask 64512
  %137 = vst.msk [vmem:[#allocation3] sm:$0xff] %vm136, 0.0
  %138 = vst.msk [vmem:[#allocation3 + $0x8] sm:$0xff] %vm136, 0.0
  %vm139 = vcmask 58368
  %140 = vst.msk [vmem:[#allocation3 + $0x10] sm:$0x3] %vm139, 0.0
  %141 = vst.msk [vmem:[#allocation3 + $0x18] sm:$0xff] %vm136, 0.0
  %142 = vst.msk [vmem:[#allocation3 + $0x20] sm:$0xff] %vm136, 0.0
  %143 = vst.msk [vmem:[#allocation3 + $0x28] sm:$0x3] %vm139, 0.0
  %144 = vst.msk [vmem:[#allocation3 + $0x30] sm:$0xff] %vm136, 0.0
  %145 = vst.msk [vmem:[#allocation3 + $0x38] sm:$0xff] %vm136, 0.0
  %146 = vst.msk [vmem:[#allocation3 + $0x40] sm:$0x3] %vm139, 0.0
  %147 = vst.msk [vmem:[#allocation3 + $0x48] sm:$0xff] %vm136, 0.0
  %148 = vst.msk [vmem:[#allocation3 + $0x50] sm:$0xff] %vm136, 0.0
  %149 = vst.msk [vmem:[#allocation3 + $0x58] sm:$0x3] %vm139, 0.0
  %150 = vst.msk [vmem:[#allocation3 + $0x60] sm:$0xff] %vm136, 0.0
  %151 = vst.msk [vmem:[#allocation3 + $0x68] sm:$0xff] %vm136, 0.0
  %152 = vst.msk [vmem:[#allocation3 + $0x70] sm:$0x3] %vm139, 0.0
  %153 = vst.msk [vmem:[#allocation3 + $0x78] sm:$0xff] %vm136, 0.0
  %154 = vst.msk [vmem:[#allocation3 + $0x80] sm:$0xff] %vm136, 0.0
  %155 = vst.msk [vmem:[#allocation3 + $0x88] sm:$0x3] %vm139, 0.0
  %156 = vst.msk [vmem:[#allocation3 + $0x90] sm:$0xff] %vm136, 0.0
  %157 = vst.msk [vmem:[#allocation3 + $0x98] sm:$0xff] %vm136, 0.0
  %158 = vst.msk [vmem:[#allocation3 + $0xa0] sm:$0x3] %vm139, 0.0
  %159 = vst.msk [vmem:[#allocation3 + $0xa8] sm:$0xff] %vm136, 0.0
  %160 = vst.msk [vmem:[#allocation3 + $0xb0] sm:$0xff] %vm136, 0.0
  %161 = vst.msk [vmem:[#allocation3 + $0xb8] sm:$0x3] %vm139, 0.0
  %162 = vst.msk [vmem:[#allocation3 + $0xc0] sm:$0xff] %vm136, 0.0
  %163 = vst.msk [vmem:[#allocation3 + $0xc8] sm:$0xff] %vm136, 0.0
  %164 = vst.msk [vmem:[#allocation3 + $0xd0] sm:$0x3] %vm139, 0.0
  %165 = vst.msk [vmem:[#allocation3 + $0xd8] sm:$0xff] %vm136, 0.0
  %166 = vst.msk [vmem:[#allocation3 + $0xe0] sm:$0xff] %vm136, 0.0
  %167 = vst.msk [vmem:[#allocation3 + $0xe8] sm:$0x3] %vm139, 0.0
  %168 = vst.msk [vmem:[#allocation3 + $0xf0] sm:$0xff] %vm136, 0.0
  %169 = vst.msk [vmem:[#allocation3 + $0xf8] sm:$0xff] %vm136, 0.0
  %170 = vst.msk [vmem:[#allocation3 + $0x100] sm:$0x3] %vm139, 0.0
  %171 = vst.msk [vmem:[#allocation3 + $0x108] sm:$0xff] %vm136, 0.0
  %172 = vst.msk [vmem:[#allocation3 + $0x110] sm:$0xff] %vm136, 0.0
  %173 = vst.msk [vmem:[#allocation3 + $0x118] sm:$0x3] %vm139, 0.0
  %174 = vst.msk [vmem:[#allocation3 + $0x120] sm:$0xff] %vm136, 0.0
  %175 = vst.msk [vmem:[#allocation3 + $0x128] sm:$0xff] %vm136, 0.0
  %176 = vst.msk [vmem:[#allocation3 + $0x130] sm:$0x3] %vm139, 0.0
  %177 = vst.msk [vmem:[#allocation3 + $0x138] sm:$0xff] %vm136, 0.0
  %178 = vst.msk [vmem:[#allocation3 + $0x140] sm:$0xff] %vm136, 0.0
  %179 = vst.msk [vmem:[#allocation3 + $0x148] sm:$0x3] %vm139, 0.0
  %180 = vst.msk [vmem:[#allocation3 + $0x150] sm:$0xff] %vm136, 0.0
  %181 = vst.msk [vmem:[#allocation3 + $0x158] sm:$0xff] %vm136, 0.0
  %182 = vst.msk [vmem:[#allocation3 + $0x160] sm:$0x3] %vm139, 0.0
  %183 = vst.msk [vmem:[#allocation3 + $0x168] sm:$0xff] %vm136, 0.0
  %184 = vst.msk [vmem:[#allocation3 + $0x170] sm:$0xff] %vm136, 0.0
  %185 = vst.msk [vmem:[#allocation3 + $0x178] sm:$0x3] %vm139, 0.0
  %186 = vst.msk [vmem:[#allocation3 + $0x180] sm:$0xff] %vm136, 0.0
  %187 = vst.msk [vmem:[#allocation3 + $0x188] sm:$0xff] %vm136, 0.0
  %188 = vst.msk [vmem:[#allocation3 + $0x190] sm:$0x3] %vm139, 0.0
  %189 = vst.msk [vmem:[#allocation3 + $0x198] sm:$0xff] %vm136, 0.0
  %190 = vst.msk [vmem:[#allocation3 + $0x1a0] sm:$0xff] %vm136, 0.0
  %191 = vst.msk [vmem:[#allocation3 + $0x1a8] sm:$0x3] %vm139, 0.0
  %192 = vst.msk [vmem:[#allocation3 + $0x1b0] sm:$0xff] %vm136, 0.0
  %193 = vst.msk [vmem:[#allocation3 + $0x1b8] sm:$0xff] %vm136, 0.0
  %194 = vst.msk [vmem:[#allocation3 + $0x1c0] sm:$0x3] %vm139, 0.0
  %195 = vst.msk [vmem:[#allocation3 + $0x1c8] sm:$0xff] %vm136, 0.0
  %196 = vst.msk [vmem:[#allocation3 + $0x1d0] sm:$0xff] %vm136, 0.0
  %197 = vst.msk [vmem:[#allocation3 + $0x1d8] sm:$0x3] %vm139, 0.0
  %198 = vst.msk [vmem:[#allocation3 + $0x1e0] sm:$0xff] %vm136, 0.0
  %199 = vst.msk [vmem:[#allocation3 + $0x1e8] sm:$0xff] %vm136, 0.0
  %200 = vst.msk [vmem:[#allocation3 + $0x1f0] sm:$0x3] %vm139, 0.0
  %201 = vst.msk [vmem:[#allocation3 + $0x1f8] sm:$0xff] %vm136, 0.0
  %202 = vst.msk [vmem:[#allocation3 + $0x200] sm:$0xff] %vm136, 0.0
  %203 = vst.msk [vmem:[#allocation3 + $0x208] sm:$0x3] %vm139, 0.0
  %204 = vst.msk [vmem:[#allocation3 + $0x210] sm:$0xff] %vm136, 0.0
  %205 = vst.msk [vmem:[#allocation3 + $0x218] sm:$0xff] %vm136, 0.0
  %206 = vst.msk [vmem:[#allocation3 + $0x220] sm:$0x3] %vm139, 0.0
  %207 = vst.msk [vmem:[#allocation3 + $0x228] sm:$0xff] %vm136, 0.0
  %208 = vst.msk [vmem:[#allocation3 + $0x230] sm:$0xff] %vm136, 0.0
  %209 = vst.msk [vmem:[#allocation3 + $0x238] sm:$0x3] %vm139, 0.0
  %210 = vst.msk [vmem:[#allocation3 + $0x240] sm:$0xff] %vm136, 0.0
  %211 = vst.msk [vmem:[#allocation3 + $0x248] sm:$0xff] %vm136, 0.0
  %212 = vst.msk [vmem:[#allocation3 + $0x250] sm:$0x3] %vm139, 0.0
  %213 = vst.msk [vmem:[#allocation3 + $0x258] sm:$0xff] %vm136, 0.0
  %214 = vst.msk [vmem:[#allocation3 + $0x260] sm:$0xff] %vm136, 0.0
  %215 = vst.msk [vmem:[#allocation3 + $0x268] sm:$0x3] %vm139, 0.0
  %216 = vst.msk [vmem:[#allocation3 + $0x270] sm:$0xff] %vm136, 0.0
  %217 = vst.msk [vmem:[#allocation3 + $0x278] sm:$0xff] %vm136, 0.0
  %218 = vst.msk [vmem:[#allocation3 + $0x280] sm:$0x3] %vm139, 0.0
  %219 = vst.msk [vmem:[#allocation3 + $0x288] sm:$0xff] %vm136, 0.0
  %220 = vst.msk [vmem:[#allocation3 + $0x290] sm:$0xff] %vm136, 0.0
  %221 = vst.msk [vmem:[#allocation3 + $0x298] sm:$0x3] %vm139, 0.0
  %222 = vst.msk [vmem:[#allocation3 + $0x2a0] sm:$0xff] %vm136, 0.0
  %223 = vst.msk [vmem:[#allocation3 + $0x2a8] sm:$0xff] %vm136, 0.0
  %224 = vst.msk [vmem:[#allocation3 + $0x2b0] sm:$0x3] %vm139, 0.0
  %225 = vst.msk [vmem:[#allocation3 + $0x2b8] sm:$0xff] %vm136, 0.0
  %226 = vst.msk [vmem:[#allocation3 + $0x2c0] sm:$0xff] %vm136, 0.0
  %227 = vst.msk [vmem:[#allocation3 + $0x2c8] sm:$0x3] %vm139, 0.0
  %228 = vst.msk [vmem:[#allocation3 + $0x2d0] sm:$0xff] %vm136, 0.0
  %229 = vst.msk [vmem:[#allocation3 + $0x2d8] sm:$0xff] %vm136, 0.0
  %230 = vst.msk [vmem:[#allocation3 + $0x2e0] sm:$0x3] %vm139, 0.0
  %231 = vst.msk [vmem:[#allocation3 + $0x2e8] sm:$0xff] %vm136, 0.0
  %232 = vst.msk [vmem:[#allocation3 + $0x2f0] sm:$0xff] %vm136, 0.0
  %233 = vst.msk [vmem:[#allocation3 + $0x2f8] sm:$0x3] %vm139, 0.0
  %234 = vst.msk [vmem:[#allocation3 + $0x300] sm:$0xff] %vm136, 0.0
  %235 = vst.msk [vmem:[#allocation3 + $0x308] sm:$0xff] %vm136, 0.0
  %236 = vst.msk [vmem:[#allocation3 + $0x310] sm:$0x3] %vm139, 0.0
  %237 = vst.msk [vmem:[#allocation3 + $0x318] sm:$0xff] %vm136, 0.0
  %238 = vst.msk [vmem:[#allocation3 + $0x320] sm:$0xff] %vm136, 0.0
  %239 = vst.msk [vmem:[#allocation3 + $0x328] sm:$0x3] %vm139, 0.0
  %240 = vst.msk [vmem:[#allocation3 + $0x330] sm:$0xff] %vm136, 0.0
  %241 = vst.msk [vmem:[#allocation3 + $0x338] sm:$0xff] %vm136, 0.0
  %242 = vst.msk [vmem:[#allocation3 + $0x340] sm:$0x3] %vm139, 0.0
  %243 = vst.msk [vmem:[#allocation3 + $0x348] sm:$0xff] %vm136, 0.0
  %244 = vst.msk [vmem:[#allocation3 + $0x350] sm:$0xff] %vm136, 0.0
  %245 = vst.msk [vmem:[#allocation3 + $0x358] sm:$0x3] %vm139, 0.0
  %v246 = vld [vmem:[%s0] sm:$0xff]
  %248 = vst [vmem:[#allocation1] ss:$2 sm:$0xff] %v246
  %v249 = vld.sshfl [vmem:[#allocation1] sm:$0xff pattern:$0x75316420]
  %v250 = vld.sshfl [vmem:[#allocation1 + $0x8] sm:$0xff pattern:$0x75316420]
  %253 = vxpose.xlu0.b32.start [1/16] %v249, 128
  %254 = vxpose.xlu0.b32.cont [2/16] 0.0, 128
  %255 = vxpose.xlu0.b32.cont [3/16] 0.0, 128
  %256 = vxpose.xlu0.b32.cont [4/16] 0.0, 128
  %257 = vxpose.xlu0.b32.cont [5/16] 0.0, 128
  %258 = vxpose.xlu0.b32.cont [6/16] 0.0, 128
  %259 = vxpose.xlu0.b32.cont [7/16] 0.0, 128
  %260 = vxpose.xlu0.b32.cont [8/16] 0.0, 128
  %261 = vxpose.xlu0.b32.cont [9/16] 0.0, 128
  %262 = vxpose.xlu0.b32.cont [10/16] 0.0, 128
  %263 = vxpose.xlu0.b32.cont [11/16] 0.0, 128
  %264 = vxpose.xlu0.b32.cont [12/16] 0.0, 128
  %265 = vxpose.xlu0.b32.cont [13/16] 0.0, 128
  %266 = vxpose.xlu0.b32.cont [14/16] 0.0, 128
  %267 = vxpose.xlu0.b32.cont [15/16] 0.0, 128
  %268 = vxpose.xlu0.b32.end [16/16] 0.0, 128
  %v269 = vpop.trf.xlu0
  %v270 = vpop.trf.xlu0
  %v271 = vpop.trf.xlu0
  %v272 = vpop.trf.xlu0
  %v273 = vpop.trf.xlu0
  %v274 = vpop.trf.xlu0
  %v275 = vpop.trf.xlu0
  %v276 = vpop.trf.xlu0
  %v277 = vpop.trf.xlu0
  %v278 = vpop.trf.xlu0
  %v279 = vpop.trf.xlu0
  %v280 = vpop.trf.xlu0
  %v281 = vpop.trf.xlu0
  %v282 = vpop.trf.xlu0
  %v283 = vpop.trf.xlu0
  %v284 = vpop.trf.xlu0
  %285 = vxpose.xlu0.b32.start [1/16] %v250, 128
  %286 = vxpose.xlu0.b32.cont [2/16] 0.0, 128
  %287 = vxpose.xlu0.b32.cont [3/16] 0.0, 128
  %288 = vxpose.xlu0.b32.cont [4/16] 0.0, 128
  %289 = vxpose.xlu0.b32.cont [5/16] 0.0, 128
  %290 = vxpose.xlu0.b32.cont [6/16] 0.0, 128
  %291 = vxpose.xlu0.b32.cont [7/16] 0.0, 128
  %292 = vxpose.xlu0.b32.cont [8/16] 0.0, 128
  %293 = vxpose.xlu0.b32.cont [9/16] 0.0, 128
  %294 = vxpose.xlu0.b32.cont [10/16] 0.0, 128
  %295 = vxpose.xlu0.b32.cont [11/16] 0.0, 128
  %296 = vxpose.xlu0.b32.cont [12/16] 0.0, 128
  %297 = vxpose.xlu0.b32.cont [13/16] 0.0, 128
  %298 = vxpose.xlu0.b32.cont [14/16] 0.0, 128
  %299 = vxpose.xlu0.b32.cont [15/16] 0.0, 128
  %300 = vxpose.xlu0.b32.end [16/16] 0.0, 128
  %v301 = vpop.trf.xlu0
  %v302 = vpop.trf.xlu0
  %v303 = vpop.trf.xlu0
  %v304 = vpop.trf.xlu0
  %v305 = vpop.trf.xlu0
  %v306 = vpop.trf.xlu0
  %v307 = vpop.trf.xlu0
  %v308 = vpop.trf.xlu0
  %v309 = vpop.trf.xlu0
  %v310 = vpop.trf.xlu0
  %v311 = vpop.trf.xlu0
  %v312 = vpop.trf.xlu0
  %v313 = vpop.trf.xlu0
  %v314 = vpop.trf.xlu0
  %v315 = vpop.trf.xlu0
  %v316 = vpop.trf.xlu0
  %s317 = scalar_lea.vmem [#allocation2], 24
  %318 = vst.msk [vmem:[%s317 + $0x1] sm:$0xff] %vm26, %v269
  %319 = vst.msk [vmem:[%s317 + $0x9] sm:$0xff] %vm26, %v270
  %320 = vst.msk [vmem:[%s317 + $0x19] sm:$0xff] %vm26, %v271
  %321 = vst.msk [vmem:[%s317 + $0x21] sm:$0xff] %vm26, %v272
  %322 = vst.msk [vmem:[%s317 + $0x31] sm:$0xff] %vm26, %v273
  %323 = vst.msk [vmem:[%s317 + $0x39] sm:$0xff] %vm26, %v274
  %324 = vst.msk [vmem:[%s317 + $0x49] sm:$0xff] %vm26, %v275
  %325 = vst.msk [vmem:[%s317 + $0x51] sm:$0xff] %vm26, %v276
  %326 = vst.msk [vmem:[%s317 + $0x61] sm:$0xff] %vm26, %v277
  %327 = vst.msk [vmem:[%s317 + $0x69] sm:$0xff] %vm26, %v278
  %328 = vst.msk [vmem:[%s317 + $0x79] sm:$0xff] %vm26, %v279
  %329 = vst.msk [vmem:[%s317 + $0x81] sm:$0xff] %vm26, %v280
  %330 = vst.msk [vmem:[%s317 + $0x91] sm:$0xff] %vm26, %v281
  %331 = vst.msk [vmem:[%s317 + $0x99] sm:$0xff] %vm26, %v282
  %332 = vst.msk [vmem:[%s317 + $0xa9] sm:$0xff] %vm26, %v283
  %333 = vst.msk [vmem:[%s317 + $0xb1] sm:$0xff] %vm26, %v284
  %334 = vst.msk [vmem:[%s317 + $0xc1] sm:$0xff] %vm26, %v301
  %335 = vst.msk [vmem:[%s317 + $0xc9] sm:$0xff] %vm26, %v302
  %336 = vst.msk [vmem:[%s317 + $0xd9] sm:$0xff] %vm26, %v303
  %337 = vst.msk [vmem:[%s317 + $0xe1] sm:$0xff] %vm26, %v304
  %338 = vst.msk [vmem:[%s317 + $0xf1] sm:$0xff] %vm26, %v305
  %339 = vst.msk [vmem:[%s317 + $0xf9] sm:$0xff] %vm26, %v306
  %340 = vst.msk [vmem:[%s317 + $0x109] sm:$0xff] %vm26, %v307
  %341 = vst.msk [vmem:[%s317 + $0x111] sm:$0xff] %vm26, %v308
  %342 = vst.msk [vmem:[%s317 + $0x121] sm:$0xff] %vm26, %v309
  %343 = vst.msk [vmem:[%s317 + $0x129] sm:$0xff] %vm26, %v310
  %344 = vst.msk [vmem:[%s317 + $0x139] sm:$0xff] %vm26, %v311
  %345 = vst.msk [vmem:[%s317 + $0x141] sm:$0xff] %vm26, %v312
  %346 = vst.msk [vmem:[%s317 + $0x151] sm:$0xff] %vm26, %v313
  %347 = vst.msk [vmem:[%s317 + $0x159] sm:$0xff] %vm26, %v314
  %348 = vst.msk [vmem:[%s317 + $0x169] sm:$0xff] %vm26, %v315
  %349 = vst.msk [vmem:[%s317 + $0x171] sm:$0xff] %vm26, %v316
  %s350 = scalar_lea.vmem %s0, 8
  %v351 = vld [vmem:[%s350] sm:$0xff]
  %353 = vst [vmem:[#allocation1] ss:$2 sm:$0xff] %v351
  %v354 = vld.sshfl [vmem:[#allocation1] sm:$0xff pattern:$0x75316420]
  %v355 = vld.sshfl [vmem:[#allocation1 + $0x8] sm:$0xff pattern:$0x75316420]
  %358 = vxpose.xlu0.b32.start [1/16] %v354, 128
  %359 = vxpose.xlu0.b32.cont [2/16] 0.0, 128
  %360 = vxpose.xlu0.b32.cont [3/16] 0.0, 128
  %361 = vxpose.xlu0.b32.cont [4/16] 0.0, 128
  %362 = vxpose.xlu0.b32.cont [5/16] 0.0, 128
  %363 = vxpose.xlu0.b32.cont [6/16] 0.0, 128
  %364 = vxpose.xlu0.b32.cont [7/16] 0.0, 128
  %365 = vxpose.xlu0.b32.cont [8/16] 0.0, 128
  %366 = vxpose.xlu0.b32.cont [9/16] 0.0, 128
  %367 = vxpose.xlu0.b32.cont [10/16] 0.0, 128
  %368 = vxpose.xlu0.b32.cont [11/16] 0.0, 128
  %369 = vxpose.xlu0.b32.cont [12/16] 0.0, 128
  %370 = vxpose.xlu0.b32.cont [13/16] 0.0, 128
  %371 = vxpose.xlu0.b32.cont [14/16] 0.0, 128
  %372 = vxpose.xlu0.b32.cont [15/16] 0.0, 128
  %373 = vxpose.xlu0.b32.end [16/16] 0.0, 128
  %v374 = vpop.trf.xlu0
  %v375 = vpop.trf.xlu0
  %v376 = vpop.trf.xlu0
  %v377 = vpop.trf.xlu0
  %v378 = vpop.trf.xlu0
  %v379 = vpop.trf.xlu0
  %v380 = vpop.trf.xlu0
  %v381 = vpop.trf.xlu0
  %v382 = vpop.trf.xlu0
  %v383 = vpop.trf.xlu0
  %v384 = vpop.trf.xlu0
  %v385 = vpop.trf.xlu0
  %v386 = vpop.trf.xlu0
  %v387 = vpop.trf.xlu0
  %v388 = vpop.trf.xlu0
  %v389 = vpop.trf.xlu0
  %390 = vxpose.xlu0.b32.start [1/16] %v355, 128
  %391 = vxpose.xlu0.b32.cont [2/16] 0.0, 128
  %392 = vxpose.xlu0.b32.cont [3/16] 0.0, 128
  %393 = vxpose.xlu0.b32.cont [4/16] 0.0, 128
  %394 = vxpose.xlu0.b32.cont [5/16] 0.0, 128
  %395 = vxpose.xlu0.b32.cont [6/16] 0.0, 128
  %396 = vxpose.xlu0.b32.cont [7/16] 0.0, 128
  %397 = vxpose.xlu0.b32.cont [8/16] 0.0, 128
  %398 = vxpose.xlu0.b32.cont [9/16] 0.0, 128
  %399 = vxpose.xlu0.b32.cont [10/16] 0.0, 128
  %400 = vxpose.xlu0.b32.cont [11/16] 0.0, 128
  %401 = vxpose.xlu0.b32.cont [12/16] 0.0, 128
  %402 = vxpose.xlu0.b32.cont [13/16] 0.0, 128
  %403 = vxpose.xlu0.b32.cont [14/16] 0.0, 128
  %404 = vxpose.xlu0.b32.cont [15/16] 0.0, 128
  %405 = vxpose.xlu0.b32.end [16/16] 0.0, 128
  %v406 = vpop.trf.xlu0
  %v407 = vpop.trf.xlu0
  %v408 = vpop.trf.xlu0
  %v409 = vpop.trf.xlu0
  %v410 = vpop.trf.xlu0
  %v411 = vpop.trf.xlu0
  %v412 = vpop.trf.xlu0
  %v413 = vpop.trf.xlu0
  %v414 = vpop.trf.xlu0
  %v415 = vpop.trf.xlu0
  %v416 = vpop.trf.xlu0
  %v417 = vpop.trf.xlu0
  %v418 = vpop.trf.xlu0
  %v419 = vpop.trf.xlu0
  %v420 = vpop.trf.xlu0
  %v421 = vpop.trf.xlu0
  %s422 = scalar_lea.vmem [#allocation2], 456
  %423 = vst.msk [vmem:[%s422 + $0x1] sm:$0xff] %vm26, %v374
  %424 = vst.msk [vmem:[%s422 + $0x9] sm:$0xff] %vm26, %v375
  %425 = vst.msk [vmem:[%s422 + $0x19] sm:$0xff] %vm26, %v376
  %426 = vst.msk [vmem:[%s422 + $0x21] sm:$0xff] %vm26, %v377
  %427 = vst.msk [vmem:[%s422 + $0x31] sm:$0xff] %vm26, %v378
  %428 = vst.msk [vmem:[%s422 + $0x39] sm:$0xff] %vm26, %v379
  %429 = vst.msk [vmem:[%s422 + $0x49] sm:$0xff] %vm26, %v380
  %430 = vst.msk [vmem:[%s422 + $0x51] sm:$0xff] %vm26, %v381
  %431 = vst.msk [vmem:[%s422 + $0x61] sm:$0xff] %vm26, %v382
  %432 = vst.msk [vmem:[%s422 + $0x69] sm:$0xff] %vm26, %v383
  %433 = vst.msk [vmem:[%s422 + $0x79] sm:$0xff] %vm26, %v384
  %434 = vst.msk [vmem:[%s422 + $0x81] sm:$0xff] %vm26, %v385
  %435 = vst.msk [vmem:[%s422 + $0x91] sm:$0xff] %vm26, %v386
  %436 = vst.msk [vmem:[%s422 + $0x99] sm:$0xff] %vm26, %v387
  %437 = vst.msk [vmem:[%s422 + $0xa9] sm:$0xff] %vm26, %v388
  %438 = vst.msk [vmem:[%s422 + $0xb1] sm:$0xff] %vm26, %v389
  %439 = vst.msk [vmem:[%s422 + $0xc1] sm:$0xff] %vm26, %v406
  %440 = vst.msk [vmem:[%s422 + $0xc9] sm:$0xff] %vm26, %v407
  %441 = vst.msk [vmem:[%s422 + $0xd9] sm:$0xff] %vm26, %v408
  %442 = vst.msk [vmem:[%s422 + $0xe1] sm:$0xff] %vm26, %v409
  %443 = vst.msk [vmem:[%s422 + $0xf1] sm:$0xff] %vm26, %v410
  %444 = vst.msk [vmem:[%s422 + $0xf9] sm:$0xff] %vm26, %v411
  %445 = vst.msk [vmem:[%s422 + $0x109] sm:$0xff] %vm26, %v412
  %446 = vst.msk [vmem:[%s422 + $0x111] sm:$0xff] %vm26, %v413
  %447 = vst.msk [vmem:[%s422 + $0x121] sm:$0xff] %vm26, %v414
  %448 = vst.msk [vmem:[%s422 + $0x129] sm:$0xff] %vm26, %v415
  %449 = vst.msk [vmem:[%s422 + $0x139] sm:$0xff] %vm26, %v416
  %450 = vst.msk [vmem:[%s422 + $0x141] sm:$0xff] %vm26, %v417
  %451 = vst.msk [vmem:[%s422 + $0x151] sm:$0xff] %vm26, %v418
  %452 = vst.msk [vmem:[%s422 + $0x159] sm:$0xff] %vm26, %v419
  %453 = vst.msk [vmem:[%s422 + $0x169] sm:$0xff] %vm26, %v420
  %454 = vst.msk [vmem:[%s422 + $0x171] sm:$0xff] %vm26, %v421
  %v455 = vld [vmem:[#allocation2] sm:$0xff]
  %v456 = vld [vmem:[#allocation2 + $0x8] sm:$0xff]
  %v457 = vld [vmem:[#allocation2 + $0x18] sm:$0xff]
  %v458 = vld [vmem:[#allocation2 + $0x20] sm:$0xff]
  %v459 = vld [vmem:[#allocation2 + $0x30] sm:$0xff]
  %v460 = vld [vmem:[#allocation2 + $0x38] sm:$0xff]
  %v461 = vld [vmem:[#allocation2 + $0x48] sm:$0xff]
  %v462 = vld [vmem:[#allocation2 + $0x50] sm:$0xff]
  %v463 = vld [vmem:[#allocation2 + $0x60] sm:$0xff]
  %v464 = vld [vmem:[#allocation2 + $0x68] sm:$0xff]
  %v465 = vld [vmem:[#allocation2 + $0x78] sm:$0xff]
  %v466 = vld [vmem:[#allocation2 + $0x80] sm:$0xff]
  %v467 = vld [vmem:[#allocation2 + $0x90] sm:$0xff]
  %v468 = vld [vmem:[#allocation2 + $0x98] sm:$0xff]
  %v469 = vld [vmem:[#allocation2 + $0xa8] sm:$0xff]
  %v470 = vld [vmem:[#allocation2 + $0xb0] sm:$0xff]
  %v471 = vld [vmem:[#allocation2 + $0xc0] sm:$0xff]
  %v472 = vld [vmem:[#allocation2 + $0xc8] sm:$0xff]
  %v473 = vld [vmem:[#allocation2 + $0xd8] sm:$0xff]
  %v474 = vld [vmem:[#allocation2 + $0xe0] sm:$0xff]
  %v475 = vld [vmem:[#allocation2 + $0xf0] sm:$0xff]
  %v476 = vld [vmem:[#allocation2 + $0xf8] sm:$0xff]
  %v477 = vld [vmem:[#allocation2 + $0x108] sm:$0xff]
  %v478 = vld [vmem:[#allocation2 + $0x110] sm:$0xff]
  %v479 = vld [vmem:[#allocation2 + $0x120] sm:$0xff]
  %v480 = vld [vmem:[#allocation2 + $0x128] sm:$0xff]
  %v481 = vld [vmem:[#allocation2 + $0x138] sm:$0xff]
  %v482 = vld [vmem:[#allocation2 + $0x140] sm:$0xff]
  %v483 = vld [vmem:[#allocation2 + $0x150] sm:$0xff]
  %v484 = vld [vmem:[#allocation2 + $0x158] sm:$0xff]
  %v485 = vld [vmem:[#allocation2 + $0x168] sm:$0xff]
  %v486 = vld [vmem:[#allocation2 + $0x170] sm:$0xff]
  %v487 = vld [vmem:[%s1] sm:$0xf]
  %v488 = vld [vmem:[#allocation2 + $0x1] sm:$0xff]
  %v489 = vld [vmem:[#allocation2 + $0x9] sm:$0xff]
  %v490 = vld [vmem:[#allocation2 + $0x19] sm:$0xff]
  %v491 = vld [vmem:[#allocation2 + $0x21] sm:$0xff]
  %v492 = vld [vmem:[#allocation2 + $0x31] sm:$0xff]
  %v493 = vld [vmem:[#allocation2 + $0x39] sm:$0xff]
  %v494 = vld [vmem:[#allocation2 + $0x49] sm:$0xff]
  %v495 = vld [vmem:[#allocation2 + $0x51] sm:$0xff]
  %v496 = vld [vmem:[#allocation2 + $0x61] sm:$0xff]
  %v497 = vld [vmem:[#allocation2 + $0x69] sm:$0xff]
  %v498 = vld [vmem:[#allocation2 + $0x79] sm:$0xff]
  %v499 = vld [vmem:[#allocation2 + $0x81] sm:$0xff]
  %v500 = vld [vmem:[#allocation2 + $0x91] sm:$0xff]
  %v501 = vld [vmem:[#allocation2 + $0x99] sm:$0xff]
  %v502 = vld [vmem:[#allocation2 + $0xa9] sm:$0xff]
  %v503 = vld [vmem:[#allocation2 + $0xb1] sm:$0xff]
  %v504 = vld [vmem:[#allocation2 + $0xc1] sm:$0xff]
  %v505 = vld [vmem:[#allocation2 + $0xc9] sm:$0xff]
  %v506 = vld [vmem:[#allocation2 + $0xd9] sm:$0xff]
  %v507 = vld [vmem:[#allocation2 + $0xe1] sm:$0xff]
  %v508 = vld [vmem:[#allocation2 + $0xf1] sm:$0xff]
  %v509 = vld [vmem:[#allocation2 + $0xf9] sm:$0xff]
  %v510 = vld [vmem:[#allocation2 + $0x109] sm:$0xff]
  %v511 = vld [vmem:[#allocation2 + $0x111] sm:$0xff]
  %v512 = vld [vmem:[#allocation2 + $0x121] sm:$0xff]
  %v513 = vld [vmem:[#allocation2 + $0x129] sm:$0xff]
  %v514 = vld [vmem:[#allocation2 + $0x139] sm:$0xff]
  %v515 = vld [vmem:[#allocation2 + $0x141] sm:$0xff]
  %v516 = vld [vmem:[#allocation2 + $0x151] sm:$0xff]
  %v517 = vld [vmem:[#allocation2 + $0x159] sm:$0xff]
  %v518 = vld [vmem:[#allocation2 + $0x169] sm:$0xff]
  %v519 = vld [vmem:[#allocation2 + $0x171] sm:$0xff]
  %s520 = scalar_lea.vmem %s1, 4
  %v521 = vld [vmem:[%s520] sm:$0xf]
  %v523 = vsel %vm26, %v488, 0
  %v526 = vsel %vm26, %v489, 0
  %v529 = vsel %vm26, %v490, 0
  %v532 = vsel %vm26, %v491, 0
  %v535 = vsel %vm26, %v492, 0
  %v538 = vsel %vm26, %v493, 0
  %v541 = vsel %vm26, %v494, 0
  %v544 = vsel %vm26, %v495, 0
  %v547 = vsel %vm26, %v496, 0
  %v550 = vsel %vm26, %v497, 0
  %v553 = vsel %vm26, %v498, 0
  %v556 = vsel %vm26, %v499, 0
  %v559 = vsel %vm26, %v500, 0
  %v562 = vsel %vm26, %v501, 0
  %v565 = vsel %vm26, %v502, 0
  %v568 = vsel %vm26, %v503, 0
  %v571 = vsel %vm26, %v504, 0
  %v574 = vsel %vm26, %v505, 0
  %v577 = vsel %vm26, %v506, 0
  %v580 = vsel %vm26, %v507, 0
  %v583 = vsel %vm26, %v508, 0
  %v586 = vsel %vm26, %v509, 0
  %v589 = vsel %vm26, %v510, 0
  %v592 = vsel %vm26, %v511, 0
  %v595 = vsel %vm26, %v512, 0
  %v598 = vsel %vm26, %v513, 0
  %v601 = vsel %vm26, %v514, 0
  %v604 = vsel %vm26, %v515, 0
  %v607 = vsel %vm26, %v516, 0
  %v610 = vsel %vm26, %v517, 0
  %v613 = vsel %vm26, %v518, 0
  %v616 = vsel %vm26, %v519, 0
  %vm618 = vcmask 1043456
  %v620 = vsel %vm618, %v521, 0
  %622 = vmatpush.msra.mxu0 0.0
  %623 = vmatpush.msra.mxu0 0.0
  %624 = vmatpush.msra.mxu0 0.0
  %625 = vmatpush.msra.mxu0 0.0
  %626 = vmatpush.msra.mxu0 0.0
  %627 = vmatpush.msra.mxu0 0.0
  %628 = vmatpush.msra.mxu0 0.0
  %629 = vmatpush.msra.mxu0 0.0
  %630 = vmatpush.msra.mxu0 0.0
  %631 = vmatpush.msra.mxu0 0.0
  %632 = vmatpush.msra.mxu0 0.0
  %633 = vmatpush.msra.mxu0 0.0
  %634 = vmatpush.msra.mxu0 0.0
  %635 = vmatpush.msra.mxu0 0.0
  %636 = vmatpush.msra.mxu0 0.0
  %637 = vmatpush.msra.mxu0 %v620
  %638 = vmatmul.f32.gmra.mxu0 %v523
  %v639 = vpop.f32.mrf.mxu0
  %v640 = vadd.f32 0.0, %v639
  %641 = vmatmul.f32.gmra.mxu0 %v526
  %v642 = vpop.f32.mrf.mxu0
  %v643 = vadd.f32 0.0, %v642
  %644 = vmatmul.f32.gmra.mxu0 %v529
  %v645 = vpop.f32.mrf.mxu0
  %v646 = vadd.f32 0.0, %v645
  %647 = vmatmul.f32.gmra.mxu0 %v532
  %v648 = vpop.f32.mrf.mxu0
  %v649 = vadd.f32 0.0, %v648
  %650 = vmatmul.f32.gmra.mxu0 %v535
  %v651 = vpop.f32.mrf.mxu0
  %v652 = vadd.f32 0.0, %v651
  %653 = vmatmul.f32.gmra.mxu0 %v538
  %v654 = vpop.f32.mrf.mxu0
  %v655 = vadd.f32 0.0, %v654
  %656 = vmatmul.f32.gmra.mxu0 %v541
  %v657 = vpop.f32.mrf.mxu0
  %v658 = vadd.f32 0.0, %v657
  %659 = vmatmul.f32.gmra.mxu0 %v544
  %v660 = vpop.f32.mrf.mxu0
  %v661 = vadd.f32 0.0, %v660
  %662 = vmatmul.f32.gmra.mxu0 %v547
  %v663 = vpop.f32.mrf.mxu0
  %v664 = vadd.f32 0.0, %v663
  %665 = vmatmul.f32.gmra.mxu0 %v550
  %v666 = vpop.f32.mrf.mxu0
  %v667 = vadd.f32 0.0, %v666
  %668 = vmatmul.f32.gmra.mxu0 %v553
  %v669 = vpop.f32.mrf.mxu0
  %v670 = vadd.f32 0.0, %v669
  %671 = vmatmul.f32.gmra.mxu0 %v556
  %v672 = vpop.f32.mrf.mxu0
  %v673 = vadd.f32 0.0, %v672
  %674 = vmatmul.f32.gmra.mxu0 %v559
  %v675 = vpop.f32.mrf.mxu0
  %v676 = vadd.f32 0.0, %v675
  %677 = vmatmul.f32.gmra.mxu0 %v562
  %v678 = vpop.f32.mrf.mxu0
  %v679 = vadd.f32 0.0, %v678
  %680 = vmatmul.f32.gmra.mxu0 %v565
  %v681 = vpop.f32.mrf.mxu0
  %v682 = vadd.f32 0.0, %v681
  %683 = vmatmul.f32.gmra.mxu0 %v568
  %v684 = vpop.f32.mrf.mxu0
  %v685 = vadd.f32 0.0, %v684
  %686 = vmatmul.f32.gmra.mxu0 %v571
  %v687 = vpop.f32.mrf.mxu0
  %v688 = vadd.f32 0.0, %v687
  %689 = vmatmul.f32.gmra.mxu0 %v574
  %v690 = vpop.f32.mrf.mxu0
  %v691 = vadd.f32 0.0, %v690
  %692 = vmatmul.f32.gmra.mxu0 %v577
  %v693 = vpop.f32.mrf.mxu0
  %v694 = vadd.f32 0.0, %v693
  %695 = vmatmul.f32.gmra.mxu0 %v580
  %v696 = vpop.f32.mrf.mxu0
  %v697 = vadd.f32 0.0, %v696
  %698 = vmatmul.f32.gmra.mxu0 %v583
  %v699 = vpop.f32.mrf.mxu0
  %v700 = vadd.f32 0.0, %v699
  %701 = vmatmul.f32.gmra.mxu0 %v586
  %v702 = vpop.f32.mrf.mxu0
  %v703 = vadd.f32 0.0, %v702
  %704 = vmatmul.f32.gmra.mxu0 %v589
  %v705 = vpop.f32.mrf.mxu0
  %v706 = vadd.f32 0.0, %v705
  %707 = vmatmul.f32.gmra.mxu0 %v592
  %v708 = vpop.f32.mrf.mxu0
  %v709 = vadd.f32 0.0, %v708
  %710 = vmatmul.f32.gmra.mxu0 %v595
  %v711 = vpop.f32.mrf.mxu0
  %v712 = vadd.f32 0.0, %v711
  %713 = vmatmul.f32.gmra.mxu0 %v598
  %v714 = vpop.f32.mrf.mxu0
  %v715 = vadd.f32 0.0, %v714
  %716 = vmatmul.f32.gmra.mxu0 %v601
  %v717 = vpop.f32.mrf.mxu0
  %v718 = vadd.f32 0.0, %v717
  %719 = vmatmul.f32.gmra.mxu0 %v604
  %v720 = vpop.f32.mrf.mxu0
  %v721 = vadd.f32 0.0, %v720
  %722 = vmatmul.f32.gmra.mxu0 %v607
  %v723 = vpop.f32.mrf.mxu0
  %v724 = vadd.f32 0.0, %v723
  %725 = vmatmul.f32.gmra.mxu0 %v610
  %v726 = vpop.f32.mrf.mxu0
  %v727 = vadd.f32 0.0, %v726
  %728 = vmatmul.f32.gmra.mxu0 %v613
  %v729 = vpop.f32.mrf.mxu0
  %v730 = vadd.f32 0.0, %v729
  %731 = vmatmul.f32.gmra.mxu0 %v616
  %v732 = vpop.f32.mrf.mxu0
  %v733 = vadd.f32 0.0, %v732
  %734 = vdwg.mxu0
  %v736 = vsel %vm26, %v455, 0
  %v739 = vsel %vm26, %v456, 0
  %v742 = vsel %vm26, %v457, 0
  %v745 = vsel %vm26, %v458, 0
  %v748 = vsel %vm26, %v459, 0
  %v751 = vsel %vm26, %v460, 0
  %v754 = vsel %vm26, %v461, 0
  %v757 = vsel %vm26, %v462, 0
  %v760 = vsel %vm26, %v463, 0
  %v763 = vsel %vm26, %v464, 0
  %v766 = vsel %vm26, %v465, 0
  %v769 = vsel %vm26, %v466, 0
  %v772 = vsel %vm26, %v467, 0
  %v775 = vsel %vm26, %v468, 0
  %v778 = vsel %vm26, %v469, 0
  %v781 = vsel %vm26, %v470, 0
  %v784 = vsel %vm26, %v471, 0
  %v787 = vsel %vm26, %v472, 0
  %v790 = vsel %vm26, %v473, 0
  %v793 = vsel %vm26, %v474, 0
  %v796 = vsel %vm26, %v475, 0
  %v799 = vsel %vm26, %v476, 0
  %v802 = vsel %vm26, %v477, 0
  %v805 = vsel %vm26, %v478, 0
  %v808 = vsel %vm26, %v479, 0
  %v811 = vsel %vm26, %v480, 0
  %v814 = vsel %vm26, %v481, 0
  %v817 = vsel %vm26, %v482, 0
  %v820 = vsel %vm26, %v483, 0
  %v823 = vsel %vm26, %v484, 0
  %v826 = vsel %vm26, %v485, 0
  %v829 = vsel %vm26, %v486, 0
  %v832 = vsel %vm618, %v487, 0
  %834 = vmatpush.msra.mxu0 0.0
  %835 = vmatpush.msra.mxu0 0.0
  %836 = vmatpush.msra.mxu0 0.0
  %837 = vmatpush.msra.mxu0 0.0
  %838 = vmatpush.msra.mxu0 0.0
  %839 = vmatpush.msra.mxu0 0.0
  %840 = vmatpush.msra.mxu0 0.0
  %841 = vmatpush.msra.mxu0 0.0
  %842 = vmatpush.msra.mxu0 0.0
  %843 = vmatpush.msra.mxu0 0.0
  %844 = vmatpush.msra.mxu0 0.0
  %845 = vmatpush.msra.mxu0 0.0
  %846 = vmatpush.msra.mxu0 0.0
  %847 = vmatpush.msra.mxu0 0.0
  %848 = vmatpush.msra.mxu0 0.0
  %849 = vmatpush.msra.mxu0 %v832
  %850 = vmatmul.f32.gmra.mxu0 %v736
  %v851 = vpop.f32.mrf.mxu0
  %v852 = vadd.f32 %v640, %v851
  %853 = vmatmul.f32.gmra.mxu0 %v739
  %v854 = vpop.f32.mrf.mxu0
  %v855 = vadd.f32 %v643, %v854
  %856 = vmatmul.f32.gmra.mxu0 %v742
  %v857 = vpop.f32.mrf.mxu0
  %v858 = vadd.f32 %v646, %v857
  %859 = vmatmul.f32.gmra.mxu0 %v745
  %v860 = vpop.f32.mrf.mxu0
  %v861 = vadd.f32 %v649, %v860
  %862 = vmatmul.f32.gmra.mxu0 %v748
  %v863 = vpop.f32.mrf.mxu0
  %v864 = vadd.f32 %v652, %v863
  %865 = vmatmul.f32.gmra.mxu0 %v751
  %v866 = vpop.f32.mrf.mxu0
  %v867 = vadd.f32 %v655, %v866
  %868 = vmatmul.f32.gmra.mxu0 %v754
  %v869 = vpop.f32.mrf.mxu0
  %v870 = vadd.f32 %v658, %v869
  %871 = vmatmul.f32.gmra.mxu0 %v757
  %v872 = vpop.f32.mrf.mxu0
  %v873 = vadd.f32 %v661, %v872
  %874 = vmatmul.f32.gmra.mxu0 %v760
  %v875 = vpop.f32.mrf.mxu0
  %v876 = vadd.f32 %v664, %v875
  %877 = vmatmul.f32.gmra.mxu0 %v763
  %v878 = vpop.f32.mrf.mxu0
  %v879 = vadd.f32 %v667, %v878
  %880 = vmatmul.f32.gmra.mxu0 %v766
  %v881 = vpop.f32.mrf.mxu0
  %v882 = vadd.f32 %v670, %v881
  %883 = vmatmul.f32.gmra.mxu0 %v769
  %v884 = vpop.f32.mrf.mxu0
  %v885 = vadd.f32 %v673, %v884
  %886 = vmatmul.f32.gmra.mxu0 %v772
  %v887 = vpop.f32.mrf.mxu0
  %v888 = vadd.f32 %v676, %v887
  %889 = vmatmul.f32.gmra.mxu0 %v775
  %v890 = vpop.f32.mrf.mxu0
  %v891 = vadd.f32 %v679, %v890
  %892 = vmatmul.f32.gmra.mxu0 %v778
  %v893 = vpop.f32.mrf.mxu0
  %v894 = vadd.f32 %v682, %v893
  %895 = vmatmul.f32.gmra.mxu0 %v781
  %v896 = vpop.f32.mrf.mxu0
  %v897 = vadd.f32 %v685, %v896
  %898 = vmatmul.f32.gmra.mxu0 %v784
  %v899 = vpop.f32.mrf.mxu0
  %v900 = vadd.f32 %v688, %v899
  %901 = vmatmul.f32.gmra.mxu0 %v787
  %v902 = vpop.f32.mrf.mxu0
  %v903 = vadd.f32 %v691, %v902
  %904 = vmatmul.f32.gmra.mxu0 %v790
  %v905 = vpop.f32.mrf.mxu0
  %v906 = vadd.f32 %v694, %v905
  %907 = vmatmul.f32.gmra.mxu0 %v793
  %v908 = vpop.f32.mrf.mxu0
  %v909 = vadd.f32 %v697, %v908
  %910 = vmatmul.f32.gmra.mxu0 %v796
  %v911 = vpop.f32.mrf.mxu0
  %v912 = vadd.f32 %v700, %v911
  %913 = vmatmul.f32.gmra.mxu0 %v799
  %v914 = vpop.f32.mrf.mxu0
  %v915 = vadd.f32 %v703, %v914
  %916 = vmatmul.f32.gmra.mxu0 %v802
  %v917 = vpop.f32.mrf.mxu0
  %v918 = vadd.f32 %v706, %v917
  %919 = vmatmul.f32.gmra.mxu0 %v805
  %v920 = vpop.f32.mrf.mxu0
  %v921 = vadd.f32 %v709, %v920
  %922 = vmatmul.f32.gmra.mxu0 %v808
  %v923 = vpop.f32.mrf.mxu0
  %v924 = vadd.f32 %v712, %v923
  %925 = vmatmul.f32.gmra.mxu0 %v811
  %v926 = vpop.f32.mrf.mxu0
  %v927 = vadd.f32 %v715, %v926
  %928 = vmatmul.f32.gmra.mxu0 %v814
  %v929 = vpop.f32.mrf.mxu0
  %v930 = vadd.f32 %v718, %v929
  %931 = vmatmul.f32.gmra.mxu0 %v817
  %v932 = vpop.f32.mrf.mxu0
  %v933 = vadd.f32 %v721, %v932
  %934 = vmatmul.f32.gmra.mxu0 %v820
  %v935 = vpop.f32.mrf.mxu0
  %v936 = vadd.f32 %v724, %v935
  %937 = vmatmul.f32.gmra.mxu0 %v823
  %v938 = vpop.f32.mrf.mxu0
  %v939 = vadd.f32 %v727, %v938
  %940 = vmatmul.f32.gmra.mxu0 %v826
  %v941 = vpop.f32.mrf.mxu0
  %v942 = vadd.f32 %v730, %v941
  %943 = vmatmul.f32.gmra.mxu0 %v829
  %v944 = vpop.f32.mrf.mxu0
  %v945 = vadd.f32 %v733, %v944
  %946 = vdwg.mxu0
  %v947 = vld [vmem:[#allocation2 + $0x2] sm:$0xff]
  %v948 = vld [vmem:[#allocation2 + $0xa] sm:$0xff]
  %v949 = vld [vmem:[#allocation2 + $0x1a] sm:$0xff]
  %v950 = vld [vmem:[#allocation2 + $0x22] sm:$0xff]
  %v951 = vld [vmem:[#allocation2 + $0x32] sm:$0xff]
  %v952 = vld [vmem:[#allocation2 + $0x3a] sm:$0xff]
  %v953 = vld [vmem:[#allocation2 + $0x4a] sm:$0xff]
  %v954 = vld [vmem:[#allocation2 + $0x52] sm:$0xff]
  %v955 = vld [vmem:[#allocation2 + $0x62] sm:$0xff]
  %v956 = vld [vmem:[#allocation2 + $0x6a] sm:$0xff]
  %v957 = vld [vmem:[#allocation2 + $0x7a] sm:$0xff]
  %v958 = vld [vmem:[#allocation2 + $0x82] sm:$0xff]
  %v959 = vld [vmem:[#allocation2 + $0x92] sm:$0xff]
  %v960 = vld [vmem:[#allocation2 + $0x9a] sm:$0xff]
  %v961 = vld [vmem:[#allocation2 + $0xaa] sm:$0xff]
  %v962 = vld [vmem:[#allocation2 + $0xb2] sm:$0xff]
  %v963 = vld [vmem:[#allocation2 + $0xc2] sm:$0xff]
  %v964 = vld [vmem:[#allocation2 + $0xca] sm:$0xff]
  %v965 = vld [vmem:[#allocation2 + $0xda] sm:$0xff]
  %v966 = vld [vmem:[#allocation2 + $0xe2] sm:$0xff]
  %v967 = vld [vmem:[#allocation2 + $0xf2] sm:$0xff]
  %v968 = vld [vmem:[#allocation2 + $0xfa] sm:$0xff]
  %v969 = vld [vmem:[#allocation2 + $0x10a] sm:$0xff]
  %v970 = vld [vmem:[#allocation2 + $0x112] sm:$0xff]
  %v971 = vld [vmem:[#allocation2 + $0x122] sm:$0xff]
  %v972 = vld [vmem:[#allocation2 + $0x12a] sm:$0xff]
  %v973 = vld [vmem:[#allocation2 + $0x13a] sm:$0xff]
  %v974 = vld [vmem:[#allocation2 + $0x142] sm:$0xff]
  %v975 = vld [vmem:[#allocation2 + $0x152] sm:$0xff]
  %v976 = vld [vmem:[#allocation2 + $0x15a] sm:$0xff]
  %v977 = vld [vmem:[#allocation2 + $0x16a] sm:$0xff]
  %v978 = vld [vmem:[#allocation2 + $0x172] sm:$0xff]
  %s979 = scalar_lea.vmem %s1, 8
  %v980 = vld [vmem:[%s979] sm:$0xf]
  %v982 = vsel %vm26, %v947, 0
  %v985 = vsel %vm26, %v948, 0
  %v988 = vsel %vm26, %v949, 0
  %v991 = vsel %vm26, %v950, 0
  %v994 = vsel %vm26, %v951, 0
  %v997 = vsel %vm26, %v952, 0
  %v1000 = vsel %vm26, %v953, 0
  %v1003 = vsel %vm26, %v954, 0
  %v1006 = vsel %vm26, %v955, 0
  %v1009 = vsel %vm26, %v956, 0
  %v1012 = vsel %vm26, %v957, 0
  %v1015 = vsel %vm26, %v958, 0
  %v1018 = vsel %vm26, %v959, 0
  %v1021 = vsel %vm26, %v960, 0
  %v1024 = vsel %vm26, %v961, 0
  %v1027 = vsel %vm26, %v962, 0
  %v1030 = vsel %vm26, %v963, 0
  %v1033 = vsel %vm26, %v964, 0
  %v1036 = vsel %vm26, %v965, 0
  %v1039 = vsel %vm26, %v966, 0
  %v1042 = vsel %vm26, %v967, 0
  %v1045 = vsel %vm26, %v968, 0
  %v1048 = vsel %vm26, %v969, 0
  %v1051 = vsel %vm26, %v970, 0
  %v1054 = vsel %vm26, %v971, 0
  %v1057 = vsel %vm26, %v972, 0
  %v1060 = vsel %vm26, %v973, 0
  %v1063 = vsel %vm26, %v974, 0
  %v1066 = vsel %vm26, %v975, 0
  %v1069 = vsel %vm26, %v976, 0
  %v1072 = vsel %vm26, %v977, 0
  %v1075 = vsel %vm26, %v978, 0
  %v1078 = vsel %vm618, %v980, 0
  %1080 = vmatpush.msra.mxu0 0.0
  %1081 = vmatpush.msra.mxu0 0.0
  %1082 = vmatpush.msra.mxu0 0.0
  %1083 = vmatpush.msra.mxu0 0.0
  %1084 = vmatpush.msra.mxu0 0.0
  %1085 = vmatpush.msra.mxu0 0.0
  %1086 = vmatpush.msra.mxu0 0.0
  %1087 = vmatpush.msra.mxu0 0.0
  %1088 = vmatpush.msra.mxu0 0.0
  %1089 = vmatpush.msra.mxu0 0.0
  %1090 = vmatpush.msra.mxu0 0.0
  %1091 = vmatpush.msra.mxu0 0.0
  %1092 = vmatpush.msra.mxu0 0.0
  %1093 = vmatpush.msra.mxu0 0.0
  %1094 = vmatpush.msra.mxu0 0.0
  %1095 = vmatpush.msra.mxu0 %v1078
  %1096 = vmatmul.f32.gmra.mxu0 %v982
  %v1097 = vpop.f32.mrf.mxu0
  %v1098 = vadd.f32 0.0, %v1097
  %1099 = vmatmul.f32.gmra.mxu0 %v985
  %v1100 = vpop.f32.mrf.mxu0
  %v1101 = vadd.f32 0.0, %v1100
  %1102 = vmatmul.f32.gmra.mxu0 %v988
  %v1103 = vpop.f32.mrf.mxu0
  %v1104 = vadd.f32 0.0, %v1103
  %1105 = vmatmul.f32.gmra.mxu0 %v991
  %v1106 = vpop.f32.mrf.mxu0
  %v1107 = vadd.f32 0.0, %v1106
  %1108 = vmatmul.f32.gmra.mxu0 %v994
  %v1109 = vpop.f32.mrf.mxu0
  %v1110 = vadd.f32 0.0, %v1109
  %1111 = vmatmul.f32.gmra.mxu0 %v997
  %v1112 = vpop.f32.mrf.mxu0
  %v1113 = vadd.f32 0.0, %v1112
  %1114 = vmatmul.f32.gmra.mxu0 %v1000
  %v1115 = vpop.f32.mrf.mxu0
  %v1116 = vadd.f32 0.0, %v1115
  %1117 = vmatmul.f32.gmra.mxu0 %v1003
  %v1118 = vpop.f32.mrf.mxu0
  %v1119 = vadd.f32 0.0, %v1118
  %1120 = vmatmul.f32.gmra.mxu0 %v1006
  %v1121 = vpop.f32.mrf.mxu0
  %v1122 = vadd.f32 0.0, %v1121
  %1123 = vmatmul.f32.gmra.mxu0 %v1009
  %v1124 = vpop.f32.mrf.mxu0
  %v1125 = vadd.f32 0.0, %v1124
  %1126 = vmatmul.f32.gmra.mxu0 %v1012
  %v1127 = vpop.f32.mrf.mxu0
  %v1128 = vadd.f32 0.0, %v1127
  %1129 = vmatmul.f32.gmra.mxu0 %v1015
  %v1130 = vpop.f32.mrf.mxu0
  %v1131 = vadd.f32 0.0, %v1130
  %1132 = vmatmul.f32.gmra.mxu0 %v1018
  %v1133 = vpop.f32.mrf.mxu0
  %v1134 = vadd.f32 0.0, %v1133
  %1135 = vmatmul.f32.gmra.mxu0 %v1021
  %v1136 = vpop.f32.mrf.mxu0
  %v1137 = vadd.f32 0.0, %v1136
  %1138 = vmatmul.f32.gmra.mxu0 %v1024
  %v1139 = vpop.f32.mrf.mxu0
  %v1140 = vadd.f32 0.0, %v1139
  %1141 = vmatmul.f32.gmra.mxu0 %v1027
  %v1142 = vpop.f32.mrf.mxu0
  %v1143 = vadd.f32 0.0, %v1142
  %1144 = vmatmul.f32.gmra.mxu0 %v1030
  %v1145 = vpop.f32.mrf.mxu0
  %v1146 = vadd.f32 0.0, %v1145
  %1147 = vmatmul.f32.gmra.mxu0 %v1033
  %v1148 = vpop.f32.mrf.mxu0
  %v1149 = vadd.f32 0.0, %v1148
  %1150 = vmatmul.f32.gmra.mxu0 %v1036
  %v1151 = vpop.f32.mrf.mxu0
  %v1152 = vadd.f32 0.0, %v1151
  %1153 = vmatmul.f32.gmra.mxu0 %v1039
  %v1154 = vpop.f32.mrf.mxu0
  %v1155 = vadd.f32 0.0, %v1154
  %1156 = vmatmul.f32.gmra.mxu0 %v1042
  %v1157 = vpop.f32.mrf.mxu0
  %v1158 = vadd.f32 0.0, %v1157
  %1159 = vmatmul.f32.gmra.mxu0 %v1045
  %v1160 = vpop.f32.mrf.mxu0
  %v1161 = vadd.f32 0.0, %v1160
  %1162 = vmatmul.f32.gmra.mxu0 %v1048
  %v1163 = vpop.f32.mrf.mxu0
  %v1164 = vadd.f32 0.0, %v1163
  %1165 = vmatmul.f32.gmra.mxu0 %v1051
  %v1166 = vpop.f32.mrf.mxu0
  %v1167 = vadd.f32 0.0, %v1166
  %1168 = vmatmul.f32.gmra.mxu0 %v1054
  %v1169 = vpop.f32.mrf.mxu0
  %v1170 = vadd.f32 0.0, %v1169
  %1171 = vmatmul.f32.gmra.mxu0 %v1057
  %v1172 = vpop.f32.mrf.mxu0
  %v1173 = vadd.f32 0.0, %v1172
  %1174 = vmatmul.f32.gmra.mxu0 %v1060
  %v1175 = vpop.f32.mrf.mxu0
  %v1176 = vadd.f32 0.0, %v1175
  %1177 = vmatmul.f32.gmra.mxu0 %v1063
  %v1178 = vpop.f32.mrf.mxu0
  %v1179 = vadd.f32 0.0, %v1178
  %1180 = vmatmul.f32.gmra.mxu0 %v1066
  %v1181 = vpop.f32.mrf.mxu0
  %v1182 = vadd.f32 0.0, %v1181
  %1183 = vmatmul.f32.gmra.mxu0 %v1069
  %v1184 = vpop.f32.mrf.mxu0
  %v1185 = vadd.f32 0.0, %v1184
  %1186 = vmatmul.f32.gmra.mxu0 %v1072
  %v1187 = vpop.f32.mrf.mxu0
  %v1188 = vadd.f32 0.0, %v1187
  %1189 = vmatmul.f32.gmra.mxu0 %v1075
  %v1190 = vpop.f32.mrf.mxu0
  %v1191 = vadd.f32 0.0, %v1190
  %1192 = vdwg.mxu0
  %v1193 = vadd.f32 %v852, %v1098
  %v1194 = vadd.f32 %v855, %v1101
  %v1195 = vadd.f32 %v858, %v1104
  %v1196 = vadd.f32 %v861, %v1107
  %v1197 = vadd.f32 %v864, %v1110
  %v1198 = vadd.f32 %v867, %v1113
  %v1199 = vadd.f32 %v870, %v1116
  %v1200 = vadd.f32 %v873, %v1119
  %v1201 = vadd.f32 %v876, %v1122
  %v1202 = vadd.f32 %v879, %v1125
  %v1203 = vadd.f32 %v882, %v1128
  %v1204 = vadd.f32 %v885, %v1131
  %v1205 = vadd.f32 %v888, %v1134
  %v1206 = vadd.f32 %v891, %v1137
  %v1207 = vadd.f32 %v894, %v1140
  %v1208 = vadd.f32 %v897, %v1143
  %v1209 = vadd.f32 %v900, %v1146
  %v1210 = vadd.f32 %v903, %v1149
  %v1211 = vadd.f32 %v906, %v1152
  %v1212 = vadd.f32 %v909, %v1155
  %v1213 = vadd.f32 %v912, %v1158
  %v1214 = vadd.f32 %v915, %v1161
  %v1215 = vadd.f32 %v918, %v1164
  %v1216 = vadd.f32 %v921, %v1167
  %v1217 = vadd.f32 %v924, %v1170
  %v1218 = vadd.f32 %v927, %v1173
  %v1219 = vadd.f32 %v930, %v1176
  %v1220 = vadd.f32 %v933, %v1179
  %v1221 = vadd.f32 %v936, %v1182
  %v1222 = vadd.f32 %v939, %v1185
  %v1223 = vadd.f32 %v942, %v1188
  %v1224 = vadd.f32 %v945, %v1191
  %v1225 = vld [vmem:[%s317] sm:$0xff]
  %v1226 = vld [vmem:[%s317 + $0x8] sm:$0xff]
  %v1227 = vld [vmem:[%s317 + $0x18] sm:$0xff]
  %v1228 = vld [vmem:[%s317 + $0x20] sm:$0xff]
  %v1229 = vld [vmem:[%s317 + $0x30] sm:$0xff]
  %v1230 = vld [vmem:[%s317 + $0x38] sm:$0xff]
  %v1231 = vld [vmem:[%s317 + $0x48] sm:$0xff]
  %v1232 = vld [vmem:[%s317 + $0x50] sm:$0xff]
  %v1233 = vld [vmem:[%s317 + $0x60] sm:$0xff]
  %v1234 = vld [vmem:[%s317 + $0x68] sm:$0xff]
  %v1235 = vld [vmem:[%s317 + $0x78] sm:$0xff]
  %v1236 = vld [vmem:[%s317 + $0x80] sm:$0xff]
  %v1237 = vld [vmem:[%s317 + $0x90] sm:$0xff]
  %v1238 = vld [vmem:[%s317 + $0x98] sm:$0xff]
  %v1239 = vld [vmem:[%s317 + $0xa8] sm:$0xff]
  %v1240 = vld [vmem:[%s317 + $0xb0] sm:$0xff]
  %v1241 = vld [vmem:[%s317 + $0xc0] sm:$0xff]
  %v1242 = vld [vmem:[%s317 + $0xc8] sm:$0xff]
  %v1243 = vld [vmem:[%s317 + $0xd8] sm:$0xff]
  %v1244 = vld [vmem:[%s317 + $0xe0] sm:$0xff]
  %v1245 = vld [vmem:[%s317 + $0xf0] sm:$0xff]
  %v1246 = vld [vmem:[%s317 + $0xf8] sm:$0xff]
  %v1247 = vld [vmem:[%s317 + $0x108] sm:$0xff]
  %v1248 = vld [vmem:[%s317 + $0x110] sm:$0xff]
  %v1249 = vld [vmem:[%s317 + $0x120] sm:$0xff]
  %v1250 = vld [vmem:[%s317 + $0x128] sm:$0xff]
  %v1251 = vld [vmem:[%s317 + $0x138] sm:$0xff]
  %v1252 = vld [vmem:[%s317 + $0x140] sm:$0xff]
  %v1253 = vld [vmem:[%s317 + $0x150] sm:$0xff]
  %v1254 = vld [vmem:[%s317 + $0x158] sm:$0xff]
  %v1255 = vld [vmem:[%s317 + $0x168] sm:$0xff]
  %v1256 = vld [vmem:[%s317 + $0x170] sm:$0xff]
  %s1257 = scalar_lea.vmem %s1, 12
  %v1258 = vld [vmem:[%s1257] sm:$0xf]
  %v1260 = vsel %vm26, %v1225, 0
  %v1263 = vsel %vm26, %v1226, 0
  %v1266 = vsel %vm26, %v1227, 0
  %v1269 = vsel %vm26, %v1228, 0
  %v1272 = vsel %vm26, %v1229, 0
  %v1275 = vsel %vm26, %v1230, 0
  %v1278 = vsel %vm26, %v1231, 0
  %v1281 = vsel %vm26, %v1232, 0
  %v1284 = vsel %vm26, %v1233, 0
  %v1287 = vsel %vm26, %v1234, 0
  %v1290 = vsel %vm26, %v1235, 0
  %v1293 = vsel %vm26, %v1236, 0
  %v1296 = vsel %vm26, %v1237, 0
  %v1299 = vsel %vm26, %v1238, 0
  %v1302 = vsel %vm26, %v1239, 0
  %v1305 = vsel %vm26, %v1240, 0
  %v1308 = vsel %vm26, %v1241, 0
  %v1311 = vsel %vm26, %v1242, 0
  %v1314 = vsel %vm26, %v1243, 0
  %v1317 = vsel %vm26, %v1244, 0
  %v1320 = vsel %vm26, %v1245, 0
  %v1323 = vsel %vm26, %v1246, 0
  %v1326 = vsel %vm26, %v1247, 0
  %v1329 = vsel %vm26, %v1248, 0
  %v1332 = vsel %vm26, %v1249, 0
  %v1335 = vsel %vm26, %v1250, 0
  %v1338 = vsel %vm26, %v1251, 0
  %v1341 = vsel %vm26, %v1252, 0
  %v1344 = vsel %vm26, %v1253, 0
  %v1347 = vsel %vm26, %v1254, 0
  %v1350 = vsel %vm26, %v1255, 0
  %v1353 = vsel %vm26, %v1256, 0
  %v1356 = vsel %vm618, %v1258, 0
  %1358 = vmatpush.msra.mxu0 0.0
  %1359 = vmatpush.msra.mxu0 0.0
  %1360 = vmatpush.msra.mxu0 0.0
  %1361 = vmatpush.msra.mxu0 0.0
  %1362 = vmatpush.msra.mxu0 0.0
  %1363 = vmatpush.msra.mxu0 0.0
  %1364 = vmatpush.msra.mxu0 0.0
  %1365 = vmatpush.msra.mxu0 0.0
  %1366 = vmatpush.msra.mxu0 0.0
  %1367 = vmatpush.msra.mxu0 0.0
  %1368 = vmatpush.msra.mxu0 0.0
  %1369 = vmatpush.msra.mxu0 0.0
  %1370 = vmatpush.msra.mxu0 0.0
  %1371 = vmatpush.msra.mxu0 0.0
  %1372 = vmatpush.msra.mxu0 0.0
  %1373 = vmatpush.msra.mxu0 %v1356
  %1374 = vmatmul.f32.gmra.mxu0 %v1260
  %v1375 = vpop.f32.mrf.mxu0
  %v1376 = vadd.f32 0.0, %v1375
  %1377 = vmatmul.f32.gmra.mxu0 %v1263
  %v1378 = vpop.f32.mrf.mxu0
  %v1379 = vadd.f32 0.0, %v1378
  %1380 = vmatmul.f32.gmra.mxu0 %v1266
  %v1381 = vpop.f32.mrf.mxu0
  %v1382 = vadd.f32 0.0, %v1381
  %1383 = vmatmul.f32.gmra.mxu0 %v1269
  %v1384 = vpop.f32.mrf.mxu0
  %v1385 = vadd.f32 0.0, %v1384
  %1386 = vmatmul.f32.gmra.mxu0 %v1272
  %v1387 = vpop.f32.mrf.mxu0
  %v1388 = vadd.f32 0.0, %v1387
  %1389 = vmatmul.f32.gmra.mxu0 %v1275
  %v1390 = vpop.f32.mrf.mxu0
  %v1391 = vadd.f32 0.0, %v1390
  %1392 = vmatmul.f32.gmra.mxu0 %v1278
  %v1393 = vpop.f32.mrf.mxu0
  %v1394 = vadd.f32 0.0, %v1393
  %1395 = vmatmul.f32.gmra.mxu0 %v1281
  %v1396 = vpop.f32.mrf.mxu0
  %v1397 = vadd.f32 0.0, %v1396
  %1398 = vmatmul.f32.gmra.mxu0 %v1284
  %v1399 = vpop.f32.mrf.mxu0
  %v1400 = vadd.f32 0.0, %v1399
  %1401 = vmatmul.f32.gmra.mxu0 %v1287
  %v1402 = vpop.f32.mrf.mxu0
  %v1403 = vadd.f32 0.0, %v1402
  %1404 = vmatmul.f32.gmra.mxu0 %v1290
  %v1405 = vpop.f32.mrf.mxu0
  %v1406 = vadd.f32 0.0, %v1405
  %1407 = vmatmul.f32.gmra.mxu0 %v1293
  %v1408 = vpop.f32.mrf.mxu0
  %v1409 = vadd.f32 0.0, %v1408
  %1410 = vmatmul.f32.gmra.mxu0 %v1296
  %v1411 = vpop.f32.mrf.mxu0
  %v1412 = vadd.f32 0.0, %v1411
  %1413 = vmatmul.f32.gmra.mxu0 %v1299
  %v1414 = vpop.f32.mrf.mxu0
  %v1415 = vadd.f32 0.0, %v1414
  %1416 = vmatmul.f32.gmra.mxu0 %v1302
  %v1417 = vpop.f32.mrf.mxu0
  %v1418 = vadd.f32 0.0, %v1417
  %1419 = vmatmul.f32.gmra.mxu0 %v1305
  %v1420 = vpop.f32.mrf.mxu0
  %v1421 = vadd.f32 0.0, %v1420
  %1422 = vmatmul.f32.gmra.mxu0 %v1308
  %v1423 = vpop.f32.mrf.mxu0
  %v1424 = vadd.f32 0.0, %v1423
  %1425 = vmatmul.f32.gmra.mxu0 %v1311
  %v1426 = vpop.f32.mrf.mxu0
  %v1427 = vadd.f32 0.0, %v1426
  %1428 = vmatmul.f32.gmra.mxu0 %v1314
  %v1429 = vpop.f32.mrf.mxu0
  %v1430 = vadd.f32 0.0, %v1429
  %1431 = vmatmul.f32.gmra.mxu0 %v1317
  %v1432 = vpop.f32.mrf.mxu0
  %v1433 = vadd.f32 0.0, %v1432
  %1434 = vmatmul.f32.gmra.mxu0 %v1320
  %v1435 = vpop.f32.mrf.mxu0
  %v1436 = vadd.f32 0.0, %v1435
  %1437 = vmatmul.f32.gmra.mxu0 %v1323
  %v1438 = vpop.f32.mrf.mxu0
  %v1439 = vadd.f32 0.0, %v1438
  %1440 = vmatmul.f32.gmra.mxu0 %v1326
  %v1441 = vpop.f32.mrf.mxu0
  %v1442 = vadd.f32 0.0, %v1441
  %1443 = vmatmul.f32.gmra.mxu0 %v1329
  %v1444 = vpop.f32.mrf.mxu0
  %v1445 = vadd.f32 0.0, %v1444
  %1446 = vmatmul.f32.gmra.mxu0 %v1332
  %v1447 = vpop.f32.mrf.mxu0
  %v1448 = vadd.f32 0.0, %v1447
  %1449 = vmatmul.f32.gmra.mxu0 %v1335
  %v1450 = vpop.f32.mrf.mxu0
  %v1451 = vadd.f32 0.0, %v1450
  %1452 = vmatmul.f32.gmra.mxu0 %v1338
  %v1453 = vpop.f32.mrf.mxu0
  %v1454 = vadd.f32 0.0, %v1453
  %1455 = vmatmul.f32.gmra.mxu0 %v1341
  %v1456 = vpop.f32.mrf.mxu0
  %v1457 = vadd.f32 0.0, %v1456
  %1458 = vmatmul.f32.gmra.mxu0 %v1344
  %v1459 = vpop.f32.mrf.mxu0
  %v1460 = vadd.f32 0.0, %v1459
  %1461 = vmatmul.f32.gmra.mxu0 %v1347
  %v1462 = vpop.f32.mrf.mxu0
  %v1463 = vadd.f32 0.0, %v1462
  %1464 = vmatmul.f32.gmra.mxu0 %v1350
  %v1465 = vpop.f32.mrf.mxu0
  %v1466 = vadd.f32 0.0, %v1465
  %1467 = vmatmul.f32.gmra.mxu0 %v1353
  %v1468 = vpop.f32.mrf.mxu0
  %v1469 = vadd.f32 0.0, %v1468
  %1470 = vdwg.mxu0
  %v1471 = vadd.f32 %v1193, %v1376
  %v1472 = vadd.f32 %v1194, %v1379
  %v1473 = vadd.f32 %v1195, %v1382
  %v1474 = vadd.f32 %v1196, %v1385
  %v1475 = vadd.f32 %v1197, %v1388
  %v1476 = vadd.f32 %v1198, %v1391
  %v1477 = vadd.f32 %v1199, %v1394
  %v1478 = vadd.f32 %v1200, %v1397
  %v1479 = vadd.f32 %v1201, %v1400
  %v1480 = vadd.f32 %v1202, %v1403
  %v1481 = vadd.f32 %v1203, %v1406
  %v1482 = vadd.f32 %v1204, %v1409
  %v1483 = vadd.f32 %v1205, %v1412
  %v1484 = vadd.f32 %v1206, %v1415
  %v1485 = vadd.f32 %v1207, %v1418
  %v1486 = vadd.f32 %v1208, %v1421
  %v1487 = vadd.f32 %v1209, %v1424
  %v1488 = vadd.f32 %v1210, %v1427
  %v1489 = vadd.f32 %v1211, %v1430
  %v1490 = vadd.f32 %v1212, %v1433
  %v1491 = vadd.f32 %v1213, %v1436
  %v1492 = vadd.f32 %v1214, %v1439
  %v1493 = vadd.f32 %v1215, %v1442
  %v1494 = vadd.f32 %v1216, %v1445
  %v1495 = vadd.f32 %v1217, %v1448
  %v1496 = vadd.f32 %v1218, %v1451
  %v1497 = vadd.f32 %v1219, %v1454
  %v1498 = vadd.f32 %v1220, %v1457
  %v1499 = vadd.f32 %v1221, %v1460
  %v1500 = vadd.f32 %v1222, %v1463
  %v1501 = vadd.f32 %v1223, %v1466
  %v1502 = vadd.f32 %v1224, %v1469
  %v1503 = vld [vmem:[%s317 + $0x1] sm:$0xff]
  %v1504 = vld [vmem:[%s317 + $0x9] sm:$0xff]
  %v1505 = vld [vmem:[%s317 + $0x19] sm:$0xff]
  %v1506 = vld [vmem:[%s317 + $0x21] sm:$0xff]
  %v1507 = vld [vmem:[%s317 + $0x31] sm:$0xff]
  %v1508 = vld [vmem:[%s317 + $0x39] sm:$0xff]
  %v1509 = vld [vmem:[%s317 + $0x49] sm:$0xff]
  %v1510 = vld [vmem:[%s317 + $0x51] sm:$0xff]
  %v1511 = vld [vmem:[%s317 + $0x61] sm:$0xff]
  %v1512 = vld [vmem:[%s317 + $0x69] sm:$0xff]
  %v1513 = vld [vmem:[%s317 + $0x79] sm:$0xff]
  %v1514 = vld [vmem:[%s317 + $0x81] sm:$0xff]
  %v1515 = vld [vmem:[%s317 + $0x91] sm:$0xff]
  %v1516 = vld [vmem:[%s317 + $0x99] sm:$0xff]
  %v1517 = vld [vmem:[%s317 + $0xa9] sm:$0xff]
  %v1518 = vld [vmem:[%s317 + $0xb1] sm:$0xff]
  %v1519 = vld [vmem:[%s317 + $0xc1] sm:$0xff]
  %v1520 = vld [vmem:[%s317 + $0xc9] sm:$0xff]
  %v1521 = vld [vmem:[%s317 + $0xd9] sm:$0xff]
  %v1522 = vld [vmem:[%s317 + $0xe1] sm:$0xff]
  %v1523 = vld [vmem:[%s317 + $0xf1] sm:$0xff]
  %v1524 = vld [vmem:[%s317 + $0xf9] sm:$0xff]
  %v1525 = vld [vmem:[%s317 + $0x109] sm:$0xff]
  %v1526 = vld [vmem:[%s317 + $0x111] sm:$0xff]
  %v1527 = vld [vmem:[%s317 + $0x121] sm:$0xff]
  %v1528 = vld [vmem:[%s317 + $0x129] sm:$0xff]
  %v1529 = vld [vmem:[%s317 + $0x139] sm:$0xff]
  %v1530 = vld [vmem:[%s317 + $0x141] sm:$0xff]
  %v1531 = vld [vmem:[%s317 + $0x151] sm:$0xff]
  %v1532 = vld [vmem:[%s317 + $0x159] sm:$0xff]
  %v1533 = vld [vmem:[%s317 + $0x169] sm:$0xff]
  %v1534 = vld [vmem:[%s317 + $0x171] sm:$0xff]
  %s1535 = scalar_lea.vmem %s1, 16
  %v1536 = vld [vmem:[%s1535] sm:$0xf]
  %v1538 = vsel %vm26, %v1503, 0
  %v1541 = vsel %vm26, %v1504, 0
  %v1544 = vsel %vm26, %v1505, 0
  %v1547 = vsel %vm26, %v1506, 0
  %v1550 = vsel %vm26, %v1507, 0
  %v1553 = vsel %vm26, %v1508, 0
  %v1556 = vsel %vm26, %v1509, 0
  %v1559 = vsel %vm26, %v1510, 0
  %v1562 = vsel %vm26, %v1511, 0
  %v1565 = vsel %vm26, %v1512, 0
  %v1568 = vsel %vm26, %v1513, 0
  %v1571 = vsel %vm26, %v1514, 0
  %v1574 = vsel %vm26, %v1515, 0
  %v1577 = vsel %vm26, %v1516, 0
  %v1580 = vsel %vm26, %v1517, 0
  %v1583 = vsel %vm26, %v1518, 0
  %v1586 = vsel %vm26, %v1519, 0
  %v1589 = vsel %vm26, %v1520, 0
  %v1592 = vsel %vm26, %v1521, 0
  %v1595 = vsel %vm26, %v1522, 0
  %v1598 = vsel %vm26, %v1523, 0
  %v1601 = vsel %vm26, %v1524, 0
  %v1604 = vsel %vm26, %v1525, 0
  %v1607 = vsel %vm26, %v1526, 0
  %v1610 = vsel %vm26, %v1527, 0
  %v1613 = vsel %vm26, %v1528, 0
  %v1616 = vsel %vm26, %v1529, 0
  %v1619 = vsel %vm26, %v1530, 0
  %v1622 = vsel %vm26, %v1531, 0
  %v1625 = vsel %vm26, %v1532, 0
  %v1628 = vsel %vm26, %v1533, 0
  %v1631 = vsel %vm26, %v1534, 0
  %v1634 = vsel %vm618, %v1536, 0
  %1636 = vmatpush.msra.mxu0 0.0
  %1637 = vmatpush.msra.mxu0 0.0
  %1638 = vmatpush.msra.mxu0 0.0
  %1639 = vmatpush.msra.mxu0 0.0
  %1640 = vmatpush.msra.mxu0 0.0
  %1641 = vmatpush.msra.mxu0 0.0
  %1642 = vmatpush.msra.mxu0 0.0
  %1643 = vmatpush.msra.mxu0 0.0
  %1644 = vmatpush.msra.mxu0 0.0
  %1645 = vmatpush.msra.mxu0 0.0
  %1646 = vmatpush.msra.mxu0 0.0
  %1647 = vmatpush.msra.mxu0 0.0
  %1648 = vmatpush.msra.mxu0 0.0
  %1649 = vmatpush.msra.mxu0 0.0
  %1650 = vmatpush.msra.mxu0 0.0
  %1651 = vmatpush.msra.mxu0 %v1634
  %1652 = vmatmul.f32.gmra.mxu0 %v1538
  %v1653 = vpop.f32.mrf.mxu0
  %v1654 = vadd.f32 0.0, %v1653
  %1655 = vmatmul.f32.gmra.mxu0 %v1541
  %v1656 = vpop.f32.mrf.mxu0
  %v1657 = vadd.f32 0.0, %v1656
  %1658 = vmatmul.f32.gmra.mxu0 %v1544
  %v1659 = vpop.f32.mrf.mxu0
  %v1660 = vadd.f32 0.0, %v1659
  %1661 = vmatmul.f32.gmra.mxu0 %v1547
  %v1662 = vpop.f32.mrf.mxu0
  %v1663 = vadd.f32 0.0, %v1662
  %1664 = vmatmul.f32.gmra.mxu0 %v1550
  %v1665 = vpop.f32.mrf.mxu0
  %v1666 = vadd.f32 0.0, %v1665
  %1667 = vmatmul.f32.gmra.mxu0 %v1553
  %v1668 = vpop.f32.mrf.mxu0
  %v1669 = vadd.f32 0.0, %v1668
  %1670 = vmatmul.f32.gmra.mxu0 %v1556
  %v1671 = vpop.f32.mrf.mxu0
  %v1672 = vadd.f32 0.0, %v1671
  %1673 = vmatmul.f32.gmra.mxu0 %v1559
  %v1674 = vpop.f32.mrf.mxu0
  %v1675 = vadd.f32 0.0, %v1674
  %1676 = vmatmul.f32.gmra.mxu0 %v1562
  %v1677 = vpop.f32.mrf.mxu0
  %v1678 = vadd.f32 0.0, %v1677
  %1679 = vmatmul.f32.gmra.mxu0 %v1565
  %v1680 = vpop.f32.mrf.mxu0
  %v1681 = vadd.f32 0.0, %v1680
  %1682 = vmatmul.f32.gmra.mxu0 %v1568
  %v1683 = vpop.f32.mrf.mxu0
  %v1684 = vadd.f32 0.0, %v1683
  %1685 = vmatmul.f32.gmra.mxu0 %v1571
  %v1686 = vpop.f32.mrf.mxu0
  %v1687 = vadd.f32 0.0, %v1686
  %1688 = vmatmul.f32.gmra.mxu0 %v1574
  %v1689 = vpop.f32.mrf.mxu0
  %v1690 = vadd.f32 0.0, %v1689
  %1691 = vmatmul.f32.gmra.mxu0 %v1577
  %v1692 = vpop.f32.mrf.mxu0
  %v1693 = vadd.f32 0.0, %v1692
  %1694 = vmatmul.f32.gmra.mxu0 %v1580
  %v1695 = vpop.f32.mrf.mxu0
  %v1696 = vadd.f32 0.0, %v1695
  %1697 = vmatmul.f32.gmra.mxu0 %v1583
  %v1698 = vpop.f32.mrf.mxu0
  %v1699 = vadd.f32 0.0, %v1698
  %1700 = vmatmul.f32.gmra.mxu0 %v1586
  %v1701 = vpop.f32.mrf.mxu0
  %v1702 = vadd.f32 0.0, %v1701
  %1703 = vmatmul.f32.gmra.mxu0 %v1589
  %v1704 = vpop.f32.mrf.mxu0
  %v1705 = vadd.f32 0.0, %v1704
  %1706 = vmatmul.f32.gmra.mxu0 %v1592
  %v1707 = vpop.f32.mrf.mxu0
  %v1708 = vadd.f32 0.0, %v1707
  %1709 = vmatmul.f32.gmra.mxu0 %v1595
  %v1710 = vpop.f32.mrf.mxu0
  %v1711 = vadd.f32 0.0, %v1710
  %1712 = vmatmul.f32.gmra.mxu0 %v1598
  %v1713 = vpop.f32.mrf.mxu0
  %v1714 = vadd.f32 0.0, %v1713
  %1715 = vmatmul.f32.gmra.mxu0 %v1601
  %v1716 = vpop.f32.mrf.mxu0
  %v1717 = vadd.f32 0.0, %v1716
  %1718 = vmatmul.f32.gmra.mxu0 %v1604
  %v1719 = vpop.f32.mrf.mxu0
  %v1720 = vadd.f32 0.0, %v1719
  %1721 = vmatmul.f32.gmra.mxu0 %v1607
  %v1722 = vpop.f32.mrf.mxu0
  %v1723 = vadd.f32 0.0, %v1722
  %1724 = vmatmul.f32.gmra.mxu0 %v1610
  %v1725 = vpop.f32.mrf.mxu0
  %v1726 = vadd.f32 0.0, %v1725
  %1727 = vmatmul.f32.gmra.mxu0 %v1613
  %v1728 = vpop.f32.mrf.mxu0
  %v1729 = vadd.f32 0.0, %v1728
  %1730 = vmatmul.f32.gmra.mxu0 %v1616
  %v1731 = vpop.f32.mrf.mxu0
  %v1732 = vadd.f32 0.0, %v1731
  %1733 = vmatmul.f32.gmra.mxu0 %v1619
  %v1734 = vpop.f32.mrf.mxu0
  %v1735 = vadd.f32 0.0, %v1734
  %1736 = vmatmul.f32.gmra.mxu0 %v1622
  %v1737 = vpop.f32.mrf.mxu0
  %v1738 = vadd.f32 0.0, %v1737
  %1739 = vmatmul.f32.gmra.mxu0 %v1625
  %v1740 = vpop.f32.mrf.mxu0
  %v1741 = vadd.f32 0.0, %v1740
  %1742 = vmatmul.f32.gmra.mxu0 %v1628
  %v1743 = vpop.f32.mrf.mxu0
  %v1744 = vadd.f32 0.0, %v1743
  %1745 = vmatmul.f32.gmra.mxu0 %v1631
  %v1746 = vpop.f32.mrf.mxu0
  %v1747 = vadd.f32 0.0, %v1746
  %1748 = vdwg.mxu0
  %v1749 = vadd.f32 %v1471, %v1654
  %v1750 = vadd.f32 %v1472, %v1657
  %v1751 = vadd.f32 %v1473, %v1660
  %v1752 = vadd.f32 %v1474, %v1663
  %v1753 = vadd.f32 %v1475, %v1666
  %v1754 = vadd.f32 %v1476, %v1669
  %v1755 = vadd.f32 %v1477, %v1672
  %v1756 = vadd.f32 %v1478, %v1675
  %v1757 = vadd.f32 %v1479, %v1678
  %v1758 = vadd.f32 %v1480, %v1681
  %v1759 = vadd.f32 %v1481, %v1684
  %v1760 = vadd.f32 %v1482, %v1687
  %v1761 = vadd.f32 %v1483, %v1690
  %v1762 = vadd.f32 %v1484, %v1693
  %v1763 = vadd.f32 %v1485, %v1696
  %v1764 = vadd.f32 %v1486, %v1699
  %v1765 = vadd.f32 %v1487, %v1702
  %v1766 = vadd.f32 %v1488, %v1705
  %v1767 = vadd.f32 %v1489, %v1708
  %v1768 = vadd.f32 %v1490, %v1711
  %v1769 = vadd.f32 %v1491, %v1714
  %v1770 = vadd.f32 %v1492, %v1717
  %v1771 = vadd.f32 %v1493, %v1720
  %v1772 = vadd.f32 %v1494, %v1723
  %v1773 = vadd.f32 %v1495, %v1726
  %v1774 = vadd.f32 %v1496, %v1729
  %v1775 = vadd.f32 %v1497, %v1732
  %v1776 = vadd.f32 %v1498, %v1735
  %v1777 = vadd.f32 %v1499, %v1738
  %v1778 = vadd.f32 %v1500, %v1741
  %v1779 = vadd.f32 %v1501, %v1744
  %v1780 = vadd.f32 %v1502, %v1747
  %v1781 = vld [vmem:[%s317 + $0x2] sm:$0xff]
  %v1782 = vld [vmem:[%s317 + $0xa] sm:$0xff]
  %v1783 = vld [vmem:[%s317 + $0x1a] sm:$0xff]
  %v1784 = vld [vmem:[%s317 + $0x22] sm:$0xff]
  %v1785 = vld [vmem:[%s317 + $0x32] sm:$0xff]
  %v1786 = vld [vmem:[%s317 + $0x3a] sm:$0xff]
  %v1787 = vld [vmem:[%s317 + $0x4a] sm:$0xff]
  %v1788 = vld [vmem:[%s317 + $0x52] sm:$0xff]
  %v1789 = vld [vmem:[%s317 + $0x62] sm:$0xff]
  %v1790 = vld [vmem:[%s317 + $0x6a] sm:$0xff]
  %v1791 = vld [vmem:[%s317 + $0x7a] sm:$0xff]
  %v1792 = vld [vmem:[%s317 + $0x82] sm:$0xff]
  %v1793 = vld [vmem:[%s317 + $0x92] sm:$0xff]
  %v1794 = vld [vmem:[%s317 + $0x9a] sm:$0xff]
  %v1795 = vld [vmem:[%s317 + $0xaa] sm:$0xff]
  %v1796 = vld [vmem:[%s317 + $0xb2] sm:$0xff]
  %v1797 = vld [vmem:[%s317 + $0xc2] sm:$0xff]
  %v1798 = vld [vmem:[%s317 + $0xca] sm:$0xff]
  %v1799 = vld [vmem:[%s317 + $0xda] sm:$0xff]
  %v1800 = vld [vmem:[%s317 + $0xe2] sm:$0xff]
  %v1801 = vld [vmem:[%s317 + $0xf2] sm:$0xff]
  %v1802 = vld [vmem:[%s317 + $0xfa] sm:$0xff]
  %v1803 = vld [vmem:[%s317 + $0x10a] sm:$0xff]
  %v1804 = vld [vmem:[%s317 + $0x112] sm:$0xff]
  %v1805 = vld [vmem:[%s317 + $0x122] sm:$0xff]
  %v1806 = vld [vmem:[%s317 + $0x12a] sm:$0xff]
  %v1807 = vld [vmem:[%s317 + $0x13a] sm:$0xff]
  %v1808 = vld [vmem:[%s317 + $0x142] sm:$0xff]
  %v1809 = vld [vmem:[%s317 + $0x152] sm:$0xff]
  %v1810 = vld [vmem:[%s317 + $0x15a] sm:$0xff]
  %v1811 = vld [vmem:[%s317 + $0x16a] sm:$0xff]
  %v1812 = vld [vmem:[%s317 + $0x172] sm:$0xff]
  %s1813 = scalar_lea.vmem %s1, 20
  %v1814 = vld [vmem:[%s1813] sm:$0xf]
  %v1816 = vsel %vm26, %v1781, 0
  %v1819 = vsel %vm26, %v1782, 0
  %v1822 = vsel %vm26, %v1783, 0
  %v1825 = vsel %vm26, %v1784, 0
  %v1828 = vsel %vm26, %v1785, 0
  %v1831 = vsel %vm26, %v1786, 0
  %v1834 = vsel %vm26, %v1787, 0
  %v1837 = vsel %vm26, %v1788, 0
  %v1840 = vsel %vm26, %v1789, 0
  %v1843 = vsel %vm26, %v1790, 0
  %v1846 = vsel %vm26, %v1791, 0
  %v1849 = vsel %vm26, %v1792, 0
  %v1852 = vsel %vm26, %v1793, 0
  %v1855 = vsel %vm26, %v1794, 0
  %v1858 = vsel %vm26, %v1795, 0
  %v1861 = vsel %vm26, %v1796, 0
  %v1864 = vsel %vm26, %v1797, 0
  %v1867 = vsel %vm26, %v1798, 0
  %v1870 = vsel %vm26, %v1799, 0
  %v1873 = vsel %vm26, %v1800, 0
  %v1876 = vsel %vm26, %v1801, 0
  %v1879 = vsel %vm26, %v1802, 0
  %v1882 = vsel %vm26, %v1803, 0
  %v1885 = vsel %vm26, %v1804, 0
  %v1888 = vsel %vm26, %v1805, 0
  %v1891 = vsel %vm26, %v1806, 0
  %v1894 = vsel %vm26, %v1807, 0
  %v1897 = vsel %vm26, %v1808, 0
  %v1900 = vsel %vm26, %v1809, 0
  %v1903 = vsel %vm26, %v1810, 0
  %v1906 = vsel %vm26, %v1811, 0
  %v1909 = vsel %vm26, %v1812, 0
  %v1912 = vsel %vm618, %v1814, 0
  %1914 = vmatpush.msra.mxu0 0.0
  %1915 = vmatpush.msra.mxu0 0.0
  %1916 = vmatpush.msra.mxu0 0.0
  %1917 = vmatpush.msra.mxu0 0.0
  %1918 = vmatpush.msra.mxu0 0.0
  %1919 = vmatpush.msra.mxu0 0.0
  %1920 = vmatpush.msra.mxu0 0.0
  %1921 = vmatpush.msra.mxu0 0.0
  %1922 = vmatpush.msra.mxu0 0.0
  %1923 = vmatpush.msra.mxu0 0.0
  %1924 = vmatpush.msra.mxu0 0.0
  %1925 = vmatpush.msra.mxu0 0.0
  %1926 = vmatpush.msra.mxu0 0.0
  %1927 = vmatpush.msra.mxu0 0.0
  %1928 = vmatpush.msra.mxu0 0.0
  %1929 = vmatpush.msra.mxu0 %v1912
  %1930 = vmatmul.f32.gmra.mxu0 %v1816
  %v1931 = vpop.f32.mrf.mxu0
  %v1932 = vadd.f32 0.0, %v1931
  %1933 = vmatmul.f32.gmra.mxu0 %v1819
  %v1934 = vpop.f32.mrf.mxu0
  %v1935 = vadd.f32 0.0, %v1934
  %1936 = vmatmul.f32.gmra.mxu0 %v1822
  %v1937 = vpop.f32.mrf.mxu0
  %v1938 = vadd.f32 0.0, %v1937
  %1939 = vmatmul.f32.gmra.mxu0 %v1825
  %v1940 = vpop.f32.mrf.mxu0
  %v1941 = vadd.f32 0.0, %v1940
  %1942 = vmatmul.f32.gmra.mxu0 %v1828
  %v1943 = vpop.f32.mrf.mxu0
  %v1944 = vadd.f32 0.0, %v1943
  %1945 = vmatmul.f32.gmra.mxu0 %v1831
  %v1946 = vpop.f32.mrf.mxu0
  %v1947 = vadd.f32 0.0, %v1946
  %1948 = vmatmul.f32.gmra.mxu0 %v1834
  %v1949 = vpop.f32.mrf.mxu0
  %v1950 = vadd.f32 0.0, %v1949
  %1951 = vmatmul.f32.gmra.mxu0 %v1837
  %v1952 = vpop.f32.mrf.mxu0
  %v1953 = vadd.f32 0.0, %v1952
  %1954 = vmatmul.f32.gmra.mxu0 %v1840
  %v1955 = vpop.f32.mrf.mxu0
  %v1956 = vadd.f32 0.0, %v1955
  %1957 = vmatmul.f32.gmra.mxu0 %v1843
  %v1958 = vpop.f32.mrf.mxu0
  %v1959 = vadd.f32 0.0, %v1958
  %1960 = vmatmul.f32.gmra.mxu0 %v1846
  %v1961 = vpop.f32.mrf.mxu0
  %v1962 = vadd.f32 0.0, %v1961
  %1963 = vmatmul.f32.gmra.mxu0 %v1849
  %v1964 = vpop.f32.mrf.mxu0
  %v1965 = vadd.f32 0.0, %v1964
  %1966 = vmatmul.f32.gmra.mxu0 %v1852
  %v1967 = vpop.f32.mrf.mxu0
  %v1968 = vadd.f32 0.0, %v1967
  %1969 = vmatmul.f32.gmra.mxu0 %v1855
  %v1970 = vpop.f32.mrf.mxu0
  %v1971 = vadd.f32 0.0, %v1970
  %1972 = vmatmul.f32.gmra.mxu0 %v1858
  %v1973 = vpop.f32.mrf.mxu0
  %v1974 = vadd.f32 0.0, %v1973
  %1975 = vmatmul.f32.gmra.mxu0 %v1861
  %v1976 = vpop.f32.mrf.mxu0
  %v1977 = vadd.f32 0.0, %v1976
  %1978 = vmatmul.f32.gmra.mxu0 %v1864
  %v1979 = vpop.f32.mrf.mxu0
  %v1980 = vadd.f32 0.0, %v1979
  %1981 = vmatmul.f32.gmra.mxu0 %v1867
  %v1982 = vpop.f32.mrf.mxu0
  %v1983 = vadd.f32 0.0, %v1982
  %1984 = vmatmul.f32.gmra.mxu0 %v1870
  %v1985 = vpop.f32.mrf.mxu0
  %v1986 = vadd.f32 0.0, %v1985
  %1987 = vmatmul.f32.gmra.mxu0 %v1873
  %v1988 = vpop.f32.mrf.mxu0
  %v1989 = vadd.f32 0.0, %v1988
  %1990 = vmatmul.f32.gmra.mxu0 %v1876
  %v1991 = vpop.f32.mrf.mxu0
  %v1992 = vadd.f32 0.0, %v1991
  %1993 = vmatmul.f32.gmra.mxu0 %v1879
  %v1994 = vpop.f32.mrf.mxu0
  %v1995 = vadd.f32 0.0, %v1994
  %1996 = vmatmul.f32.gmra.mxu0 %v1882
  %v1997 = vpop.f32.mrf.mxu0
  %v1998 = vadd.f32 0.0, %v1997
  %1999 = vmatmul.f32.gmra.mxu0 %v1885
  %v2000 = vpop.f32.mrf.mxu0
  %v2001 = vadd.f32 0.0, %v2000
  %2002 = vmatmul.f32.gmra.mxu0 %v1888
  %v2003 = vpop.f32.mrf.mxu0
  %v2004 = vadd.f32 0.0, %v2003
  %2005 = vmatmul.f32.gmra.mxu0 %v1891
  %v2006 = vpop.f32.mrf.mxu0
  %v2007 = vadd.f32 0.0, %v2006
  %2008 = vmatmul.f32.gmra.mxu0 %v1894
  %v2009 = vpop.f32.mrf.mxu0
  %v2010 = vadd.f32 0.0, %v2009
  %2011 = vmatmul.f32.gmra.mxu0 %v1897
  %v2012 = vpop.f32.mrf.mxu0
  %v2013 = vadd.f32 0.0, %v2012
  %2014 = vmatmul.f32.gmra.mxu0 %v1900
  %v2015 = vpop.f32.mrf.mxu0
  %v2016 = vadd.f32 0.0, %v2015
  %2017 = vmatmul.f32.gmra.mxu0 %v1903
  %v2018 = vpop.f32.mrf.mxu0
  %v2019 = vadd.f32 0.0, %v2018
  %2020 = vmatmul.f32.gmra.mxu0 %v1906
  %v2021 = vpop.f32.mrf.mxu0
  %v2022 = vadd.f32 0.0, %v2021
  %2023 = vmatmul.f32.gmra.mxu0 %v1909
  %v2024 = vpop.f32.mrf.mxu0
  %v2025 = vadd.f32 0.0, %v2024
  %2026 = vdwg.mxu0
  %v2027 = vadd.f32 %v1749, %v1932
  %v2028 = vadd.f32 %v1750, %v1935
  %v2029 = vadd.f32 %v1751, %v1938
  %v2030 = vadd.f32 %v1752, %v1941
  %v2031 = vadd.f32 %v1753, %v1944
  %v2032 = vadd.f32 %v1754, %v1947
  %v2033 = vadd.f32 %v1755, %v1950
  %v2034 = vadd.f32 %v1756, %v1953
  %v2035 = vadd.f32 %v1757, %v1956
  %v2036 = vadd.f32 %v1758, %v1959
  %v2037 = vadd.f32 %v1759, %v1962
  %v2038 = vadd.f32 %v1760, %v1965
  %v2039 = vadd.f32 %v1761, %v1968
  %v2040 = vadd.f32 %v1762, %v1971
  %v2041 = vadd.f32 %v1763, %v1974
  %v2042 = vadd.f32 %v1764, %v1977
  %v2043 = vadd.f32 %v1765, %v1980
  %v2044 = vadd.f32 %v1766, %v1983
  %v2045 = vadd.f32 %v1767, %v1986
  %v2046 = vadd.f32 %v1768, %v1989
  %v2047 = vadd.f32 %v1769, %v1992
  %v2048 = vadd.f32 %v1770, %v1995
  %v2049 = vadd.f32 %v1771, %v1998
  %v2050 = vadd.f32 %v1772, %v2001
  %v2051 = vadd.f32 %v1773, %v2004
  %v2052 = vadd.f32 %v1774, %v2007
  %v2053 = vadd.f32 %v1775, %v2010
  %v2054 = vadd.f32 %v1776, %v2013
  %v2055 = vadd.f32 %v1777, %v2016
  %v2056 = vadd.f32 %v1778, %v2019
  %v2057 = vadd.f32 %v1779, %v2022
  %v2058 = vadd.f32 %v1780, %v2025
  %s2059 = scalar_lea.vmem [#allocation2], 48
  %v2060 = vld [vmem:[%s2059] sm:$0xff]
  %v2061 = vld [vmem:[%s2059 + $0x8] sm:$0xff]
  %v2062 = vld [vmem:[%s2059 + $0x18] sm:$0xff]
  %v2063 = vld [vmem:[%s2059 + $0x20] sm:$0xff]
  %v2064 = vld [vmem:[%s2059 + $0x30] sm:$0xff]
  %v2065 = vld [vmem:[%s2059 + $0x38] sm:$0xff]
  %v2066 = vld [vmem:[%s2059 + $0x48] sm:$0xff]
  %v2067 = vld [vmem:[%s2059 + $0x50] sm:$0xff]
  %v2068 = vld [vmem:[%s2059 + $0x60] sm:$0xff]
  %v2069 = vld [vmem:[%s2059 + $0x68] sm:$0xff]
  %v2070 = vld [vmem:[%s2059 + $0x78] sm:$0xff]
  %v2071 = vld [vmem:[%s2059 + $0x80] sm:$0xff]
  %v2072 = vld [vmem:[%s2059 + $0x90] sm:$0xff]
  %v2073 = vld [vmem:[%s2059 + $0x98] sm:$0xff]
  %v2074 = vld [vmem:[%s2059 + $0xa8] sm:$0xff]
  %v2075 = vld [vmem:[%s2059 + $0xb0] sm:$0xff]
  %v2076 = vld [vmem:[%s2059 + $0xc0] sm:$0xff]
  %v2077 = vld [vmem:[%s2059 + $0xc8] sm:$0xff]
  %v2078 = vld [vmem:[%s2059 + $0xd8] sm:$0xff]
  %v2079 = vld [vmem:[%s2059 + $0xe0] sm:$0xff]
  %v2080 = vld [vmem:[%s2059 + $0xf0] sm:$0xff]
  %v2081 = vld [vmem:[%s2059 + $0xf8] sm:$0xff]
  %v2082 = vld [vmem:[%s2059 + $0x108] sm:$0xff]
  %v2083 = vld [vmem:[%s2059 + $0x110] sm:$0xff]
  %v2084 = vld [vmem:[%s2059 + $0x120] sm:$0xff]
  %v2085 = vld [vmem:[%s2059 + $0x128] sm:$0xff]
  %v2086 = vld [vmem:[%s2059 + $0x138] sm:$0xff]
  %v2087 = vld [vmem:[%s2059 + $0x140] sm:$0xff]
  %v2088 = vld [vmem:[%s2059 + $0x150] sm:$0xff]
  %v2089 = vld [vmem:[%s2059 + $0x158] sm:$0xff]
  %v2090 = vld [vmem:[%s2059 + $0x168] sm:$0xff]
  %v2091 = vld [vmem:[%s2059 + $0x170] sm:$0xff]
  %s2092 = scalar_lea.vmem %s1, 24
  %v2093 = vld [vmem:[%s2092] sm:$0xf]
  %v2095 = vsel %vm26, %v2060, 0
  %v2098 = vsel %vm26, %v2061, 0
  %v2101 = vsel %vm26, %v2062, 0
  %v2104 = vsel %vm26, %v2063, 0
  %v2107 = vsel %vm26, %v2064, 0
  %v2110 = vsel %vm26, %v2065, 0
  %v2113 = vsel %vm26, %v2066, 0
  %v2116 = vsel %vm26, %v2067, 0
  %v2119 = vsel %vm26, %v2068, 0
  %v2122 = vsel %vm26, %v2069, 0
  %v2125 = vsel %vm26, %v2070, 0
  %v2128 = vsel %vm26, %v2071, 0
  %v2131 = vsel %vm26, %v2072, 0
  %v2134 = vsel %vm26, %v2073, 0
  %v2137 = vsel %vm26, %v2074, 0
  %v2140 = vsel %vm26, %v2075, 0
  %v2143 = vsel %vm26, %v2076, 0
  %v2146 = vsel %vm26, %v2077, 0
  %v2149 = vsel %vm26, %v2078, 0
  %v2152 = vsel %vm26, %v2079, 0
  %v2155 = vsel %vm26, %v2080, 0
  %v2158 = vsel %vm26, %v2081, 0
  %v2161 = vsel %vm26, %v2082, 0
  %v2164 = vsel %vm26, %v2083, 0
  %v2167 = vsel %vm26, %v2084, 0
  %v2170 = vsel %vm26, %v2085, 0
  %v2173 = vsel %vm26, %v2086, 0
  %v2176 = vsel %vm26, %v2087, 0
  %v2179 = vsel %vm26, %v2088, 0
  %v2182 = vsel %vm26, %v2089, 0
  %v2185 = vsel %vm26, %v2090, 0
  %v2188 = vsel %vm26, %v2091, 0
  %v2191 = vsel %vm618, %v2093, 0
  %2193 = vmatpush.msra.mxu0 0.0
  %2194 = vmatpush.msra.mxu0 0.0
  %2195 = vmatpush.msra.mxu0 0.0
  %2196 = vmatpush.msra.mxu0 0.0
  %2197 = vmatpush.msra.mxu0 0.0
  %2198 = vmatpush.msra.mxu0 0.0
  %2199 = vmatpush.msra.mxu0 0.0
  %2200 = vmatpush.msra.mxu0 0.0
  %2201 = vmatpush.msra.mxu0 0.0
  %2202 = vmatpush.msra.mxu0 0.0
  %2203 = vmatpush.msra.mxu0 0.0
  %2204 = vmatpush.msra.mxu0 0.0
  %2205 = vmatpush.msra.mxu0 0.0
  %2206 = vmatpush.msra.mxu0 0.0
  %2207 = vmatpush.msra.mxu0 0.0
  %2208 = vmatpush.msra.mxu0 %v2191
  %2209 = vmatmul.f32.gmra.mxu0 %v2095
  %v2210 = vpop.f32.mrf.mxu0
  %v2211 = vadd.f32 0.0, %v2210
  %2212 = vmatmul.f32.gmra.mxu0 %v2098
  %v2213 = vpop.f32.mrf.mxu0
  %v2214 = vadd.f32 0.0, %v2213
  %2215 = vmatmul.f32.gmra.mxu0 %v2101
  %v2216 = vpop.f32.mrf.mxu0
  %v2217 = vadd.f32 0.0, %v2216
  %2218 = vmatmul.f32.gmra.mxu0 %v2104
  %v2219 = vpop.f32.mrf.mxu0
  %v2220 = vadd.f32 0.0, %v2219
  %2221 = vmatmul.f32.gmra.mxu0 %v2107
  %v2222 = vpop.f32.mrf.mxu0
  %v2223 = vadd.f32 0.0, %v2222
  %2224 = vmatmul.f32.gmra.mxu0 %v2110
  %v2225 = vpop.f32.mrf.mxu0
  %v2226 = vadd.f32 0.0, %v2225
  %2227 = vmatmul.f32.gmra.mxu0 %v2113
  %v2228 = vpop.f32.mrf.mxu0
  %v2229 = vadd.f32 0.0, %v2228
  %2230 = vmatmul.f32.gmra.mxu0 %v2116
  %v2231 = vpop.f32.mrf.mxu0
  %v2232 = vadd.f32 0.0, %v2231
  %2233 = vmatmul.f32.gmra.mxu0 %v2119
  %v2234 = vpop.f32.mrf.mxu0
  %v2235 = vadd.f32 0.0, %v2234
  %2236 = vmatmul.f32.gmra.mxu0 %v2122
  %v2237 = vpop.f32.mrf.mxu0
  %v2238 = vadd.f32 0.0, %v2237
  %2239 = vmatmul.f32.gmra.mxu0 %v2125
  %v2240 = vpop.f32.mrf.mxu0
  %v2241 = vadd.f32 0.0, %v2240
  %2242 = vmatmul.f32.gmra.mxu0 %v2128
  %v2243 = vpop.f32.mrf.mxu0
  %v2244 = vadd.f32 0.0, %v2243
  %2245 = vmatmul.f32.gmra.mxu0 %v2131
  %v2246 = vpop.f32.mrf.mxu0
  %v2247 = vadd.f32 0.0, %v2246
  %2248 = vmatmul.f32.gmra.mxu0 %v2134
  %v2249 = vpop.f32.mrf.mxu0
  %v2250 = vadd.f32 0.0, %v2249
  %2251 = vmatmul.f32.gmra.mxu0 %v2137
  %v2252 = vpop.f32.mrf.mxu0
  %v2253 = vadd.f32 0.0, %v2252
  %2254 = vmatmul.f32.gmra.mxu0 %v2140
  %v2255 = vpop.f32.mrf.mxu0
  %v2256 = vadd.f32 0.0, %v2255
  %2257 = vmatmul.f32.gmra.mxu0 %v2143
  %v2258 = vpop.f32.mrf.mxu0
  %v2259 = vadd.f32 0.0, %v2258
  %2260 = vmatmul.f32.gmra.mxu0 %v2146
  %v2261 = vpop.f32.mrf.mxu0
  %v2262 = vadd.f32 0.0, %v2261
  %2263 = vmatmul.f32.gmra.mxu0 %v2149
  %v2264 = vpop.f32.mrf.mxu0
  %v2265 = vadd.f32 0.0, %v2264
  %2266 = vmatmul.f32.gmra.mxu0 %v2152
  %v2267 = vpop.f32.mrf.mxu0
  %v2268 = vadd.f32 0.0, %v2267
  %2269 = vmatmul.f32.gmra.mxu0 %v2155
  %v2270 = vpop.f32.mrf.mxu0
  %v2271 = vadd.f32 0.0, %v2270
  %2272 = vmatmul.f32.gmra.mxu0 %v2158
  %v2273 = vpop.f32.mrf.mxu0
  %v2274 = vadd.f32 0.0, %v2273
  %2275 = vmatmul.f32.gmra.mxu0 %v2161
  %v2276 = vpop.f32.mrf.mxu0
  %v2277 = vadd.f32 0.0, %v2276
  %2278 = vmatmul.f32.gmra.mxu0 %v2164
  %v2279 = vpop.f32.mrf.mxu0
  %v2280 = vadd.f32 0.0, %v2279
  %2281 = vmatmul.f32.gmra.mxu0 %v2167
  %v2282 = vpop.f32.mrf.mxu0
  %v2283 = vadd.f32 0.0, %v2282
  %2284 = vmatmul.f32.gmra.mxu0 %v2170
  %v2285 = vpop.f32.mrf.mxu0
  %v2286 = vadd.f32 0.0, %v2285
  %2287 = vmatmul.f32.gmra.mxu0 %v2173
  %v2288 = vpop.f32.mrf.mxu0
  %v2289 = vadd.f32 0.0, %v2288
  %2290 = vmatmul.f32.gmra.mxu0 %v2176
  %v2291 = vpop.f32.mrf.mxu0
  %v2292 = vadd.f32 0.0, %v2291
  %2293 = vmatmul.f32.gmra.mxu0 %v2179
  %v2294 = vpop.f32.mrf.mxu0
  %v2295 = vadd.f32 0.0, %v2294
  %2296 = vmatmul.f32.gmra.mxu0 %v2182
  %v2297 = vpop.f32.mrf.mxu0
  %v2298 = vadd.f32 0.0, %v2297
  %2299 = vmatmul.f32.gmra.mxu0 %v2185
  %v2300 = vpop.f32.mrf.mxu0
  %v2301 = vadd.f32 0.0, %v2300
  %2302 = vmatmul.f32.gmra.mxu0 %v2188
  %v2303 = vpop.f32.mrf.mxu0
  %v2304 = vadd.f32 0.0, %v2303
  %2305 = vdwg.mxu0
  %v2306 = vadd.f32 %v2027, %v2211
  %v2307 = vadd.f32 %v2028, %v2214
  %v2308 = vadd.f32 %v2029, %v2217
  %v2309 = vadd.f32 %v2030, %v2220
  %v2310 = vadd.f32 %v2031, %v2223
  %v2311 = vadd.f32 %v2032, %v2226
  %v2312 = vadd.f32 %v2033, %v2229
  %v2313 = vadd.f32 %v2034, %v2232
  %v2314 = vadd.f32 %v2035, %v2235
  %v2315 = vadd.f32 %v2036, %v2238
  %v2316 = vadd.f32 %v2037, %v2241
  %v2317 = vadd.f32 %v2038, %v2244
  %v2318 = vadd.f32 %v2039, %v2247
  %v2319 = vadd.f32 %v2040, %v2250
  %v2320 = vadd.f32 %v2041, %v2253
  %v2321 = vadd.f32 %v2042, %v2256
  %v2322 = vadd.f32 %v2043, %v2259
  %v2323 = vadd.f32 %v2044, %v2262
  %v2324 = vadd.f32 %v2045, %v2265
  %v2325 = vadd.f32 %v2046, %v2268
  %v2326 = vadd.f32 %v2047, %v2271
  %v2327 = vadd.f32 %v2048, %v2274
  %v2328 = vadd.f32 %v2049, %v2277
  %v2329 = vadd.f32 %v2050, %v2280
  %v2330 = vadd.f32 %v2051, %v2283
  %v2331 = vadd.f32 %v2052, %v2286
  %v2332 = vadd.f32 %v2053, %v2289
  %v2333 = vadd.f32 %v2054, %v2292
  %v2334 = vadd.f32 %v2055, %v2295
  %v2335 = vadd.f32 %v2056, %v2298
  %v2336 = vadd.f32 %v2057, %v2301
  %v2337 = vadd.f32 %v2058, %v2304
  %v2338 = vld [vmem:[%s2059 + $0x1] sm:$0xff]
  %v2339 = vld [vmem:[%s2059 + $0x9] sm:$0xff]
  %v2340 = vld [vmem:[%s2059 + $0x19] sm:$0xff]
  %v2341 = vld [vmem:[%s2059 + $0x21] sm:$0xff]
  %v2342 = vld [vmem:[%s2059 + $0x31] sm:$0xff]
  %v2343 = vld [vmem:[%s2059 + $0x39] sm:$0xff]
  %v2344 = vld [vmem:[%s2059 + $0x49] sm:$0xff]
  %v2345 = vld [vmem:[%s2059 + $0x51] sm:$0xff]
  %v2346 = vld [vmem:[%s2059 + $0x61] sm:$0xff]
  %v2347 = vld [vmem:[%s2059 + $0x69] sm:$0xff]
  %v2348 = vld [vmem:[%s2059 + $0x79] sm:$0xff]
  %v2349 = vld [vmem:[%s2059 + $0x81] sm:$0xff]
  %v2350 = vld [vmem:[%s2059 + $0x91] sm:$0xff]
  %v2351 = vld [vmem:[%s2059 + $0x99] sm:$0xff]
  %v2352 = vld [vmem:[%s2059 + $0xa9] sm:$0xff]
  %v2353 = vld [vmem:[%s2059 + $0xb1] sm:$0xff]
  %v2354 = vld [vmem:[%s2059 + $0xc1] sm:$0xff]
  %v2355 = vld [vmem:[%s2059 + $0xc9] sm:$0xff]
  %v2356 = vld [vmem:[%s2059 + $0xd9] sm:$0xff]
  %v2357 = vld [vmem:[%s2059 + $0xe1] sm:$0xff]
  %v2358 = vld [vmem:[%s2059 + $0xf1] sm:$0xff]
  %v2359 = vld [vmem:[%s2059 + $0xf9] sm:$0xff]
  %v2360 = vld [vmem:[%s2059 + $0x109] sm:$0xff]
  %v2361 = vld [vmem:[%s2059 + $0x111] sm:$0xff]
  %v2362 = vld [vmem:[%s2059 + $0x121] sm:$0xff]
  %v2363 = vld [vmem:[%s2059 + $0x129] sm:$0xff]
  %v2364 = vld [vmem:[%s2059 + $0x139] sm:$0xff]
  %v2365 = vld [vmem:[%s2059 + $0x141] sm:$0xff]
  %v2366 = vld [vmem:[%s2059 + $0x151] sm:$0xff]
  %v2367 = vld [vmem:[%s2059 + $0x159] sm:$0xff]
  %v2368 = vld [vmem:[%s2059 + $0x169] sm:$0xff]
  %v2369 = vld [vmem:[%s2059 + $0x171] sm:$0xff]
  %s2370 = scalar_lea.vmem %s1, 28
  %v2371 = vld [vmem:[%s2370] sm:$0xf]
  %v2373 = vsel %vm26, %v2338, 0
  %v2376 = vsel %vm26, %v2339, 0
  %v2379 = vsel %vm26, %v2340, 0
  %v2382 = vsel %vm26, %v2341, 0
  %v2385 = vsel %vm26, %v2342, 0
  %v2388 = vsel %vm26, %v2343, 0
  %v2391 = vsel %vm26, %v2344, 0
  %v2394 = vsel %vm26, %v2345, 0
  %v2397 = vsel %vm26, %v2346, 0
  %v2400 = vsel %vm26, %v2347, 0
  %v2403 = vsel %vm26, %v2348, 0
  %v2406 = vsel %vm26, %v2349, 0
  %v2409 = vsel %vm26, %v2350, 0
  %v2412 = vsel %vm26, %v2351, 0
  %v2415 = vsel %vm26, %v2352, 0
  %v2418 = vsel %vm26, %v2353, 0
  %v2421 = vsel %vm26, %v2354, 0
  %v2424 = vsel %vm26, %v2355, 0
  %v2427 = vsel %vm26, %v2356, 0
  %v2430 = vsel %vm26, %v2357, 0
  %v2433 = vsel %vm26, %v2358, 0
  %v2436 = vsel %vm26, %v2359, 0
  %v2439 = vsel %vm26, %v2360, 0
  %v2442 = vsel %vm26, %v2361, 0
  %v2445 = vsel %vm26, %v2362, 0
  %v2448 = vsel %vm26, %v2363, 0
  %v2451 = vsel %vm26, %v2364, 0
  %v2454 = vsel %vm26, %v2365, 0
  %v2457 = vsel %vm26, %v2366, 0
  %v2460 = vsel %vm26, %v2367, 0
  %v2463 = vsel %vm26, %v2368, 0
  %v2466 = vsel %vm26, %v2369, 0
  %v2469 = vsel %vm618, %v2371, 0
  %2471 = vmatpush.msra.mxu0 0.0
  %2472 = vmatpush.msra.mxu0 0.0
  %2473 = vmatpush.msra.mxu0 0.0
  %2474 = vmatpush.msra.mxu0 0.0
  %2475 = vmatpush.msra.mxu0 0.0
  %2476 = vmatpush.msra.mxu0 0.0
  %2477 = vmatpush.msra.mxu0 0.0
  %2478 = vmatpush.msra.mxu0 0.0
  %2479 = vmatpush.msra.mxu0 0.0
  %2480 = vmatpush.msra.mxu0 0.0
  %2481 = vmatpush.msra.mxu0 0.0
  %2482 = vmatpush.msra.mxu0 0.0
  %2483 = vmatpush.msra.mxu0 0.0
  %2484 = vmatpush.msra.mxu0 0.0
  %2485 = vmatpush.msra.mxu0 0.0
  %2486 = vmatpush.msra.mxu0 %v2469
  %2487 = vmatmul.f32.gmra.mxu0 %v2373
  %v2488 = vpop.f32.mrf.mxu0
  %v2489 = vadd.f32 0.0, %v2488
  %2490 = vmatmul.f32.gmra.mxu0 %v2376
  %v2491 = vpop.f32.mrf.mxu0
  %v2492 = vadd.f32 0.0, %v2491
  %2493 = vmatmul.f32.gmra.mxu0 %v2379
  %v2494 = vpop.f32.mrf.mxu0
  %v2495 = vadd.f32 0.0, %v2494
  %2496 = vmatmul.f32.gmra.mxu0 %v2382
  %v2497 = vpop.f32.mrf.mxu0
  %v2498 = vadd.f32 0.0, %v2497
  %2499 = vmatmul.f32.gmra.mxu0 %v2385
  %v2500 = vpop.f32.mrf.mxu0
  %v2501 = vadd.f32 0.0, %v2500
  %2502 = vmatmul.f32.gmra.mxu0 %v2388
  %v2503 = vpop.f32.mrf.mxu0
  %v2504 = vadd.f32 0.0, %v2503
  %2505 = vmatmul.f32.gmra.mxu0 %v2391
  %v2506 = vpop.f32.mrf.mxu0
  %v2507 = vadd.f32 0.0, %v2506
  %2508 = vmatmul.f32.gmra.mxu0 %v2394
  %v2509 = vpop.f32.mrf.mxu0
  %v2510 = vadd.f32 0.0, %v2509
  %2511 = vmatmul.f32.gmra.mxu0 %v2397
  %v2512 = vpop.f32.mrf.mxu0
  %v2513 = vadd.f32 0.0, %v2512
  %2514 = vmatmul.f32.gmra.mxu0 %v2400
  %v2515 = vpop.f32.mrf.mxu0
  %v2516 = vadd.f32 0.0, %v2515
  %2517 = vmatmul.f32.gmra.mxu0 %v2403
  %v2518 = vpop.f32.mrf.mxu0
  %v2519 = vadd.f32 0.0, %v2518
  %2520 = vmatmul.f32.gmra.mxu0 %v2406
  %v2521 = vpop.f32.mrf.mxu0
  %v2522 = vadd.f32 0.0, %v2521
  %2523 = vmatmul.f32.gmra.mxu0 %v2409
  %v2524 = vpop.f32.mrf.mxu0
  %v2525 = vadd.f32 0.0, %v2524
  %2526 = vmatmul.f32.gmra.mxu0 %v2412
  %v2527 = vpop.f32.mrf.mxu0
  %v2528 = vadd.f32 0.0, %v2527
  %2529 = vmatmul.f32.gmra.mxu0 %v2415
  %v2530 = vpop.f32.mrf.mxu0
  %v2531 = vadd.f32 0.0, %v2530
  %2532 = vmatmul.f32.gmra.mxu0 %v2418
  %v2533 = vpop.f32.mrf.mxu0
  %v2534 = vadd.f32 0.0, %v2533
  %2535 = vmatmul.f32.gmra.mxu0 %v2421
  %v2536 = vpop.f32.mrf.mxu0
  %v2537 = vadd.f32 0.0, %v2536
  %2538 = vmatmul.f32.gmra.mxu0 %v2424
  %v2539 = vpop.f32.mrf.mxu0
  %v2540 = vadd.f32 0.0, %v2539
  %2541 = vmatmul.f32.gmra.mxu0 %v2427
  %v2542 = vpop.f32.mrf.mxu0
  %v2543 = vadd.f32 0.0, %v2542
  %2544 = vmatmul.f32.gmra.mxu0 %v2430
  %v2545 = vpop.f32.mrf.mxu0
  %v2546 = vadd.f32 0.0, %v2545
  %2547 = vmatmul.f32.gmra.mxu0 %v2433
  %v2548 = vpop.f32.mrf.mxu0
  %v2549 = vadd.f32 0.0, %v2548
  %2550 = vmatmul.f32.gmra.mxu0 %v2436
  %v2551 = vpop.f32.mrf.mxu0
  %v2552 = vadd.f32 0.0, %v2551
  %2553 = vmatmul.f32.gmra.mxu0 %v2439
  %v2554 = vpop.f32.mrf.mxu0
  %v2555 = vadd.f32 0.0, %v2554
  %2556 = vmatmul.f32.gmra.mxu0 %v2442
  %v2557 = vpop.f32.mrf.mxu0
  %v2558 = vadd.f32 0.0, %v2557
  %2559 = vmatmul.f32.gmra.mxu0 %v2445
  %v2560 = vpop.f32.mrf.mxu0
  %v2561 = vadd.f32 0.0, %v2560
  %2562 = vmatmul.f32.gmra.mxu0 %v2448
  %v2563 = vpop.f32.mrf.mxu0
  %v2564 = vadd.f32 0.0, %v2563
  %2565 = vmatmul.f32.gmra.mxu0 %v2451
  %v2566 = vpop.f32.mrf.mxu0
  %v2567 = vadd.f32 0.0, %v2566
  %2568 = vmatmul.f32.gmra.mxu0 %v2454
  %v2569 = vpop.f32.mrf.mxu0
  %v2570 = vadd.f32 0.0, %v2569
  %2571 = vmatmul.f32.gmra.mxu0 %v2457
  %v2572 = vpop.f32.mrf.mxu0
  %v2573 = vadd.f32 0.0, %v2572
  %2574 = vmatmul.f32.gmra.mxu0 %v2460
  %v2575 = vpop.f32.mrf.mxu0
  %v2576 = vadd.f32 0.0, %v2575
  %2577 = vmatmul.f32.gmra.mxu0 %v2463
  %v2578 = vpop.f32.mrf.mxu0
  %v2579 = vadd.f32 0.0, %v2578
  %2580 = vmatmul.f32.gmra.mxu0 %v2466
  %v2581 = vpop.f32.mrf.mxu0
  %v2582 = vadd.f32 0.0, %v2581
  %2583 = vdwg.mxu0
  %v2584 = vadd.f32 %v2306, %v2489
  %v2585 = vadd.f32 %v2307, %v2492
  %v2586 = vadd.f32 %v2308, %v2495
  %v2587 = vadd.f32 %v2309, %v2498
  %v2588 = vadd.f32 %v2310, %v2501
  %v2589 = vadd.f32 %v2311, %v2504
  %v2590 = vadd.f32 %v2312, %v2507
  %v2591 = vadd.f32 %v2313, %v2510
  %v2592 = vadd.f32 %v2314, %v2513
  %v2593 = vadd.f32 %v2315, %v2516
  %v2594 = vadd.f32 %v2316, %v2519
  %v2595 = vadd.f32 %v2317, %v2522
  %v2596 = vadd.f32 %v2318, %v2525
  %v2597 = vadd.f32 %v2319, %v2528
  %v2598 = vadd.f32 %v2320, %v2531
  %v2599 = vadd.f32 %v2321, %v2534
  %v2600 = vadd.f32 %v2322, %v2537
  %v2601 = vadd.f32 %v2323, %v2540
  %v2602 = vadd.f32 %v2324, %v2543
  %v2603 = vadd.f32 %v2325, %v2546
  %v2604 = vadd.f32 %v2326, %v2549
  %v2605 = vadd.f32 %v2327, %v2552
  %v2606 = vadd.f32 %v2328, %v2555
  %v2607 = vadd.f32 %v2329, %v2558
  %v2608 = vadd.f32 %v2330, %v2561
  %v2609 = vadd.f32 %v2331, %v2564
  %v2610 = vadd.f32 %v2332, %v2567
  %v2611 = vadd.f32 %v2333, %v2570
  %v2612 = vadd.f32 %v2334, %v2573
  %v2613 = vadd.f32 %v2335, %v2576
  %v2614 = vadd.f32 %v2336, %v2579
  %v2615 = vadd.f32 %v2337, %v2582
  %v2616 = vld [vmem:[%s2059 + $0x2] sm:$0xff]
  %v2617 = vld [vmem:[%s2059 + $0xa] sm:$0xff]
  %v2618 = vld [vmem:[%s2059 + $0x1a] sm:$0xff]
  %v2619 = vld [vmem:[%s2059 + $0x22] sm:$0xff]
  %v2620 = vld [vmem:[%s2059 + $0x32] sm:$0xff]
  %v2621 = vld [vmem:[%s2059 + $0x3a] sm:$0xff]
  %v2622 = vld [vmem:[%s2059 + $0x4a] sm:$0xff]
  %v2623 = vld [vmem:[%s2059 + $0x52] sm:$0xff]
  %v2624 = vld [vmem:[%s2059 + $0x62] sm:$0xff]
  %v2625 = vld [vmem:[%s2059 + $0x6a] sm:$0xff]
  %v2626 = vld [vmem:[%s2059 + $0x7a] sm:$0xff]
  %v2627 = vld [vmem:[%s2059 + $0x82] sm:$0xff]
  %v2628 = vld [vmem:[%s2059 + $0x92] sm:$0xff]
  %v2629 = vld [vmem:[%s2059 + $0x9a] sm:$0xff]
  %v2630 = vld [vmem:[%s2059 + $0xaa] sm:$0xff]
  %v2631 = vld [vmem:[%s2059 + $0xb2] sm:$0xff]
  %v2632 = vld [vmem:[%s2059 + $0xc2] sm:$0xff]
  %v2633 = vld [vmem:[%s2059 + $0xca] sm:$0xff]
  %v2634 = vld [vmem:[%s2059 + $0xda] sm:$0xff]
  %v2635 = vld [vmem:[%s2059 + $0xe2] sm:$0xff]
  %v2636 = vld [vmem:[%s2059 + $0xf2] sm:$0xff]
  %v2637 = vld [vmem:[%s2059 + $0xfa] sm:$0xff]
  %v2638 = vld [vmem:[%s2059 + $0x10a] sm:$0xff]
  %v2639 = vld [vmem:[%s2059 + $0x112] sm:$0xff]
  %v2640 = vld [vmem:[%s2059 + $0x122] sm:$0xff]
  %v2641 = vld [vmem:[%s2059 + $0x12a] sm:$0xff]
  %v2642 = vld [vmem:[%s2059 + $0x13a] sm:$0xff]
  %v2643 = vld [vmem:[%s2059 + $0x142] sm:$0xff]
  %v2644 = vld [vmem:[%s2059 + $0x152] sm:$0xff]
  %v2645 = vld [vmem:[%s2059 + $0x15a] sm:$0xff]
  %v2646 = vld [vmem:[%s2059 + $0x16a] sm:$0xff]
  %v2647 = vld [vmem:[%s2059 + $0x172] sm:$0xff]
  %s2648 = scalar_lea.vmem %s1, 32
  %v2649 = vld [vmem:[%s2648] sm:$0xf]
  %v2651 = vsel %vm26, %v2616, 0
  %v2654 = vsel %vm26, %v2617, 0
  %v2657 = vsel %vm26, %v2618, 0
  %v2660 = vsel %vm26, %v2619, 0
  %v2663 = vsel %vm26, %v2620, 0
  %v2666 = vsel %vm26, %v2621, 0
  %v2669 = vsel %vm26, %v2622, 0
  %v2672 = vsel %vm26, %v2623, 0
  %v2675 = vsel %vm26, %v2624, 0
  %v2678 = vsel %vm26, %v2625, 0
  %v2681 = vsel %vm26, %v2626, 0
  %v2684 = vsel %vm26, %v2627, 0
  %v2687 = vsel %vm26, %v2628, 0
  %v2690 = vsel %vm26, %v2629, 0
  %v2693 = vsel %vm26, %v2630, 0
  %v2696 = vsel %vm26, %v2631, 0
  %v2699 = vsel %vm26, %v2632, 0
  %v2702 = vsel %vm26, %v2633, 0
  %v2705 = vsel %vm26, %v2634, 0
  %v2708 = vsel %vm26, %v2635, 0
  %v2711 = vsel %vm26, %v2636, 0
  %v2714 = vsel %vm26, %v2637, 0
  %v2717 = vsel %vm26, %v2638, 0
  %v2720 = vsel %vm26, %v2639, 0
  %v2723 = vsel %vm26, %v2640, 0
  %v2726 = vsel %vm26, %v2641, 0
  %v2729 = vsel %vm26, %v2642, 0
  %v2732 = vsel %vm26, %v2643, 0
  %v2735 = vsel %vm26, %v2644, 0
  %v2738 = vsel %vm26, %v2645, 0
  %v2741 = vsel %vm26, %v2646, 0
  %v2744 = vsel %vm26, %v2647, 0
  %v2747 = vsel %vm618, %v2649, 0
  %2749 = vmatpush.msra.mxu0 0.0
  %2750 = vmatpush.msra.mxu0 0.0
  %2751 = vmatpush.msra.mxu0 0.0
  %2752 = vmatpush.msra.mxu0 0.0
  %2753 = vmatpush.msra.mxu0 0.0
  %2754 = vmatpush.msra.mxu0 0.0
  %2755 = vmatpush.msra.mxu0 0.0
  %2756 = vmatpush.msra.mxu0 0.0
  %2757 = vmatpush.msra.mxu0 0.0
  %2758 = vmatpush.msra.mxu0 0.0
  %2759 = vmatpush.msra.mxu0 0.0
  %2760 = vmatpush.msra.mxu0 0.0
  %2761 = vmatpush.msra.mxu0 0.0
  %2762 = vmatpush.msra.mxu0 0.0
  %2763 = vmatpush.msra.mxu0 0.0
  %2764 = vmatpush.msra.mxu0 %v2747
  %2765 = vmatmul.f32.gmra.mxu0 %v2651
  %v2766 = vpop.f32.mrf.mxu0
  %v2767 = vadd.f32 0.0, %v2766
  %2768 = vmatmul.f32.gmra.mxu0 %v2654
  %v2769 = vpop.f32.mrf.mxu0
  %v2770 = vadd.f32 0.0, %v2769
  %2771 = vmatmul.f32.gmra.mxu0 %v2657
  %v2772 = vpop.f32.mrf.mxu0
  %v2773 = vadd.f32 0.0, %v2772
  %2774 = vmatmul.f32.gmra.mxu0 %v2660
  %v2775 = vpop.f32.mrf.mxu0
  %v2776 = vadd.f32 0.0, %v2775
  %2777 = vmatmul.f32.gmra.mxu0 %v2663
  %v2778 = vpop.f32.mrf.mxu0
  %v2779 = vadd.f32 0.0, %v2778
  %2780 = vmatmul.f32.gmra.mxu0 %v2666
  %v2781 = vpop.f32.mrf.mxu0
  %v2782 = vadd.f32 0.0, %v2781
  %2783 = vmatmul.f32.gmra.mxu0 %v2669
  %v2784 = vpop.f32.mrf.mxu0
  %v2785 = vadd.f32 0.0, %v2784
  %2786 = vmatmul.f32.gmra.mxu0 %v2672
  %v2787 = vpop.f32.mrf.mxu0
  %v2788 = vadd.f32 0.0, %v2787
  %2789 = vmatmul.f32.gmra.mxu0 %v2675
  %v2790 = vpop.f32.mrf.mxu0
  %v2791 = vadd.f32 0.0, %v2790
  %2792 = vmatmul.f32.gmra.mxu0 %v2678
  %v2793 = vpop.f32.mrf.mxu0
  %v2794 = vadd.f32 0.0, %v2793
  %2795 = vmatmul.f32.gmra.mxu0 %v2681
  %v2796 = vpop.f32.mrf.mxu0
  %v2797 = vadd.f32 0.0, %v2796
  %2798 = vmatmul.f32.gmra.mxu0 %v2684
  %v2799 = vpop.f32.mrf.mxu0
  %v2800 = vadd.f32 0.0, %v2799
  %2801 = vmatmul.f32.gmra.mxu0 %v2687
  %v2802 = vpop.f32.mrf.mxu0
  %v2803 = vadd.f32 0.0, %v2802
  %2804 = vmatmul.f32.gmra.mxu0 %v2690
  %v2805 = vpop.f32.mrf.mxu0
  %v2806 = vadd.f32 0.0, %v2805
  %2807 = vmatmul.f32.gmra.mxu0 %v2693
  %v2808 = vpop.f32.mrf.mxu0
  %v2809 = vadd.f32 0.0, %v2808
  %2810 = vmatmul.f32.gmra.mxu0 %v2696
  %v2811 = vpop.f32.mrf.mxu0
  %v2812 = vadd.f32 0.0, %v2811
  %2813 = vmatmul.f32.gmra.mxu0 %v2699
  %v2814 = vpop.f32.mrf.mxu0
  %v2815 = vadd.f32 0.0, %v2814
  %2816 = vmatmul.f32.gmra.mxu0 %v2702
  %v2817 = vpop.f32.mrf.mxu0
  %v2818 = vadd.f32 0.0, %v2817
  %2819 = vmatmul.f32.gmra.mxu0 %v2705
  %v2820 = vpop.f32.mrf.mxu0
  %v2821 = vadd.f32 0.0, %v2820
  %2822 = vmatmul.f32.gmra.mxu0 %v2708
  %v2823 = vpop.f32.mrf.mxu0
  %v2824 = vadd.f32 0.0, %v2823
  %2825 = vmatmul.f32.gmra.mxu0 %v2711
  %v2826 = vpop.f32.mrf.mxu0
  %v2827 = vadd.f32 0.0, %v2826
  %2828 = vmatmul.f32.gmra.mxu0 %v2714
  %v2829 = vpop.f32.mrf.mxu0
  %v2830 = vadd.f32 0.0, %v2829
  %2831 = vmatmul.f32.gmra.mxu0 %v2717
  %v2832 = vpop.f32.mrf.mxu0
  %v2833 = vadd.f32 0.0, %v2832
  %2834 = vmatmul.f32.gmra.mxu0 %v2720
  %v2835 = vpop.f32.mrf.mxu0
  %v2836 = vadd.f32 0.0, %v2835
  %2837 = vmatmul.f32.gmra.mxu0 %v2723
  %v2838 = vpop.f32.mrf.mxu0
  %v2839 = vadd.f32 0.0, %v2838
  %2840 = vmatmul.f32.gmra.mxu0 %v2726
  %v2841 = vpop.f32.mrf.mxu0
  %v2842 = vadd.f32 0.0, %v2841
  %2843 = vmatmul.f32.gmra.mxu0 %v2729
  %v2844 = vpop.f32.mrf.mxu0
  %v2845 = vadd.f32 0.0, %v2844
  %2846 = vmatmul.f32.gmra.mxu0 %v2732
  %v2847 = vpop.f32.mrf.mxu0
  %v2848 = vadd.f32 0.0, %v2847
  %2849 = vmatmul.f32.gmra.mxu0 %v2735
  %v2850 = vpop.f32.mrf.mxu0
  %v2851 = vadd.f32 0.0, %v2850
  %2852 = vmatmul.f32.gmra.mxu0 %v2738
  %v2853 = vpop.f32.mrf.mxu0
  %v2854 = vadd.f32 0.0, %v2853
  %2855 = vmatmul.f32.gmra.mxu0 %v2741
  %v2856 = vpop.f32.mrf.mxu0
  %v2857 = vadd.f32 0.0, %v2856
  %2858 = vmatmul.f32.gmra.mxu0 %v2744
  %v2859 = vpop.f32.mrf.mxu0
  %v2860 = vadd.f32 0.0, %v2859
  %2861 = vdwg.mxu0
  %v2862 = vadd.f32 %v2584, %v2767
  %v2863 = vadd.f32 %v2585, %v2770
  %v2864 = vadd.f32 %v2586, %v2773
  %v2865 = vadd.f32 %v2587, %v2776
  %v2866 = vadd.f32 %v2588, %v2779
  %v2867 = vadd.f32 %v2589, %v2782
  %v2868 = vadd.f32 %v2590, %v2785
  %v2869 = vadd.f32 %v2591, %v2788
  %v2870 = vadd.f32 %v2592, %v2791
  %v2871 = vadd.f32 %v2593, %v2794
  %v2872 = vadd.f32 %v2594, %v2797
  %v2873 = vadd.f32 %v2595, %v2800
  %v2874 = vadd.f32 %v2596, %v2803
  %v2875 = vadd.f32 %v2597, %v2806
  %v2876 = vadd.f32 %v2598, %v2809
  %v2877 = vadd.f32 %v2599, %v2812
  %v2878 = vadd.f32 %v2600, %v2815
  %v2879 = vadd.f32 %v2601, %v2818
  %v2880 = vadd.f32 %v2602, %v2821
  %v2881 = vadd.f32 %v2603, %v2824
  %v2882 = vadd.f32 %v2604, %v2827
  %v2883 = vadd.f32 %v2605, %v2830
  %v2884 = vadd.f32 %v2606, %v2833
  %v2885 = vadd.f32 %v2607, %v2836
  %v2886 = vadd.f32 %v2608, %v2839
  %v2887 = vadd.f32 %v2609, %v2842
  %v2888 = vadd.f32 %v2610, %v2845
  %v2889 = vadd.f32 %v2611, %v2848
  %v2890 = vadd.f32 %v2612, %v2851
  %v2891 = vadd.f32 %v2613, %v2854
  %v2892 = vadd.f32 %v2614, %v2857
  %v2893 = vadd.f32 %v2615, %v2860
  %v2894 = vld [vmem:[%s2] sm:$0x1]
  %v2896 = vperm.slane %v2894, 0
  %v2898 = vadd.f32 %v2862, %v2896
  %v2899 = vadd.f32 %v2863, %v2896
  %v2900 = vadd.f32 %v2864, %v2896
  %v2901 = vadd.f32 %v2865, %v2896
  %v2902 = vadd.f32 %v2866, %v2896
  %v2903 = vadd.f32 %v2867, %v2896
  %v2904 = vadd.f32 %v2868, %v2896
  %v2905 = vadd.f32 %v2869, %v2896
  %v2906 = vadd.f32 %v2870, %v2896
  %v2907 = vadd.f32 %v2871, %v2896
  %v2908 = vadd.f32 %v2872, %v2896
  %v2909 = vadd.f32 %v2873, %v2896
  %v2910 = vadd.f32 %v2874, %v2896
  %v2911 = vadd.f32 %v2875, %v2896
  %v2912 = vadd.f32 %v2876, %v2896
  %v2913 = vadd.f32 %v2877, %v2896
  %v2914 = vadd.f32 %v2878, %v2896
  %v2915 = vadd.f32 %v2879, %v2896
  %v2916 = vadd.f32 %v2880, %v2896
  %v2917 = vadd.f32 %v2881, %v2896
  %v2918 = vadd.f32 %v2882, %v2896
  %v2919 = vadd.f32 %v2883, %v2896
  %v2920 = vadd.f32 %v2884, %v2896
  %v2921 = vadd.f32 %v2885, %v2896
  %v2922 = vadd.f32 %v2886, %v2896
  %v2923 = vadd.f32 %v2887, %v2896
  %v2924 = vadd.f32 %v2888, %v2896
  %v2925 = vadd.f32 %v2889, %v2896
  %v2926 = vadd.f32 %v2890, %v2896
  %v2927 = vadd.f32 %v2891, %v2896
  %v2928 = vadd.f32 %v2892, %v2896
  %v2929 = vadd.f32 %v2893, %v2896
  %s2930 = scalar_lea.vmem [#allocation2], 432
  %v2931 = vld [vmem:[%s2930] sm:$0xff]
  %v2932 = vld [vmem:[%s2930 + $0x8] sm:$0xff]
  %v2933 = vld [vmem:[%s2930 + $0x18] sm:$0xff]
  %v2934 = vld [vmem:[%s2930 + $0x20] sm:$0xff]
  %v2935 = vld [vmem:[%s2930 + $0x30] sm:$0xff]
  %v2936 = vld [vmem:[%s2930 + $0x38] sm:$0xff]
  %v2937 = vld [vmem:[%s2930 + $0x48] sm:$0xff]
  %v2938 = vld [vmem:[%s2930 + $0x50] sm:$0xff]
  %v2939 = vld [vmem:[%s2930 + $0x60] sm:$0xff]
  %v2940 = vld [vmem:[%s2930 + $0x68] sm:$0xff]
  %v2941 = vld [vmem:[%s2930 + $0x78] sm:$0xff]
  %v2942 = vld [vmem:[%s2930 + $0x80] sm:$0xff]
  %v2943 = vld [vmem:[%s2930 + $0x90] sm:$0xff]
  %v2944 = vld [vmem:[%s2930 + $0x98] sm:$0xff]
  %v2945 = vld [vmem:[%s2930 + $0xa8] sm:$0xff]
  %v2946 = vld [vmem:[%s2930 + $0xb0] sm:$0xff]
  %v2947 = vld [vmem:[%s2930 + $0xc0] sm:$0xff]
  %v2948 = vld [vmem:[%s2930 + $0xc8] sm:$0xff]
  %v2949 = vld [vmem:[%s2930 + $0xd8] sm:$0xff]
  %v2950 = vld [vmem:[%s2930 + $0xe0] sm:$0xff]
  %v2951 = vld [vmem:[%s2930 + $0xf0] sm:$0xff]
  %v2952 = vld [vmem:[%s2930 + $0xf8] sm:$0xff]
  %v2953 = vld [vmem:[%s2930 + $0x108] sm:$0xff]
  %v2954 = vld [vmem:[%s2930 + $0x110] sm:$0xff]
  %v2955 = vld [vmem:[%s2930 + $0x120] sm:$0xff]
  %v2956 = vld [vmem:[%s2930 + $0x128] sm:$0xff]
  %v2957 = vld [vmem:[%s2930 + $0x138] sm:$0xff]
  %v2958 = vld [vmem:[%s2930 + $0x140] sm:$0xff]
  %v2959 = vld [vmem:[%s2930 + $0x150] sm:$0xff]
  %v2960 = vld [vmem:[%s2930 + $0x158] sm:$0xff]
  %v2961 = vld [vmem:[%s2930 + $0x168] sm:$0xff]
  %v2962 = vld [vmem:[%s2930 + $0x170] sm:$0xff]
  %v2963 = vld [vmem:[%s2930 + $0x1] sm:$0xff]
  %v2964 = vld [vmem:[%s2930 + $0x9] sm:$0xff]
  %v2965 = vld [vmem:[%s2930 + $0x19] sm:$0xff]
  %v2966 = vld [vmem:[%s2930 + $0x21] sm:$0xff]
  %v2967 = vld [vmem:[%s2930 + $0x31] sm:$0xff]
  %v2968 = vld [vmem:[%s2930 + $0x39] sm:$0xff]
  %v2969 = vld [vmem:[%s2930 + $0x49] sm:$0xff]
  %v2970 = vld [vmem:[%s2930 + $0x51] sm:$0xff]
  %v2971 = vld [vmem:[%s2930 + $0x61] sm:$0xff]
  %v2972 = vld [vmem:[%s2930 + $0x69] sm:$0xff]
  %v2973 = vld [vmem:[%s2930 + $0x79] sm:$0xff]
  %v2974 = vld [vmem:[%s2930 + $0x81] sm:$0xff]
  %v2975 = vld [vmem:[%s2930 + $0x91] sm:$0xff]
  %v2976 = vld [vmem:[%s2930 + $0x99] sm:$0xff]
  %v2977 = vld [vmem:[%s2930 + $0xa9] sm:$0xff]
  %v2978 = vld [vmem:[%s2930 + $0xb1] sm:$0xff]
  %v2979 = vld [vmem:[%s2930 + $0xc1] sm:$0xff]
  %v2980 = vld [vmem:[%s2930 + $0xc9] sm:$0xff]
  %v2981 = vld [vmem:[%s2930 + $0xd9] sm:$0xff]
  %v2982 = vld [vmem:[%s2930 + $0xe1] sm:$0xff]
  %v2983 = vld [vmem:[%s2930 + $0xf1] sm:$0xff]
  %v2984 = vld [vmem:[%s2930 + $0xf9] sm:$0xff]
  %v2985 = vld [vmem:[%s2930 + $0x109] sm:$0xff]
  %v2986 = vld [vmem:[%s2930 + $0x111] sm:$0xff]
  %v2987 = vld [vmem:[%s2930 + $0x121] sm:$0xff]
  %v2988 = vld [vmem:[%s2930 + $0x129] sm:$0xff]
  %v2989 = vld [vmem:[%s2930 + $0x139] sm:$0xff]
  %v2990 = vld [vmem:[%s2930 + $0x141] sm:$0xff]
  %v2991 = vld [vmem:[%s2930 + $0x151] sm:$0xff]
  %v2992 = vld [vmem:[%s2930 + $0x159] sm:$0xff]
  %v2993 = vld [vmem:[%s2930 + $0x169] sm:$0xff]
  %v2994 = vld [vmem:[%s2930 + $0x171] sm:$0xff]
  %v2996 = vsel %vm26, %v2963, 0
  %v2999 = vsel %vm26, %v2964, 0
  %v3002 = vsel %vm26, %v2965, 0
  %v3005 = vsel %vm26, %v2966, 0
  %v3008 = vsel %vm26, %v2967, 0
  %v3011 = vsel %vm26, %v2968, 0
  %v3014 = vsel %vm26, %v2969, 0
  %v3017 = vsel %vm26, %v2970, 0
  %v3020 = vsel %vm26, %v2971, 0
  %v3023 = vsel %vm26, %v2972, 0
  %v3026 = vsel %vm26, %v2973, 0
  %v3029 = vsel %vm26, %v2974, 0
  %v3032 = vsel %vm26, %v2975, 0
  %v3035 = vsel %vm26, %v2976, 0
  %v3038 = vsel %vm26, %v2977, 0
  %v3041 = vsel %vm26, %v2978, 0
  %v3044 = vsel %vm26, %v2979, 0
  %v3047 = vsel %vm26, %v2980, 0
  %v3050 = vsel %vm26, %v2981, 0
  %v3053 = vsel %vm26, %v2982, 0
  %v3056 = vsel %vm26, %v2983, 0
  %v3059 = vsel %vm26, %v2984, 0
  %v3062 = vsel %vm26, %v2985, 0
  %v3065 = vsel %vm26, %v2986, 0
  %v3068 = vsel %vm26, %v2987, 0
  %v3071 = vsel %vm26, %v2988, 0
  %v3074 = vsel %vm26, %v2989, 0
  %v3077 = vsel %vm26, %v2990, 0
  %v3080 = vsel %vm26, %v2991, 0
  %v3083 = vsel %vm26, %v2992, 0
  %v3086 = vsel %vm26, %v2993, 0
  %v3089 = vsel %vm26, %v2994, 0
  %3091 = vmatpush.msra.mxu0 0.0
  %3092 = vmatpush.msra.mxu0 0.0
  %3093 = vmatpush.msra.mxu0 0.0
  %3094 = vmatpush.msra.mxu0 0.0
  %3095 = vmatpush.msra.mxu0 0.0
  %3096 = vmatpush.msra.mxu0 0.0
  %3097 = vmatpush.msra.mxu0 0.0
  %3098 = vmatpush.msra.mxu0 0.0
  %3099 = vmatpush.msra.mxu0 0.0
  %3100 = vmatpush.msra.mxu0 0.0
  %3101 = vmatpush.msra.mxu0 0.0
  %3102 = vmatpush.msra.mxu0 0.0
  %3103 = vmatpush.msra.mxu0 0.0
  %3104 = vmatpush.msra.mxu0 0.0
  %3105 = vmatpush.msra.mxu0 0.0
  %3106 = vmatpush.msra.mxu0 %v620
  %3107 = vmatmul.f32.gmra.mxu0 %v2996
  %v3108 = vpop.f32.mrf.mxu0
  %v3109 = vadd.f32 0.0, %v3108
  %3110 = vmatmul.f32.gmra.mxu0 %v2999
  %v3111 = vpop.f32.mrf.mxu0
  %v3112 = vadd.f32 0.0, %v3111
  %3113 = vmatmul.f32.gmra.mxu0 %v3002
  %v3114 = vpop.f32.mrf.mxu0
  %v3115 = vadd.f32 0.0, %v3114
  %3116 = vmatmul.f32.gmra.mxu0 %v3005
  %v3117 = vpop.f32.mrf.mxu0
  %v3118 = vadd.f32 0.0, %v3117
  %3119 = vmatmul.f32.gmra.mxu0 %v3008
  %v3120 = vpop.f32.mrf.mxu0
  %v3121 = vadd.f32 0.0, %v3120
  %3122 = vmatmul.f32.gmra.mxu0 %v3011
  %v3123 = vpop.f32.mrf.mxu0
  %v3124 = vadd.f32 0.0, %v3123
  %3125 = vmatmul.f32.gmra.mxu0 %v3014
  %v3126 = vpop.f32.mrf.mxu0
  %v3127 = vadd.f32 0.0, %v3126
  %3128 = vmatmul.f32.gmra.mxu0 %v3017
  %v3129 = vpop.f32.mrf.mxu0
  %v3130 = vadd.f32 0.0, %v3129
  %3131 = vmatmul.f32.gmra.mxu0 %v3020
  %v3132 = vpop.f32.mrf.mxu0
  %v3133 = vadd.f32 0.0, %v3132
  %3134 = vmatmul.f32.gmra.mxu0 %v3023
  %v3135 = vpop.f32.mrf.mxu0
  %v3136 = vadd.f32 0.0, %v3135
  %3137 = vmatmul.f32.gmra.mxu0 %v3026
  %v3138 = vpop.f32.mrf.mxu0
  %v3139 = vadd.f32 0.0, %v3138
  %3140 = vmatmul.f32.gmra.mxu0 %v3029
  %v3141 = vpop.f32.mrf.mxu0
  %v3142 = vadd.f32 0.0, %v3141
  %3143 = vmatmul.f32.gmra.mxu0 %v3032
  %v3144 = vpop.f32.mrf.mxu0
  %v3145 = vadd.f32 0.0, %v3144
  %3146 = vmatmul.f32.gmra.mxu0 %v3035
  %v3147 = vpop.f32.mrf.mxu0
  %v3148 = vadd.f32 0.0, %v3147
  %3149 = vmatmul.f32.gmra.mxu0 %v3038
  %v3150 = vpop.f32.mrf.mxu0
  %v3151 = vadd.f32 0.0, %v3150
  %3152 = vmatmul.f32.gmra.mxu0 %v3041
  %v3153 = vpop.f32.mrf.mxu0
  %v3154 = vadd.f32 0.0, %v3153
  %3155 = vmatmul.f32.gmra.mxu0 %v3044
  %v3156 = vpop.f32.mrf.mxu0
  %v3157 = vadd.f32 0.0, %v3156
  %3158 = vmatmul.f32.gmra.mxu0 %v3047
  %v3159 = vpop.f32.mrf.mxu0
  %v3160 = vadd.f32 0.0, %v3159
  %3161 = vmatmul.f32.gmra.mxu0 %v3050
  %v3162 = vpop.f32.mrf.mxu0
  %v3163 = vadd.f32 0.0, %v3162
  %3164 = vmatmul.f32.gmra.mxu0 %v3053
  %v3165 = vpop.f32.mrf.mxu0
  %v3166 = vadd.f32 0.0, %v3165
  %3167 = vmatmul.f32.gmra.mxu0 %v3056
  %v3168 = vpop.f32.mrf.mxu0
  %v3169 = vadd.f32 0.0, %v3168
  %3170 = vmatmul.f32.gmra.mxu0 %v3059
  %v3171 = vpop.f32.mrf.mxu0
  %v3172 = vadd.f32 0.0, %v3171
  %3173 = vmatmul.f32.gmra.mxu0 %v3062
  %v3174 = vpop.f32.mrf.mxu0
  %v3175 = vadd.f32 0.0, %v3174
  %3176 = vmatmul.f32.gmra.mxu0 %v3065
  %v3177 = vpop.f32.mrf.mxu0
  %v3178 = vadd.f32 0.0, %v3177
  %3179 = vmatmul.f32.gmra.mxu0 %v3068
  %v3180 = vpop.f32.mrf.mxu0
  %v3181 = vadd.f32 0.0, %v3180
  %3182 = vmatmul.f32.gmra.mxu0 %v3071
  %v3183 = vpop.f32.mrf.mxu0
  %v3184 = vadd.f32 0.0, %v3183
  %3185 = vmatmul.f32.gmra.mxu0 %v3074
  %v3186 = vpop.f32.mrf.mxu0
  %v3187 = vadd.f32 0.0, %v3186
  %3188 = vmatmul.f32.gmra.mxu0 %v3077
  %v3189 = vpop.f32.mrf.mxu0
  %v3190 = vadd.f32 0.0, %v3189
  %3191 = vmatmul.f32.gmra.mxu0 %v3080
  %v3192 = vpop.f32.mrf.mxu0
  %v3193 = vadd.f32 0.0, %v3192
  %3194 = vmatmul.f32.gmra.mxu0 %v3083
  %v3195 = vpop.f32.mrf.mxu0
  %v3196 = vadd.f32 0.0, %v3195
  %3197 = vmatmul.f32.gmra.mxu0 %v3086
  %v3198 = vpop.f32.mrf.mxu0
  %v3199 = vadd.f32 0.0, %v3198
  %3200 = vmatmul.f32.gmra.mxu0 %v3089
  %v3201 = vpop.f32.mrf.mxu0
  %v3202 = vadd.f32 0.0, %v3201
  %3203 = vdwg.mxu0
  %v3205 = vsel %vm26, %v2931, 0
  %v3208 = vsel %vm26, %v2932, 0
  %v3211 = vsel %vm26, %v2933, 0
  %v3214 = vsel %vm26, %v2934, 0
  %v3217 = vsel %vm26, %v2935, 0
  %v3220 = vsel %vm26, %v2936, 0
  %v3223 = vsel %vm26, %v2937, 0
  %v3226 = vsel %vm26, %v2938, 0
  %v3229 = vsel %vm26, %v2939, 0
  %v3232 = vsel %vm26, %v2940, 0
  %v3235 = vsel %vm26, %v2941, 0
  %v3238 = vsel %vm26, %v2942, 0
  %v3241 = vsel %vm26, %v2943, 0
  %v3244 = vsel %vm26, %v2944, 0
  %v3247 = vsel %vm26, %v2945, 0
  %v3250 = vsel %vm26, %v2946, 0
  %v3253 = vsel %vm26, %v2947, 0
  %v3256 = vsel %vm26, %v2948, 0
  %v3259 = vsel %vm26, %v2949, 0
  %v3262 = vsel %vm26, %v2950, 0
  %v3265 = vsel %vm26, %v2951, 0
  %v3268 = vsel %vm26, %v2952, 0
  %v3271 = vsel %vm26, %v2953, 0
  %v3274 = vsel %vm26, %v2954, 0
  %v3277 = vsel %vm26, %v2955, 0
  %v3280 = vsel %vm26, %v2956, 0
  %v3283 = vsel %vm26, %v2957, 0
  %v3286 = vsel %vm26, %v2958, 0
  %v3289 = vsel %vm26, %v2959, 0
  %v3292 = vsel %vm26, %v2960, 0
  %v3295 = vsel %vm26, %v2961, 0
  %v3298 = vsel %vm26, %v2962, 0
  %3300 = vmatpush.msra.mxu0 0.0
  %3301 = vmatpush.msra.mxu0 0.0
  %3302 = vmatpush.msra.mxu0 0.0
  %3303 = vmatpush.msra.mxu0 0.0
  %3304 = vmatpush.msra.mxu0 0.0
  %3305 = vmatpush.msra.mxu0 0.0
  %3306 = vmatpush.msra.mxu0 0.0
  %3307 = vmatpush.msra.mxu0 0.0
  %3308 = vmatpush.msra.mxu0 0.0
  %3309 = vmatpush.msra.mxu0 0.0
  %3310 = vmatpush.msra.mxu0 0.0
  %3311 = vmatpush.msra.mxu0 0.0
  %3312 = vmatpush.msra.mxu0 0.0
  %3313 = vmatpush.msra.mxu0 0.0
  %3314 = vmatpush.msra.mxu0 0.0
  %3315 = vmatpush.msra.mxu0 %v832
  %3316 = vmatmul.f32.gmra.mxu0 %v3205
  %v3317 = vpop.f32.mrf.mxu0
  %v3318 = vadd.f32 %v3109, %v3317
  %3319 = vmatmul.f32.gmra.mxu0 %v3208
  %v3320 = vpop.f32.mrf.mxu0
  %v3321 = vadd.f32 %v3112, %v3320
  %3322 = vmatmul.f32.gmra.mxu0 %v3211
  %v3323 = vpop.f32.mrf.mxu0
  %v3324 = vadd.f32 %v3115, %v3323
  %3325 = vmatmul.f32.gmra.mxu0 %v3214
  %v3326 = vpop.f32.mrf.mxu0
  %v3327 = vadd.f32 %v3118, %v3326
  %3328 = vmatmul.f32.gmra.mxu0 %v3217
  %v3329 = vpop.f32.mrf.mxu0
  %v3330 = vadd.f32 %v3121, %v3329
  %3331 = vmatmul.f32.gmra.mxu0 %v3220
  %v3332 = vpop.f32.mrf.mxu0
  %v3333 = vadd.f32 %v3124, %v3332
  %3334 = vmatmul.f32.gmra.mxu0 %v3223
  %v3335 = vpop.f32.mrf.mxu0
  %v3336 = vadd.f32 %v3127, %v3335
  %3337 = vmatmul.f32.gmra.mxu0 %v3226
  %v3338 = vpop.f32.mrf.mxu0
  %v3339 = vadd.f32 %v3130, %v3338
  %3340 = vmatmul.f32.gmra.mxu0 %v3229
  %v3341 = vpop.f32.mrf.mxu0
  %v3342 = vadd.f32 %v3133, %v3341
  %3343 = vmatmul.f32.gmra.mxu0 %v3232
  %v3344 = vpop.f32.mrf.mxu0
  %v3345 = vadd.f32 %v3136, %v3344
  %3346 = vmatmul.f32.gmra.mxu0 %v3235
  %v3347 = vpop.f32.mrf.mxu0
  %v3348 = vadd.f32 %v3139, %v3347
  %3349 = vmatmul.f32.gmra.mxu0 %v3238
  %v3350 = vpop.f32.mrf.mxu0
  %v3351 = vadd.f32 %v3142, %v3350
  %3352 = vmatmul.f32.gmra.mxu0 %v3241
  %v3353 = vpop.f32.mrf.mxu0
  %v3354 = vadd.f32 %v3145, %v3353
  %3355 = vmatmul.f32.gmra.mxu0 %v3244
  %v3356 = vpop.f32.mrf.mxu0
  %v3357 = vadd.f32 %v3148, %v3356
  %3358 = vmatmul.f32.gmra.mxu0 %v3247
  %v3359 = vpop.f32.mrf.mxu0
  %v3360 = vadd.f32 %v3151, %v3359
  %3361 = vmatmul.f32.gmra.mxu0 %v3250
  %v3362 = vpop.f32.mrf.mxu0
  %v3363 = vadd.f32 %v3154, %v3362
  %3364 = vmatmul.f32.gmra.mxu0 %v3253
  %v3365 = vpop.f32.mrf.mxu0
  %v3366 = vadd.f32 %v3157, %v3365
  %3367 = vmatmul.f32.gmra.mxu0 %v3256
  %v3368 = vpop.f32.mrf.mxu0
  %v3369 = vadd.f32 %v3160, %v3368
  %3370 = vmatmul.f32.gmra.mxu0 %v3259
  %v3371 = vpop.f32.mrf.mxu0
  %v3372 = vadd.f32 %v3163, %v3371
  %3373 = vmatmul.f32.gmra.mxu0 %v3262
  %v3374 = vpop.f32.mrf.mxu0
  %v3375 = vadd.f32 %v3166, %v3374
  %3376 = vmatmul.f32.gmra.mxu0 %v3265
  %v3377 = vpop.f32.mrf.mxu0
  %v3378 = vadd.f32 %v3169, %v3377
  %3379 = vmatmul.f32.gmra.mxu0 %v3268
  %v3380 = vpop.f32.mrf.mxu0
  %v3381 = vadd.f32 %v3172, %v3380
  %3382 = vmatmul.f32.gmra.mxu0 %v3271
  %v3383 = vpop.f32.mrf.mxu0
  %v3384 = vadd.f32 %v3175, %v3383
  %3385 = vmatmul.f32.gmra.mxu0 %v3274
  %v3386 = vpop.f32.mrf.mxu0
  %v3387 = vadd.f32 %v3178, %v3386
  %3388 = vmatmul.f32.gmra.mxu0 %v3277
  %v3389 = vpop.f32.mrf.mxu0
  %v3390 = vadd.f32 %v3181, %v3389
  %3391 = vmatmul.f32.gmra.mxu0 %v3280
  %v3392 = vpop.f32.mrf.mxu0
  %v3393 = vadd.f32 %v3184, %v3392
  %3394 = vmatmul.f32.gmra.mxu0 %v3283
  %v3395 = vpop.f32.mrf.mxu0
  %v3396 = vadd.f32 %v3187, %v3395
  %3397 = vmatmul.f32.gmra.mxu0 %v3286
  %v3398 = vpop.f32.mrf.mxu0
  %v3399 = vadd.f32 %v3190, %v3398
  %3400 = vmatmul.f32.gmra.mxu0 %v3289
  %v3401 = vpop.f32.mrf.mxu0
  %v3402 = vadd.f32 %v3193, %v3401
  %3403 = vmatmul.f32.gmra.mxu0 %v3292
  %v3404 = vpop.f32.mrf.mxu0
  %v3405 = vadd.f32 %v3196, %v3404
  %3406 = vmatmul.f32.gmra.mxu0 %v3295
  %v3407 = vpop.f32.mrf.mxu0
  %v3408 = vadd.f32 %v3199, %v3407
  %3409 = vmatmul.f32.gmra.mxu0 %v3298
  %v3410 = vpop.f32.mrf.mxu0
  %v3411 = vadd.f32 %v3202, %v3410
  %3412 = vdwg.mxu0
  %v3413 = vld [vmem:[%s2930 + $0x2] sm:$0xff]
  %v3414 = vld [vmem:[%s2930 + $0xa] sm:$0xff]
  %v3415 = vld [vmem:[%s2930 + $0x1a] sm:$0xff]
  %v3416 = vld [vmem:[%s2930 + $0x22] sm:$0xff]
  %v3417 = vld [vmem:[%s2930 + $0x32] sm:$0xff]
  %v3418 = vld [vmem:[%s2930 + $0x3a] sm:$0xff]
  %v3419 = vld [vmem:[%s2930 + $0x4a] sm:$0xff]
  %v3420 = vld [vmem:[%s2930 + $0x52] sm:$0xff]
  %v3421 = vld [vmem:[%s2930 + $0x62] sm:$0xff]
  %v3422 = vld [vmem:[%s2930 + $0x6a] sm:$0xff]
  %v3423 = vld [vmem:[%s2930 + $0x7a] sm:$0xff]
  %v3424 = vld [vmem:[%s2930 + $0x82] sm:$0xff]
  %v3425 = vld [vmem:[%s2930 + $0x92] sm:$0xff]
  %v3426 = vld [vmem:[%s2930 + $0x9a] sm:$0xff]
  %v3427 = vld [vmem:[%s2930 + $0xaa] sm:$0xff]
  %v3428 = vld [vmem:[%s2930 + $0xb2] sm:$0xff]
  %v3429 = vld [vmem:[%s2930 + $0xc2] sm:$0xff]
  %v3430 = vld [vmem:[%s2930 + $0xca] sm:$0xff]
  %v3431 = vld [vmem:[%s2930 + $0xda] sm:$0xff]
  %v3432 = vld [vmem:[%s2930 + $0xe2] sm:$0xff]
  %v3433 = vld [vmem:[%s2930 + $0xf2] sm:$0xff]
  %v3434 = vld [vmem:[%s2930 + $0xfa] sm:$0xff]
  %v3435 = vld [vmem:[%s2930 + $0x10a] sm:$0xff]
  %v3436 = vld [vmem:[%s2930 + $0x112] sm:$0xff]
  %v3437 = vld [vmem:[%s2930 + $0x122] sm:$0xff]
  %v3438 = vld [vmem:[%s2930 + $0x12a] sm:$0xff]
  %v3439 = vld [vmem:[%s2930 + $0x13a] sm:$0xff]
  %v3440 = vld [vmem:[%s2930 + $0x142] sm:$0xff]
  %v3441 = vld [vmem:[%s2930 + $0x152] sm:$0xff]
  %v3442 = vld [vmem:[%s2930 + $0x15a] sm:$0xff]
  %v3443 = vld [vmem:[%s2930 + $0x16a] sm:$0xff]
  %v3444 = vld [vmem:[%s2930 + $0x172] sm:$0xff]
  %v3446 = vsel %vm26, %v3413, 0
  %v3449 = vsel %vm26, %v3414, 0
  %v3452 = vsel %vm26, %v3415, 0
  %v3455 = vsel %vm26, %v3416, 0
  %v3458 = vsel %vm26, %v3417, 0
  %v3461 = vsel %vm26, %v3418, 0
  %v3464 = vsel %vm26, %v3419, 0
  %v3467 = vsel %vm26, %v3420, 0
  %v3470 = vsel %vm26, %v3421, 0
  %v3473 = vsel %vm26, %v3422, 0
  %v3476 = vsel %vm26, %v3423, 0
  %v3479 = vsel %vm26, %v3424, 0
  %v3482 = vsel %vm26, %v3425, 0
  %v3485 = vsel %vm26, %v3426, 0
  %v3488 = vsel %vm26, %v3427, 0
  %v3491 = vsel %vm26, %v3428, 0
  %v3494 = vsel %vm26, %v3429, 0
  %v3497 = vsel %vm26, %v3430, 0
  %v3500 = vsel %vm26, %v3431, 0
  %v3503 = vsel %vm26, %v3432, 0
  %v3506 = vsel %vm26, %v3433, 0
  %v3509 = vsel %vm26, %v3434, 0
  %v3512 = vsel %vm26, %v3435, 0
  %v3515 = vsel %vm26, %v3436, 0
  %v3518 = vsel %vm26, %v3437, 0
  %v3521 = vsel %vm26, %v3438, 0
  %v3524 = vsel %vm26, %v3439, 0
  %v3527 = vsel %vm26, %v3440, 0
  %v3530 = vsel %vm26, %v3441, 0
  %v3533 = vsel %vm26, %v3442, 0
  %v3536 = vsel %vm26, %v3443, 0
  %v3539 = vsel %vm26, %v3444, 0
  %3541 = vmatpush.msra.mxu0 0.0
  %3542 = vmatpush.msra.mxu0 0.0
  %3543 = vmatpush.msra.mxu0 0.0
  %3544 = vmatpush.msra.mxu0 0.0
  %3545 = vmatpush.msra.mxu0 0.0
  %3546 = vmatpush.msra.mxu0 0.0
  %3547 = vmatpush.msra.mxu0 0.0
  %3548 = vmatpush.msra.mxu0 0.0
  %3549 = vmatpush.msra.mxu0 0.0
  %3550 = vmatpush.msra.mxu0 0.0
  %3551 = vmatpush.msra.mxu0 0.0
  %3552 = vmatpush.msra.mxu0 0.0
  %3553 = vmatpush.msra.mxu0 0.0
  %3554 = vmatpush.msra.mxu0 0.0
  %3555 = vmatpush.msra.mxu0 0.0
  %3556 = vmatpush.msra.mxu0 %v1078
  %3557 = vmatmul.f32.gmra.mxu0 %v3446
  %v3558 = vpop.f32.mrf.mxu0
  %v3559 = vadd.f32 0.0, %v3558
  %3560 = vmatmul.f32.gmra.mxu0 %v3449
  %v3561 = vpop.f32.mrf.mxu0
  %v3562 = vadd.f32 0.0, %v3561
  %3563 = vmatmul.f32.gmra.mxu0 %v3452
  %v3564 = vpop.f32.mrf.mxu0
  %v3565 = vadd.f32 0.0, %v3564
  %3566 = vmatmul.f32.gmra.mxu0 %v3455
  %v3567 = vpop.f32.mrf.mxu0
  %v3568 = vadd.f32 0.0, %v3567
  %3569 = vmatmul.f32.gmra.mxu0 %v3458
  %v3570 = vpop.f32.mrf.mxu0
  %v3571 = vadd.f32 0.0, %v3570
  %3572 = vmatmul.f32.gmra.mxu0 %v3461
  %v3573 = vpop.f32.mrf.mxu0
  %v3574 = vadd.f32 0.0, %v3573
  %3575 = vmatmul.f32.gmra.mxu0 %v3464
  %v3576 = vpop.f32.mrf.mxu0
  %v3577 = vadd.f32 0.0, %v3576
  %3578 = vmatmul.f32.gmra.mxu0 %v3467
  %v3579 = vpop.f32.mrf.mxu0
  %v3580 = vadd.f32 0.0, %v3579
  %3581 = vmatmul.f32.gmra.mxu0 %v3470
  %v3582 = vpop.f32.mrf.mxu0
  %v3583 = vadd.f32 0.0, %v3582
  %3584 = vmatmul.f32.gmra.mxu0 %v3473
  %v3585 = vpop.f32.mrf.mxu0
  %v3586 = vadd.f32 0.0, %v3585
  %3587 = vmatmul.f32.gmra.mxu0 %v3476
  %v3588 = vpop.f32.mrf.mxu0
  %v3589 = vadd.f32 0.0, %v3588
  %3590 = vmatmul.f32.gmra.mxu0 %v3479
  %v3591 = vpop.f32.mrf.mxu0
  %v3592 = vadd.f32 0.0, %v3591
  %3593 = vmatmul.f32.gmra.mxu0 %v3482
  %v3594 = vpop.f32.mrf.mxu0
  %v3595 = vadd.f32 0.0, %v3594
  %3596 = vmatmul.f32.gmra.mxu0 %v3485
  %v3597 = vpop.f32.mrf.mxu0
  %v3598 = vadd.f32 0.0, %v3597
  %3599 = vmatmul.f32.gmra.mxu0 %v3488
  %v3600 = vpop.f32.mrf.mxu0
  %v3601 = vadd.f32 0.0, %v3600
  %3602 = vmatmul.f32.gmra.mxu0 %v3491
  %v3603 = vpop.f32.mrf.mxu0
  %v3604 = vadd.f32 0.0, %v3603
  %3605 = vmatmul.f32.gmra.mxu0 %v3494
  %v3606 = vpop.f32.mrf.mxu0
  %v3607 = vadd.f32 0.0, %v3606
  %3608 = vmatmul.f32.gmra.mxu0 %v3497
  %v3609 = vpop.f32.mrf.mxu0
  %v3610 = vadd.f32 0.0, %v3609
  %3611 = vmatmul.f32.gmra.mxu0 %v3500
  %v3612 = vpop.f32.mrf.mxu0
  %v3613 = vadd.f32 0.0, %v3612
  %3614 = vmatmul.f32.gmra.mxu0 %v3503
  %v3615 = vpop.f32.mrf.mxu0
  %v3616 = vadd.f32 0.0, %v3615
  %3617 = vmatmul.f32.gmra.mxu0 %v3506
  %v3618 = vpop.f32.mrf.mxu0
  %v3619 = vadd.f32 0.0, %v3618
  %3620 = vmatmul.f32.gmra.mxu0 %v3509
  %v3621 = vpop.f32.mrf.mxu0
  %v3622 = vadd.f32 0.0, %v3621
  %3623 = vmatmul.f32.gmra.mxu0 %v3512
  %v3624 = vpop.f32.mrf.mxu0
  %v3625 = vadd.f32 0.0, %v3624
  %3626 = vmatmul.f32.gmra.mxu0 %v3515
  %v3627 = vpop.f32.mrf.mxu0
  %v3628 = vadd.f32 0.0, %v3627
  %3629 = vmatmul.f32.gmra.mxu0 %v3518
  %v3630 = vpop.f32.mrf.mxu0
  %v3631 = vadd.f32 0.0, %v3630
  %3632 = vmatmul.f32.gmra.mxu0 %v3521
  %v3633 = vpop.f32.mrf.mxu0
  %v3634 = vadd.f32 0.0, %v3633
  %3635 = vmatmul.f32.gmra.mxu0 %v3524
  %v3636 = vpop.f32.mrf.mxu0
  %v3637 = vadd.f32 0.0, %v3636
  %3638 = vmatmul.f32.gmra.mxu0 %v3527
  %v3639 = vpop.f32.mrf.mxu0
  %v3640 = vadd.f32 0.0, %v3639
  %3641 = vmatmul.f32.gmra.mxu0 %v3530
  %v3642 = vpop.f32.mrf.mxu0
  %v3643 = vadd.f32 0.0, %v3642
  %3644 = vmatmul.f32.gmra.mxu0 %v3533
  %v3645 = vpop.f32.mrf.mxu0
  %v3646 = vadd.f32 0.0, %v3645
  %3647 = vmatmul.f32.gmra.mxu0 %v3536
  %v3648 = vpop.f32.mrf.mxu0
  %v3649 = vadd.f32 0.0, %v3648
  %3650 = vmatmul.f32.gmra.mxu0 %v3539
  %v3651 = vpop.f32.mrf.mxu0
  %v3652 = vadd.f32 0.0, %v3651
  %3653 = vdwg.mxu0
  %v3654 = vadd.f32 %v3318, %v3559
  %v3655 = vadd.f32 %v3321, %v3562
  %v3656 = vadd.f32 %v3324, %v3565
  %v3657 = vadd.f32 %v3327, %v3568
  %v3658 = vadd.f32 %v3330, %v3571
  %v3659 = vadd.f32 %v3333, %v3574
  %v3660 = vadd.f32 %v3336, %v3577
  %v3661 = vadd.f32 %v3339, %v3580
  %v3662 = vadd.f32 %v3342, %v3583
  %v3663 = vadd.f32 %v3345, %v3586
  %v3664 = vadd.f32 %v3348, %v3589
  %v3665 = vadd.f32 %v3351, %v3592
  %v3666 = vadd.f32 %v3354, %v3595
  %v3667 = vadd.f32 %v3357, %v3598
  %v3668 = vadd.f32 %v3360, %v3601
  %v3669 = vadd.f32 %v3363, %v3604
  %v3670 = vadd.f32 %v3366, %v3607
  %v3671 = vadd.f32 %v3369, %v3610
  %v3672 = vadd.f32 %v3372, %v3613
  %v3673 = vadd.f32 %v3375, %v3616
  %v3674 = vadd.f32 %v3378, %v3619
  %v3675 = vadd.f32 %v3381, %v3622
  %v3676 = vadd.f32 %v3384, %v3625
  %v3677 = vadd.f32 %v3387, %v3628
  %v3678 = vadd.f32 %v3390, %v3631
  %v3679 = vadd.f32 %v3393, %v3634
  %v3680 = vadd.f32 %v3396, %v3637
  %v3681 = vadd.f32 %v3399, %v3640
  %v3682 = vadd.f32 %v3402, %v3643
  %v3683 = vadd.f32 %v3405, %v3646
  %v3684 = vadd.f32 %v3408, %v3649
  %v3685 = vadd.f32 %v3411, %v3652
  %v3686 = vld [vmem:[%s422] sm:$0xff]
  %v3687 = vld [vmem:[%s422 + $0x8] sm:$0xff]
  %v3688 = vld [vmem:[%s422 + $0x18] sm:$0xff]
  %v3689 = vld [vmem:[%s422 + $0x20] sm:$0xff]
  %v3690 = vld [vmem:[%s422 + $0x30] sm:$0xff]
  %v3691 = vld [vmem:[%s422 + $0x38] sm:$0xff]
  %v3692 = vld [vmem:[%s422 + $0x48] sm:$0xff]
  %v3693 = vld [vmem:[%s422 + $0x50] sm:$0xff]
  %v3694 = vld [vmem:[%s422 + $0x60] sm:$0xff]
  %v3695 = vld [vmem:[%s422 + $0x68] sm:$0xff]
  %v3696 = vld [vmem:[%s422 + $0x78] sm:$0xff]
  %v3697 = vld [vmem:[%s422 + $0x80] sm:$0xff]
  %v3698 = vld [vmem:[%s422 + $0x90] sm:$0xff]
  %v3699 = vld [vmem:[%s422 + $0x98] sm:$0xff]
  %v3700 = vld [vmem:[%s422 + $0xa8] sm:$0xff]
  %v3701 = vld [vmem:[%s422 + $0xb0] sm:$0xff]
  %v3702 = vld [vmem:[%s422 + $0xc0] sm:$0xff]
  %v3703 = vld [vmem:[%s422 + $0xc8] sm:$0xff]
  %v3704 = vld [vmem:[%s422 + $0xd8] sm:$0xff]
  %v3705 = vld [vmem:[%s422 + $0xe0] sm:$0xff]
  %v3706 = vld [vmem:[%s422 + $0xf0] sm:$0xff]
  %v3707 = vld [vmem:[%s422 + $0xf8] sm:$0xff]
  %v3708 = vld [vmem:[%s422 + $0x108] sm:$0xff]
  %v3709 = vld [vmem:[%s422 + $0x110] sm:$0xff]
  %v3710 = vld [vmem:[%s422 + $0x120] sm:$0xff]
  %v3711 = vld [vmem:[%s422 + $0x128] sm:$0xff]
  %v3712 = vld [vmem:[%s422 + $0x138] sm:$0xff]
  %v3713 = vld [vmem:[%s422 + $0x140] sm:$0xff]
  %v3714 = vld [vmem:[%s422 + $0x150] sm:$0xff]
  %v3715 = vld [vmem:[%s422 + $0x158] sm:$0xff]
  %v3716 = vld [vmem:[%s422 + $0x168] sm:$0xff]
  %v3717 = vld [vmem:[%s422 + $0x170] sm:$0xff]
  %v3719 = vsel %vm26, %v3686, 0
  %v3722 = vsel %vm26, %v3687, 0
  %v3725 = vsel %vm26, %v3688, 0
  %v3728 = vsel %vm26, %v3689, 0
  %v3731 = vsel %vm26, %v3690, 0
  %v3734 = vsel %vm26, %v3691, 0
  %v3737 = vsel %vm26, %v3692, 0
  %v3740 = vsel %vm26, %v3693, 0
  %v3743 = vsel %vm26, %v3694, 0
  %v3746 = vsel %vm26, %v3695, 0
  %v3749 = vsel %vm26, %v3696, 0
  %v3752 = vsel %vm26, %v3697, 0
  %v3755 = vsel %vm26, %v3698, 0
  %v3758 = vsel %vm26, %v3699, 0
  %v3761 = vsel %vm26, %v3700, 0
  %v3764 = vsel %vm26, %v3701, 0
  %v3767 = vsel %vm26, %v3702, 0
  %v3770 = vsel %vm26, %v3703, 0
  %v3773 = vsel %vm26, %v3704, 0
  %v3776 = vsel %vm26, %v3705, 0
  %v3779 = vsel %vm26, %v3706, 0
  %v3782 = vsel %vm26, %v3707, 0
  %v3785 = vsel %vm26, %v3708, 0
  %v3788 = vsel %vm26, %v3709, 0
  %v3791 = vsel %vm26, %v3710, 0
  %v3794 = vsel %vm26, %v3711, 0
  %v3797 = vsel %vm26, %v3712, 0
  %v3800 = vsel %vm26, %v3713, 0
  %v3803 = vsel %vm26, %v3714, 0
  %v3806 = vsel %vm26, %v3715, 0
  %v3809 = vsel %vm26, %v3716, 0
  %v3812 = vsel %vm26, %v3717, 0
  %3814 = vmatpush.msra.mxu0 0.0
  %3815 = vmatpush.msra.mxu0 0.0
  %3816 = vmatpush.msra.mxu0 0.0
  %3817 = vmatpush.msra.mxu0 0.0
  %3818 = vmatpush.msra.mxu0 0.0
  %3819 = vmatpush.msra.mxu0 0.0
  %3820 = vmatpush.msra.mxu0 0.0
  %3821 = vmatpush.msra.mxu0 0.0
  %3822 = vmatpush.msra.mxu0 0.0
  %3823 = vmatpush.msra.mxu0 0.0
  %3824 = vmatpush.msra.mxu0 0.0
  %3825 = vmatpush.msra.mxu0 0.0
  %3826 = vmatpush.msra.mxu0 0.0
  %3827 = vmatpush.msra.mxu0 0.0
  %3828 = vmatpush.msra.mxu0 0.0
  %3829 = vmatpush.msra.mxu0 %v1356
  %3830 = vmatmul.f32.gmra.mxu0 %v3719
  %v3831 = vpop.f32.mrf.mxu0
  %v3832 = vadd.f32 0.0, %v3831
  %3833 = vmatmul.f32.gmra.mxu0 %v3722
  %v3834 = vpop.f32.mrf.mxu0
  %v3835 = vadd.f32 0.0, %v3834
  %3836 = vmatmul.f32.gmra.mxu0 %v3725
  %v3837 = vpop.f32.mrf.mxu0
  %v3838 = vadd.f32 0.0, %v3837
  %3839 = vmatmul.f32.gmra.mxu0 %v3728
  %v3840 = vpop.f32.mrf.mxu0
  %v3841 = vadd.f32 0.0, %v3840
  %3842 = vmatmul.f32.gmra.mxu0 %v3731
  %v3843 = vpop.f32.mrf.mxu0
  %v3844 = vadd.f32 0.0, %v3843
  %3845 = vmatmul.f32.gmra.mxu0 %v3734
  %v3846 = vpop.f32.mrf.mxu0
  %v3847 = vadd.f32 0.0, %v3846
  %3848 = vmatmul.f32.gmra.mxu0 %v3737
  %v3849 = vpop.f32.mrf.mxu0
  %v3850 = vadd.f32 0.0, %v3849
  %3851 = vmatmul.f32.gmra.mxu0 %v3740
  %v3852 = vpop.f32.mrf.mxu0
  %v3853 = vadd.f32 0.0, %v3852
  %3854 = vmatmul.f32.gmra.mxu0 %v3743
  %v3855 = vpop.f32.mrf.mxu0
  %v3856 = vadd.f32 0.0, %v3855
  %3857 = vmatmul.f32.gmra.mxu0 %v3746
  %v3858 = vpop.f32.mrf.mxu0
  %v3859 = vadd.f32 0.0, %v3858
  %3860 = vmatmul.f32.gmra.mxu0 %v3749
  %v3861 = vpop.f32.mrf.mxu0
  %v3862 = vadd.f32 0.0, %v3861
  %3863 = vmatmul.f32.gmra.mxu0 %v3752
  %v3864 = vpop.f32.mrf.mxu0
  %v3865 = vadd.f32 0.0, %v3864
  %3866 = vmatmul.f32.gmra.mxu0 %v3755
  %v3867 = vpop.f32.mrf.mxu0
  %v3868 = vadd.f32 0.0, %v3867
  %3869 = vmatmul.f32.gmra.mxu0 %v3758
  %v3870 = vpop.f32.mrf.mxu0
  %v3871 = vadd.f32 0.0, %v3870
  %3872 = vmatmul.f32.gmra.mxu0 %v3761
  %v3873 = vpop.f32.mrf.mxu0
  %v3874 = vadd.f32 0.0, %v3873
  %3875 = vmatmul.f32.gmra.mxu0 %v3764
  %v3876 = vpop.f32.mrf.mxu0
  %v3877 = vadd.f32 0.0, %v3876
  %3878 = vmatmul.f32.gmra.mxu0 %v3767
  %v3879 = vpop.f32.mrf.mxu0
  %v3880 = vadd.f32 0.0, %v3879
  %3881 = vmatmul.f32.gmra.mxu0 %v3770
  %v3882 = vpop.f32.mrf.mxu0
  %v3883 = vadd.f32 0.0, %v3882
  %3884 = vmatmul.f32.gmra.mxu0 %v3773
  %v3885 = vpop.f32.mrf.mxu0
  %v3886 = vadd.f32 0.0, %v3885
  %3887 = vmatmul.f32.gmra.mxu0 %v3776
  %v3888 = vpop.f32.mrf.mxu0
  %v3889 = vadd.f32 0.0, %v3888
  %3890 = vmatmul.f32.gmra.mxu0 %v3779
  %v3891 = vpop.f32.mrf.mxu0
  %v3892 = vadd.f32 0.0, %v3891
  %3893 = vmatmul.f32.gmra.mxu0 %v3782
  %v3894 = vpop.f32.mrf.mxu0
  %v3895 = vadd.f32 0.0, %v3894
  %3896 = vmatmul.f32.gmra.mxu0 %v3785
  %v3897 = vpop.f32.mrf.mxu0
  %v3898 = vadd.f32 0.0, %v3897
  %3899 = vmatmul.f32.gmra.mxu0 %v3788
  %v3900 = vpop.f32.mrf.mxu0
  %v3901 = vadd.f32 0.0, %v3900
  %3902 = vmatmul.f32.gmra.mxu0 %v3791
  %v3903 = vpop.f32.mrf.mxu0
  %v3904 = vadd.f32 0.0, %v3903
  %3905 = vmatmul.f32.gmra.mxu0 %v3794
  %v3906 = vpop.f32.mrf.mxu0
  %v3907 = vadd.f32 0.0, %v3906
  %3908 = vmatmul.f32.gmra.mxu0 %v3797
  %v3909 = vpop.f32.mrf.mxu0
  %v3910 = vadd.f32 0.0, %v3909
  %3911 = vmatmul.f32.gmra.mxu0 %v3800
  %v3912 = vpop.f32.mrf.mxu0
  %v3913 = vadd.f32 0.0, %v3912
  %3914 = vmatmul.f32.gmra.mxu0 %v3803
  %v3915 = vpop.f32.mrf.mxu0
  %v3916 = vadd.f32 0.0, %v3915
  %3917 = vmatmul.f32.gmra.mxu0 %v3806
  %v3918 = vpop.f32.mrf.mxu0
  %v3919 = vadd.f32 0.0, %v3918
  %3920 = vmatmul.f32.gmra.mxu0 %v3809
  %v3921 = vpop.f32.mrf.mxu0
  %v3922 = vadd.f32 0.0, %v3921
  %3923 = vmatmul.f32.gmra.mxu0 %v3812
  %v3924 = vpop.f32.mrf.mxu0
  %v3925 = vadd.f32 0.0, %v3924
  %3926 = vdwg.mxu0
  %v3927 = vadd.f32 %v3654, %v3832
  %v3928 = vadd.f32 %v3655, %v3835
  %v3929 = vadd.f32 %v3656, %v3838
  %v3930 = vadd.f32 %v3657, %v3841
  %v3931 = vadd.f32 %v3658, %v3844
  %v3932 = vadd.f32 %v3659, %v3847
  %v3933 = vadd.f32 %v3660, %v3850
  %v3934 = vadd.f32 %v3661, %v3853
  %v3935 = vadd.f32 %v3662, %v3856
  %v3936 = vadd.f32 %v3663, %v3859
  %v3937 = vadd.f32 %v3664, %v3862
  %v3938 = vadd.f32 %v3665, %v3865
  %v3939 = vadd.f32 %v3666, %v3868
  %v3940 = vadd.f32 %v3667, %v3871
  %v3941 = vadd.f32 %v3668, %v3874
  %v3942 = vadd.f32 %v3669, %v3877
  %v3943 = vadd.f32 %v3670, %v3880
  %v3944 = vadd.f32 %v3671, %v3883
  %v3945 = vadd.f32 %v3672, %v3886
  %v3946 = vadd.f32 %v3673, %v3889
  %v3947 = vadd.f32 %v3674, %v3892
  %v3948 = vadd.f32 %v3675, %v3895
  %v3949 = vadd.f32 %v3676, %v3898
  %v3950 = vadd.f32 %v3677, %v3901
  %v3951 = vadd.f32 %v3678, %v3904
  %v3952 = vadd.f32 %v3679, %v3907
  %v3953 = vadd.f32 %v3680, %v3910
  %v3954 = vadd.f32 %v3681, %v3913
  %v3955 = vadd.f32 %v3682, %v3916
  %v3956 = vadd.f32 %v3683, %v3919
  %v3957 = vadd.f32 %v3684, %v3922
  %v3958 = vadd.f32 %v3685, %v3925
  %v3959 = vld [vmem:[%s422 + $0x1] sm:$0xff]
  %v3960 = vld [vmem:[%s422 + $0x9] sm:$0xff]
  %v3961 = vld [vmem:[%s422 + $0x19] sm:$0xff]
  %v3962 = vld [vmem:[%s422 + $0x21] sm:$0xff]
  %v3963 = vld [vmem:[%s422 + $0x31] sm:$0xff]
  %v3964 = vld [vmem:[%s422 + $0x39] sm:$0xff]
  %v3965 = vld [vmem:[%s422 + $0x49] sm:$0xff]
  %v3966 = vld [vmem:[%s422 + $0x51] sm:$0xff]
  %v3967 = vld [vmem:[%s422 + $0x61] sm:$0xff]
  %v3968 = vld [vmem:[%s422 + $0x69] sm:$0xff]
  %v3969 = vld [vmem:[%s422 + $0x79] sm:$0xff]
  %v3970 = vld [vmem:[%s422 + $0x81] sm:$0xff]
  %v3971 = vld [vmem:[%s422 + $0x91] sm:$0xff]
  %v3972 = vld [vmem:[%s422 + $0x99] sm:$0xff]
  %v3973 = vld [vmem:[%s422 + $0xa9] sm:$0xff]
  %v3974 = vld [vmem:[%s422 + $0xb1] sm:$0xff]
  %v3975 = vld [vmem:[%s422 + $0xc1] sm:$0xff]
  %v3976 = vld [vmem:[%s422 + $0xc9] sm:$0xff]
  %v3977 = vld [vmem:[%s422 + $0xd9] sm:$0xff]
  %v3978 = vld [vmem:[%s422 + $0xe1] sm:$0xff]
  %v3979 = vld [vmem:[%s422 + $0xf1] sm:$0xff]
  %v3980 = vld [vmem:[%s422 + $0xf9] sm:$0xff]
  %v3981 = vld [vmem:[%s422 + $0x109] sm:$0xff]
  %v3982 = vld [vmem:[%s422 + $0x111] sm:$0xff]
  %v3983 = vld [vmem:[%s422 + $0x121] sm:$0xff]
  %v3984 = vld [vmem:[%s422 + $0x129] sm:$0xff]
  %v3985 = vld [vmem:[%s422 + $0x139] sm:$0xff]
  %v3986 = vld [vmem:[%s422 + $0x141] sm:$0xff]
  %v3987 = vld [vmem:[%s422 + $0x151] sm:$0xff]
  %v3988 = vld [vmem:[%s422 + $0x159] sm:$0xff]
  %v3989 = vld [vmem:[%s422 + $0x169] sm:$0xff]
  %v3990 = vld [vmem:[%s422 + $0x171] sm:$0xff]
  %v3992 = vsel %vm26, %v3959, 0
  %v3995 = vsel %vm26, %v3960, 0
  %v3998 = vsel %vm26, %v3961, 0
  %v4001 = vsel %vm26, %v3962, 0
  %v4004 = vsel %vm26, %v3963, 0
  %v4007 = vsel %vm26, %v3964, 0
  %v4010 = vsel %vm26, %v3965, 0
  %v4013 = vsel %vm26, %v3966, 0
  %v4016 = vsel %vm26, %v3967, 0
  %v4019 = vsel %vm26, %v3968, 0
  %v4022 = vsel %vm26, %v3969, 0
  %v4025 = vsel %vm26, %v3970, 0
  %v4028 = vsel %vm26, %v3971, 0
  %v4031 = vsel %vm26, %v3972, 0
  %v4034 = vsel %vm26, %v3973, 0
  %v4037 = vsel %vm26, %v3974, 0
  %v4040 = vsel %vm26, %v3975, 0
  %v4043 = vsel %vm26, %v3976, 0
  %v4046 = vsel %vm26, %v3977, 0
  %v4049 = vsel %vm26, %v3978, 0
  %v4052 = vsel %vm26, %v3979, 0
  %v4055 = vsel %vm26, %v3980, 0
  %v4058 = vsel %vm26, %v3981, 0
  %v4061 = vsel %vm26, %v3982, 0
  %v4064 = vsel %vm26, %v3983, 0
  %v4067 = vsel %vm26, %v3984, 0
  %v4070 = vsel %vm26, %v3985, 0
  %v4073 = vsel %vm26, %v3986, 0
  %v4076 = vsel %vm26, %v3987, 0
  %v4079 = vsel %vm26, %v3988, 0
  %v4082 = vsel %vm26, %v3989, 0
  %v4085 = vsel %vm26, %v3990, 0
  %4087 = vmatpush.msra.mxu0 0.0
  %4088 = vmatpush.msra.mxu0 0.0
  %4089 = vmatpush.msra.mxu0 0.0
  %4090 = vmatpush.msra.mxu0 0.0
  %4091 = vmatpush.msra.mxu0 0.0
  %4092 = vmatpush.msra.mxu0 0.0
  %4093 = vmatpush.msra.mxu0 0.0
  %4094 = vmatpush.msra.mxu0 0.0
  %4095 = vmatpush.msra.mxu0 0.0
  %4096 = vmatpush.msra.mxu0 0.0
  %4097 = vmatpush.msra.mxu0 0.0
  %4098 = vmatpush.msra.mxu0 0.0
  %4099 = vmatpush.msra.mxu0 0.0
  %4100 = vmatpush.msra.mxu0 0.0
  %4101 = vmatpush.msra.mxu0 0.0
  %4102 = vmatpush.msra.mxu0 %v1634
  %4103 = vmatmul.f32.gmra.mxu0 %v3992
  %v4104 = vpop.f32.mrf.mxu0
  %v4105 = vadd.f32 0.0, %v4104
  %4106 = vmatmul.f32.gmra.mxu0 %v3995
  %v4107 = vpop.f32.mrf.mxu0
  %v4108 = vadd.f32 0.0, %v4107
  %4109 = vmatmul.f32.gmra.mxu0 %v3998
  %v4110 = vpop.f32.mrf.mxu0
  %v4111 = vadd.f32 0.0, %v4110
  %4112 = vmatmul.f32.gmra.mxu0 %v4001
  %v4113 = vpop.f32.mrf.mxu0
  %v4114 = vadd.f32 0.0, %v4113
  %4115 = vmatmul.f32.gmra.mxu0 %v4004
  %v4116 = vpop.f32.mrf.mxu0
  %v4117 = vadd.f32 0.0, %v4116
  %4118 = vmatmul.f32.gmra.mxu0 %v4007
  %v4119 = vpop.f32.mrf.mxu0
  %v4120 = vadd.f32 0.0, %v4119
  %4121 = vmatmul.f32.gmra.mxu0 %v4010
  %v4122 = vpop.f32.mrf.mxu0
  %v4123 = vadd.f32 0.0, %v4122
  %4124 = vmatmul.f32.gmra.mxu0 %v4013
  %v4125 = vpop.f32.mrf.mxu0
  %v4126 = vadd.f32 0.0, %v4125
  %4127 = vmatmul.f32.gmra.mxu0 %v4016
  %v4128 = vpop.f32.mrf.mxu0
  %v4129 = vadd.f32 0.0, %v4128
  %4130 = vmatmul.f32.gmra.mxu0 %v4019
  %v4131 = vpop.f32.mrf.mxu0
  %v4132 = vadd.f32 0.0, %v4131
  %4133 = vmatmul.f32.gmra.mxu0 %v4022
  %v4134 = vpop.f32.mrf.mxu0
  %v4135 = vadd.f32 0.0, %v4134
  %4136 = vmatmul.f32.gmra.mxu0 %v4025
  %v4137 = vpop.f32.mrf.mxu0
  %v4138 = vadd.f32 0.0, %v4137
  %4139 = vmatmul.f32.gmra.mxu0 %v4028
  %v4140 = vpop.f32.mrf.mxu0
  %v4141 = vadd.f32 0.0, %v4140
  %4142 = vmatmul.f32.gmra.mxu0 %v4031
  %v4143 = vpop.f32.mrf.mxu0
  %v4144 = vadd.f32 0.0, %v4143
  %4145 = vmatmul.f32.gmra.mxu0 %v4034
  %v4146 = vpop.f32.mrf.mxu0
  %v4147 = vadd.f32 0.0, %v4146
  %4148 = vmatmul.f32.gmra.mxu0 %v4037
  %v4149 = vpop.f32.mrf.mxu0
  %v4150 = vadd.f32 0.0, %v4149
  %4151 = vmatmul.f32.gmra.mxu0 %v4040
  %v4152 = vpop.f32.mrf.mxu0
  %v4153 = vadd.f32 0.0, %v4152
  %4154 = vmatmul.f32.gmra.mxu0 %v4043
  %v4155 = vpop.f32.mrf.mxu0
  %v4156 = vadd.f32 0.0, %v4155
  %4157 = vmatmul.f32.gmra.mxu0 %v4046
  %v4158 = vpop.f32.mrf.mxu0
  %v4159 = vadd.f32 0.0, %v4158
  %4160 = vmatmul.f32.gmra.mxu0 %v4049
  %v4161 = vpop.f32.mrf.mxu0
  %v4162 = vadd.f32 0.0, %v4161
  %4163 = vmatmul.f32.gmra.mxu0 %v4052
  %v4164 = vpop.f32.mrf.mxu0
  %v4165 = vadd.f32 0.0, %v4164
  %4166 = vmatmul.f32.gmra.mxu0 %v4055
  %v4167 = vpop.f32.mrf.mxu0
  %v4168 = vadd.f32 0.0, %v4167
  %4169 = vmatmul.f32.gmra.mxu0 %v4058
  %v4170 = vpop.f32.mrf.mxu0
  %v4171 = vadd.f32 0.0, %v4170
  %4172 = vmatmul.f32.gmra.mxu0 %v4061
  %v4173 = vpop.f32.mrf.mxu0
  %v4174 = vadd.f32 0.0, %v4173
  %4175 = vmatmul.f32.gmra.mxu0 %v4064
  %v4176 = vpop.f32.mrf.mxu0
  %v4177 = vadd.f32 0.0, %v4176
  %4178 = vmatmul.f32.gmra.mxu0 %v4067
  %v4179 = vpop.f32.mrf.mxu0
  %v4180 = vadd.f32 0.0, %v4179
  %4181 = vmatmul.f32.gmra.mxu0 %v4070
  %v4182 = vpop.f32.mrf.mxu0
  %v4183 = vadd.f32 0.0, %v4182
  %4184 = vmatmul.f32.gmra.mxu0 %v4073
  %v4185 = vpop.f32.mrf.mxu0
  %v4186 = vadd.f32 0.0, %v4185
  %4187 = vmatmul.f32.gmra.mxu0 %v4076
  %v4188 = vpop.f32.mrf.mxu0
  %v4189 = vadd.f32 0.0, %v4188
  %4190 = vmatmul.f32.gmra.mxu0 %v4079
  %v4191 = vpop.f32.mrf.mxu0
  %v4192 = vadd.f32 0.0, %v4191
  %4193 = vmatmul.f32.gmra.mxu0 %v4082
  %v4194 = vpop.f32.mrf.mxu0
  %v4195 = vadd.f32 0.0, %v4194
  %4196 = vmatmul.f32.gmra.mxu0 %v4085
  %v4197 = vpop.f32.mrf.mxu0
  %v4198 = vadd.f32 0.0, %v4197
  %4199 = vdwg.mxu0
  %v4200 = vadd.f32 %v3927, %v4105
  %v4201 = vadd.f32 %v3928, %v4108
  %v4202 = vadd.f32 %v3929, %v4111
  %v4203 = vadd.f32 %v3930, %v4114
  %v4204 = vadd.f32 %v3931, %v4117
  %v4205 = vadd.f32 %v3932, %v4120
  %v4206 = vadd.f32 %v3933, %v4123
  %v4207 = vadd.f32 %v3934, %v4126
  %v4208 = vadd.f32 %v3935, %v4129
  %v4209 = vadd.f32 %v3936, %v4132
  %v4210 = vadd.f32 %v3937, %v4135
  %v4211 = vadd.f32 %v3938, %v4138
  %v4212 = vadd.f32 %v3939, %v4141
  %v4213 = vadd.f32 %v3940, %v4144
  %v4214 = vadd.f32 %v3941, %v4147
  %v4215 = vadd.f32 %v3942, %v4150
  %v4216 = vadd.f32 %v3943, %v4153
  %v4217 = vadd.f32 %v3944, %v4156
  %v4218 = vadd.f32 %v3945, %v4159
  %v4219 = vadd.f32 %v3946, %v4162
  %v4220 = vadd.f32 %v3947, %v4165
  %v4221 = vadd.f32 %v3948, %v4168
  %v4222 = vadd.f32 %v3949, %v4171
  %v4223 = vadd.f32 %v3950, %v4174
  %v4224 = vadd.f32 %v3951, %v4177
  %v4225 = vadd.f32 %v3952, %v4180
  %v4226 = vadd.f32 %v3953, %v4183
  %v4227 = vadd.f32 %v3954, %v4186
  %v4228 = vadd.f32 %v3955, %v4189
  %v4229 = vadd.f32 %v3956, %v4192
  %v4230 = vadd.f32 %v3957, %v4195
  %v4231 = vadd.f32 %v3958, %v4198
  %v4232 = vld [vmem:[%s422 + $0x2] sm:$0xff]
  %v4233 = vld [vmem:[%s422 + $0xa] sm:$0xff]
  %v4234 = vld [vmem:[%s422 + $0x1a] sm:$0xff]
  %v4235 = vld [vmem:[%s422 + $0x22] sm:$0xff]
  %v4236 = vld [vmem:[%s422 + $0x32] sm:$0xff]
  %v4237 = vld [vmem:[%s422 + $0x3a] sm:$0xff]
  %v4238 = vld [vmem:[%s422 + $0x4a] sm:$0xff]
  %v4239 = vld [vmem:[%s422 + $0x52] sm:$0xff]
  %v4240 = vld [vmem:[%s422 + $0x62] sm:$0xff]
  %v4241 = vld [vmem:[%s422 + $0x6a] sm:$0xff]
  %v4242 = vld [vmem:[%s422 + $0x7a] sm:$0xff]
  %v4243 = vld [vmem:[%s422 + $0x82] sm:$0xff]
  %v4244 = vld [vmem:[%s422 + $0x92] sm:$0xff]
  %v4245 = vld [vmem:[%s422 + $0x9a] sm:$0xff]
  %v4246 = vld [vmem:[%s422 + $0xaa] sm:$0xff]
  %v4247 = vld [vmem:[%s422 + $0xb2] sm:$0xff]
  %v4248 = vld [vmem:[%s422 + $0xc2] sm:$0xff]
  %v4249 = vld [vmem:[%s422 + $0xca] sm:$0xff]
  %v4250 = vld [vmem:[%s422 + $0xda] sm:$0xff]
  %v4251 = vld [vmem:[%s422 + $0xe2] sm:$0xff]
  %v4252 = vld [vmem:[%s422 + $0xf2] sm:$0xff]
  %v4253 = vld [vmem:[%s422 + $0xfa] sm:$0xff]
  %v4254 = vld [vmem:[%s422 + $0x10a] sm:$0xff]
  %v4255 = vld [vmem:[%s422 + $0x112] sm:$0xff]
  %v4256 = vld [vmem:[%s422 + $0x122] sm:$0xff]
  %v4257 = vld [vmem:[%s422 + $0x12a] sm:$0xff]
  %v4258 = vld [vmem:[%s422 + $0x13a] sm:$0xff]
  %v4259 = vld [vmem:[%s422 + $0x142] sm:$0xff]
  %v4260 = vld [vmem:[%s422 + $0x152] sm:$0xff]
  %v4261 = vld [vmem:[%s422 + $0x15a] sm:$0xff]
  %v4262 = vld [vmem:[%s422 + $0x16a] sm:$0xff]
  %v4263 = vld [vmem:[%s422 + $0x172] sm:$0xff]
  %v4265 = vsel %vm26, %v4232, 0
  %v4268 = vsel %vm26, %v4233, 0
  %v4271 = vsel %vm26, %v4234, 0
  %v4274 = vsel %vm26, %v4235, 0
  %v4277 = vsel %vm26, %v4236, 0
  %v4280 = vsel %vm26, %v4237, 0
  %v4283 = vsel %vm26, %v4238, 0
  %v4286 = vsel %vm26, %v4239, 0
  %v4289 = vsel %vm26, %v4240, 0
  %v4292 = vsel %vm26, %v4241, 0
  %v4295 = vsel %vm26, %v4242, 0
  %v4298 = vsel %vm26, %v4243, 0
  %v4301 = vsel %vm26, %v4244, 0
  %v4304 = vsel %vm26, %v4245, 0
  %v4307 = vsel %vm26, %v4246, 0
  %v4310 = vsel %vm26, %v4247, 0
  %v4313 = vsel %vm26, %v4248, 0
  %v4316 = vsel %vm26, %v4249, 0
  %v4319 = vsel %vm26, %v4250, 0
  %v4322 = vsel %vm26, %v4251, 0
  %v4325 = vsel %vm26, %v4252, 0
  %v4328 = vsel %vm26, %v4253, 0
  %v4331 = vsel %vm26, %v4254, 0
  %v4334 = vsel %vm26, %v4255, 0
  %v4337 = vsel %vm26, %v4256, 0
  %v4340 = vsel %vm26, %v4257, 0
  %v4343 = vsel %vm26, %v4258, 0
  %v4346 = vsel %vm26, %v4259, 0
  %v4349 = vsel %vm26, %v4260, 0
  %v4352 = vsel %vm26, %v4261, 0
  %v4355 = vsel %vm26, %v4262, 0
  %v4358 = vsel %vm26, %v4263, 0
  %4360 = vmatpush.msra.mxu0 0.0
  %4361 = vmatpush.msra.mxu0 0.0
  %4362 = vmatpush.msra.mxu0 0.0
  %4363 = vmatpush.msra.mxu0 0.0
  %4364 = vmatpush.msra.mxu0 0.0
  %4365 = vmatpush.msra.mxu0 0.0
  %4366 = vmatpush.msra.mxu0 0.0
  %4367 = vmatpush.msra.mxu0 0.0
  %4368 = vmatpush.msra.mxu0 0.0
  %4369 = vmatpush.msra.mxu0 0.0
  %4370 = vmatpush.msra.mxu0 0.0
  %4371 = vmatpush.msra.mxu0 0.0
  %4372 = vmatpush.msra.mxu0 0.0
  %4373 = vmatpush.msra.mxu0 0.0
  %4374 = vmatpush.msra.mxu0 0.0
  %4375 = vmatpush.msra.mxu0 %v1912
  %4376 = vmatmul.f32.gmra.mxu0 %v4265
  %v4377 = vpop.f32.mrf.mxu0
  %v4378 = vadd.f32 0.0, %v4377
  %4379 = vmatmul.f32.gmra.mxu0 %v4268
  %v4380 = vpop.f32.mrf.mxu0
  %v4381 = vadd.f32 0.0, %v4380
  %4382 = vmatmul.f32.gmra.mxu0 %v4271
  %v4383 = vpop.f32.mrf.mxu0
  %v4384 = vadd.f32 0.0, %v4383
  %4385 = vmatmul.f32.gmra.mxu0 %v4274
  %v4386 = vpop.f32.mrf.mxu0
  %v4387 = vadd.f32 0.0, %v4386
  %4388 = vmatmul.f32.gmra.mxu0 %v4277
  %v4389 = vpop.f32.mrf.mxu0
  %v4390 = vadd.f32 0.0, %v4389
  %4391 = vmatmul.f32.gmra.mxu0 %v4280
  %v4392 = vpop.f32.mrf.mxu0
  %v4393 = vadd.f32 0.0, %v4392
  %4394 = vmatmul.f32.gmra.mxu0 %v4283
  %v4395 = vpop.f32.mrf.mxu0
  %v4396 = vadd.f32 0.0, %v4395
  %4397 = vmatmul.f32.gmra.mxu0 %v4286
  %v4398 = vpop.f32.mrf.mxu0
  %v4399 = vadd.f32 0.0, %v4398
  %4400 = vmatmul.f32.gmra.mxu0 %v4289
  %v4401 = vpop.f32.mrf.mxu0
  %v4402 = vadd.f32 0.0, %v4401
  %4403 = vmatmul.f32.gmra.mxu0 %v4292
  %v4404 = vpop.f32.mrf.mxu0
  %v4405 = vadd.f32 0.0, %v4404
  %4406 = vmatmul.f32.gmra.mxu0 %v4295
  %v4407 = vpop.f32.mrf.mxu0
  %v4408 = vadd.f32 0.0, %v4407
  %4409 = vmatmul.f32.gmra.mxu0 %v4298
  %v4410 = vpop.f32.mrf.mxu0
  %v4411 = vadd.f32 0.0, %v4410
  %4412 = vmatmul.f32.gmra.mxu0 %v4301
  %v4413 = vpop.f32.mrf.mxu0
  %v4414 = vadd.f32 0.0, %v4413
  %4415 = vmatmul.f32.gmra.mxu0 %v4304
  %v4416 = vpop.f32.mrf.mxu0
  %v4417 = vadd.f32 0.0, %v4416
  %4418 = vmatmul.f32.gmra.mxu0 %v4307
  %v4419 = vpop.f32.mrf.mxu0
  %v4420 = vadd.f32 0.0, %v4419
  %4421 = vmatmul.f32.gmra.mxu0 %v4310
  %v4422 = vpop.f32.mrf.mxu0
  %v4423 = vadd.f32 0.0, %v4422
  %4424 = vmatmul.f32.gmra.mxu0 %v4313
  %v4425 = vpop.f32.mrf.mxu0
  %v4426 = vadd.f32 0.0, %v4425
  %4427 = vmatmul.f32.gmra.mxu0 %v4316
  %v4428 = vpop.f32.mrf.mxu0
  %v4429 = vadd.f32 0.0, %v4428
  %4430 = vmatmul.f32.gmra.mxu0 %v4319
  %v4431 = vpop.f32.mrf.mxu0
  %v4432 = vadd.f32 0.0, %v4431
  %4433 = vmatmul.f32.gmra.mxu0 %v4322
  %v4434 = vpop.f32.mrf.mxu0
  %v4435 = vadd.f32 0.0, %v4434
  %4436 = vmatmul.f32.gmra.mxu0 %v4325
  %v4437 = vpop.f32.mrf.mxu0
  %v4438 = vadd.f32 0.0, %v4437
  %4439 = vmatmul.f32.gmra.mxu0 %v4328
  %v4440 = vpop.f32.mrf.mxu0
  %v4441 = vadd.f32 0.0, %v4440
  %4442 = vmatmul.f32.gmra.mxu0 %v4331
  %v4443 = vpop.f32.mrf.mxu0
  %v4444 = vadd.f32 0.0, %v4443
  %4445 = vmatmul.f32.gmra.mxu0 %v4334
  %v4446 = vpop.f32.mrf.mxu0
  %v4447 = vadd.f32 0.0, %v4446
  %4448 = vmatmul.f32.gmra.mxu0 %v4337
  %v4449 = vpop.f32.mrf.mxu0
  %v4450 = vadd.f32 0.0, %v4449
  %4451 = vmatmul.f32.gmra.mxu0 %v4340
  %v4452 = vpop.f32.mrf.mxu0
  %v4453 = vadd.f32 0.0, %v4452
  %4454 = vmatmul.f32.gmra.mxu0 %v4343
  %v4455 = vpop.f32.mrf.mxu0
  %v4456 = vadd.f32 0.0, %v4455
  %4457 = vmatmul.f32.gmra.mxu0 %v4346
  %v4458 = vpop.f32.mrf.mxu0
  %v4459 = vadd.f32 0.0, %v4458
  %4460 = vmatmul.f32.gmra.mxu0 %v4349
  %v4461 = vpop.f32.mrf.mxu0
  %v4462 = vadd.f32 0.0, %v4461
  %4463 = vmatmul.f32.gmra.mxu0 %v4352
  %v4464 = vpop.f32.mrf.mxu0
  %v4465 = vadd.f32 0.0, %v4464
  %4466 = vmatmul.f32.gmra.mxu0 %v4355
  %v4467 = vpop.f32.mrf.mxu0
  %v4468 = vadd.f32 0.0, %v4467
  %4469 = vmatmul.f32.gmra.mxu0 %v4358
  %v4470 = vpop.f32.mrf.mxu0
  %v4471 = vadd.f32 0.0, %v4470
  %4472 = vdwg.mxu0
  %v4473 = vadd.f32 %v4200, %v4378
  %v4474 = vadd.f32 %v4201, %v4381
  %v4475 = vadd.f32 %v4202, %v4384
  %v4476 = vadd.f32 %v4203, %v4387
  %v4477 = vadd.f32 %v4204, %v4390
  %v4478 = vadd.f32 %v4205, %v4393
  %v4479 = vadd.f32 %v4206, %v4396
  %v4480 = vadd.f32 %v4207, %v4399
  %v4481 = vadd.f32 %v4208, %v4402
  %v4482 = vadd.f32 %v4209, %v4405
  %v4483 = vadd.f32 %v4210, %v4408
  %v4484 = vadd.f32 %v4211, %v4411
  %v4485 = vadd.f32 %v4212, %v4414
  %v4486 = vadd.f32 %v4213, %v4417
  %v4487 = vadd.f32 %v4214, %v4420
  %v4488 = vadd.f32 %v4215, %v4423
  %v4489 = vadd.f32 %v4216, %v4426
  %v4490 = vadd.f32 %v4217, %v4429
  %v4491 = vadd.f32 %v4218, %v4432
  %v4492 = vadd.f32 %v4219, %v4435
  %v4493 = vadd.f32 %v4220, %v4438
  %v4494 = vadd.f32 %v4221, %v4441
  %v4495 = vadd.f32 %v4222, %v4444
  %v4496 = vadd.f32 %v4223, %v4447
  %v4497 = vadd.f32 %v4224, %v4450
  %v4498 = vadd.f32 %v4225, %v4453
  %v4499 = vadd.f32 %v4226, %v4456
  %v4500 = vadd.f32 %v4227, %v4459
  %v4501 = vadd.f32 %v4228, %v4462
  %v4502 = vadd.f32 %v4229, %v4465
  %v4503 = vadd.f32 %v4230, %v4468
  %v4504 = vadd.f32 %v4231, %v4471
  %s4505 = scalar_lea.vmem [#allocation2], 480
  %v4506 = vld [vmem:[%s4505] sm:$0xff]
  %v4507 = vld [vmem:[%s4505 + $0x8] sm:$0xff]
  %v4508 = vld [vmem:[%s4505 + $0x18] sm:$0xff]
  %v4509 = vld [vmem:[%s4505 + $0x20] sm:$0xff]
  %v4510 = vld [vmem:[%s4505 + $0x30] sm:$0xff]
  %v4511 = vld [vmem:[%s4505 + $0x38] sm:$0xff]
  %v4512 = vld [vmem:[%s4505 + $0x48] sm:$0xff]
  %v4513 = vld [vmem:[%s4505 + $0x50] sm:$0xff]
  %v4514 = vld [vmem:[%s4505 + $0x60] sm:$0xff]
  %v4515 = vld [vmem:[%s4505 + $0x68] sm:$0xff]
  %v4516 = vld [vmem:[%s4505 + $0x78] sm:$0xff]
  %v4517 = vld [vmem:[%s4505 + $0x80] sm:$0xff]
  %v4518 = vld [vmem:[%s4505 + $0x90] sm:$0xff]
  %v4519 = vld [vmem:[%s4505 + $0x98] sm:$0xff]
  %v4520 = vld [vmem:[%s4505 + $0xa8] sm:$0xff]
  %v4521 = vld [vmem:[%s4505 + $0xb0] sm:$0xff]
  %v4522 = vld [vmem:[%s4505 + $0xc0] sm:$0xff]
  %v4523 = vld [vmem:[%s4505 + $0xc8] sm:$0xff]
  %v4524 = vld [vmem:[%s4505 + $0xd8] sm:$0xff]
  %v4525 = vld [vmem:[%s4505 + $0xe0] sm:$0xff]
  %v4526 = vld [vmem:[%s4505 + $0xf0] sm:$0xff]
  %v4527 = vld [vmem:[%s4505 + $0xf8] sm:$0xff]
  %v4528 = vld [vmem:[%s4505 + $0x108] sm:$0xff]
  %v4529 = vld [vmem:[%s4505 + $0x110] sm:$0xff]
  %v4530 = vld [vmem:[%s4505 + $0x120] sm:$0xff]
  %v4531 = vld [vmem:[%s4505 + $0x128] sm:$0xff]
  %v4532 = vld [vmem:[%s4505 + $0x138] sm:$0xff]
  %v4533 = vld [vmem:[%s4505 + $0x140] sm:$0xff]
  %v4534 = vld [vmem:[%s4505 + $0x150] sm:$0xff]
  %v4535 = vld [vmem:[%s4505 + $0x158] sm:$0xff]
  %v4536 = vld [vmem:[%s4505 + $0x168] sm:$0xff]
  %v4537 = vld [vmem:[%s4505 + $0x170] sm:$0xff]
  %v4539 = vsel %vm26, %v4506, 0
  %v4542 = vsel %vm26, %v4507, 0
  %v4545 = vsel %vm26, %v4508, 0
  %v4548 = vsel %vm26, %v4509, 0
  %v4551 = vsel %vm26, %v4510, 0
  %v4554 = vsel %vm26, %v4511, 0
  %v4557 = vsel %vm26, %v4512, 0
  %v4560 = vsel %vm26, %v4513, 0
  %v4563 = vsel %vm26, %v4514, 0
  %v4566 = vsel %vm26, %v4515, 0
  %v4569 = vsel %vm26, %v4516, 0
  %v4572 = vsel %vm26, %v4517, 0
  %v4575 = vsel %vm26, %v4518, 0
  %v4578 = vsel %vm26, %v4519, 0
  %v4581 = vsel %vm26, %v4520, 0
  %v4584 = vsel %vm26, %v4521, 0
  %v4587 = vsel %vm26, %v4522, 0
  %v4590 = vsel %vm26, %v4523, 0
  %v4593 = vsel %vm26, %v4524, 0
  %v4596 = vsel %vm26, %v4525, 0
  %v4599 = vsel %vm26, %v4526, 0
  %v4602 = vsel %vm26, %v4527, 0
  %v4605 = vsel %vm26, %v4528, 0
  %v4608 = vsel %vm26, %v4529, 0
  %v4611 = vsel %vm26, %v4530, 0
  %v4614 = vsel %vm26, %v4531, 0
  %v4617 = vsel %vm26, %v4532, 0
  %v4620 = vsel %vm26, %v4533, 0
  %v4623 = vsel %vm26, %v4534, 0
  %v4626 = vsel %vm26, %v4535, 0
  %v4629 = vsel %vm26, %v4536, 0
  %v4632 = vsel %vm26, %v4537, 0
  %4634 = vmatpush.msra.mxu0 0.0
  %4635 = vmatpush.msra.mxu0 0.0
  %4636 = vmatpush.msra.mxu0 0.0
  %4637 = vmatpush.msra.mxu0 0.0
  %4638 = vmatpush.msra.mxu0 0.0
  %4639 = vmatpush.msra.mxu0 0.0
  %4640 = vmatpush.msra.mxu0 0.0
  %4641 = vmatpush.msra.mxu0 0.0
  %4642 = vmatpush.msra.mxu0 0.0
  %4643 = vmatpush.msra.mxu0 0.0
  %4644 = vmatpush.msra.mxu0 0.0
  %4645 = vmatpush.msra.mxu0 0.0
  %4646 = vmatpush.msra.mxu0 0.0
  %4647 = vmatpush.msra.mxu0 0.0
  %4648 = vmatpush.msra.mxu0 0.0
  %4649 = vmatpush.msra.mxu0 %v2191
  %4650 = vmatmul.f32.gmra.mxu0 %v4539
  %v4651 = vpop.f32.mrf.mxu0
  %v4652 = vadd.f32 0.0, %v4651
  %4653 = vmatmul.f32.gmra.mxu0 %v4542
  %v4654 = vpop.f32.mrf.mxu0
  %v4655 = vadd.f32 0.0, %v4654
  %4656 = vmatmul.f32.gmra.mxu0 %v4545
  %v4657 = vpop.f32.mrf.mxu0
  %v4658 = vadd.f32 0.0, %v4657
  %4659 = vmatmul.f32.gmra.mxu0 %v4548
  %v4660 = vpop.f32.mrf.mxu0
  %v4661 = vadd.f32 0.0, %v4660
  %4662 = vmatmul.f32.gmra.mxu0 %v4551
  %v4663 = vpop.f32.mrf.mxu0
  %v4664 = vadd.f32 0.0, %v4663
  %4665 = vmatmul.f32.gmra.mxu0 %v4554
  %v4666 = vpop.f32.mrf.mxu0
  %v4667 = vadd.f32 0.0, %v4666
  %4668 = vmatmul.f32.gmra.mxu0 %v4557
  %v4669 = vpop.f32.mrf.mxu0
  %v4670 = vadd.f32 0.0, %v4669
  %4671 = vmatmul.f32.gmra.mxu0 %v4560
  %v4672 = vpop.f32.mrf.mxu0
  %v4673 = vadd.f32 0.0, %v4672
  %4674 = vmatmul.f32.gmra.mxu0 %v4563
  %v4675 = vpop.f32.mrf.mxu0
  %v4676 = vadd.f32 0.0, %v4675
  %4677 = vmatmul.f32.gmra.mxu0 %v4566
  %v4678 = vpop.f32.mrf.mxu0
  %v4679 = vadd.f32 0.0, %v4678
  %4680 = vmatmul.f32.gmra.mxu0 %v4569
  %v4681 = vpop.f32.mrf.mxu0
  %v4682 = vadd.f32 0.0, %v4681
  %4683 = vmatmul.f32.gmra.mxu0 %v4572
  %v4684 = vpop.f32.mrf.mxu0
  %v4685 = vadd.f32 0.0, %v4684
  %4686 = vmatmul.f32.gmra.mxu0 %v4575
  %v4687 = vpop.f32.mrf.mxu0
  %v4688 = vadd.f32 0.0, %v4687
  %4689 = vmatmul.f32.gmra.mxu0 %v4578
  %v4690 = vpop.f32.mrf.mxu0
  %v4691 = vadd.f32 0.0, %v4690
  %4692 = vmatmul.f32.gmra.mxu0 %v4581
  %v4693 = vpop.f32.mrf.mxu0
  %v4694 = vadd.f32 0.0, %v4693
  %4695 = vmatmul.f32.gmra.mxu0 %v4584
  %v4696 = vpop.f32.mrf.mxu0
  %v4697 = vadd.f32 0.0, %v4696
  %4698 = vmatmul.f32.gmra.mxu0 %v4587
  %v4699 = vpop.f32.mrf.mxu0
  %v4700 = vadd.f32 0.0, %v4699
  %4701 = vmatmul.f32.gmra.mxu0 %v4590
  %v4702 = vpop.f32.mrf.mxu0
  %v4703 = vadd.f32 0.0, %v4702
  %4704 = vmatmul.f32.gmra.mxu0 %v4593
  %v4705 = vpop.f32.mrf.mxu0
  %v4706 = vadd.f32 0.0, %v4705
  %4707 = vmatmul.f32.gmra.mxu0 %v4596
  %v4708 = vpop.f32.mrf.mxu0
  %v4709 = vadd.f32 0.0, %v4708
  %4710 = vmatmul.f32.gmra.mxu0 %v4599
  %v4711 = vpop.f32.mrf.mxu0
  %v4712 = vadd.f32 0.0, %v4711
  %4713 = vmatmul.f32.gmra.mxu0 %v4602
  %v4714 = vpop.f32.mrf.mxu0
  %v4715 = vadd.f32 0.0, %v4714
  %4716 = vmatmul.f32.gmra.mxu0 %v4605
  %v4717 = vpop.f32.mrf.mxu0
  %v4718 = vadd.f32 0.0, %v4717
  %4719 = vmatmul.f32.gmra.mxu0 %v4608
  %v4720 = vpop.f32.mrf.mxu0
  %v4721 = vadd.f32 0.0, %v4720
  %4722 = vmatmul.f32.gmra.mxu0 %v4611
  %v4723 = vpop.f32.mrf.mxu0
  %v4724 = vadd.f32 0.0, %v4723
  %4725 = vmatmul.f32.gmra.mxu0 %v4614
  %v4726 = vpop.f32.mrf.mxu0
  %v4727 = vadd.f32 0.0, %v4726
  %4728 = vmatmul.f32.gmra.mxu0 %v4617
  %v4729 = vpop.f32.mrf.mxu0
  %v4730 = vadd.f32 0.0, %v4729
  %4731 = vmatmul.f32.gmra.mxu0 %v4620
  %v4732 = vpop.f32.mrf.mxu0
  %v4733 = vadd.f32 0.0, %v4732
  %4734 = vmatmul.f32.gmra.mxu0 %v4623
  %v4735 = vpop.f32.mrf.mxu0
  %v4736 = vadd.f32 0.0, %v4735
  %4737 = vmatmul.f32.gmra.mxu0 %v4626
  %v4738 = vpop.f32.mrf.mxu0
  %v4739 = vadd.f32 0.0, %v4738
  %4740 = vmatmul.f32.gmra.mxu0 %v4629
  %v4741 = vpop.f32.mrf.mxu0
  %v4742 = vadd.f32 0.0, %v4741
  %4743 = vmatmul.f32.gmra.mxu0 %v4632
  %v4744 = vpop.f32.mrf.mxu0
  %v4745 = vadd.f32 0.0, %v4744
  %4746 = vdwg.mxu0
  %v4747 = vadd.f32 %v4473, %v4652
  %v4748 = vadd.f32 %v4474, %v4655
  %v4749 = vadd.f32 %v4475, %v4658
  %v4750 = vadd.f32 %v4476, %v4661
  %v4751 = vadd.f32 %v4477, %v4664
  %v4752 = vadd.f32 %v4478, %v4667
  %v4753 = vadd.f32 %v4479, %v4670
  %v4754 = vadd.f32 %v4480, %v4673
  %v4755 = vadd.f32 %v4481, %v4676
  %v4756 = vadd.f32 %v4482, %v4679
  %v4757 = vadd.f32 %v4483, %v4682
  %v4758 = vadd.f32 %v4484, %v4685
  %v4759 = vadd.f32 %v4485, %v4688
  %v4760 = vadd.f32 %v4486, %v4691
  %v4761 = vadd.f32 %v4487, %v4694
  %v4762 = vadd.f32 %v4488, %v4697
  %v4763 = vadd.f32 %v4489, %v4700
  %v4764 = vadd.f32 %v4490, %v4703
  %v4765 = vadd.f32 %v4491, %v4706
  %v4766 = vadd.f32 %v4492, %v4709
  %v4767 = vadd.f32 %v4493, %v4712
  %v4768 = vadd.f32 %v4494, %v4715
  %v4769 = vadd.f32 %v4495, %v4718
  %v4770 = vadd.f32 %v4496, %v4721
  %v4771 = vadd.f32 %v4497, %v4724
  %v4772 = vadd.f32 %v4498, %v4727
  %v4773 = vadd.f32 %v4499, %v4730
  %v4774 = vadd.f32 %v4500, %v4733
  %v4775 = vadd.f32 %v4501, %v4736
  %v4776 = vadd.f32 %v4502, %v4739
  %v4777 = vadd.f32 %v4503, %v4742
  %v4778 = vadd.f32 %v4504, %v4745
  %v4779 = vld [vmem:[%s4505 + $0x1] sm:$0xff]
  %v4780 = vld [vmem:[%s4505 + $0x9] sm:$0xff]
  %v4781 = vld [vmem:[%s4505 + $0x19] sm:$0xff]
  %v4782 = vld [vmem:[%s4505 + $0x21] sm:$0xff]
  %v4783 = vld [vmem:[%s4505 + $0x31] sm:$0xff]
  %v4784 = vld [vmem:[%s4505 + $0x39] sm:$0xff]
  %v4785 = vld [vmem:[%s4505 + $0x49] sm:$0xff]
  %v4786 = vld [vmem:[%s4505 + $0x51] sm:$0xff]
  %v4787 = vld [vmem:[%s4505 + $0x61] sm:$0xff]
  %v4788 = vld [vmem:[%s4505 + $0x69] sm:$0xff]
  %v4789 = vld [vmem:[%s4505 + $0x79] sm:$0xff]
  %v4790 = vld [vmem:[%s4505 + $0x81] sm:$0xff]
  %v4791 = vld [vmem:[%s4505 + $0x91] sm:$0xff]
  %v4792 = vld [vmem:[%s4505 + $0x99] sm:$0xff]
  %v4793 = vld [vmem:[%s4505 + $0xa9] sm:$0xff]
  %v4794 = vld [vmem:[%s4505 + $0xb1] sm:$0xff]
  %v4795 = vld [vmem:[%s4505 + $0xc1] sm:$0xff]
  %v4796 = vld [vmem:[%s4505 + $0xc9] sm:$0xff]
  %v4797 = vld [vmem:[%s4505 + $0xd9] sm:$0xff]
  %v4798 = vld [vmem:[%s4505 + $0xe1] sm:$0xff]
  %v4799 = vld [vmem:[%s4505 + $0xf1] sm:$0xff]
  %v4800 = vld [vmem:[%s4505 + $0xf9] sm:$0xff]
  %v4801 = vld [vmem:[%s4505 + $0x109] sm:$0xff]
  %v4802 = vld [vmem:[%s4505 + $0x111] sm:$0xff]
  %v4803 = vld [vmem:[%s4505 + $0x121] sm:$0xff]
  %v4804 = vld [vmem:[%s4505 + $0x129] sm:$0xff]
  %v4805 = vld [vmem:[%s4505 + $0x139] sm:$0xff]
  %v4806 = vld [vmem:[%s4505 + $0x141] sm:$0xff]
  %v4807 = vld [vmem:[%s4505 + $0x151] sm:$0xff]
  %v4808 = vld [vmem:[%s4505 + $0x159] sm:$0xff]
  %v4809 = vld [vmem:[%s4505 + $0x169] sm:$0xff]
  %v4810 = vld [vmem:[%s4505 + $0x171] sm:$0xff]
  %v4812 = vsel %vm26, %v4779, 0
  %v4815 = vsel %vm26, %v4780, 0
  %v4818 = vsel %vm26, %v4781, 0
  %v4821 = vsel %vm26, %v4782, 0
  %v4824 = vsel %vm26, %v4783, 0
  %v4827 = vsel %vm26, %v4784, 0
  %v4830 = vsel %vm26, %v4785, 0
  %v4833 = vsel %vm26, %v4786, 0
  %v4836 = vsel %vm26, %v4787, 0
  %v4839 = vsel %vm26, %v4788, 0
  %v4842 = vsel %vm26, %v4789, 0
  %v4845 = vsel %vm26, %v4790, 0
  %v4848 = vsel %vm26, %v4791, 0
  %v4851 = vsel %vm26, %v4792, 0
  %v4854 = vsel %vm26, %v4793, 0
  %v4857 = vsel %vm26, %v4794, 0
  %v4860 = vsel %vm26, %v4795, 0
  %v4863 = vsel %vm26, %v4796, 0
  %v4866 = vsel %vm26, %v4797, 0
  %v4869 = vsel %vm26, %v4798, 0
  %v4872 = vsel %vm26, %v4799, 0
  %v4875 = vsel %vm26, %v4800, 0
  %v4878 = vsel %vm26, %v4801, 0
  %v4881 = vsel %vm26, %v4802, 0
  %v4884 = vsel %vm26, %v4803, 0
  %v4887 = vsel %vm26, %v4804, 0
  %v4890 = vsel %vm26, %v4805, 0
  %v4893 = vsel %vm26, %v4806, 0
  %v4896 = vsel %vm26, %v4807, 0
  %v4899 = vsel %vm26, %v4808, 0
  %v4902 = vsel %vm26, %v4809, 0
  %v4905 = vsel %vm26, %v4810, 0
  %4907 = vmatpush.msra.mxu0 0.0
  %4908 = vmatpush.msra.mxu0 0.0
  %4909 = vmatpush.msra.mxu0 0.0
  %4910 = vmatpush.msra.mxu0 0.0
  %4911 = vmatpush.msra.mxu0 0.0
  %4912 = vmatpush.msra.mxu0 0.0
  %4913 = vmatpush.msra.mxu0 0.0
  %4914 = vmatpush.msra.mxu0 0.0
  %4915 = vmatpush.msra.mxu0 0.0
  %4916 = vmatpush.msra.mxu0 0.0
  %4917 = vmatpush.msra.mxu0 0.0
  %4918 = vmatpush.msra.mxu0 0.0
  %4919 = vmatpush.msra.mxu0 0.0
  %4920 = vmatpush.msra.mxu0 0.0
  %4921 = vmatpush.msra.mxu0 0.0
  %4922 = vmatpush.msra.mxu0 %v2469
  %4923 = vmatmul.f32.gmra.mxu0 %v4812
  %v4924 = vpop.f32.mrf.mxu0
  %v4925 = vadd.f32 0.0, %v4924
  %4926 = vmatmul.f32.gmra.mxu0 %v4815
  %v4927 = vpop.f32.mrf.mxu0
  %v4928 = vadd.f32 0.0, %v4927
  %4929 = vmatmul.f32.gmra.mxu0 %v4818
  %v4930 = vpop.f32.mrf.mxu0
  %v4931 = vadd.f32 0.0, %v4930
  %4932 = vmatmul.f32.gmra.mxu0 %v4821
  %v4933 = vpop.f32.mrf.mxu0
  %v4934 = vadd.f32 0.0, %v4933
  %4935 = vmatmul.f32.gmra.mxu0 %v4824
  %v4936 = vpop.f32.mrf.mxu0
  %v4937 = vadd.f32 0.0, %v4936
  %4938 = vmatmul.f32.gmra.mxu0 %v4827
  %v4939 = vpop.f32.mrf.mxu0
  %v4940 = vadd.f32 0.0, %v4939
  %4941 = vmatmul.f32.gmra.mxu0 %v4830
  %v4942 = vpop.f32.mrf.mxu0
  %v4943 = vadd.f32 0.0, %v4942
  %4944 = vmatmul.f32.gmra.mxu0 %v4833
  %v4945 = vpop.f32.mrf.mxu0
  %v4946 = vadd.f32 0.0, %v4945
  %4947 = vmatmul.f32.gmra.mxu0 %v4836
  %v4948 = vpop.f32.mrf.mxu0
  %v4949 = vadd.f32 0.0, %v4948
  %4950 = vmatmul.f32.gmra.mxu0 %v4839
  %v4951 = vpop.f32.mrf.mxu0
  %v4952 = vadd.f32 0.0, %v4951
  %4953 = vmatmul.f32.gmra.mxu0 %v4842
  %v4954 = vpop.f32.mrf.mxu0
  %v4955 = vadd.f32 0.0, %v4954
  %4956 = vmatmul.f32.gmra.mxu0 %v4845
  %v4957 = vpop.f32.mrf.mxu0
  %v4958 = vadd.f32 0.0, %v4957
  %4959 = vmatmul.f32.gmra.mxu0 %v4848
  %v4960 = vpop.f32.mrf.mxu0
  %v4961 = vadd.f32 0.0, %v4960
  %4962 = vmatmul.f32.gmra.mxu0 %v4851
  %v4963 = vpop.f32.mrf.mxu0
  %v4964 = vadd.f32 0.0, %v4963
  %4965 = vmatmul.f32.gmra.mxu0 %v4854
  %v4966 = vpop.f32.mrf.mxu0
  %v4967 = vadd.f32 0.0, %v4966
  %4968 = vmatmul.f32.gmra.mxu0 %v4857
  %v4969 = vpop.f32.mrf.mxu0
  %v4970 = vadd.f32 0.0, %v4969
  %4971 = vmatmul.f32.gmra.mxu0 %v4860
  %v4972 = vpop.f32.mrf.mxu0
  %v4973 = vadd.f32 0.0, %v4972
  %4974 = vmatmul.f32.gmra.mxu0 %v4863
  %v4975 = vpop.f32.mrf.mxu0
  %v4976 = vadd.f32 0.0, %v4975
  %4977 = vmatmul.f32.gmra.mxu0 %v4866
  %v4978 = vpop.f32.mrf.mxu0
  %v4979 = vadd.f32 0.0, %v4978
  %4980 = vmatmul.f32.gmra.mxu0 %v4869
  %v4981 = vpop.f32.mrf.mxu0
  %v4982 = vadd.f32 0.0, %v4981
  %4983 = vmatmul.f32.gmra.mxu0 %v4872
  %v4984 = vpop.f32.mrf.mxu0
  %v4985 = vadd.f32 0.0, %v4984
  %4986 = vmatmul.f32.gmra.mxu0 %v4875
  %v4987 = vpop.f32.mrf.mxu0
  %v4988 = vadd.f32 0.0, %v4987
  %4989 = vmatmul.f32.gmra.mxu0 %v4878
  %v4990 = vpop.f32.mrf.mxu0
  %v4991 = vadd.f32 0.0, %v4990
  %4992 = vmatmul.f32.gmra.mxu0 %v4881
  %v4993 = vpop.f32.mrf.mxu0
  %v4994 = vadd.f32 0.0, %v4993
  %4995 = vmatmul.f32.gmra.mxu0 %v4884
  %v4996 = vpop.f32.mrf.mxu0
  %v4997 = vadd.f32 0.0, %v4996
  %4998 = vmatmul.f32.gmra.mxu0 %v4887
  %v4999 = vpop.f32.mrf.mxu0
  %v5000 = vadd.f32 0.0, %v4999
  %5001 = vmatmul.f32.gmra.mxu0 %v4890
  %v5002 = vpop.f32.mrf.mxu0
  %v5003 = vadd.f32 0.0, %v5002
  %5004 = vmatmul.f32.gmra.mxu0 %v4893
  %v5005 = vpop.f32.mrf.mxu0
  %v5006 = vadd.f32 0.0, %v5005
  %5007 = vmatmul.f32.gmra.mxu0 %v4896
  %v5008 = vpop.f32.mrf.mxu0
  %v5009 = vadd.f32 0.0, %v5008
  %5010 = vmatmul.f32.gmra.mxu0 %v4899
  %v5011 = vpop.f32.mrf.mxu0
  %v5012 = vadd.f32 0.0, %v5011
  %5013 = vmatmul.f32.gmra.mxu0 %v4902
  %v5014 = vpop.f32.mrf.mxu0
  %v5015 = vadd.f32 0.0, %v5014
  %5016 = vmatmul.f32.gmra.mxu0 %v4905
  %v5017 = vpop.f32.mrf.mxu0
  %v5018 = vadd.f32 0.0, %v5017
  %5019 = vdwg.mxu0
  %v5020 = vadd.f32 %v4747, %v4925
  %v5021 = vadd.f32 %v4748, %v4928
  %v5022 = vadd.f32 %v4749, %v4931
  %v5023 = vadd.f32 %v4750, %v4934
  %v5024 = vadd.f32 %v4751, %v4937
  %v5025 = vadd.f32 %v4752, %v4940
  %v5026 = vadd.f32 %v4753, %v4943
  %v5027 = vadd.f32 %v4754, %v4946
  %v5028 = vadd.f32 %v4755, %v4949
  %v5029 = vadd.f32 %v4756, %v4952
  %v5030 = vadd.f32 %v4757, %v4955
  %v5031 = vadd.f32 %v4758, %v4958
  %v5032 = vadd.f32 %v4759, %v4961
  %v5033 = vadd.f32 %v4760, %v4964
  %v5034 = vadd.f32 %v4761, %v4967
  %v5035 = vadd.f32 %v4762, %v4970
  %v5036 = vadd.f32 %v4763, %v4973
  %v5037 = vadd.f32 %v4764, %v4976
  %v5038 = vadd.f32 %v4765, %v4979
  %v5039 = vadd.f32 %v4766, %v4982
  %v5040 = vadd.f32 %v4767, %v4985
  %v5041 = vadd.f32 %v4768, %v4988
  %v5042 = vadd.f32 %v4769, %v4991
  %v5043 = vadd.f32 %v4770, %v4994
  %v5044 = vadd.f32 %v4771, %v4997
  %v5045 = vadd.f32 %v4772, %v5000
  %v5046 = vadd.f32 %v4773, %v5003
  %v5047 = vadd.f32 %v4774, %v5006
  %v5048 = vadd.f32 %v4775, %v5009
  %v5049 = vadd.f32 %v4776, %v5012
  %v5050 = vadd.f32 %v4777, %v5015
  %v5051 = vadd.f32 %v4778, %v5018
  %v5052 = vld [vmem:[%s4505 + $0x2] sm:$0xff]
  %v5053 = vld [vmem:[%s4505 + $0xa] sm:$0xff]
  %v5054 = vld [vmem:[%s4505 + $0x1a] sm:$0xff]
  %v5055 = vld [vmem:[%s4505 + $0x22] sm:$0xff]
  %v5056 = vld [vmem:[%s4505 + $0x32] sm:$0xff]
  %v5057 = vld [vmem:[%s4505 + $0x3a] sm:$0xff]
  %v5058 = vld [vmem:[%s4505 + $0x4a] sm:$0xff]
  %v5059 = vld [vmem:[%s4505 + $0x52] sm:$0xff]
  %v5060 = vld [vmem:[%s4505 + $0x62] sm:$0xff]
  %v5061 = vld [vmem:[%s4505 + $0x6a] sm:$0xff]
  %v5062 = vld [vmem:[%s4505 + $0x7a] sm:$0xff]
  %v5063 = vld [vmem:[%s4505 + $0x82] sm:$0xff]
  %v5064 = vld [vmem:[%s4505 + $0x92] sm:$0xff]
  %v5065 = vld [vmem:[%s4505 + $0x9a] sm:$0xff]
  %v5066 = vld [vmem:[%s4505 + $0xaa] sm:$0xff]
  %v5067 = vld [vmem:[%s4505 + $0xb2] sm:$0xff]
  %v5068 = vld [vmem:[%s4505 + $0xc2] sm:$0xff]
  %v5069 = vld [vmem:[%s4505 + $0xca] sm:$0xff]
  %v5070 = vld [vmem:[%s4505 + $0xda] sm:$0xff]
  %v5071 = vld [vmem:[%s4505 + $0xe2] sm:$0xff]
  %v5072 = vld [vmem:[%s4505 + $0xf2] sm:$0xff]
  %v5073 = vld [vmem:[%s4505 + $0xfa] sm:$0xff]
  %v5074 = vld [vmem:[%s4505 + $0x10a] sm:$0xff]
  %v5075 = vld [vmem:[%s4505 + $0x112] sm:$0xff]
  %v5076 = vld [vmem:[%s4505 + $0x122] sm:$0xff]
  %v5077 = vld [vmem:[%s4505 + $0x12a] sm:$0xff]
  %v5078 = vld [vmem:[%s4505 + $0x13a] sm:$0xff]
  %v5079 = vld [vmem:[%s4505 + $0x142] sm:$0xff]
  %v5080 = vld [vmem:[%s4505 + $0x152] sm:$0xff]
  %v5081 = vld [vmem:[%s4505 + $0x15a] sm:$0xff]
  %v5082 = vld [vmem:[%s4505 + $0x16a] sm:$0xff]
  %v5083 = vld [vmem:[%s4505 + $0x172] sm:$0xff]
  %v5085 = vsel %vm26, %v5052, 0
  %v5088 = vsel %vm26, %v5053, 0
  %v5091 = vsel %vm26, %v5054, 0
  %v5094 = vsel %vm26, %v5055, 0
  %v5097 = vsel %vm26, %v5056, 0
  %v5100 = vsel %vm26, %v5057, 0
  %v5103 = vsel %vm26, %v5058, 0
  %v5106 = vsel %vm26, %v5059, 0
  %v5109 = vsel %vm26, %v5060, 0
  %v5112 = vsel %vm26, %v5061, 0
  %v5115 = vsel %vm26, %v5062, 0
  %v5118 = vsel %vm26, %v5063, 0
  %v5121 = vsel %vm26, %v5064, 0
  %v5124 = vsel %vm26, %v5065, 0
  %v5127 = vsel %vm26, %v5066, 0
  %v5130 = vsel %vm26, %v5067, 0
  %v5133 = vsel %vm26, %v5068, 0
  %v5136 = vsel %vm26, %v5069, 0
  %v5139 = vsel %vm26, %v5070, 0
  %v5142 = vsel %vm26, %v5071, 0
  %v5145 = vsel %vm26, %v5072, 0
  %v5148 = vsel %vm26, %v5073, 0
  %v5151 = vsel %vm26, %v5074, 0
  %v5154 = vsel %vm26, %v5075, 0
  %v5157 = vsel %vm26, %v5076, 0
  %v5160 = vsel %vm26, %v5077, 0
  %v5163 = vsel %vm26, %v5078, 0
  %v5166 = vsel %vm26, %v5079, 0
  %v5169 = vsel %vm26, %v5080, 0
  %v5172 = vsel %vm26, %v5081, 0
  %v5175 = vsel %vm26, %v5082, 0
  %v5178 = vsel %vm26, %v5083, 0
  %5180 = vmatpush.msra.mxu0 0.0
  %5181 = vmatpush.msra.mxu0 0.0
  %5182 = vmatpush.msra.mxu0 0.0
  %5183 = vmatpush.msra.mxu0 0.0
  %5184 = vmatpush.msra.mxu0 0.0
  %5185 = vmatpush.msra.mxu0 0.0
  %5186 = vmatpush.msra.mxu0 0.0
  %5187 = vmatpush.msra.mxu0 0.0
  %5188 = vmatpush.msra.mxu0 0.0
  %5189 = vmatpush.msra.mxu0 0.0
  %5190 = vmatpush.msra.mxu0 0.0
  %5191 = vmatpush.msra.mxu0 0.0
  %5192 = vmatpush.msra.mxu0 0.0
  %5193 = vmatpush.msra.mxu0 0.0
  %5194 = vmatpush.msra.mxu0 0.0
  %5195 = vmatpush.msra.mxu0 %v2747
  %5196 = vmatmul.f32.gmra.mxu0 %v5085
  %v5197 = vpop.f32.mrf.mxu0
  %v5198 = vadd.f32 0.0, %v5197
  %5199 = vmatmul.f32.gmra.mxu0 %v5088
  %v5200 = vpop.f32.mrf.mxu0
  %v5201 = vadd.f32 0.0, %v5200
  %5202 = vmatmul.f32.gmra.mxu0 %v5091
  %v5203 = vpop.f32.mrf.mxu0
  %v5204 = vadd.f32 0.0, %v5203
  %5205 = vmatmul.f32.gmra.mxu0 %v5094
  %v5206 = vpop.f32.mrf.mxu0
  %v5207 = vadd.f32 0.0, %v5206
  %5208 = vmatmul.f32.gmra.mxu0 %v5097
  %v5209 = vpop.f32.mrf.mxu0
  %v5210 = vadd.f32 0.0, %v5209
  %5211 = vmatmul.f32.gmra.mxu0 %v5100
  %v5212 = vpop.f32.mrf.mxu0
  %v5213 = vadd.f32 0.0, %v5212
  %5214 = vmatmul.f32.gmra.mxu0 %v5103
  %v5215 = vpop.f32.mrf.mxu0
  %v5216 = vadd.f32 0.0, %v5215
  %5217 = vmatmul.f32.gmra.mxu0 %v5106
  %v5218 = vpop.f32.mrf.mxu0
  %v5219 = vadd.f32 0.0, %v5218
  %5220 = vmatmul.f32.gmra.mxu0 %v5109
  %v5221 = vpop.f32.mrf.mxu0
  %v5222 = vadd.f32 0.0, %v5221
  %5223 = vmatmul.f32.gmra.mxu0 %v5112
  %v5224 = vpop.f32.mrf.mxu0
  %v5225 = vadd.f32 0.0, %v5224
  %5226 = vmatmul.f32.gmra.mxu0 %v5115
  %v5227 = vpop.f32.mrf.mxu0
  %v5228 = vadd.f32 0.0, %v5227
  %5229 = vmatmul.f32.gmra.mxu0 %v5118
  %v5230 = vpop.f32.mrf.mxu0
  %v5231 = vadd.f32 0.0, %v5230
  %5232 = vmatmul.f32.gmra.mxu0 %v5121
  %v5233 = vpop.f32.mrf.mxu0
  %v5234 = vadd.f32 0.0, %v5233
  %5235 = vmatmul.f32.gmra.mxu0 %v5124
  %v5236 = vpop.f32.mrf.mxu0
  %v5237 = vadd.f32 0.0, %v5236
  %5238 = vmatmul.f32.gmra.mxu0 %v5127
  %v5239 = vpop.f32.mrf.mxu0
  %v5240 = vadd.f32 0.0, %v5239
  %5241 = vmatmul.f32.gmra.mxu0 %v5130
  %v5242 = vpop.f32.mrf.mxu0
  %v5243 = vadd.f32 0.0, %v5242
  %5244 = vmatmul.f32.gmra.mxu0 %v5133
  %v5245 = vpop.f32.mrf.mxu0
  %v5246 = vadd.f32 0.0, %v5245
  %5247 = vmatmul.f32.gmra.mxu0 %v5136
  %v5248 = vpop.f32.mrf.mxu0
  %v5249 = vadd.f32 0.0, %v5248
  %5250 = vmatmul.f32.gmra.mxu0 %v5139
  %v5251 = vpop.f32.mrf.mxu0
  %v5252 = vadd.f32 0.0, %v5251
  %5253 = vmatmul.f32.gmra.mxu0 %v5142
  %v5254 = vpop.f32.mrf.mxu0
  %v5255 = vadd.f32 0.0, %v5254
  %5256 = vmatmul.f32.gmra.mxu0 %v5145
  %v5257 = vpop.f32.mrf.mxu0
  %v5258 = vadd.f32 0.0, %v5257
  %5259 = vmatmul.f32.gmra.mxu0 %v5148
  %v5260 = vpop.f32.mrf.mxu0
  %v5261 = vadd.f32 0.0, %v5260
  %5262 = vmatmul.f32.gmra.mxu0 %v5151
  %v5263 = vpop.f32.mrf.mxu0
  %v5264 = vadd.f32 0.0, %v5263
  %5265 = vmatmul.f32.gmra.mxu0 %v5154
  %v5266 = vpop.f32.mrf.mxu0
  %v5267 = vadd.f32 0.0, %v5266
  %5268 = vmatmul.f32.gmra.mxu0 %v5157
  %v5269 = vpop.f32.mrf.mxu0
  %v5270 = vadd.f32 0.0, %v5269
  %5271 = vmatmul.f32.gmra.mxu0 %v5160
  %v5272 = vpop.f32.mrf.mxu0
  %v5273 = vadd.f32 0.0, %v5272
  %5274 = vmatmul.f32.gmra.mxu0 %v5163
  %v5275 = vpop.f32.mrf.mxu0
  %v5276 = vadd.f32 0.0, %v5275
  %5277 = vmatmul.f32.gmra.mxu0 %v5166
  %v5278 = vpop.f32.mrf.mxu0
  %v5279 = vadd.f32 0.0, %v5278
  %5280 = vmatmul.f32.gmra.mxu0 %v5169
  %v5281 = vpop.f32.mrf.mxu0
  %v5282 = vadd.f32 0.0, %v5281
  %5283 = vmatmul.f32.gmra.mxu0 %v5172
  %v5284 = vpop.f32.mrf.mxu0
  %v5285 = vadd.f32 0.0, %v5284
  %5286 = vmatmul.f32.gmra.mxu0 %v5175
  %v5287 = vpop.f32.mrf.mxu0
  %v5288 = vadd.f32 0.0, %v5287
  %5289 = vmatmul.f32.gmra.mxu0 %v5178
  %v5290 = vpop.f32.mrf.mxu0
  %v5291 = vadd.f32 0.0, %v5290
  %5292 = vdwg.mxu0
  %v5293 = vadd.f32 %v5020, %v5198
  %v5294 = vadd.f32 %v5021, %v5201
  %v5295 = vadd.f32 %v5022, %v5204
  %v5296 = vadd.f32 %v5023, %v5207
  %v5297 = vadd.f32 %v5024, %v5210
  %v5298 = vadd.f32 %v5025, %v5213
  %v5299 = vadd.f32 %v5026, %v5216
  %v5300 = vadd.f32 %v5027, %v5219
  %v5301 = vadd.f32 %v5028, %v5222
  %v5302 = vadd.f32 %v5029, %v5225
  %v5303 = vadd.f32 %v5030, %v5228
  %v5304 = vadd.f32 %v5031, %v5231
  %v5305 = vadd.f32 %v5032, %v5234
  %v5306 = vadd.f32 %v5033, %v5237
  %v5307 = vadd.f32 %v5034, %v5240
  %v5308 = vadd.f32 %v5035, %v5243
  %v5309 = vadd.f32 %v5036, %v5246
  %v5310 = vadd.f32 %v5037, %v5249
  %v5311 = vadd.f32 %v5038, %v5252
  %v5312 = vadd.f32 %v5039, %v5255
  %v5313 = vadd.f32 %v5040, %v5258
  %v5314 = vadd.f32 %v5041, %v5261
  %v5315 = vadd.f32 %v5042, %v5264
  %v5316 = vadd.f32 %v5043, %v5267
  %v5317 = vadd.f32 %v5044, %v5270
  %v5318 = vadd.f32 %v5045, %v5273
  %v5319 = vadd.f32 %v5046, %v5276
  %v5320 = vadd.f32 %v5047, %v5279
  %v5321 = vadd.f32 %v5048, %v5282
  %v5322 = vadd.f32 %v5049, %v5285
  %v5323 = vadd.f32 %v5050, %v5288
  %v5324 = vadd.f32 %v5051, %v5291
  %v5325 = vadd.f32 %v5293, %v2896
  %v5326 = vadd.f32 %v5294, %v2896
  %v5327 = vadd.f32 %v5295, %v2896
  %v5328 = vadd.f32 %v5296, %v2896
  %v5329 = vadd.f32 %v5297, %v2896
  %v5330 = vadd.f32 %v5298, %v2896
  %v5331 = vadd.f32 %v5299, %v2896
  %v5332 = vadd.f32 %v5300, %v2896
  %v5333 = vadd.f32 %v5301, %v2896
  %v5334 = vadd.f32 %v5302, %v2896
  %v5335 = vadd.f32 %v5303, %v2896
  %v5336 = vadd.f32 %v5304, %v2896
  %v5337 = vadd.f32 %v5305, %v2896
  %v5338 = vadd.f32 %v5306, %v2896
  %v5339 = vadd.f32 %v5307, %v2896
  %v5340 = vadd.f32 %v5308, %v2896
  %v5341 = vadd.f32 %v5309, %v2896
  %v5342 = vadd.f32 %v5310, %v2896
  %v5343 = vadd.f32 %v5311, %v2896
  %v5344 = vadd.f32 %v5312, %v2896
  %v5345 = vadd.f32 %v5313, %v2896
  %v5346 = vadd.f32 %v5314, %v2896
  %v5347 = vadd.f32 %v5315, %v2896
  %v5348 = vadd.f32 %v5316, %v2896
  %v5349 = vadd.f32 %v5317, %v2896
  %v5350 = vadd.f32 %v5318, %v2896
  %v5351 = vadd.f32 %v5319, %v2896
  %v5352 = vadd.f32 %v5320, %v2896
  %v5353 = vadd.f32 %v5321, %v2896
  %v5354 = vadd.f32 %v5322, %v2896
  %v5355 = vadd.f32 %v5323, %v2896
  %v5356 = vadd.f32 %v5324, %v2896
  %v5357 = vsel %vm136, %v2898, 0.0
  %v5358 = vsel %vm136, %v2899, 0.0
  %v5359 = vadd.f32 %v5357, %v5358
  %v5360 = vsel %vm136, %v2900, 0.0
  %v5361 = vadd.f32 %v5359, %v5360
  %v5362 = vsel %vm136, %v2901, 0.0
  %v5363 = vadd.f32 %v5361, %v5362
  %v5364 = vsel %vm136, %v2902, 0.0
  %v5365 = vadd.f32 %v5363, %v5364
  %v5366 = vsel %vm136, %v2903, 0.0
  %v5367 = vadd.f32 %v5365, %v5366
  %v5368 = vsel %vm136, %v2904, 0.0
  %v5369 = vadd.f32 %v5367, %v5368
  %v5370 = vsel %vm136, %v2905, 0.0
  %v5371 = vadd.f32 %v5369, %v5370
  %v5372 = vsel %vm136, %v2906, 0.0
  %v5373 = vadd.f32 %v5371, %v5372
  %v5374 = vsel %vm136, %v2907, 0.0
  %v5375 = vadd.f32 %v5373, %v5374
  %v5376 = vsel %vm136, %v2908, 0.0
  %v5377 = vadd.f32 %v5375, %v5376
  %v5378 = vsel %vm136, %v2909, 0.0
  %v5379 = vadd.f32 %v5377, %v5378
  %v5380 = vsel %vm136, %v2910, 0.0
  %v5381 = vadd.f32 %v5379, %v5380
  %v5382 = vsel %vm136, %v2911, 0.0
  %v5383 = vadd.f32 %v5381, %v5382
  %v5384 = vsel %vm136, %v2912, 0.0
  %v5385 = vadd.f32 %v5383, %v5384
  %v5386 = vsel %vm136, %v2913, 0.0
  %v5387 = vadd.f32 %v5385, %v5386
  %v5388 = vsel %vm136, %v2914, 0.0
  %v5389 = vadd.f32 %v5387, %v5388
  %v5390 = vsel %vm136, %v2915, 0.0
  %v5391 = vadd.f32 %v5389, %v5390
  %v5392 = vsel %vm136, %v2916, 0.0
  %v5393 = vadd.f32 %v5391, %v5392
  %v5394 = vsel %vm136, %v2917, 0.0
  %v5395 = vadd.f32 %v5393, %v5394
  %v5396 = vsel %vm136, %v2918, 0.0
  %v5397 = vadd.f32 %v5395, %v5396
  %v5398 = vsel %vm136, %v2919, 0.0
  %v5399 = vadd.f32 %v5397, %v5398
  %v5400 = vsel %vm136, %v2920, 0.0
  %v5401 = vadd.f32 %v5399, %v5400
  %v5402 = vsel %vm136, %v2921, 0.0
  %v5403 = vadd.f32 %v5401, %v5402
  %v5404 = vsel %vm136, %v2922, 0.0
  %v5405 = vadd.f32 %v5403, %v5404
  %v5406 = vsel %vm136, %v2923, 0.0
  %v5407 = vadd.f32 %v5405, %v5406
  %v5408 = vsel %vm136, %v2924, 0.0
  %v5409 = vadd.f32 %v5407, %v5408
  %v5410 = vsel %vm136, %v2925, 0.0
  %v5411 = vadd.f32 %v5409, %v5410
  %v5412 = vsel %vm136, %v2926, 0.0
  %v5413 = vadd.f32 %v5411, %v5412
  %v5414 = vsel %vm136, %v2927, 0.0
  %v5415 = vadd.f32 %v5413, %v5414
  %v5416 = vsel %vm136, %v2928, 0.0
  %v5417 = vadd.f32 %v5415, %v5416
  %v5418 = vsel %vm136, %v2929, 0.0
  %v5419 = vadd.f32 %v5417, %v5418
  %v5420 = vrot.slane %v5419, 4
  %v5421 = vadd.f32 %v5419, %v5420
  %v5422 = vrot.slane %v5421, 2
  %v5423 = vadd.f32 %v5421, %v5422
  %v5424 = vrot.slane %v5423, 1
  %v5425 = vadd.f32 %v5423, %v5424
  %v5426 = vadd.f32 %v5425, 0.0
  %v5427 = vsel %vm136, %v5325, 0.0
  %v5428 = vsel %vm136, %v5326, 0.0
  %v5429 = vadd.f32 %v5427, %v5428
  %v5430 = vsel %vm136, %v5327, 0.0
  %v5431 = vadd.f32 %v5429, %v5430
  %v5432 = vsel %vm136, %v5328, 0.0
  %v5433 = vadd.f32 %v5431, %v5432
  %v5434 = vsel %vm136, %v5329, 0.0
  %v5435 = vadd.f32 %v5433, %v5434
  %v5436 = vsel %vm136, %v5330, 0.0
  %v5437 = vadd.f32 %v5435, %v5436
  %v5438 = vsel %vm136, %v5331, 0.0
  %v5439 = vadd.f32 %v5437, %v5438
  %v5440 = vsel %vm136, %v5332, 0.0
  %v5441 = vadd.f32 %v5439, %v5440
  %v5442 = vsel %vm136, %v5333, 0.0
  %v5443 = vadd.f32 %v5441, %v5442
  %v5444 = vsel %vm136, %v5334, 0.0
  %v5445 = vadd.f32 %v5443, %v5444
  %v5446 = vsel %vm136, %v5335, 0.0
  %v5447 = vadd.f32 %v5445, %v5446
  %v5448 = vsel %vm136, %v5336, 0.0
  %v5449 = vadd.f32 %v5447, %v5448
  %v5450 = vsel %vm136, %v5337, 0.0
  %v5451 = vadd.f32 %v5449, %v5450
  %v5452 = vsel %vm136, %v5338, 0.0
  %v5453 = vadd.f32 %v5451, %v5452
  %v5454 = vsel %vm136, %v5339, 0.0
  %v5455 = vadd.f32 %v5453, %v5454
  %v5456 = vsel %vm136, %v5340, 0.0
  %v5457 = vadd.f32 %v5455, %v5456
  %v5458 = vsel %vm136, %v5341, 0.0
  %v5459 = vadd.f32 %v5457, %v5458
  %v5460 = vsel %vm136, %v5342, 0.0
  %v5461 = vadd.f32 %v5459, %v5460
  %v5462 = vsel %vm136, %v5343, 0.0
  %v5463 = vadd.f32 %v5461, %v5462
  %v5464 = vsel %vm136, %v5344, 0.0
  %v5465 = vadd.f32 %v5463, %v5464
  %v5466 = vsel %vm136, %v5345, 0.0
  %v5467 = vadd.f32 %v5465, %v5466
  %v5468 = vsel %vm136, %v5346, 0.0
  %v5469 = vadd.f32 %v5467, %v5468
  %v5470 = vsel %vm136, %v5347, 0.0
  %v5471 = vadd.f32 %v5469, %v5470
  %v5472 = vsel %vm136, %v5348, 0.0
  %v5473 = vadd.f32 %v5471, %v5472
  %v5474 = vsel %vm136, %v5349, 0.0
  %v5475 = vadd.f32 %v5473, %v5474
  %v5476 = vsel %vm136, %v5350, 0.0
  %v5477 = vadd.f32 %v5475, %v5476
  %v5478 = vsel %vm136, %v5351, 0.0
  %v5479 = vadd.f32 %v5477, %v5478
  %v5480 = vsel %vm136, %v5352, 0.0
  %v5481 = vadd.f32 %v5479, %v5480
  %v5482 = vsel %vm136, %v5353, 0.0
  %v5483 = vadd.f32 %v5481, %v5482
  %v5484 = vsel %vm136, %v5354, 0.0
  %v5485 = vadd.f32 %v5483, %v5484
  %v5486 = vsel %vm136, %v5355, 0.0
  %v5487 = vadd.f32 %v5485, %v5486
  %v5488 = vsel %vm136, %v5356, 0.0
  %v5489 = vadd.f32 %v5487, %v5488
  %v5490 = vrot.slane %v5489, 4
  %v5491 = vadd.f32 %v5489, %v5490
  %v5492 = vrot.slane %v5491, 2
  %v5493 = vadd.f32 %v5491, %v5492
  %v5494 = vrot.slane %v5493, 1
  %v5495 = vadd.f32 %v5493, %v5494
  %v5496 = vadd.f32 %v5426, %v5495
  %v5497 = vrcp.pop 512.0
  %v5498 = vmul.f32 512.0, %v5497
  %v5499 = vsub.f32 1.0, %v5498
  %v5500 = vmul.f32 %v5497, %v5499
  %v5501 = vadd.f32 %v5497, %v5500
  %vm5502 = vweird.f32 %v5497
  %v5503 = vsel %vm5502, %v5497, %v5501
  %v5504 = vmul.f32 %v5496, %v5503
  %v5505 = vsub.f32 %v2898, %v5504
  %v5506 = vsub.f32 %v2899, %v5504
  %v5507 = vsub.f32 %v2900, %v5504
  %v5508 = vsub.f32 %v2901, %v5504
  %v5509 = vsub.f32 %v2902, %v5504
  %v5510 = vsub.f32 %v2903, %v5504
  %v5511 = vsub.f32 %v2904, %v5504
  %v5512 = vsub.f32 %v2905, %v5504
  %v5513 = vsub.f32 %v2906, %v5504
  %v5514 = vsub.f32 %v2907, %v5504
  %v5515 = vsub.f32 %v2908, %v5504
  %v5516 = vsub.f32 %v2909, %v5504
  %v5517 = vsub.f32 %v2910, %v5504
  %v5518 = vsub.f32 %v2911, %v5504
  %v5519 = vsub.f32 %v2912, %v5504
  %v5520 = vsub.f32 %v2913, %v5504
  %v5521 = vsub.f32 %v2914, %v5504
  %v5522 = vsub.f32 %v2915, %v5504
  %v5523 = vsub.f32 %v2916, %v5504
  %v5524 = vsub.f32 %v2917, %v5504
  %v5525 = vsub.f32 %v2918, %v5504
  %v5526 = vsub.f32 %v2919, %v5504
  %v5527 = vsub.f32 %v2920, %v5504
  %v5528 = vsub.f32 %v2921, %v5504
  %v5529 = vsub.f32 %v2922, %v5504
  %v5530 = vsub.f32 %v2923, %v5504
  %v5531 = vsub.f32 %v2924, %v5504
  %v5532 = vsub.f32 %v2925, %v5504
  %v5533 = vsub.f32 %v2926, %v5504
  %v5534 = vsub.f32 %v2927, %v5504
  %v5535 = vsub.f32 %v2928, %v5504
  %v5536 = vsub.f32 %v2929, %v5504
  %v5537 = vmul.f32 %v5505, %v5505
  %v5538 = vmul.f32 %v5506, %v5506
  %v5539 = vmul.f32 %v5507, %v5507
  %v5540 = vmul.f32 %v5508, %v5508
  %v5541 = vmul.f32 %v5509, %v5509
  %v5542 = vmul.f32 %v5510, %v5510
  %v5543 = vmul.f32 %v5511, %v5511
  %v5544 = vmul.f32 %v5512, %v5512
  %v5545 = vmul.f32 %v5513, %v5513
  %v5546 = vmul.f32 %v5514, %v5514
  %v5547 = vmul.f32 %v5515, %v5515
  %v5548 = vmul.f32 %v5516, %v5516
  %v5549 = vmul.f32 %v5517, %v5517
  %v5550 = vmul.f32 %v5518, %v5518
  %v5551 = vmul.f32 %v5519, %v5519
  %v5552 = vmul.f32 %v5520, %v5520
  %v5553 = vmul.f32 %v5521, %v5521
  %v5554 = vmul.f32 %v5522, %v5522
  %v5555 = vmul.f32 %v5523, %v5523
  %v5556 = vmul.f32 %v5524, %v5524
  %v5557 = vmul.f32 %v5525, %v5525
  %v5558 = vmul.f32 %v5526, %v5526
  %v5559 = vmul.f32 %v5527, %v5527
  %v5560 = vmul.f32 %v5528, %v5528
  %v5561 = vmul.f32 %v5529, %v5529
  %v5562 = vmul.f32 %v5530, %v5530
  %v5563 = vmul.f32 %v5531, %v5531
  %v5564 = vmul.f32 %v5532, %v5532
  %v5565 = vmul.f32 %v5533, %v5533
  %v5566 = vmul.f32 %v5534, %v5534
  %v5567 = vmul.f32 %v5535, %v5535
  %v5568 = vmul.f32 %v5536, %v5536
  %v5569 = vsel %vm136, %v5537, 0.0
  %v5570 = vsel %vm136, %v5538, 0.0
  %v5571 = vadd.f32 %v5569, %v5570
  %v5572 = vsel %vm136, %v5539, 0.0
  %v5573 = vadd.f32 %v5571, %v5572
  %v5574 = vsel %vm136, %v5540, 0.0
  %v5575 = vadd.f32 %v5573, %v5574
  %v5576 = vsel %vm136, %v5541, 0.0
  %v5577 = vadd.f32 %v5575, %v5576
  %v5578 = vsel %vm136, %v5542, 0.0
  %v5579 = vadd.f32 %v5577, %v5578
  %v5580 = vsel %vm136, %v5543, 0.0
  %v5581 = vadd.f32 %v5579, %v5580
  %v5582 = vsel %vm136, %v5544, 0.0
  %v5583 = vadd.f32 %v5581, %v5582
  %v5584 = vsel %vm136, %v5545, 0.0
  %v5585 = vadd.f32 %v5583, %v5584
  %v5586 = vsel %vm136, %v5546, 0.0
  %v5587 = vadd.f32 %v5585, %v5586
  %v5588 = vsel %vm136, %v5547, 0.0
  %v5589 = vadd.f32 %v5587, %v5588
  %v5590 = vsel %vm136, %v5548, 0.0
  %v5591 = vadd.f32 %v5589, %v5590
  %v5592 = vsel %vm136, %v5549, 0.0
  %v5593 = vadd.f32 %v5591, %v5592
  %v5594 = vsel %vm136, %v5550, 0.0
  %v5595 = vadd.f32 %v5593, %v5594
  %v5596 = vsel %vm136, %v5551, 0.0
  %v5597 = vadd.f32 %v5595, %v5596
  %v5598 = vsel %vm136, %v5552, 0.0
  %v5599 = vadd.f32 %v5597, %v5598
  %v5600 = vsel %vm136, %v5553, 0.0
  %v5601 = vadd.f32 %v5599, %v5600
  %v5602 = vsel %vm136, %v5554, 0.0
  %v5603 = vadd.f32 %v5601, %v5602
  %v5604 = vsel %vm136, %v5555, 0.0
  %v5605 = vadd.f32 %v5603, %v5604
  %v5606 = vsel %vm136, %v5556, 0.0
  %v5607 = vadd.f32 %v5605, %v5606
  %v5608 = vsel %vm136, %v5557, 0.0
  %v5609 = vadd.f32 %v5607, %v5608
  %v5610 = vsel %vm136, %v5558, 0.0
  %v5611 = vadd.f32 %v5609, %v5610
  %v5612 = vsel %vm136, %v5559, 0.0
  %v5613 = vadd.f32 %v5611, %v5612
  %v5614 = vsel %vm136, %v5560, 0.0
  %v5615 = vadd.f32 %v5613, %v5614
  %v5616 = vsel %vm136, %v5561, 0.0
  %v5617 = vadd.f32 %v5615, %v5616
  %v5618 = vsel %vm136, %v5562, 0.0
  %v5619 = vadd.f32 %v5617, %v5618
  %v5620 = vsel %vm136, %v5563, 0.0
  %v5621 = vadd.f32 %v5619, %v5620
  %v5622 = vsel %vm136, %v5564, 0.0
  %v5623 = vadd.f32 %v5621, %v5622
  %v5624 = vsel %vm136, %v5565, 0.0
  %v5625 = vadd.f32 %v5623, %v5624
  %v5626 = vsel %vm136, %v5566, 0.0
  %v5627 = vadd.f32 %v5625, %v5626
  %v5628 = vsel %vm136, %v5567, 0.0
  %v5629 = vadd.f32 %v5627, %v5628
  %v5630 = vsel %vm136, %v5568, 0.0
  %v5631 = vadd.f32 %v5629, %v5630
  %v5632 = vrot.slane %v5631, 4
  %v5633 = vadd.f32 %v5631, %v5632
  %v5634 = vrot.slane %v5633, 2
  %v5635 = vadd.f32 %v5633, %v5634
  %v5636 = vrot.slane %v5635, 1
  %v5637 = vadd.f32 %v5635, %v5636
  %v5638 = vadd.f32 %v5637, 0.0
  %v5639 = vsub.f32 %v5325, %v5504
  %v5640 = vsub.f32 %v5326, %v5504
  %v5641 = vsub.f32 %v5327, %v5504
  %v5642 = vsub.f32 %v5328, %v5504
  %v5643 = vsub.f32 %v5329, %v5504
  %v5644 = vsub.f32 %v5330, %v5504
  %v5645 = vsub.f32 %v5331, %v5504
  %v5646 = vsub.f32 %v5332, %v5504
  %v5647 = vsub.f32 %v5333, %v5504
  %v5648 = vsub.f32 %v5334, %v5504
  %v5649 = vsub.f32 %v5335, %v5504
  %v5650 = vsub.f32 %v5336, %v5504
  %v5651 = vsub.f32 %v5337, %v5504
  %v5652 = vsub.f32 %v5338, %v5504
  %v5653 = vsub.f32 %v5339, %v5504
  %v5654 = vsub.f32 %v5340, %v5504
  %v5655 = vsub.f32 %v5341, %v5504
  %v5656 = vsub.f32 %v5342, %v5504
  %v5657 = vsub.f32 %v5343, %v5504
  %v5658 = vsub.f32 %v5344, %v5504
  %v5659 = vsub.f32 %v5345, %v5504
  %v5660 = vsub.f32 %v5346, %v5504
  %v5661 = vsub.f32 %v5347, %v5504
  %v5662 = vsub.f32 %v5348, %v5504
  %v5663 = vsub.f32 %v5349, %v5504
  %v5664 = vsub.f32 %v5350, %v5504
  %v5665 = vsub.f32 %v5351, %v5504
  %v5666 = vsub.f32 %v5352, %v5504
  %v5667 = vsub.f32 %v5353, %v5504
  %v5668 = vsub.f32 %v5354, %v5504
  %v5669 = vsub.f32 %v5355, %v5504
  %v5670 = vsub.f32 %v5356, %v5504
  %v5671 = vmul.f32 %v5639, %v5639
  %v5672 = vmul.f32 %v5640, %v5640
  %v5673 = vmul.f32 %v5641, %v5641
  %v5674 = vmul.f32 %v5642, %v5642
  %v5675 = vmul.f32 %v5643, %v5643
  %v5676 = vmul.f32 %v5644, %v5644
  %v5677 = vmul.f32 %v5645, %v5645
  %v5678 = vmul.f32 %v5646, %v5646
  %v5679 = vmul.f32 %v5647, %v5647
  %v5680 = vmul.f32 %v5648, %v5648
  %v5681 = vmul.f32 %v5649, %v5649
  %v5682 = vmul.f32 %v5650, %v5650
  %v5683 = vmul.f32 %v5651, %v5651
  %v5684 = vmul.f32 %v5652, %v5652
  %v5685 = vmul.f32 %v5653, %v5653
  %v5686 = vmul.f32 %v5654, %v5654
  %v5687 = vmul.f32 %v5655, %v5655
  %v5688 = vmul.f32 %v5656, %v5656
  %v5689 = vmul.f32 %v5657, %v5657
  %v5690 = vmul.f32 %v5658, %v5658
  %v5691 = vmul.f32 %v5659, %v5659
  %v5692 = vmul.f32 %v5660, %v5660
  %v5693 = vmul.f32 %v5661, %v5661
  %v5694 = vmul.f32 %v5662, %v5662
  %v5695 = vmul.f32 %v5663, %v5663
  %v5696 = vmul.f32 %v5664, %v5664
  %v5697 = vmul.f32 %v5665, %v5665
  %v5698 = vmul.f32 %v5666, %v5666
  %v5699 = vmul.f32 %v5667, %v5667
  %v5700 = vmul.f32 %v5668, %v5668
  %v5701 = vmul.f32 %v5669, %v5669
  %v5702 = vmul.f32 %v5670, %v5670
  %v5703 = vsel %vm136, %v5671, 0.0
  %v5704 = vsel %vm136, %v5672, 0.0
  %v5705 = vadd.f32 %v5703, %v5704
  %v5706 = vsel %vm136, %v5673, 0.0
  %v5707 = vadd.f32 %v5705, %v5706
  %v5708 = vsel %vm136, %v5674, 0.0
  %v5709 = vadd.f32 %v5707, %v5708
  %v5710 = vsel %vm136, %v5675, 0.0
  %v5711 = vadd.f32 %v5709, %v5710
  %v5712 = vsel %vm136, %v5676, 0.0
  %v5713 = vadd.f32 %v5711, %v5712
  %v5714 = vsel %vm136, %v5677, 0.0
  %v5715 = vadd.f32 %v5713, %v5714
  %v5716 = vsel %vm136, %v5678, 0.0
  %v5717 = vadd.f32 %v5715, %v5716
  %v5718 = vsel %vm136, %v5679, 0.0
  %v5719 = vadd.f32 %v5717, %v5718
  %v5720 = vsel %vm136, %v5680, 0.0
  %v5721 = vadd.f32 %v5719, %v5720
  %v5722 = vsel %vm136, %v5681, 0.0
  %v5723 = vadd.f32 %v5721, %v5722
  %v5724 = vsel %vm136, %v5682, 0.0
  %v5725 = vadd.f32 %v5723, %v5724
  %v5726 = vsel %vm136, %v5683, 0.0
  %v5727 = vadd.f32 %v5725, %v5726
  %v5728 = vsel %vm136, %v5684, 0.0
  %v5729 = vadd.f32 %v5727, %v5728
  %v5730 = vsel %vm136, %v5685, 0.0
  %v5731 = vadd.f32 %v5729, %v5730
  %v5732 = vsel %vm136, %v5686, 0.0
  %v5733 = vadd.f32 %v5731, %v5732
  %v5734 = vsel %vm136, %v5687, 0.0
  %v5735 = vadd.f32 %v5733, %v5734
  %v5736 = vsel %vm136, %v5688, 0.0
  %v5737 = vadd.f32 %v5735, %v5736
  %v5738 = vsel %vm136, %v5689, 0.0
  %v5739 = vadd.f32 %v5737, %v5738
  %v5740 = vsel %vm136, %v5690, 0.0
  %v5741 = vadd.f32 %v5739, %v5740
  %v5742 = vsel %vm136, %v5691, 0.0
  %v5743 = vadd.f32 %v5741, %v5742
  %v5744 = vsel %vm136, %v5692, 0.0
  %v5745 = vadd.f32 %v5743, %v5744
  %v5746 = vsel %vm136, %v5693, 0.0
  %v5747 = vadd.f32 %v5745, %v5746
  %v5748 = vsel %vm136, %v5694, 0.0
  %v5749 = vadd.f32 %v5747, %v5748
  %v5750 = vsel %vm136, %v5695, 0.0
  %v5751 = vadd.f32 %v5749, %v5750
  %v5752 = vsel %vm136, %v5696, 0.0
  %v5753 = vadd.f32 %v5751, %v5752
  %v5754 = vsel %vm136, %v5697, 0.0
  %v5755 = vadd.f32 %v5753, %v5754
  %v5756 = vsel %vm136, %v5698, 0.0
  %v5757 = vadd.f32 %v5755, %v5756
  %v5758 = vsel %vm136, %v5699, 0.0
  %v5759 = vadd.f32 %v5757, %v5758
  %v5760 = vsel %vm136, %v5700, 0.0
  %v5761 = vadd.f32 %v5759, %v5760
  %v5762 = vsel %vm136, %v5701, 0.0
  %v5763 = vadd.f32 %v5761, %v5762
  %v5764 = vsel %vm136, %v5702, 0.0
  %v5765 = vadd.f32 %v5763, %v5764
  %v5766 = vrot.slane %v5765, 4
  %v5767 = vadd.f32 %v5765, %v5766
  %v5768 = vrot.slane %v5767, 2
  %v5769 = vadd.f32 %v5767, %v5768
  %v5770 = vrot.slane %v5769, 1
  %v5771 = vadd.f32 %v5769, %v5770
  %v5772 = vadd.f32 %v5638, %v5771
  %v5773 = vmul.f32 %v5772, %v5503
  %v5774 = vadd.f32 %v5773, 1e-05
  %v5775 = vrsqrt.pop %v5774
  %v5776 = vmul.f32 %v5775, %v5774
  %v5777 = vmul.f32 %v5776, %v5775
  %v5778 = vmul.f32 0.5, %v5777
  %v5779 = vsub.f32 1.5, %v5778
  %v5780 = vmul.f32 %v5775, %v5779
  %vm5781 = vweird.f32 %v5774
  %vm5782 = vweird.f32 %v5775
  %vm5783 = vmor %vm5781, %vm5782
  %v5784 = vsel %vm5783, %v5775, %v5780
  %v5785 = vld [vmem:[%s3] sm:$0x1]
  %v5786 = vmul.f32 %v5784, %v5785
  %v5787 = vperm.slane %v5786, 0
  %v5788 = vmul.f32 %v5505, %v5787
  %v5789 = vmul.f32 %v5506, %v5787
  %v5790 = vmul.f32 %v5507, %v5787
  %v5791 = vmul.f32 %v5508, %v5787
  %v5792 = vmul.f32 %v5509, %v5787
  %v5793 = vmul.f32 %v5510, %v5787
  %v5794 = vmul.f32 %v5511, %v5787
  %v5795 = vmul.f32 %v5512, %v5787
  %v5796 = vmul.f32 %v5513, %v5787
  %v5797 = vmul.f32 %v5514, %v5787
  %v5798 = vmul.f32 %v5515, %v5787
  %v5799 = vmul.f32 %v5516, %v5787
  %v5800 = vmul.f32 %v5517, %v5787
  %v5801 = vmul.f32 %v5518, %v5787
  %v5802 = vmul.f32 %v5519, %v5787
  %v5803 = vmul.f32 %v5520, %v5787
  %v5804 = vmul.f32 %v5521, %v5787
  %v5805 = vmul.f32 %v5522, %v5787
  %v5806 = vmul.f32 %v5523, %v5787
  %v5807 = vmul.f32 %v5524, %v5787
  %v5808 = vmul.f32 %v5525, %v5787
  %v5809 = vmul.f32 %v5526, %v5787
  %v5810 = vmul.f32 %v5527, %v5787
  %v5811 = vmul.f32 %v5528, %v5787
  %v5812 = vmul.f32 %v5529, %v5787
  %v5813 = vmul.f32 %v5530, %v5787
  %v5814 = vmul.f32 %v5531, %v5787
  %v5815 = vmul.f32 %v5532, %v5787
  %v5816 = vmul.f32 %v5533, %v5787
  %v5817 = vmul.f32 %v5534, %v5787
  %v5818 = vmul.f32 %v5535, %v5787
  %v5819 = vmul.f32 %v5536, %v5787
  %v5820 = vld [vmem:[%s4] sm:$0x1]
  %v5822 = vperm.slane %v5820, 0
  %v5824 = vadd.f32 %v5788, %v5822
  %v5825 = vadd.f32 %v5789, %v5822
  %v5826 = vadd.f32 %v5790, %v5822
  %v5827 = vadd.f32 %v5791, %v5822
  %v5828 = vadd.f32 %v5792, %v5822
  %v5829 = vadd.f32 %v5793, %v5822
  %v5830 = vadd.f32 %v5794, %v5822
  %v5831 = vadd.f32 %v5795, %v5822
  %v5832 = vadd.f32 %v5796, %v5822
  %v5833 = vadd.f32 %v5797, %v5822
  %v5834 = vadd.f32 %v5798, %v5822
  %v5835 = vadd.f32 %v5799, %v5822
  %v5836 = vadd.f32 %v5800, %v5822
  %v5837 = vadd.f32 %v5801, %v5822
  %v5838 = vadd.f32 %v5802, %v5822
  %v5839 = vadd.f32 %v5803, %v5822
  %v5840 = vadd.f32 %v5804, %v5822
  %v5841 = vadd.f32 %v5805, %v5822
  %v5842 = vadd.f32 %v5806, %v5822
  %v5843 = vadd.f32 %v5807, %v5822
  %v5844 = vadd.f32 %v5808, %v5822
  %v5845 = vadd.f32 %v5809, %v5822
  %v5846 = vadd.f32 %v5810, %v5822
  %v5847 = vadd.f32 %v5811, %v5822
  %v5848 = vadd.f32 %v5812, %v5822
  %v5849 = vadd.f32 %v5813, %v5822
  %v5850 = vadd.f32 %v5814, %v5822
  %v5851 = vadd.f32 %v5815, %v5822
  %v5852 = vadd.f32 %v5816, %v5822
  %v5853 = vadd.f32 %v5817, %v5822
  %v5854 = vadd.f32 %v5818, %v5822
  %v5855 = vadd.f32 %v5819, %v5822
  %vm5856 = vcmp.ge.f32.partialorder %v5824, 0.0
  %vm5857 = vcmp.ge.f32.partialorder %v5825, 0.0
  %vm5858 = vcmp.ge.f32.partialorder %v5826, 0.0
  %vm5859 = vcmp.ge.f32.partialorder %v5827, 0.0
  %vm5860 = vcmp.ge.f32.partialorder %v5828, 0.0
  %vm5861 = vcmp.ge.f32.partialorder %v5829, 0.0
  %vm5862 = vcmp.ge.f32.partialorder %v5830, 0.0
  %vm5863 = vcmp.ge.f32.partialorder %v5831, 0.0
  %vm5864 = vcmp.ge.f32.partialorder %v5832, 0.0
  %vm5865 = vcmp.ge.f32.partialorder %v5833, 0.0
  %vm5866 = vcmp.ge.f32.partialorder %v5834, 0.0
  %vm5867 = vcmp.ge.f32.partialorder %v5835, 0.0
  %vm5868 = vcmp.ge.f32.partialorder %v5836, 0.0
  %vm5869 = vcmp.ge.f32.partialorder %v5837, 0.0
  %vm5870 = vcmp.ge.f32.partialorder %v5838, 0.0
  %vm5871 = vcmp.ge.f32.partialorder %v5839, 0.0
  %vm5872 = vcmp.ge.f32.partialorder %v5840, 0.0
  %vm5873 = vcmp.ge.f32.partialorder %v5841, 0.0
  %vm5874 = vcmp.ge.f32.partialorder %v5842, 0.0
  %vm5875 = vcmp.ge.f32.partialorder %v5843, 0.0
  %vm5876 = vcmp.ge.f32.partialorder %v5844, 0.0
  %vm5877 = vcmp.ge.f32.partialorder %v5845, 0.0
  %vm5878 = vcmp.ge.f32.partialorder %v5846, 0.0
  %vm5879 = vcmp.ge.f32.partialorder %v5847, 0.0
  %vm5880 = vcmp.ge.f32.partialorder %v5848, 0.0
  %vm5881 = vcmp.ge.f32.partialorder %v5849, 0.0
  %vm5882 = vcmp.ge.f32.partialorder %v5850, 0.0
  %vm5883 = vcmp.ge.f32.partialorder %v5851, 0.0
  %vm5884 = vcmp.ge.f32.partialorder %v5852, 0.0
  %vm5885 = vcmp.ge.f32.partialorder %v5853, 0.0
  %vm5886 = vcmp.ge.f32.partialorder %v5854, 0.0
  %vm5887 = vcmp.ge.f32.partialorder %v5855, 0.0
  %v5888 = vmul.f32 %v5824, 0.2
  %v5889 = vmul.f32 %v5825, 0.2
  %v5890 = vmul.f32 %v5826, 0.2
  %v5891 = vmul.f32 %v5827, 0.2
  %v5892 = vmul.f32 %v5828, 0.2
  %v5893 = vmul.f32 %v5829, 0.2
  %v5894 = vmul.f32 %v5830, 0.2
  %v5895 = vmul.f32 %v5831, 0.2
  %v5896 = vmul.f32 %v5832, 0.2
  %v5897 = vmul.f32 %v5833, 0.2
  %v5898 = vmul.f32 %v5834, 0.2
  %v5899 = vmul.f32 %v5835, 0.2
  %v5900 = vmul.f32 %v5836, 0.2
  %v5901 = vmul.f32 %v5837, 0.2
  %v5902 = vmul.f32 %v5838, 0.2
  %v5903 = vmul.f32 %v5839, 0.2
  %v5904 = vmul.f32 %v5840, 0.2
  %v5905 = vmul.f32 %v5841, 0.2
  %v5906 = vmul.f32 %v5842, 0.2
  %v5907 = vmul.f32 %v5843, 0.2
  %v5908 = vmul.f32 %v5844, 0.2
  %v5909 = vmul.f32 %v5845, 0.2
  %v5910 = vmul.f32 %v5846, 0.2
  %v5911 = vmul.f32 %v5847, 0.2
  %v5912 = vmul.f32 %v5848, 0.2
  %v5913 = vmul.f32 %v5849, 0.2
  %v5914 = vmul.f32 %v5850, 0.2
  %v5915 = vmul.f32 %v5851, 0.2
  %v5916 = vmul.f32 %v5852, 0.2
  %v5917 = vmul.f32 %v5853, 0.2
  %v5918 = vmul.f32 %v5854, 0.2
  %v5919 = vmul.f32 %v5855, 0.2
  %v5920 = vsel %vm5856, %v5824, %v5888
  %v5921 = vsel %vm5857, %v5825, %v5889
  %v5922 = vsel %vm5858, %v5826, %v5890
  %v5923 = vsel %vm5859, %v5827, %v5891
  %v5924 = vsel %vm5860, %v5828, %v5892
  %v5925 = vsel %vm5861, %v5829, %v5893
  %v5926 = vsel %vm5862, %v5830, %v5894
  %v5927 = vsel %vm5863, %v5831, %v5895
  %v5928 = vsel %vm5864, %v5832, %v5896
  %v5929 = vsel %vm5865, %v5833, %v5897
  %v5930 = vsel %vm5866, %v5834, %v5898
  %v5931 = vsel %vm5867, %v5835, %v5899
  %v5932 = vsel %vm5868, %v5836, %v5900
  %v5933 = vsel %vm5869, %v5837, %v5901
  %v5934 = vsel %vm5870, %v5838, %v5902
  %v5935 = vsel %vm5871, %v5839, %v5903
  %v5936 = vsel %vm5872, %v5840, %v5904
  %v5937 = vsel %vm5873, %v5841, %v5905
  %v5938 = vsel %vm5874, %v5842, %v5906
  %v5939 = vsel %vm5875, %v5843, %v5907
  %v5940 = vsel %vm5876, %v5844, %v5908
  %v5941 = vsel %vm5877, %v5845, %v5909
  %v5942 = vsel %vm5878, %v5846, %v5910
  %v5943 = vsel %vm5879, %v5847, %v5911
  %v5944 = vsel %vm5880, %v5848, %v5912
  %v5945 = vsel %vm5881, %v5849, %v5913
  %v5946 = vsel %vm5882, %v5850, %v5914
  %v5947 = vsel %vm5883, %v5851, %v5915
  %v5948 = vsel %vm5884, %v5852, %v5916
  %v5949 = vsel %vm5885, %v5853, %v5917
  %v5950 = vsel %vm5886, %v5854, %v5918
  %v5951 = vsel %vm5887, %v5855, %v5919
  %s5952 = scalar_lea.vmem [#allocation3], 24
  %5953 = vst.msk [vmem:[%s5952 + $0x1] sm:$0xff] %vm136, %v5920
  %5954 = vst.msk [vmem:[%s5952 + $0x9] sm:$0xff] %vm136, %v5921
  %5955 = vst.msk [vmem:[%s5952 + $0x19] sm:$0xff] %vm136, %v5922
  %5956 = vst.msk [vmem:[%s5952 + $0x21] sm:$0xff] %vm136, %v5923
  %5957 = vst.msk [vmem:[%s5952 + $0x31] sm:$0xff] %vm136, %v5924
  %5958 = vst.msk [vmem:[%s5952 + $0x39] sm:$0xff] %vm136, %v5925
  %5959 = vst.msk [vmem:[%s5952 + $0x49] sm:$0xff] %vm136, %v5926
  %5960 = vst.msk [vmem:[%s5952 + $0x51] sm:$0xff] %vm136, %v5927
  %5961 = vst.msk [vmem:[%s5952 + $0x61] sm:$0xff] %vm136, %v5928
  %5962 = vst.msk [vmem:[%s5952 + $0x69] sm:$0xff] %vm136, %v5929
  %5963 = vst.msk [vmem:[%s5952 + $0x79] sm:$0xff] %vm136, %v5930
  %5964 = vst.msk [vmem:[%s5952 + $0x81] sm:$0xff] %vm136, %v5931
  %5965 = vst.msk [vmem:[%s5952 + $0x91] sm:$0xff] %vm136, %v5932
  %5966 = vst.msk [vmem:[%s5952 + $0x99] sm:$0xff] %vm136, %v5933
  %5967 = vst.msk [vmem:[%s5952 + $0xa9] sm:$0xff] %vm136, %v5934
  %5968 = vst.msk [vmem:[%s5952 + $0xb1] sm:$0xff] %vm136, %v5935
  %5969 = vst.msk [vmem:[%s5952 + $0xc1] sm:$0xff] %vm136, %v5936
  %5970 = vst.msk [vmem:[%s5952 + $0xc9] sm:$0xff] %vm136, %v5937
  %5971 = vst.msk [vmem:[%s5952 + $0xd9] sm:$0xff] %vm136, %v5938
  %5972 = vst.msk [vmem:[%s5952 + $0xe1] sm:$0xff] %vm136, %v5939
  %5973 = vst.msk [vmem:[%s5952 + $0xf1] sm:$0xff] %vm136, %v5940
  %5974 = vst.msk [vmem:[%s5952 + $0xf9] sm:$0xff] %vm136, %v5941
  %5975 = vst.msk [vmem:[%s5952 + $0x109] sm:$0xff] %vm136, %v5942
  %5976 = vst.msk [vmem:[%s5952 + $0x111] sm:$0xff] %vm136, %v5943
  %5977 = vst.msk [vmem:[%s5952 + $0x121] sm:$0xff] %vm136, %v5944
  %5978 = vst.msk [vmem:[%s5952 + $0x129] sm:$0xff] %vm136, %v5945
  %5979 = vst.msk [vmem:[%s5952 + $0x139] sm:$0xff] %vm136, %v5946
  %5980 = vst.msk [vmem:[%s5952 + $0x141] sm:$0xff] %vm136, %v5947
  %5981 = vst.msk [vmem:[%s5952 + $0x151] sm:$0xff] %vm136, %v5948
  %5982 = vst.msk [vmem:[%s5952 + $0x159] sm:$0xff] %vm136, %v5949
  %5983 = vst.msk [vmem:[%s5952 + $0x169] sm:$0xff] %vm136, %v5950
  %5984 = vst.msk [vmem:[%s5952 + $0x171] sm:$0xff] %vm136, %v5951
  %v5985 = vmul.f32 %v5639, %v5787
  %v5986 = vmul.f32 %v5640, %v5787
  %v5987 = vmul.f32 %v5641, %v5787
  %v5988 = vmul.f32 %v5642, %v5787
  %v5989 = vmul.f32 %v5643, %v5787
  %v5990 = vmul.f32 %v5644, %v5787
  %v5991 = vmul.f32 %v5645, %v5787
  %v5992 = vmul.f32 %v5646, %v5787
  %v5993 = vmul.f32 %v5647, %v5787
  %v5994 = vmul.f32 %v5648, %v5787
  %v5995 = vmul.f32 %v5649, %v5787
  %v5996 = vmul.f32 %v5650, %v5787
  %v5997 = vmul.f32 %v5651, %v5787
  %v5998 = vmul.f32 %v5652, %v5787
  %v5999 = vmul.f32 %v5653, %v5787
  %v6000 = vmul.f32 %v5654, %v5787
  %v6001 = vmul.f32 %v5655, %v5787
  %v6002 = vmul.f32 %v5656, %v5787
  %v6003 = vmul.f32 %v5657, %v5787
  %v6004 = vmul.f32 %v5658, %v5787
  %v6005 = vmul.f32 %v5659, %v5787
  %v6006 = vmul.f32 %v5660, %v5787
  %v6007 = vmul.f32 %v5661, %v5787
  %v6008 = vmul.f32 %v5662, %v5787
  %v6009 = vmul.f32 %v5663, %v5787
  %v6010 = vmul.f32 %v5664, %v5787
  %v6011 = vmul.f32 %v5665, %v5787
  %v6012 = vmul.f32 %v5666, %v5787
  %v6013 = vmul.f32 %v5667, %v5787
  %v6014 = vmul.f32 %v5668, %v5787
  %v6015 = vmul.f32 %v5669, %v5787
  %v6016 = vmul.f32 %v5670, %v5787
  %v6017 = vld [vmem:[%s4] sm:$0x1]
  %v6019 = vperm.slane %v6017, 0
  %v6021 = vadd.f32 %v5985, %v6019
  %v6022 = vadd.f32 %v5986, %v6019
  %v6023 = vadd.f32 %v5987, %v6019
  %v6024 = vadd.f32 %v5988, %v6019
  %v6025 = vadd.f32 %v5989, %v6019
  %v6026 = vadd.f32 %v5990, %v6019
  %v6027 = vadd.f32 %v5991, %v6019
  %v6028 = vadd.f32 %v5992, %v6019
  %v6029 = vadd.f32 %v5993, %v6019
  %v6030 = vadd.f32 %v5994, %v6019
  %v6031 = vadd.f32 %v5995, %v6019
  %v6032 = vadd.f32 %v5996, %v6019
  %v6033 = vadd.f32 %v5997, %v6019
  %v6034 = vadd.f32 %v5998, %v6019
  %v6035 = vadd.f32 %v5999, %v6019
  %v6036 = vadd.f32 %v6000, %v6019
  %v6037 = vadd.f32 %v6001, %v6019
  %v6038 = vadd.f32 %v6002, %v6019
  %v6039 = vadd.f32 %v6003, %v6019
  %v6040 = vadd.f32 %v6004, %v6019
  %v6041 = vadd.f32 %v6005, %v6019
  %v6042 = vadd.f32 %v6006, %v6019
  %v6043 = vadd.f32 %v6007, %v6019
  %v6044 = vadd.f32 %v6008, %v6019
  %v6045 = vadd.f32 %v6009, %v6019
  %v6046 = vadd.f32 %v6010, %v6019
  %v6047 = vadd.f32 %v6011, %v6019
  %v6048 = vadd.f32 %v6012, %v6019
  %v6049 = vadd.f32 %v6013, %v6019
  %v6050 = vadd.f32 %v6014, %v6019
  %v6051 = vadd.f32 %v6015, %v6019
  %v6052 = vadd.f32 %v6016, %v6019
  %vm6053 = vcmp.ge.f32.partialorder %v6021, 0.0
  %vm6054 = vcmp.ge.f32.partialorder %v6022, 0.0
  %vm6055 = vcmp.ge.f32.partialorder %v6023, 0.0
  %vm6056 = vcmp.ge.f32.partialorder %v6024, 0.0
  %vm6057 = vcmp.ge.f32.partialorder %v6025, 0.0
  %vm6058 = vcmp.ge.f32.partialorder %v6026, 0.0
  %vm6059 = vcmp.ge.f32.partialorder %v6027, 0.0
  %vm6060 = vcmp.ge.f32.partialorder %v6028, 0.0
  %vm6061 = vcmp.ge.f32.partialorder %v6029, 0.0
  %vm6062 = vcmp.ge.f32.partialorder %v6030, 0.0
  %vm6063 = vcmp.ge.f32.partialorder %v6031, 0.0
  %vm6064 = vcmp.ge.f32.partialorder %v6032, 0.0
  %vm6065 = vcmp.ge.f32.partialorder %v6033, 0.0
  %vm6066 = vcmp.ge.f32.partialorder %v6034, 0.0
  %vm6067 = vcmp.ge.f32.partialorder %v6035, 0.0
  %vm6068 = vcmp.ge.f32.partialorder %v6036, 0.0
  %vm6069 = vcmp.ge.f32.partialorder %v6037, 0.0
  %vm6070 = vcmp.ge.f32.partialorder %v6038, 0.0
  %vm6071 = vcmp.ge.f32.partialorder %v6039, 0.0
  %vm6072 = vcmp.ge.f32.partialorder %v6040, 0.0
  %vm6073 = vcmp.ge.f32.partialorder %v6041, 0.0
  %vm6074 = vcmp.ge.f32.partialorder %v6042, 0.0
  %vm6075 = vcmp.ge.f32.partialorder %v6043, 0.0
  %vm6076 = vcmp.ge.f32.partialorder %v6044, 0.0
  %vm6077 = vcmp.ge.f32.partialorder %v6045, 0.0
  %vm6078 = vcmp.ge.f32.partialorder %v6046, 0.0
  %vm6079 = vcmp.ge.f32.partialorder %v6047, 0.0
  %vm6080 = vcmp.ge.f32.partialorder %v6048, 0.0
  %vm6081 = vcmp.ge.f32.partialorder %v6049, 0.0
  %vm6082 = vcmp.ge.f32.partialorder %v6050, 0.0
  %vm6083 = vcmp.ge.f32.partialorder %v6051, 0.0
  %vm6084 = vcmp.ge.f32.partialorder %v6052, 0.0
  %v6085 = vmul.f32 %v6021, 0.2
  %v6086 = vmul.f32 %v6022, 0.2
  %v6087 = vmul.f32 %v6023, 0.2
  %v6088 = vmul.f32 %v6024, 0.2
  %v6089 = vmul.f32 %v6025, 0.2
  %v6090 = vmul.f32 %v6026, 0.2
  %v6091 = vmul.f32 %v6027, 0.2
  %v6092 = vmul.f32 %v6028, 0.2
  %v6093 = vmul.f32 %v6029, 0.2
  %v6094 = vmul.f32 %v6030, 0.2
  %v6095 = vmul.f32 %v6031, 0.2
  %v6096 = vmul.f32 %v6032, 0.2
  %v6097 = vmul.f32 %v6033, 0.2
  %v6098 = vmul.f32 %v6034, 0.2
  %v6099 = vmul.f32 %v6035, 0.2
  %v6100 = vmul.f32 %v6036, 0.2
  %v6101 = vmul.f32 %v6037, 0.2
  %v6102 = vmul.f32 %v6038, 0.2
  %v6103 = vmul.f32 %v6039, 0.2
  %v6104 = vmul.f32 %v6040, 0.2
  %v6105 = vmul.f32 %v6041, 0.2
  %v6106 = vmul.f32 %v6042, 0.2
  %v6107 = vmul.f32 %v6043, 0.2
  %v6108 = vmul.f32 %v6044, 0.2
  %v6109 = vmul.f32 %v6045, 0.2
  %v6110 = vmul.f32 %v6046, 0.2
  %v6111 = vmul.f32 %v6047, 0.2
  %v6112 = vmul.f32 %v6048, 0.2
  %v6113 = vmul.f32 %v6049, 0.2
  %v6114 = vmul.f32 %v6050, 0.2
  %v6115 = vmul.f32 %v6051, 0.2
  %v6116 = vmul.f32 %v6052, 0.2
  %v6117 = vsel %vm6053, %v6021, %v6085
  %v6118 = vsel %vm6054, %v6022, %v6086
  %v6119 = vsel %vm6055, %v6023, %v6087
  %v6120 = vsel %vm6056, %v6024, %v6088
  %v6121 = vsel %vm6057, %v6025, %v6089
  %v6122 = vsel %vm6058, %v6026, %v6090
  %v6123 = vsel %vm6059, %v6027, %v6091
  %v6124 = vsel %vm6060, %v6028, %v6092
  %v6125 = vsel %vm6061, %v6029, %v6093
  %v6126 = vsel %vm6062, %v6030, %v6094
  %v6127 = vsel %vm6063, %v6031, %v6095
  %v6128 = vsel %vm6064, %v6032, %v6096
  %v6129 = vsel %vm6065, %v6033, %v6097
  %v6130 = vsel %vm6066, %v6034, %v6098
  %v6131 = vsel %vm6067, %v6035, %v6099
  %v6132 = vsel %vm6068, %v6036, %v6100
  %v6133 = vsel %vm6069, %v6037, %v6101
  %v6134 = vsel %vm6070, %v6038, %v6102
  %v6135 = vsel %vm6071, %v6039, %v6103
  %v6136 = vsel %vm6072, %v6040, %v6104
  %v6137 = vsel %vm6073, %v6041, %v6105
  %v6138 = vsel %vm6074, %v6042, %v6106
  %v6139 = vsel %vm6075, %v6043, %v6107
  %v6140 = vsel %vm6076, %v6044, %v6108
  %v6141 = vsel %vm6077, %v6045, %v6109
  %v6142 = vsel %vm6078, %v6046, %v6110
  %v6143 = vsel %vm6079, %v6047, %v6111
  %v6144 = vsel %vm6080, %v6048, %v6112
  %v6145 = vsel %vm6081, %v6049, %v6113
  %v6146 = vsel %vm6082, %v6050, %v6114
  %v6147 = vsel %vm6083, %v6051, %v6115
  %v6148 = vsel %vm6084, %v6052, %v6116
  %s6149 = scalar_lea.vmem [#allocation3], 456
  %6150 = vst.msk [vmem:[%s6149 + $0x1] sm:$0xff] %vm136, %v6117
  %6151 = vst.msk [vmem:[%s6149 + $0x9] sm:$0xff] %vm136, %v6118
  %6152 = vst.msk [vmem:[%s6149 + $0x19] sm:$0xff] %vm136, %v6119
  %6153 = vst.msk [vmem:[%s6149 + $0x21] sm:$0xff] %vm136, %v6120
  %6154 = vst.msk [vmem:[%s6149 + $0x31] sm:$0xff] %vm136, %v6121
  %6155 = vst.msk [vmem:[%s6149 + $0x39] sm:$0xff] %vm136, %v6122
  %6156 = vst.msk [vmem:[%s6149 + $0x49] sm:$0xff] %vm136, %v6123
  %6157 = vst.msk [vmem:[%s6149 + $0x51] sm:$0xff] %vm136, %v6124
  %6158 = vst.msk [vmem:[%s6149 + $0x61] sm:$0xff] %vm136, %v6125
  %6159 = vst.msk [vmem:[%s6149 + $0x69] sm:$0xff] %vm136, %v6126
  %6160 = vst.msk [vmem:[%s6149 + $0x79] sm:$0xff] %vm136, %v6127
  %6161 = vst.msk [vmem:[%s6149 + $0x81] sm:$0xff] %vm136, %v6128
  %6162 = vst.msk [vmem:[%s6149 + $0x91] sm:$0xff] %vm136, %v6129
  %6163 = vst.msk [vmem:[%s6149 + $0x99] sm:$0xff] %vm136, %v6130
  %6164 = vst.msk [vmem:[%s6149 + $0xa9] sm:$0xff] %vm136, %v6131
  %6165 = vst.msk [vmem:[%s6149 + $0xb1] sm:$0xff] %vm136, %v6132
  %6166 = vst.msk [vmem:[%s6149 + $0xc1] sm:$0xff] %vm136, %v6133
  %6167 = vst.msk [vmem:[%s6149 + $0xc9] sm:$0xff] %vm136, %v6134
  %6168 = vst.msk [vmem:[%s6149 + $0xd9] sm:$0xff] %vm136, %v6135
  %6169 = vst.msk [vmem:[%s6149 + $0xe1] sm:$0xff] %vm136, %v6136
  %6170 = vst.msk [vmem:[%s6149 + $0xf1] sm:$0xff] %vm136, %v6137
  %6171 = vst.msk [vmem:[%s6149 + $0xf9] sm:$0xff] %vm136, %v6138
  %6172 = vst.msk [vmem:[%s6149 + $0x109] sm:$0xff] %vm136, %v6139
  %6173 = vst.msk [vmem:[%s6149 + $0x111] sm:$0xff] %vm136, %v6140
  %6174 = vst.msk [vmem:[%s6149 + $0x121] sm:$0xff] %vm136, %v6141
  %6175 = vst.msk [vmem:[%s6149 + $0x129] sm:$0xff] %vm136, %v6142
  %6176 = vst.msk [vmem:[%s6149 + $0x139] sm:$0xff] %vm136, %v6143
  %6177 = vst.msk [vmem:[%s6149 + $0x141] sm:$0xff] %vm136, %v6144
  %6178 = vst.msk [vmem:[%s6149 + $0x151] sm:$0xff] %vm136, %v6145
  %6179 = vst.msk [vmem:[%s6149 + $0x159] sm:$0xff] %vm136, %v6146
  %6180 = vst.msk [vmem:[%s6149 + $0x169] sm:$0xff] %vm136, %v6147
  %6181 = vst.msk [vmem:[%s6149 + $0x171] sm:$0xff] %vm136, %v6148
  %v6182 = vld [vmem:[#allocation3] sm:$0xff]
  %v6183 = vld [vmem:[#allocation3 + $0x8] sm:$0xff]
  %v6184 = vld [vmem:[#allocation3 + $0x18] sm:$0xff]
  %v6185 = vld [vmem:[#allocation3 + $0x20] sm:$0xff]
  %v6186 = vld [vmem:[#allocation3 + $0x30] sm:$0xff]
  %v6187 = vld [vmem:[#allocation3 + $0x38] sm:$0xff]
  %v6188 = vld [vmem:[#allocation3 + $0x48] sm:$0xff]
  %v6189 = vld [vmem:[#allocation3 + $0x50] sm:$0xff]
  %v6190 = vld [vmem:[#allocation3 + $0x60] sm:$0xff]
  %v6191 = vld [vmem:[#allocation3 + $0x68] sm:$0xff]
  %v6192 = vld [vmem:[#allocation3 + $0x78] sm:$0xff]
  %v6193 = vld [vmem:[#allocation3 + $0x80] sm:$0xff]
  %v6194 = vld [vmem:[#allocation3 + $0x90] sm:$0xff]
  %v6195 = vld [vmem:[#allocation3 + $0x98] sm:$0xff]
  %v6196 = vld [vmem:[#allocation3 + $0xa8] sm:$0xff]
  %v6197 = vld [vmem:[#allocation3 + $0xb0] sm:$0xff]
  %v6198 = vld [vmem:[#allocation3 + $0xc0] sm:$0xff]
  %v6199 = vld [vmem:[#allocation3 + $0xc8] sm:$0xff]
  %v6200 = vld [vmem:[#allocation3 + $0xd8] sm:$0xff]
  %v6201 = vld [vmem:[#allocation3 + $0xe0] sm:$0xff]
  %v6202 = vld [vmem:[#allocation3 + $0xf0] sm:$0xff]
  %v6203 = vld [vmem:[#allocation3 + $0xf8] sm:$0xff]
  %v6204 = vld [vmem:[#allocation3 + $0x108] sm:$0xff]
  %v6205 = vld [vmem:[#allocation3 + $0x110] sm:$0xff]
  %v6206 = vld [vmem:[#allocation3 + $0x120] sm:$0xff]
  %v6207 = vld [vmem:[#allocation3 + $0x128] sm:$0xff]
  %v6208 = vld [vmem:[#allocation3 + $0x138] sm:$0xff]
  %v6209 = vld [vmem:[#allocation3 + $0x140] sm:$0xff]
  %v6210 = vld [vmem:[#allocation3 + $0x150] sm:$0xff]
  %v6211 = vld [vmem:[#allocation3 + $0x158] sm:$0xff]
  %v6212 = vld [vmem:[#allocation3 + $0x168] sm:$0xff]
  %v6213 = vld [vmem:[#allocation3 + $0x170] sm:$0xff]
  %v6214 = vld [vmem:[%s5] sm:$0xff]
  %v6215 = vld [vmem:[#allocation3 + $0x1] sm:$0xff]
  %v6216 = vld [vmem:[#allocation3 + $0x9] sm:$0xff]
  %v6217 = vld [vmem:[#allocation3 + $0x19] sm:$0xff]
  %v6218 = vld [vmem:[#allocation3 + $0x21] sm:$0xff]
  %v6219 = vld [vmem:[#allocation3 + $0x31] sm:$0xff]
  %v6220 = vld [vmem:[#allocation3 + $0x39] sm:$0xff]
  %v6221 = vld [vmem:[#allocation3 + $0x49] sm:$0xff]
  %v6222 = vld [vmem:[#allocation3 + $0x51] sm:$0xff]
  %v6223 = vld [vmem:[#allocation3 + $0x61] sm:$0xff]
  %v6224 = vld [vmem:[#allocation3 + $0x69] sm:$0xff]
  %v6225 = vld [vmem:[#allocation3 + $0x79] sm:$0xff]
  %v6226 = vld [vmem:[#allocation3 + $0x81] sm:$0xff]
  %v6227 = vld [vmem:[#allocation3 + $0x91] sm:$0xff]
  %v6228 = vld [vmem:[#allocation3 + $0x99] sm:$0xff]
  %v6229 = vld [vmem:[#allocation3 + $0xa9] sm:$0xff]
  %v6230 = vld [vmem:[#allocation3 + $0xb1] sm:$0xff]
  %v6231 = vld [vmem:[#allocation3 + $0xc1] sm:$0xff]
  %v6232 = vld [vmem:[#allocation3 + $0xc9] sm:$0xff]
  %v6233 = vld [vmem:[#allocation3 + $0xd9] sm:$0xff]
  %v6234 = vld [vmem:[#allocation3 + $0xe1] sm:$0xff]
  %v6235 = vld [vmem:[#allocation3 + $0xf1] sm:$0xff]
  %v6236 = vld [vmem:[#allocation3 + $0xf9] sm:$0xff]
  %v6237 = vld [vmem:[#allocation3 + $0x109] sm:$0xff]
  %v6238 = vld [vmem:[#allocation3 + $0x111] sm:$0xff]
  %v6239 = vld [vmem:[#allocation3 + $0x121] sm:$0xff]
  %v6240 = vld [vmem:[#allocation3 + $0x129] sm:$0xff]
  %v6241 = vld [vmem:[#allocation3 + $0x139] sm:$0xff]
  %v6242 = vld [vmem:[#allocation3 + $0x141] sm:$0xff]
  %v6243 = vld [vmem:[#allocation3 + $0x151] sm:$0xff]
  %v6244 = vld [vmem:[#allocation3 + $0x159] sm:$0xff]
  %v6245 = vld [vmem:[#allocation3 + $0x169] sm:$0xff]
  %v6246 = vld [vmem:[#allocation3 + $0x171] sm:$0xff]
  %s6247 = scalar_lea.vmem %s5, 8
  %v6248 = vld [vmem:[%s6247] sm:$0xff]
  %v6250 = vsel %vm136, %v6215, 0
  %v6253 = vsel %vm136, %v6216, 0
  %v6256 = vsel %vm136, %v6217, 0
  %v6259 = vsel %vm136, %v6218, 0
  %v6262 = vsel %vm136, %v6219, 0
  %v6265 = vsel %vm136, %v6220, 0
  %v6268 = vsel %vm136, %v6221, 0
  %v6271 = vsel %vm136, %v6222, 0
  %v6274 = vsel %vm136, %v6223, 0
  %v6277 = vsel %vm136, %v6224, 0
  %v6280 = vsel %vm136, %v6225, 0
  %v6283 = vsel %vm136, %v6226, 0
  %v6286 = vsel %vm136, %v6227, 0
  %v6289 = vsel %vm136, %v6228, 0
  %v6292 = vsel %vm136, %v6229, 0
  %v6295 = vsel %vm136, %v6230, 0
  %v6298 = vsel %vm136, %v6231, 0
  %v6301 = vsel %vm136, %v6232, 0
  %v6304 = vsel %vm136, %v6233, 0
  %v6307 = vsel %vm136, %v6234, 0
  %v6310 = vsel %vm136, %v6235, 0
  %v6313 = vsel %vm136, %v6236, 0
  %v6316 = vsel %vm136, %v6237, 0
  %v6319 = vsel %vm136, %v6238, 0
  %v6322 = vsel %vm136, %v6239, 0
  %v6325 = vsel %vm136, %v6240, 0
  %v6328 = vsel %vm136, %v6241, 0
  %v6331 = vsel %vm136, %v6242, 0
  %v6334 = vsel %vm136, %v6243, 0
  %v6337 = vsel %vm136, %v6244, 0
  %v6340 = vsel %vm136, %v6245, 0
  %v6343 = vsel %vm136, %v6246, 0
  %6345 = vmatpush.msra.mxu0 0.0
  %6346 = vmatpush.msra.mxu0 0.0
  %6347 = vmatpush.msra.mxu0 0.0
  %6348 = vmatpush.msra.mxu0 0.0
  %6349 = vmatpush.msra.mxu0 0.0
  %6350 = vmatpush.msra.mxu0 0.0
  %6351 = vmatpush.msra.mxu0 0.0
  %6352 = vmatpush.msra.mxu0 0.0
  %6353 = vmatpush.msra.mxu0 0.0
  %6354 = vmatpush.msra.mxu0 0.0
  %6355 = vmatpush.msra.mxu0 0.0
  %6356 = vmatpush.msra.mxu0 0.0
  %6357 = vmatpush.msra.mxu0 0.0
  %6358 = vmatpush.msra.mxu0 0.0
  %6359 = vmatpush.msra.mxu0 0.0
  %6360 = vmatpush.msra.mxu0 %v6248
  %6361 = vmatmul.f32.gmra.mxu0 %v6250
  %v6362 = vpop.f32.mrf.mxu0
  %v6363 = vadd.f32 0.0, %v6362
  %6364 = vmatmul.f32.gmra.mxu0 %v6253
  %v6365 = vpop.f32.mrf.mxu0
  %v6366 = vadd.f32 0.0, %v6365
  %6367 = vmatmul.f32.gmra.mxu0 %v6256
  %v6368 = vpop.f32.mrf.mxu0
  %v6369 = vadd.f32 0.0, %v6368
  %6370 = vmatmul.f32.gmra.mxu0 %v6259
  %v6371 = vpop.f32.mrf.mxu0
  %v6372 = vadd.f32 0.0, %v6371
  %6373 = vmatmul.f32.gmra.mxu0 %v6262
  %v6374 = vpop.f32.mrf.mxu0
  %v6375 = vadd.f32 0.0, %v6374
  %6376 = vmatmul.f32.gmra.mxu0 %v6265
  %v6377 = vpop.f32.mrf.mxu0
  %v6378 = vadd.f32 0.0, %v6377
  %6379 = vmatmul.f32.gmra.mxu0 %v6268
  %v6380 = vpop.f32.mrf.mxu0
  %v6381 = vadd.f32 0.0, %v6380
  %6382 = vmatmul.f32.gmra.mxu0 %v6271
  %v6383 = vpop.f32.mrf.mxu0
  %v6384 = vadd.f32 0.0, %v6383
  %6385 = vmatmul.f32.gmra.mxu0 %v6274
  %v6386 = vpop.f32.mrf.mxu0
  %v6387 = vadd.f32 0.0, %v6386
  %6388 = vmatmul.f32.gmra.mxu0 %v6277
  %v6389 = vpop.f32.mrf.mxu0
  %v6390 = vadd.f32 0.0, %v6389
  %6391 = vmatmul.f32.gmra.mxu0 %v6280
  %v6392 = vpop.f32.mrf.mxu0
  %v6393 = vadd.f32 0.0, %v6392
  %6394 = vmatmul.f32.gmra.mxu0 %v6283
  %v6395 = vpop.f32.mrf.mxu0
  %v6396 = vadd.f32 0.0, %v6395
  %6397 = vmatmul.f32.gmra.mxu0 %v6286
  %v6398 = vpop.f32.mrf.mxu0
  %v6399 = vadd.f32 0.0, %v6398
  %6400 = vmatmul.f32.gmra.mxu0 %v6289
  %v6401 = vpop.f32.mrf.mxu0
  %v6402 = vadd.f32 0.0, %v6401
  %6403 = vmatmul.f32.gmra.mxu0 %v6292
  %v6404 = vpop.f32.mrf.mxu0
  %v6405 = vadd.f32 0.0, %v6404
  %6406 = vmatmul.f32.gmra.mxu0 %v6295
  %v6407 = vpop.f32.mrf.mxu0
  %v6408 = vadd.f32 0.0, %v6407
  %6409 = vmatmul.f32.gmra.mxu0 %v6298
  %v6410 = vpop.f32.mrf.mxu0
  %v6411 = vadd.f32 0.0, %v6410
  %6412 = vmatmul.f32.gmra.mxu0 %v6301
  %v6413 = vpop.f32.mrf.mxu0
  %v6414 = vadd.f32 0.0, %v6413
  %6415 = vmatmul.f32.gmra.mxu0 %v6304
  %v6416 = vpop.f32.mrf.mxu0
  %v6417 = vadd.f32 0.0, %v6416
  %6418 = vmatmul.f32.gmra.mxu0 %v6307
  %v6419 = vpop.f32.mrf.mxu0
  %v6420 = vadd.f32 0.0, %v6419
  %6421 = vmatmul.f32.gmra.mxu0 %v6310
  %v6422 = vpop.f32.mrf.mxu0
  %v6423 = vadd.f32 0.0, %v6422
  %6424 = vmatmul.f32.gmra.mxu0 %v6313
  %v6425 = vpop.f32.mrf.mxu0
  %v6426 = vadd.f32 0.0, %v6425
  %6427 = vmatmul.f32.gmra.mxu0 %v6316
  %v6428 = vpop.f32.mrf.mxu0
  %v6429 = vadd.f32 0.0, %v6428
  %6430 = vmatmul.f32.gmra.mxu0 %v6319
  %v6431 = vpop.f32.mrf.mxu0
  %v6432 = vadd.f32 0.0, %v6431
  %6433 = vmatmul.f32.gmra.mxu0 %v6322
  %v6434 = vpop.f32.mrf.mxu0
  %v6435 = vadd.f32 0.0, %v6434
  %6436 = vmatmul.f32.gmra.mxu0 %v6325
  %v6437 = vpop.f32.mrf.mxu0
  %v6438 = vadd.f32 0.0, %v6437
  %6439 = vmatmul.f32.gmra.mxu0 %v6328
  %v6440 = vpop.f32.mrf.mxu0
  %v6441 = vadd.f32 0.0, %v6440
  %6442 = vmatmul.f32.gmra.mxu0 %v6331
  %v6443 = vpop.f32.mrf.mxu0
  %v6444 = vadd.f32 0.0, %v6443
  %6445 = vmatmul.f32.gmra.mxu0 %v6334
  %v6446 = vpop.f32.mrf.mxu0
  %v6447 = vadd.f32 0.0, %v6446
  %6448 = vmatmul.f32.gmra.mxu0 %v6337
  %v6449 = vpop.f32.mrf.mxu0
  %v6450 = vadd.f32 0.0, %v6449
  %6451 = vmatmul.f32.gmra.mxu0 %v6340
  %v6452 = vpop.f32.mrf.mxu0
  %v6453 = vadd.f32 0.0, %v6452
  %6454 = vmatmul.f32.gmra.mxu0 %v6343
  %v6455 = vpop.f32.mrf.mxu0
  %v6456 = vadd.f32 0.0, %v6455
  %6457 = vdwg.mxu0
  %v6459 = vsel %vm136, %v6182, 0
  %v6462 = vsel %vm136, %v6183, 0
  %v6465 = vsel %vm136, %v6184, 0
  %v6468 = vsel %vm136, %v6185, 0
  %v6471 = vsel %vm136, %v6186, 0
  %v6474 = vsel %vm136, %v6187, 0
  %v6477 = vsel %vm136, %v6188, 0
  %v6480 = vsel %vm136, %v6189, 0
  %v6483 = vsel %vm136, %v6190, 0
  %v6486 = vsel %vm136, %v6191, 0
  %v6489 = vsel %vm136, %v6192, 0
  %v6492 = vsel %vm136, %v6193, 0
  %v6495 = vsel %vm136, %v6194, 0
  %v6498 = vsel %vm136, %v6195, 0
  %v6501 = vsel %vm136, %v6196, 0
  %v6504 = vsel %vm136, %v6197, 0
  %v6507 = vsel %vm136, %v6198, 0
  %v6510 = vsel %vm136, %v6199, 0
  %v6513 = vsel %vm136, %v6200, 0
  %v6516 = vsel %vm136, %v6201, 0
  %v6519 = vsel %vm136, %v6202, 0
  %v6522 = vsel %vm136, %v6203, 0
  %v6525 = vsel %vm136, %v6204, 0
  %v6528 = vsel %vm136, %v6205, 0
  %v6531 = vsel %vm136, %v6206, 0
  %v6534 = vsel %vm136, %v6207, 0
  %v6537 = vsel %vm136, %v6208, 0
  %v6540 = vsel %vm136, %v6209, 0
  %v6543 = vsel %vm136, %v6210, 0
  %v6546 = vsel %vm136, %v6211, 0
  %v6549 = vsel %vm136, %v6212, 0
  %v6552 = vsel %vm136, %v6213, 0
  %6554 = vmatpush.msra.mxu0 0.0
  %6555 = vmatpush.msra.mxu0 0.0
  %6556 = vmatpush.msra.mxu0 0.0
  %6557 = vmatpush.msra.mxu0 0.0
  %6558 = vmatpush.msra.mxu0 0.0
  %6559 = vmatpush.msra.mxu0 0.0
  %6560 = vmatpush.msra.mxu0 0.0
  %6561 = vmatpush.msra.mxu0 0.0
  %6562 = vmatpush.msra.mxu0 0.0
  %6563 = vmatpush.msra.mxu0 0.0
  %6564 = vmatpush.msra.mxu0 0.0
  %6565 = vmatpush.msra.mxu0 0.0
  %6566 = vmatpush.msra.mxu0 0.0
  %6567 = vmatpush.msra.mxu0 0.0
  %6568 = vmatpush.msra.mxu0 0.0
  %6569 = vmatpush.msra.mxu0 %v6214
  %6570 = vmatmul.f32.gmra.mxu0 %v6459
  %v6571 = vpop.f32.mrf.mxu0
  %v6572 = vadd.f32 %v6363, %v6571
  %6573 = vmatmul.f32.gmra.mxu0 %v6462
  %v6574 = vpop.f32.mrf.mxu0
  %v6575 = vadd.f32 %v6366, %v6574
  %6576 = vmatmul.f32.gmra.mxu0 %v6465
  %v6577 = vpop.f32.mrf.mxu0
  %v6578 = vadd.f32 %v6369, %v6577
  %6579 = vmatmul.f32.gmra.mxu0 %v6468
  %v6580 = vpop.f32.mrf.mxu0
  %v6581 = vadd.f32 %v6372, %v6580
  %6582 = vmatmul.f32.gmra.mxu0 %v6471
  %v6583 = vpop.f32.mrf.mxu0
  %v6584 = vadd.f32 %v6375, %v6583
  %6585 = vmatmul.f32.gmra.mxu0 %v6474
  %v6586 = vpop.f32.mrf.mxu0
  %v6587 = vadd.f32 %v6378, %v6586
  %6588 = vmatmul.f32.gmra.mxu0 %v6477
  %v6589 = vpop.f32.mrf.mxu0
  %v6590 = vadd.f32 %v6381, %v6589
  %6591 = vmatmul.f32.gmra.mxu0 %v6480
  %v6592 = vpop.f32.mrf.mxu0
  %v6593 = vadd.f32 %v6384, %v6592
  %6594 = vmatmul.f32.gmra.mxu0 %v6483
  %v6595 = vpop.f32.mrf.mxu0
  %v6596 = vadd.f32 %v6387, %v6595
  %6597 = vmatmul.f32.gmra.mxu0 %v6486
  %v6598 = vpop.f32.mrf.mxu0
  %v6599 = vadd.f32 %v6390, %v6598
  %6600 = vmatmul.f32.gmra.mxu0 %v6489
  %v6601 = vpop.f32.mrf.mxu0
  %v6602 = vadd.f32 %v6393, %v6601
  %6603 = vmatmul.f32.gmra.mxu0 %v6492
  %v6604 = vpop.f32.mrf.mxu0
  %v6605 = vadd.f32 %v6396, %v6604
  %6606 = vmatmul.f32.gmra.mxu0 %v6495
  %v6607 = vpop.f32.mrf.mxu0
  %v6608 = vadd.f32 %v6399, %v6607
  %6609 = vmatmul.f32.gmra.mxu0 %v6498
  %v6610 = vpop.f32.mrf.mxu0
  %v6611 = vadd.f32 %v6402, %v6610
  %6612 = vmatmul.f32.gmra.mxu0 %v6501
  %v6613 = vpop.f32.mrf.mxu0
  %v6614 = vadd.f32 %v6405, %v6613
  %6615 = vmatmul.f32.gmra.mxu0 %v6504
  %v6616 = vpop.f32.mrf.mxu0
  %v6617 = vadd.f32 %v6408, %v6616
  %6618 = vmatmul.f32.gmra.mxu0 %v6507
  %v6619 = vpop.f32.mrf.mxu0
  %v6620 = vadd.f32 %v6411, %v6619
  %6621 = vmatmul.f32.gmra.mxu0 %v6510
  %v6622 = vpop.f32.mrf.mxu0
  %v6623 = vadd.f32 %v6414, %v6622
  %6624 = vmatmul.f32.gmra.mxu0 %v6513
  %v6625 = vpop.f32.mrf.mxu0
  %v6626 = vadd.f32 %v6417, %v6625
  %6627 = vmatmul.f32.gmra.mxu0 %v6516
  %v6628 = vpop.f32.mrf.mxu0
  %v6629 = vadd.f32 %v6420, %v6628
  %6630 = vmatmul.f32.gmra.mxu0 %v6519
  %v6631 = vpop.f32.mrf.mxu0
  %v6632 = vadd.f32 %v6423, %v6631
  %6633 = vmatmul.f32.gmra.mxu0 %v6522
  %v6634 = vpop.f32.mrf.mxu0
  %v6635 = vadd.f32 %v6426, %v6634
  %6636 = vmatmul.f32.gmra.mxu0 %v6525
  %v6637 = vpop.f32.mrf.mxu0
  %v6638 = vadd.f32 %v6429, %v6637
  %6639 = vmatmul.f32.gmra.mxu0 %v6528
  %v6640 = vpop.f32.mrf.mxu0
  %v6641 = vadd.f32 %v6432, %v6640
  %6642 = vmatmul.f32.gmra.mxu0 %v6531
  %v6643 = vpop.f32.mrf.mxu0
  %v6644 = vadd.f32 %v6435, %v6643
  %6645 = vmatmul.f32.gmra.mxu0 %v6534
  %v6646 = vpop.f32.mrf.mxu0
  %v6647 = vadd.f32 %v6438, %v6646
  %6648 = vmatmul.f32.gmra.mxu0 %v6537
  %v6649 = vpop.f32.mrf.mxu0
  %v6650 = vadd.f32 %v6441, %v6649
  %6651 = vmatmul.f32.gmra.mxu0 %v6540
  %v6652 = vpop.f32.mrf.mxu0
  %v6653 = vadd.f32 %v6444, %v6652
  %6654 = vmatmul.f32.gmra.mxu0 %v6543
  %v6655 = vpop.f32.mrf.mxu0
  %v6656 = vadd.f32 %v6447, %v6655
  %6657 = vmatmul.f32.gmra.mxu0 %v6546
  %v6658 = vpop.f32.mrf.mxu0
  %v6659 = vadd.f32 %v6450, %v6658
  %6660 = vmatmul.f32.gmra.mxu0 %v6549
  %v6661 = vpop.f32.mrf.mxu0
  %v6662 = vadd.f32 %v6453, %v6661
  %6663 = vmatmul.f32.gmra.mxu0 %v6552
  %v6664 = vpop.f32.mrf.mxu0
  %v6665 = vadd.f32 %v6456, %v6664
  %6666 = vdwg.mxu0
  %v6667 = vld [vmem:[#allocation3 + $0x2] sm:$0xff]
  %v6668 = vld [vmem:[#allocation3 + $0xa] sm:$0xff]
  %v6669 = vld [vmem:[#allocation3 + $0x1a] sm:$0xff]
  %v6670 = vld [vmem:[#allocation3 + $0x22] sm:$0xff]
  %v6671 = vld [vmem:[#allocation3 + $0x32] sm:$0xff]
  %v6672 = vld [vmem:[#allocation3 + $0x3a] sm:$0xff]
  %v6673 = vld [vmem:[#allocation3 + $0x4a] sm:$0xff]
  %v6674 = vld [vmem:[#allocation3 + $0x52] sm:$0xff]
  %v6675 = vld [vmem:[#allocation3 + $0x62] sm:$0xff]
  %v6676 = vld [vmem:[#allocation3 + $0x6a] sm:$0xff]
  %v6677 = vld [vmem:[#allocation3 + $0x7a] sm:$0xff]
  %v6678 = vld [vmem:[#allocation3 + $0x82] sm:$0xff]
  %v6679 = vld [vmem:[#allocation3 + $0x92] sm:$0xff]
  %v6680 = vld [vmem:[#allocation3 + $0x9a] sm:$0xff]
  %v6681 = vld [vmem:[#allocation3 + $0xaa] sm:$0xff]
  %v6682 = vld [vmem:[#allocation3 + $0xb2] sm:$0xff]
  %v6683 = vld [vmem:[#allocation3 + $0xc2] sm:$0xff]
  %v6684 = vld [vmem:[#allocation3 + $0xca] sm:$0xff]
  %v6685 = vld [vmem:[#allocation3 + $0xda] sm:$0xff]
  %v6686 = vld [vmem:[#allocation3 + $0xe2] sm:$0xff]
  %v6687 = vld [vmem:[#allocation3 + $0xf2] sm:$0xff]
  %v6688 = vld [vmem:[#allocation3 + $0xfa] sm:$0xff]
  %v6689 = vld [vmem:[#allocation3 + $0x10a] sm:$0xff]
  %v6690 = vld [vmem:[#allocation3 + $0x112] sm:$0xff]
  %v6691 = vld [vmem:[#allocation3 + $0x122] sm:$0xff]
  %v6692 = vld [vmem:[#allocation3 + $0x12a] sm:$0xff]
  %v6693 = vld [vmem:[#allocation3 + $0x13a] sm:$0xff]
  %v6694 = vld [vmem:[#allocation3 + $0x142] sm:$0xff]
  %v6695 = vld [vmem:[#allocation3 + $0x152] sm:$0xff]
  %v6696 = vld [vmem:[#allocation3 + $0x15a] sm:$0xff]
  %v6697 = vld [vmem:[#allocation3 + $0x16a] sm:$0xff]
  %v6698 = vld [vmem:[#allocation3 + $0x172] sm:$0xff]
  %s6699 = scalar_lea.vmem %s5, 16
  %v6700 = vld [vmem:[%s6699] sm:$0xff]
  %v6702 = vsel %vm136, %v6667, 0
  %v6705 = vsel %vm136, %v6668, 0
  %v6708 = vsel %vm136, %v6669, 0
  %v6711 = vsel %vm136, %v6670, 0
  %v6714 = vsel %vm136, %v6671, 0
  %v6717 = vsel %vm136, %v6672, 0
  %v6720 = vsel %vm136, %v6673, 0
  %v6723 = vsel %vm136, %v6674, 0
  %v6726 = vsel %vm136, %v6675, 0
  %v6729 = vsel %vm136, %v6676, 0
  %v6732 = vsel %vm136, %v6677, 0
  %v6735 = vsel %vm136, %v6678, 0
  %v6738 = vsel %vm136, %v6679, 0
  %v6741 = vsel %vm136, %v6680, 0
  %v6744 = vsel %vm136, %v6681, 0
  %v6747 = vsel %vm136, %v6682, 0
  %v6750 = vsel %vm136, %v6683, 0
  %v6753 = vsel %vm136, %v6684, 0
  %v6756 = vsel %vm136, %v6685, 0
  %v6759 = vsel %vm136, %v6686, 0
  %v6762 = vsel %vm136, %v6687, 0
  %v6765 = vsel %vm136, %v6688, 0
  %v6768 = vsel %vm136, %v6689, 0
  %v6771 = vsel %vm136, %v6690, 0
  %v6774 = vsel %vm136, %v6691, 0
  %v6777 = vsel %vm136, %v6692, 0
  %v6780 = vsel %vm136, %v6693, 0
  %v6783 = vsel %vm136, %v6694, 0
  %v6786 = vsel %vm136, %v6695, 0
  %v6789 = vsel %vm136, %v6696, 0
  %v6792 = vsel %vm136, %v6697, 0
  %v6795 = vsel %vm136, %v6698, 0
  %6797 = vmatpush.msra.mxu0 0.0
  %6798 = vmatpush.msra.mxu0 0.0
  %6799 = vmatpush.msra.mxu0 0.0
  %6800 = vmatpush.msra.mxu0 0.0
  %6801 = vmatpush.msra.mxu0 0.0
  %6802 = vmatpush.msra.mxu0 0.0
  %6803 = vmatpush.msra.mxu0 0.0
  %6804 = vmatpush.msra.mxu0 0.0
  %6805 = vmatpush.msra.mxu0 0.0
  %6806 = vmatpush.msra.mxu0 0.0
  %6807 = vmatpush.msra.mxu0 0.0
  %6808 = vmatpush.msra.mxu0 0.0
  %6809 = vmatpush.msra.mxu0 0.0
  %6810 = vmatpush.msra.mxu0 0.0
  %6811 = vmatpush.msra.mxu0 0.0
  %6812 = vmatpush.msra.mxu0 %v6700
  %6813 = vmatmul.f32.gmra.mxu0 %v6702
  %v6814 = vpop.f32.mrf.mxu0
  %v6815 = vadd.f32 0.0, %v6814
  %6816 = vmatmul.f32.gmra.mxu0 %v6705
  %v6817 = vpop.f32.mrf.mxu0
  %v6818 = vadd.f32 0.0, %v6817
  %6819 = vmatmul.f32.gmra.mxu0 %v6708
  %v6820 = vpop.f32.mrf.mxu0
  %v6821 = vadd.f32 0.0, %v6820
  %6822 = vmatmul.f32.gmra.mxu0 %v6711
  %v6823 = vpop.f32.mrf.mxu0
  %v6824 = vadd.f32 0.0, %v6823
  %6825 = vmatmul.f32.gmra.mxu0 %v6714
  %v6826 = vpop.f32.mrf.mxu0
  %v6827 = vadd.f32 0.0, %v6826
  %6828 = vmatmul.f32.gmra.mxu0 %v6717
  %v6829 = vpop.f32.mrf.mxu0
  %v6830 = vadd.f32 0.0, %v6829
  %6831 = vmatmul.f32.gmra.mxu0 %v6720
  %v6832 = vpop.f32.mrf.mxu0
  %v6833 = vadd.f32 0.0, %v6832
  %6834 = vmatmul.f32.gmra.mxu0 %v6723
  %v6835 = vpop.f32.mrf.mxu0
  %v6836 = vadd.f32 0.0, %v6835
  %6837 = vmatmul.f32.gmra.mxu0 %v6726
  %v6838 = vpop.f32.mrf.mxu0
  %v6839 = vadd.f32 0.0, %v6838
  %6840 = vmatmul.f32.gmra.mxu0 %v6729
  %v6841 = vpop.f32.mrf.mxu0
  %v6842 = vadd.f32 0.0, %v6841
  %6843 = vmatmul.f32.gmra.mxu0 %v6732
  %v6844 = vpop.f32.mrf.mxu0
  %v6845 = vadd.f32 0.0, %v6844
  %6846 = vmatmul.f32.gmra.mxu0 %v6735
  %v6847 = vpop.f32.mrf.mxu0
  %v6848 = vadd.f32 0.0, %v6847
  %6849 = vmatmul.f32.gmra.mxu0 %v6738
  %v6850 = vpop.f32.mrf.mxu0
  %v6851 = vadd.f32 0.0, %v6850
  %6852 = vmatmul.f32.gmra.mxu0 %v6741
  %v6853 = vpop.f32.mrf.mxu0
  %v6854 = vadd.f32 0.0, %v6853
  %6855 = vmatmul.f32.gmra.mxu0 %v6744
  %v6856 = vpop.f32.mrf.mxu0
  %v6857 = vadd.f32 0.0, %v6856
  %6858 = vmatmul.f32.gmra.mxu0 %v6747
  %v6859 = vpop.f32.mrf.mxu0
  %v6860 = vadd.f32 0.0, %v6859
  %6861 = vmatmul.f32.gmra.mxu0 %v6750
  %v6862 = vpop.f32.mrf.mxu0
  %v6863 = vadd.f32 0.0, %v6862
  %6864 = vmatmul.f32.gmra.mxu0 %v6753
  %v6865 = vpop.f32.mrf.mxu0
  %v6866 = vadd.f32 0.0, %v6865
  %6867 = vmatmul.f32.gmra.mxu0 %v6756
  %v6868 = vpop.f32.mrf.mxu0
  %v6869 = vadd.f32 0.0, %v6868
  %6870 = vmatmul.f32.gmra.mxu0 %v6759
  %v6871 = vpop.f32.mrf.mxu0
  %v6872 = vadd.f32 0.0, %v6871
  %6873 = vmatmul.f32.gmra.mxu0 %v6762
  %v6874 = vpop.f32.mrf.mxu0
  %v6875 = vadd.f32 0.0, %v6874
  %6876 = vmatmul.f32.gmra.mxu0 %v6765
  %v6877 = vpop.f32.mrf.mxu0
  %v6878 = vadd.f32 0.0, %v6877
  %6879 = vmatmul.f32.gmra.mxu0 %v6768
  %v6880 = vpop.f32.mrf.mxu0
  %v6881 = vadd.f32 0.0, %v6880
  %6882 = vmatmul.f32.gmra.mxu0 %v6771
  %v6883 = vpop.f32.mrf.mxu0
  %v6884 = vadd.f32 0.0, %v6883
  %6885 = vmatmul.f32.gmra.mxu0 %v6774
  %v6886 = vpop.f32.mrf.mxu0
  %v6887 = vadd.f32 0.0, %v6886
  %6888 = vmatmul.f32.gmra.mxu0 %v6777
  %v6889 = vpop.f32.mrf.mxu0
  %v6890 = vadd.f32 0.0, %v6889
  %6891 = vmatmul.f32.gmra.mxu0 %v6780
  %v6892 = vpop.f32.mrf.mxu0
  %v6893 = vadd.f32 0.0, %v6892
  %6894 = vmatmul.f32.gmra.mxu0 %v6783
  %v6895 = vpop.f32.mrf.mxu0
  %v6896 = vadd.f32 0.0, %v6895
  %6897 = vmatmul.f32.gmra.mxu0 %v6786
  %v6898 = vpop.f32.mrf.mxu0
  %v6899 = vadd.f32 0.0, %v6898
  %6900 = vmatmul.f32.gmra.mxu0 %v6789
  %v6901 = vpop.f32.mrf.mxu0
  %v6902 = vadd.f32 0.0, %v6901
  %6903 = vmatmul.f32.gmra.mxu0 %v6792
  %v6904 = vpop.f32.mrf.mxu0
  %v6905 = vadd.f32 0.0, %v6904
  %6906 = vmatmul.f32.gmra.mxu0 %v6795
  %v6907 = vpop.f32.mrf.mxu0
  %v6908 = vadd.f32 0.0, %v6907
  %6909 = vdwg.mxu0
  %v6910 = vadd.f32 %v6572, %v6815
  %v6911 = vadd.f32 %v6575, %v6818
  %v6912 = vadd.f32 %v6578, %v6821
  %v6913 = vadd.f32 %v6581, %v6824
  %v6914 = vadd.f32 %v6584, %v6827
  %v6915 = vadd.f32 %v6587, %v6830
  %v6916 = vadd.f32 %v6590, %v6833
  %v6917 = vadd.f32 %v6593, %v6836
  %v6918 = vadd.f32 %v6596, %v6839
  %v6919 = vadd.f32 %v6599, %v6842
  %v6920 = vadd.f32 %v6602, %v6845
  %v6921 = vadd.f32 %v6605, %v6848
  %v6922 = vadd.f32 %v6608, %v6851
  %v6923 = vadd.f32 %v6611, %v6854
  %v6924 = vadd.f32 %v6614, %v6857
  %v6925 = vadd.f32 %v6617, %v6860
  %v6926 = vadd.f32 %v6620, %v6863
  %v6927 = vadd.f32 %v6623, %v6866
  %v6928 = vadd.f32 %v6626, %v6869
  %v6929 = vadd.f32 %v6629, %v6872
  %v6930 = vadd.f32 %v6632, %v6875
  %v6931 = vadd.f32 %v6635, %v6878
  %v6932 = vadd.f32 %v6638, %v6881
  %v6933 = vadd.f32 %v6641, %v6884
  %v6934 = vadd.f32 %v6644, %v6887
  %v6935 = vadd.f32 %v6647, %v6890
  %v6936 = vadd.f32 %v6650, %v6893
  %v6937 = vadd.f32 %v6653, %v6896
  %v6938 = vadd.f32 %v6656, %v6899
  %v6939 = vadd.f32 %v6659, %v6902
  %v6940 = vadd.f32 %v6662, %v6905
  %v6941 = vadd.f32 %v6665, %v6908
  %v6942 = vld [vmem:[%s5952] sm:$0xff]
  %v6943 = vld [vmem:[%s5952 + $0x8] sm:$0xff]
  %v6944 = vld [vmem:[%s5952 + $0x18] sm:$0xff]
  %v6945 = vld [vmem:[%s5952 + $0x20] sm:$0xff]
  %v6946 = vld [vmem:[%s5952 + $0x30] sm:$0xff]
  %v6947 = vld [vmem:[%s5952 + $0x38] sm:$0xff]
  %v6948 = vld [vmem:[%s5952 + $0x48] sm:$0xff]
  %v6949 = vld [vmem:[%s5952 + $0x50] sm:$0xff]
  %v6950 = vld [vmem:[%s5952 + $0x60] sm:$0xff]
  %v6951 = vld [vmem:[%s5952 + $0x68] sm:$0xff]
  %v6952 = vld [vmem:[%s5952 + $0x78] sm:$0xff]
  %v6953 = vld [vmem:[%s5952 + $0x80] sm:$0xff]
  %v6954 = vld [vmem:[%s5952 + $0x90] sm:$0xff]
  %v6955 = vld [vmem:[%s5952 + $0x98] sm:$0xff]
  %v6956 = vld [vmem:[%s5952 + $0xa8] sm:$0xff]
  %v6957 = vld [vmem:[%s5952 + $0xb0] sm:$0xff]
  %v6958 = vld [vmem:[%s5952 + $0xc0] sm:$0xff]
  %v6959 = vld [vmem:[%s5952 + $0xc8] sm:$0xff]
  %v6960 = vld [vmem:[%s5952 + $0xd8] sm:$0xff]
  %v6961 = vld [vmem:[%s5952 + $0xe0] sm:$0xff]
  %v6962 = vld [vmem:[%s5952 + $0xf0] sm:$0xff]
  %v6963 = vld [vmem:[%s5952 + $0xf8] sm:$0xff]
  %v6964 = vld [vmem:[%s5952 + $0x108] sm:$0xff]
  %v6965 = vld [vmem:[%s5952 + $0x110] sm:$0xff]
  %v6966 = vld [vmem:[%s5952 + $0x120] sm:$0xff]
  %v6967 = vld [vmem:[%s5952 + $0x128] sm:$0xff]
  %v6968 = vld [vmem:[%s5952 + $0x138] sm:$0xff]
  %v6969 = vld [vmem:[%s5952 + $0x140] sm:$0xff]
  %v6970 = vld [vmem:[%s5952 + $0x150] sm:$0xff]
  %v6971 = vld [vmem:[%s5952 + $0x158] sm:$0xff]
  %v6972 = vld [vmem:[%s5952 + $0x168] sm:$0xff]
  %v6973 = vld [vmem:[%s5952 + $0x170] sm:$0xff]
  %s6974 = scalar_lea.vmem %s5, 24
  %v6975 = vld [vmem:[%s6974] sm:$0xff]
  %v6977 = vsel %vm136, %v6942, 0
  %v6980 = vsel %vm136, %v6943, 0
  %v6983 = vsel %vm136, %v6944, 0
  %v6986 = vsel %vm136, %v6945, 0
  %v6989 = vsel %vm136, %v6946, 0
  %v6992 = vsel %vm136, %v6947, 0
  %v6995 = vsel %vm136, %v6948, 0
  %v6998 = vsel %vm136, %v6949, 0
  %v7001 = vsel %vm136, %v6950, 0
  %v7004 = vsel %vm136, %v6951, 0
  %v7007 = vsel %vm136, %v6952, 0
  %v7010 = vsel %vm136, %v6953, 0
  %v7013 = vsel %vm136, %v6954, 0
  %v7016 = vsel %vm136, %v6955, 0
  %v7019 = vsel %vm136, %v6956, 0
  %v7022 = vsel %vm136, %v6957, 0
  %v7025 = vsel %vm136, %v6958, 0
  %v7028 = vsel %vm136, %v6959, 0
  %v7031 = vsel %vm136, %v6960, 0
  %v7034 = vsel %vm136, %v6961, 0
  %v7037 = vsel %vm136, %v6962, 0
  %v7040 = vsel %vm136, %v6963, 0
  %v7043 = vsel %vm136, %v6964, 0
  %v7046 = vsel %vm136, %v6965, 0
  %v7049 = vsel %vm136, %v6966, 0
  %v7052 = vsel %vm136, %v6967, 0
  %v7055 = vsel %vm136, %v6968, 0
  %v7058 = vsel %vm136, %v6969, 0
  %v7061 = vsel %vm136, %v6970, 0
  %v7064 = vsel %vm136, %v6971, 0
  %v7067 = vsel %vm136, %v6972, 0
  %v7070 = vsel %vm136, %v6973, 0
  %7072 = vmatpush.msra.mxu0 0.0
  %7073 = vmatpush.msra.mxu0 0.0
  %7074 = vmatpush.msra.mxu0 0.0
  %7075 = vmatpush.msra.mxu0 0.0
  %7076 = vmatpush.msra.mxu0 0.0
  %7077 = vmatpush.msra.mxu0 0.0
  %7078 = vmatpush.msra.mxu0 0.0
  %7079 = vmatpush.msra.mxu0 0.0
  %7080 = vmatpush.msra.mxu0 0.0
  %7081 = vmatpush.msra.mxu0 0.0
  %7082 = vmatpush.msra.mxu0 0.0
  %7083 = vmatpush.msra.mxu0 0.0
  %7084 = vmatpush.msra.mxu0 0.0
  %7085 = vmatpush.msra.mxu0 0.0
  %7086 = vmatpush.msra.mxu0 0.0
  %7087 = vmatpush.msra.mxu0 %v6975
  %7088 = vmatmul.f32.gmra.mxu0 %v6977
  %v7089 = vpop.f32.mrf.mxu0
  %v7090 = vadd.f32 0.0, %v7089
  %7091 = vmatmul.f32.gmra.mxu0 %v6980
  %v7092 = vpop.f32.mrf.mxu0
  %v7093 = vadd.f32 0.0, %v7092
  %7094 = vmatmul.f32.gmra.mxu0 %v6983
  %v7095 = vpop.f32.mrf.mxu0
  %v7096 = vadd.f32 0.0, %v7095
  %7097 = vmatmul.f32.gmra.mxu0 %v6986
  %v7098 = vpop.f32.mrf.mxu0
  %v7099 = vadd.f32 0.0, %v7098
  %7100 = vmatmul.f32.gmra.mxu0 %v6989
  %v7101 = vpop.f32.mrf.mxu0
  %v7102 = vadd.f32 0.0, %v7101
  %7103 = vmatmul.f32.gmra.mxu0 %v6992
  %v7104 = vpop.f32.mrf.mxu0
  %v7105 = vadd.f32 0.0, %v7104
  %7106 = vmatmul.f32.gmra.mxu0 %v6995
  %v7107 = vpop.f32.mrf.mxu0
  %v7108 = vadd.f32 0.0, %v7107
  %7109 = vmatmul.f32.gmra.mxu0 %v6998
  %v7110 = vpop.f32.mrf.mxu0
  %v7111 = vadd.f32 0.0, %v7110
  %7112 = vmatmul.f32.gmra.mxu0 %v7001
  %v7113 = vpop.f32.mrf.mxu0
  %v7114 = vadd.f32 0.0, %v7113
  %7115 = vmatmul.f32.gmra.mxu0 %v7004
  %v7116 = vpop.f32.mrf.mxu0
  %v7117 = vadd.f32 0.0, %v7116
  %7118 = vmatmul.f32.gmra.mxu0 %v7007
  %v7119 = vpop.f32.mrf.mxu0
  %v7120 = vadd.f32 0.0, %v7119
  %7121 = vmatmul.f32.gmra.mxu0 %v7010
  %v7122 = vpop.f32.mrf.mxu0
  %v7123 = vadd.f32 0.0, %v7122
  %7124 = vmatmul.f32.gmra.mxu0 %v7013
  %v7125 = vpop.f32.mrf.mxu0
  %v7126 = vadd.f32 0.0, %v7125
  %7127 = vmatmul.f32.gmra.mxu0 %v7016
  %v7128 = vpop.f32.mrf.mxu0
  %v7129 = vadd.f32 0.0, %v7128
  %7130 = vmatmul.f32.gmra.mxu0 %v7019
  %v7131 = vpop.f32.mrf.mxu0
  %v7132 = vadd.f32 0.0, %v7131
  %7133 = vmatmul.f32.gmra.mxu0 %v7022
  %v7134 = vpop.f32.mrf.mxu0
  %v7135 = vadd.f32 0.0, %v7134
  %7136 = vmatmul.f32.gmra.mxu0 %v7025
  %v7137 = vpop.f32.mrf.mxu0
  %v7138 = vadd.f32 0.0, %v7137
  %7139 = vmatmul.f32.gmra.mxu0 %v7028
  %v7140 = vpop.f32.mrf.mxu0
  %v7141 = vadd.f32 0.0, %v7140
  %7142 = vmatmul.f32.gmra.mxu0 %v7031
  %v7143 = vpop.f32.mrf.mxu0
  %v7144 = vadd.f32 0.0, %v7143
  %7145 = vmatmul.f32.gmra.mxu0 %v7034
  %v7146 = vpop.f32.mrf.mxu0
  %v7147 = vadd.f32 0.0, %v7146
  %7148 = vmatmul.f32.gmra.mxu0 %v7037
  %v7149 = vpop.f32.mrf.mxu0
  %v7150 = vadd.f32 0.0, %v7149
  %7151 = vmatmul.f32.gmra.mxu0 %v7040
  %v7152 = vpop.f32.mrf.mxu0
  %v7153 = vadd.f32 0.0, %v7152
  %7154 = vmatmul.f32.gmra.mxu0 %v7043
  %v7155 = vpop.f32.mrf.mxu0
  %v7156 = vadd.f32 0.0, %v7155
  %7157 = vmatmul.f32.gmra.mxu0 %v7046
  %v7158 = vpop.f32.mrf.mxu0
  %v7159 = vadd.f32 0.0, %v7158
  %7160 = vmatmul.f32.gmra.mxu0 %v7049
  %v7161 = vpop.f32.mrf.mxu0
  %v7162 = vadd.f32 0.0, %v7161
  %7163 = vmatmul.f32.gmra.mxu0 %v7052
  %v7164 = vpop.f32.mrf.mxu0
  %v7165 = vadd.f32 0.0, %v7164
  %7166 = vmatmul.f32.gmra.mxu0 %v7055
  %v7167 = vpop.f32.mrf.mxu0
  %v7168 = vadd.f32 0.0, %v7167
  %7169 = vmatmul.f32.gmra.mxu0 %v7058
  %v7170 = vpop.f32.mrf.mxu0
  %v7171 = vadd.f32 0.0, %v7170
  %7172 = vmatmul.f32.gmra.mxu0 %v7061
  %v7173 = vpop.f32.mrf.mxu0
  %v7174 = vadd.f32 0.0, %v7173
  %7175 = vmatmul.f32.gmra.mxu0 %v7064
  %v7176 = vpop.f32.mrf.mxu0
  %v7177 = vadd.f32 0.0, %v7176
  %7178 = vmatmul.f32.gmra.mxu0 %v7067
  %v7179 = vpop.f32.mrf.mxu0
  %v7180 = vadd.f32 0.0, %v7179
  %7181 = vmatmul.f32.gmra.mxu0 %v7070
  %v7182 = vpop.f32.mrf.mxu0
  %v7183 = vadd.f32 0.0, %v7182
  %7184 = vdwg.mxu0
  %v7185 = vadd.f32 %v6910, %v7090
  %v7186 = vadd.f32 %v6911, %v7093
  %v7187 = vadd.f32 %v6912, %v7096
  %v7188 = vadd.f32 %v6913, %v7099
  %v7189 = vadd.f32 %v6914, %v7102
  %v7190 = vadd.f32 %v6915, %v7105
  %v7191 = vadd.f32 %v6916, %v7108
  %v7192 = vadd.f32 %v6917, %v7111
  %v7193 = vadd.f32 %v6918, %v7114
  %v7194 = vadd.f32 %v6919, %v7117
  %v7195 = vadd.f32 %v6920, %v7120
  %v7196 = vadd.f32 %v6921, %v7123
  %v7197 = vadd.f32 %v6922, %v7126
  %v7198 = vadd.f32 %v6923, %v7129
  %v7199 = vadd.f32 %v6924, %v7132
  %v7200 = vadd.f32 %v6925, %v7135
  %v7201 = vadd.f32 %v6926, %v7138
  %v7202 = vadd.f32 %v6927, %v7141
  %v7203 = vadd.f32 %v6928, %v7144
  %v7204 = vadd.f32 %v6929, %v7147
  %v7205 = vadd.f32 %v6930, %v7150
  %v7206 = vadd.f32 %v6931, %v7153
  %v7207 = vadd.f32 %v6932, %v7156
  %v7208 = vadd.f32 %v6933, %v7159
  %v7209 = vadd.f32 %v6934, %v7162
  %v7210 = vadd.f32 %v6935, %v7165
  %v7211 = vadd.f32 %v6936, %v7168
  %v7212 = vadd.f32 %v6937, %v7171
  %v7213 = vadd.f32 %v6938, %v7174
  %v7214 = vadd.f32 %v6939, %v7177
  %v7215 = vadd.f32 %v6940, %v7180
  %v7216 = vadd.f32 %v6941, %v7183
  %v7217 = vld [vmem:[%s5952 + $0x1] sm:$0xff]
  %v7218 = vld [vmem:[%s5952 + $0x9] sm:$0xff]
  %v7219 = vld [vmem:[%s5952 + $0x19] sm:$0xff]
  %v7220 = vld [vmem:[%s5952 + $0x21] sm:$0xff]
  %v7221 = vld [vmem:[%s5952 + $0x31] sm:$0xff]
  %v7222 = vld [vmem:[%s5952 + $0x39] sm:$0xff]
  %v7223 = vld [vmem:[%s5952 + $0x49] sm:$0xff]
  %v7224 = vld [vmem:[%s5952 + $0x51] sm:$0xff]
  %v7225 = vld [vmem:[%s5952 + $0x61] sm:$0xff]
  %v7226 = vld [vmem:[%s5952 + $0x69] sm:$0xff]
  %v7227 = vld [vmem:[%s5952 + $0x79] sm:$0xff]
  %v7228 = vld [vmem:[%s5952 + $0x81] sm:$0xff]
  %v7229 = vld [vmem:[%s5952 + $0x91] sm:$0xff]
  %v7230 = vld [vmem:[%s5952 + $0x99] sm:$0xff]
  %v7231 = vld [vmem:[%s5952 + $0xa9] sm:$0xff]
  %v7232 = vld [vmem:[%s5952 + $0xb1] sm:$0xff]
  %v7233 = vld [vmem:[%s5952 + $0xc1] sm:$0xff]
  %v7234 = vld [vmem:[%s5952 + $0xc9] sm:$0xff]
  %v7235 = vld [vmem:[%s5952 + $0xd9] sm:$0xff]
  %v7236 = vld [vmem:[%s5952 + $0xe1] sm:$0xff]
  %v7237 = vld [vmem:[%s5952 + $0xf1] sm:$0xff]
  %v7238 = vld [vmem:[%s5952 + $0xf9] sm:$0xff]
  %v7239 = vld [vmem:[%s5952 + $0x109] sm:$0xff]
  %v7240 = vld [vmem:[%s5952 + $0x111] sm:$0xff]
  %v7241 = vld [vmem:[%s5952 + $0x121] sm:$0xff]
  %v7242 = vld [vmem:[%s5952 + $0x129] sm:$0xff]
  %v7243 = vld [vmem:[%s5952 + $0x139] sm:$0xff]
  %v7244 = vld [vmem:[%s5952 + $0x141] sm:$0xff]
  %v7245 = vld [vmem:[%s5952 + $0x151] sm:$0xff]
  %v7246 = vld [vmem:[%s5952 + $0x159] sm:$0xff]
  %v7247 = vld [vmem:[%s5952 + $0x169] sm:$0xff]
  %v7248 = vld [vmem:[%s5952 + $0x171] sm:$0xff]
  %s7249 = scalar_lea.vmem %s5, 32
  %v7250 = vld [vmem:[%s7249] sm:$0xff]
  %v7252 = vsel %vm136, %v7217, 0
  %v7255 = vsel %vm136, %v7218, 0
  %v7258 = vsel %vm136, %v7219, 0
  %v7261 = vsel %vm136, %v7220, 0
  %v7264 = vsel %vm136, %v7221, 0
  %v7267 = vsel %vm136, %v7222, 0
  %v7270 = vsel %vm136, %v7223, 0
  %v7273 = vsel %vm136, %v7224, 0
  %v7276 = vsel %vm136, %v7225, 0
  %v7279 = vsel %vm136, %v7226, 0
  %v7282 = vsel %vm136, %v7227, 0
  %v7285 = vsel %vm136, %v7228, 0
  %v7288 = vsel %vm136, %v7229, 0
  %v7291 = vsel %vm136, %v7230, 0
  %v7294 = vsel %vm136, %v7231, 0
  %v7297 = vsel %vm136, %v7232, 0
  %v7300 = vsel %vm136, %v7233, 0
  %v7303 = vsel %vm136, %v7234, 0
  %v7306 = vsel %vm136, %v7235, 0
  %v7309 = vsel %vm136, %v7236, 0
  %v7312 = vsel %vm136, %v7237, 0
  %v7315 = vsel %vm136, %v7238, 0
  %v7318 = vsel %vm136, %v7239, 0
  %v7321 = vsel %vm136, %v7240, 0
  %v7324 = vsel %vm136, %v7241, 0
  %v7327 = vsel %vm136, %v7242, 0
  %v7330 = vsel %vm136, %v7243, 0
  %v7333 = vsel %vm136, %v7244, 0
  %v7336 = vsel %vm136, %v7245, 0
  %v7339 = vsel %vm136, %v7246, 0
  %v7342 = vsel %vm136, %v7247, 0
  %v7345 = vsel %vm136, %v7248, 0
  %7347 = vmatpush.msra.mxu0 0.0
  %7348 = vmatpush.msra.mxu0 0.0
  %7349 = vmatpush.msra.mxu0 0.0
  %7350 = vmatpush.msra.mxu0 0.0
  %7351 = vmatpush.msra.mxu0 0.0
  %7352 = vmatpush.msra.mxu0 0.0
  %7353 = vmatpush.msra.mxu0 0.0
  %7354 = vmatpush.msra.mxu0 0.0
  %7355 = vmatpush.msra.mxu0 0.0
  %7356 = vmatpush.msra.mxu0 0.0
  %7357 = vmatpush.msra.mxu0 0.0
  %7358 = vmatpush.msra.mxu0 0.0
  %7359 = vmatpush.msra.mxu0 0.0
  %7360 = vmatpush.msra.mxu0 0.0
  %7361 = vmatpush.msra.mxu0 0.0
  %7362 = vmatpush.msra.mxu0 %v7250
  %7363 = vmatmul.f32.gmra.mxu0 %v7252
  %v7364 = vpop.f32.mrf.mxu0
  %v7365 = vadd.f32 0.0, %v7364
  %7366 = vmatmul.f32.gmra.mxu0 %v7255
  %v7367 = vpop.f32.mrf.mxu0
  %v7368 = vadd.f32 0.0, %v7367
  %7369 = vmatmul.f32.gmra.mxu0 %v7258
  %v7370 = vpop.f32.mrf.mxu0
  %v7371 = vadd.f32 0.0, %v7370
  %7372 = vmatmul.f32.gmra.mxu0 %v7261
  %v7373 = vpop.f32.mrf.mxu0
  %v7374 = vadd.f32 0.0, %v7373
  %7375 = vmatmul.f32.gmra.mxu0 %v7264
  %v7376 = vpop.f32.mrf.mxu0
  %v7377 = vadd.f32 0.0, %v7376
  %7378 = vmatmul.f32.gmra.mxu0 %v7267
  %v7379 = vpop.f32.mrf.mxu0
  %v7380 = vadd.f32 0.0, %v7379
  %7381 = vmatmul.f32.gmra.mxu0 %v7270
  %v7382 = vpop.f32.mrf.mxu0
  %v7383 = vadd.f32 0.0, %v7382
  %7384 = vmatmul.f32.gmra.mxu0 %v7273
  %v7385 = vpop.f32.mrf.mxu0
  %v7386 = vadd.f32 0.0, %v7385
  %7387 = vmatmul.f32.gmra.mxu0 %v7276
  %v7388 = vpop.f32.mrf.mxu0
  %v7389 = vadd.f32 0.0, %v7388
  %7390 = vmatmul.f32.gmra.mxu0 %v7279
  %v7391 = vpop.f32.mrf.mxu0
  %v7392 = vadd.f32 0.0, %v7391
  %7393 = vmatmul.f32.gmra.mxu0 %v7282
  %v7394 = vpop.f32.mrf.mxu0
  %v7395 = vadd.f32 0.0, %v7394
  %7396 = vmatmul.f32.gmra.mxu0 %v7285
  %v7397 = vpop.f32.mrf.mxu0
  %v7398 = vadd.f32 0.0, %v7397
  %7399 = vmatmul.f32.gmra.mxu0 %v7288
  %v7400 = vpop.f32.mrf.mxu0
  %v7401 = vadd.f32 0.0, %v7400
  %7402 = vmatmul.f32.gmra.mxu0 %v7291
  %v7403 = vpop.f32.mrf.mxu0
  %v7404 = vadd.f32 0.0, %v7403
  %7405 = vmatmul.f32.gmra.mxu0 %v7294
  %v7406 = vpop.f32.mrf.mxu0
  %v7407 = vadd.f32 0.0, %v7406
  %7408 = vmatmul.f32.gmra.mxu0 %v7297
  %v7409 = vpop.f32.mrf.mxu0
  %v7410 = vadd.f32 0.0, %v7409
  %7411 = vmatmul.f32.gmra.mxu0 %v7300
  %v7412 = vpop.f32.mrf.mxu0
  %v7413 = vadd.f32 0.0, %v7412
  %7414 = vmatmul.f32.gmra.mxu0 %v7303
  %v7415 = vpop.f32.mrf.mxu0
  %v7416 = vadd.f32 0.0, %v7415
  %7417 = vmatmul.f32.gmra.mxu0 %v7306
  %v7418 = vpop.f32.mrf.mxu0
  %v7419 = vadd.f32 0.0, %v7418
  %7420 = vmatmul.f32.gmra.mxu0 %v7309
  %v7421 = vpop.f32.mrf.mxu0
  %v7422 = vadd.f32 0.0, %v7421
  %7423 = vmatmul.f32.gmra.mxu0 %v7312
  %v7424 = vpop.f32.mrf.mxu0
  %v7425 = vadd.f32 0.0, %v7424
  %7426 = vmatmul.f32.gmra.mxu0 %v7315
  %v7427 = vpop.f32.mrf.mxu0
  %v7428 = vadd.f32 0.0, %v7427
  %7429 = vmatmul.f32.gmra.mxu0 %v7318
  %v7430 = vpop.f32.mrf.mxu0
  %v7431 = vadd.f32 0.0, %v7430
  %7432 = vmatmul.f32.gmra.mxu0 %v7321
  %v7433 = vpop.f32.mrf.mxu0
  %v7434 = vadd.f32 0.0, %v7433
  %7435 = vmatmul.f32.gmra.mxu0 %v7324
  %v7436 = vpop.f32.mrf.mxu0
  %v7437 = vadd.f32 0.0, %v7436
  %7438 = vmatmul.f32.gmra.mxu0 %v7327
  %v7439 = vpop.f32.mrf.mxu0
  %v7440 = vadd.f32 0.0, %v7439
  %7441 = vmatmul.f32.gmra.mxu0 %v7330
  %v7442 = vpop.f32.mrf.mxu0
  %v7443 = vadd.f32 0.0, %v7442
  %7444 = vmatmul.f32.gmra.mxu0 %v7333
  %v7445 = vpop.f32.mrf.mxu0
  %v7446 = vadd.f32 0.0, %v7445
  %7447 = vmatmul.f32.gmra.mxu0 %v7336
  %v7448 = vpop.f32.mrf.mxu0
  %v7449 = vadd.f32 0.0, %v7448
  %7450 = vmatmul.f32.gmra.mxu0 %v7339
  %v7451 = vpop.f32.mrf.mxu0
  %v7452 = vadd.f32 0.0, %v7451
  %7453 = vmatmul.f32.gmra.mxu0 %v7342
  %v7454 = vpop.f32.mrf.mxu0
  %v7455 = vadd.f32 0.0, %v7454
  %7456 = vmatmul.f32.gmra.mxu0 %v7345
  %v7457 = vpop.f32.mrf.mxu0
  %v7458 = vadd.f32 0.0, %v7457
  %7459 = vdwg.mxu0
  %v7460 = vadd.f32 %v7185, %v7365
  %v7461 = vadd.f32 %v7186, %v7368
  %v7462 = vadd.f32 %v7187, %v7371
  %v7463 = vadd.f32 %v7188, %v7374
  %v7464 = vadd.f32 %v7189, %v7377
  %v7465 = vadd.f32 %v7190, %v7380
  %v7466 = vadd.f32 %v7191, %v7383
  %v7467 = vadd.f32 %v7192, %v7386
  %v7468 = vadd.f32 %v7193, %v7389
  %v7469 = vadd.f32 %v7194, %v7392
  %v7470 = vadd.f32 %v7195, %v7395
  %v7471 = vadd.f32 %v7196, %v7398
  %v7472 = vadd.f32 %v7197, %v7401
  %v7473 = vadd.f32 %v7198, %v7404
  %v7474 = vadd.f32 %v7199, %v7407
  %v7475 = vadd.f32 %v7200, %v7410
  %v7476 = vadd.f32 %v7201, %v7413
  %v7477 = vadd.f32 %v7202, %v7416
  %v7478 = vadd.f32 %v7203, %v7419
  %v7479 = vadd.f32 %v7204, %v7422
  %v7480 = vadd.f32 %v7205, %v7425
  %v7481 = vadd.f32 %v7206, %v7428
  %v7482 = vadd.f32 %v7207, %v7431
  %v7483 = vadd.f32 %v7208, %v7434
  %v7484 = vadd.f32 %v7209, %v7437
  %v7485 = vadd.f32 %v7210, %v7440
  %v7486 = vadd.f32 %v7211, %v7443
  %v7487 = vadd.f32 %v7212, %v7446
  %v7488 = vadd.f32 %v7213, %v7449
  %v7489 = vadd.f32 %v7214, %v7452
  %v7490 = vadd.f32 %v7215, %v7455
  %v7491 = vadd.f32 %v7216, %v7458
  %v7492 = vld [vmem:[%s5952 + $0x2] sm:$0xff]
  %v7493 = vld [vmem:[%s5952 + $0xa] sm:$0xff]
  %v7494 = vld [vmem:[%s5952 + $0x1a] sm:$0xff]
  %v7495 = vld [vmem:[%s5952 + $0x22] sm:$0xff]
  %v7496 = vld [vmem:[%s5952 + $0x32] sm:$0xff]
  %v7497 = vld [vmem:[%s5952 + $0x3a] sm:$0xff]
  %v7498 = vld [vmem:[%s5952 + $0x4a] sm:$0xff]
  %v7499 = vld [vmem:[%s5952 + $0x52] sm:$0xff]
  %v7500 = vld [vmem:[%s5952 + $0x62] sm:$0xff]
  %v7501 = vld [vmem:[%s5952 + $0x6a] sm:$0xff]
  %v7502 = vld [vmem:[%s5952 + $0x7a] sm:$0xff]
  %v7503 = vld [vmem:[%s5952 + $0x82] sm:$0xff]
  %v7504 = vld [vmem:[%s5952 + $0x92] sm:$0xff]
  %v7505 = vld [vmem:[%s5952 + $0x9a] sm:$0xff]
  %v7506 = vld [vmem:[%s5952 + $0xaa] sm:$0xff]
  %v7507 = vld [vmem:[%s5952 + $0xb2] sm:$0xff]
  %v7508 = vld [vmem:[%s5952 + $0xc2] sm:$0xff]
  %v7509 = vld [vmem:[%s5952 + $0xca] sm:$0xff]
  %v7510 = vld [vmem:[%s5952 + $0xda] sm:$0xff]
  %v7511 = vld [vmem:[%s5952 + $0xe2] sm:$0xff]
  %v7512 = vld [vmem:[%s5952 + $0xf2] sm:$0xff]
  %v7513 = vld [vmem:[%s5952 + $0xfa] sm:$0xff]
  %v7514 = vld [vmem:[%s5952 + $0x10a] sm:$0xff]
  %v7515 = vld [vmem:[%s5952 + $0x112] sm:$0xff]
  %v7516 = vld [vmem:[%s5952 + $0x122] sm:$0xff]
  %v7517 = vld [vmem:[%s5952 + $0x12a] sm:$0xff]
  %v7518 = vld [vmem:[%s5952 + $0x13a] sm:$0xff]
  %v7519 = vld [vmem:[%s5952 + $0x142] sm:$0xff]
  %v7520 = vld [vmem:[%s5952 + $0x152] sm:$0xff]
  %v7521 = vld [vmem:[%s5952 + $0x15a] sm:$0xff]
  %v7522 = vld [vmem:[%s5952 + $0x16a] sm:$0xff]
  %v7523 = vld [vmem:[%s5952 + $0x172] sm:$0xff]
  %s7524 = scalar_lea.vmem %s5, 40
  %v7525 = vld [vmem:[%s7524] sm:$0xff]
  %v7527 = vsel %vm136, %v7492, 0
  %v7530 = vsel %vm136, %v7493, 0
  %v7533 = vsel %vm136, %v7494, 0
  %v7536 = vsel %vm136, %v7495, 0
  %v7539 = vsel %vm136, %v7496, 0
  %v7542 = vsel %vm136, %v7497, 0
  %v7545 = vsel %vm136, %v7498, 0
  %v7548 = vsel %vm136, %v7499, 0
  %v7551 = vsel %vm136, %v7500, 0
  %v7554 = vsel %vm136, %v7501, 0
  %v7557 = vsel %vm136, %v7502, 0
  %v7560 = vsel %vm136, %v7503, 0
  %v7563 = vsel %vm136, %v7504, 0
  %v7566 = vsel %vm136, %v7505, 0
  %v7569 = vsel %vm136, %v7506, 0
  %v7572 = vsel %vm136, %v7507, 0
  %v7575 = vsel %vm136, %v7508, 0
  %v7578 = vsel %vm136, %v7509, 0
  %v7581 = vsel %vm136, %v7510, 0
  %v7584 = vsel %vm136, %v7511, 0
  %v7587 = vsel %vm136, %v7512, 0
  %v7590 = vsel %vm136, %v7513, 0
  %v7593 = vsel %vm136, %v7514, 0
  %v7596 = vsel %vm136, %v7515, 0
  %v7599 = vsel %vm136, %v7516, 0
  %v7602 = vsel %vm136, %v7517, 0
  %v7605 = vsel %vm136, %v7518, 0
  %v7608 = vsel %vm136, %v7519, 0
  %v7611 = vsel %vm136, %v7520, 0
  %v7614 = vsel %vm136, %v7521, 0
  %v7617 = vsel %vm136, %v7522, 0
  %v7620 = vsel %vm136, %v7523, 0
  %7622 = vmatpush.msra.mxu0 0.0
  %7623 = vmatpush.msra.mxu0 0.0
  %7624 = vmatpush.msra.mxu0 0.0
  %7625 = vmatpush.msra.mxu0 0.0
  %7626 = vmatpush.msra.mxu0 0.0
  %7627 = vmatpush.msra.mxu0 0.0
  %7628 = vmatpush.msra.mxu0 0.0
  %7629 = vmatpush.msra.mxu0 0.0
  %7630 = vmatpush.msra.mxu0 0.0
  %7631 = vmatpush.msra.mxu0 0.0
  %7632 = vmatpush.msra.mxu0 0.0
  %7633 = vmatpush.msra.mxu0 0.0
  %7634 = vmatpush.msra.mxu0 0.0
  %7635 = vmatpush.msra.mxu0 0.0
  %7636 = vmatpush.msra.mxu0 0.0
  %7637 = vmatpush.msra.mxu0 %v7525
  %7638 = vmatmul.f32.gmra.mxu0 %v7527
  %v7639 = vpop.f32.mrf.mxu0
  %v7640 = vadd.f32 0.0, %v7639
  %7641 = vmatmul.f32.gmra.mxu0 %v7530
  %v7642 = vpop.f32.mrf.mxu0
  %v7643 = vadd.f32 0.0, %v7642
  %7644 = vmatmul.f32.gmra.mxu0 %v7533
  %v7645 = vpop.f32.mrf.mxu0
  %v7646 = vadd.f32 0.0, %v7645
  %7647 = vmatmul.f32.gmra.mxu0 %v7536
  %v7648 = vpop.f32.mrf.mxu0
  %v7649 = vadd.f32 0.0, %v7648
  %7650 = vmatmul.f32.gmra.mxu0 %v7539
  %v7651 = vpop.f32.mrf.mxu0
  %v7652 = vadd.f32 0.0, %v7651
  %7653 = vmatmul.f32.gmra.mxu0 %v7542
  %v7654 = vpop.f32.mrf.mxu0
  %v7655 = vadd.f32 0.0, %v7654
  %7656 = vmatmul.f32.gmra.mxu0 %v7545
  %v7657 = vpop.f32.mrf.mxu0
  %v7658 = vadd.f32 0.0, %v7657
  %7659 = vmatmul.f32.gmra.mxu0 %v7548
  %v7660 = vpop.f32.mrf.mxu0
  %v7661 = vadd.f32 0.0, %v7660
  %7662 = vmatmul.f32.gmra.mxu0 %v7551
  %v7663 = vpop.f32.mrf.mxu0
  %v7664 = vadd.f32 0.0, %v7663
  %7665 = vmatmul.f32.gmra.mxu0 %v7554
  %v7666 = vpop.f32.mrf.mxu0
  %v7667 = vadd.f32 0.0, %v7666
  %7668 = vmatmul.f32.gmra.mxu0 %v7557
  %v7669 = vpop.f32.mrf.mxu0
  %v7670 = vadd.f32 0.0, %v7669
  %7671 = vmatmul.f32.gmra.mxu0 %v7560
  %v7672 = vpop.f32.mrf.mxu0
  %v7673 = vadd.f32 0.0, %v7672
  %7674 = vmatmul.f32.gmra.mxu0 %v7563
  %v7675 = vpop.f32.mrf.mxu0
  %v7676 = vadd.f32 0.0, %v7675
  %7677 = vmatmul.f32.gmra.mxu0 %v7566
  %v7678 = vpop.f32.mrf.mxu0
  %v7679 = vadd.f32 0.0, %v7678
  %7680 = vmatmul.f32.gmra.mxu0 %v7569
  %v7681 = vpop.f32.mrf.mxu0
  %v7682 = vadd.f32 0.0, %v7681
  %7683 = vmatmul.f32.gmra.mxu0 %v7572
  %v7684 = vpop.f32.mrf.mxu0
  %v7685 = vadd.f32 0.0, %v7684
  %7686 = vmatmul.f32.gmra.mxu0 %v7575
  %v7687 = vpop.f32.mrf.mxu0
  %v7688 = vadd.f32 0.0, %v7687
  %7689 = vmatmul.f32.gmra.mxu0 %v7578
  %v7690 = vpop.f32.mrf.mxu0
  %v7691 = vadd.f32 0.0, %v7690
  %7692 = vmatmul.f32.gmra.mxu0 %v7581
  %v7693 = vpop.f32.mrf.mxu0
  %v7694 = vadd.f32 0.0, %v7693
  %7695 = vmatmul.f32.gmra.mxu0 %v7584
  %v7696 = vpop.f32.mrf.mxu0
  %v7697 = vadd.f32 0.0, %v7696
  %7698 = vmatmul.f32.gmra.mxu0 %v7587
  %v7699 = vpop.f32.mrf.mxu0
  %v7700 = vadd.f32 0.0, %v7699
  %7701 = vmatmul.f32.gmra.mxu0 %v7590
  %v7702 = vpop.f32.mrf.mxu0
  %v7703 = vadd.f32 0.0, %v7702
  %7704 = vmatmul.f32.gmra.mxu0 %v7593
  %v7705 = vpop.f32.mrf.mxu0
  %v7706 = vadd.f32 0.0, %v7705
  %7707 = vmatmul.f32.gmra.mxu0 %v7596
  %v7708 = vpop.f32.mrf.mxu0
  %v7709 = vadd.f32 0.0, %v7708
  %7710 = vmatmul.f32.gmra.mxu0 %v7599
  %v7711 = vpop.f32.mrf.mxu0
  %v7712 = vadd.f32 0.0, %v7711
  %7713 = vmatmul.f32.gmra.mxu0 %v7602
  %v7714 = vpop.f32.mrf.mxu0
  %v7715 = vadd.f32 0.0, %v7714
  %7716 = vmatmul.f32.gmra.mxu0 %v7605
  %v7717 = vpop.f32.mrf.mxu0
  %v7718 = vadd.f32 0.0, %v7717
  %7719 = vmatmul.f32.gmra.mxu0 %v7608
  %v7720 = vpop.f32.mrf.mxu0
  %v7721 = vadd.f32 0.0, %v7720
  %7722 = vmatmul.f32.gmra.mxu0 %v7611
  %v7723 = vpop.f32.mrf.mxu0
  %v7724 = vadd.f32 0.0, %v7723
  %7725 = vmatmul.f32.gmra.mxu0 %v7614
  %v7726 = vpop.f32.mrf.mxu0
  %v7727 = vadd.f32 0.0, %v7726
  %7728 = vmatmul.f32.gmra.mxu0 %v7617
  %v7729 = vpop.f32.mrf.mxu0
  %v7730 = vadd.f32 0.0, %v7729
  %7731 = vmatmul.f32.gmra.mxu0 %v7620
  %v7732 = vpop.f32.mrf.mxu0
  %v7733 = vadd.f32 0.0, %v7732
  %7734 = vdwg.mxu0
  %v7735 = vadd.f32 %v7460, %v7640
  %v7736 = vadd.f32 %v7461, %v7643
  %v7737 = vadd.f32 %v7462, %v7646
  %v7738 = vadd.f32 %v7463, %v7649
  %v7739 = vadd.f32 %v7464, %v7652
  %v7740 = vadd.f32 %v7465, %v7655
  %v7741 = vadd.f32 %v7466, %v7658
  %v7742 = vadd.f32 %v7467, %v7661
  %v7743 = vadd.f32 %v7468, %v7664
  %v7744 = vadd.f32 %v7469, %v7667
  %v7745 = vadd.f32 %v7470, %v7670
  %v7746 = vadd.f32 %v7471, %v7673
  %v7747 = vadd.f32 %v7472, %v7676
  %v7748 = vadd.f32 %v7473, %v7679
  %v7749 = vadd.f32 %v7474, %v7682
  %v7750 = vadd.f32 %v7475, %v7685
  %v7751 = vadd.f32 %v7476, %v7688
  %v7752 = vadd.f32 %v7477, %v7691
  %v7753 = vadd.f32 %v7478, %v7694
  %v7754 = vadd.f32 %v7479, %v7697
  %v7755 = vadd.f32 %v7480, %v7700
  %v7756 = vadd.f32 %v7481, %v7703
  %v7757 = vadd.f32 %v7482, %v7706
  %v7758 = vadd.f32 %v7483, %v7709
  %v7759 = vadd.f32 %v7484, %v7712
  %v7760 = vadd.f32 %v7485, %v7715
  %v7761 = vadd.f32 %v7486, %v7718
  %v7762 = vadd.f32 %v7487, %v7721
  %v7763 = vadd.f32 %v7488, %v7724
  %v7764 = vadd.f32 %v7489, %v7727
  %v7765 = vadd.f32 %v7490, %v7730
  %v7766 = vadd.f32 %v7491, %v7733
  %s7767 = scalar_lea.vmem [#allocation3], 48
  %v7768 = vld [vmem:[%s7767] sm:$0xff]
  %v7769 = vld [vmem:[%s7767 + $0x8] sm:$0xff]
  %v7770 = vld [vmem:[%s7767 + $0x18] sm:$0xff]
  %v7771 = vld [vmem:[%s7767 + $0x20] sm:$0xff]
  %v7772 = vld [vmem:[%s7767 + $0x30] sm:$0xff]
  %v7773 = vld [vmem:[%s7767 + $0x38] sm:$0xff]
  %v7774 = vld [vmem:[%s7767 + $0x48] sm:$0xff]
  %v7775 = vld [vmem:[%s7767 + $0x50] sm:$0xff]
  %v7776 = vld [vmem:[%s7767 + $0x60] sm:$0xff]
  %v7777 = vld [vmem:[%s7767 + $0x68] sm:$0xff]
  %v7778 = vld [vmem:[%s7767 + $0x78] sm:$0xff]
  %v7779 = vld [vmem:[%s7767 + $0x80] sm:$0xff]
  %v7780 = vld [vmem:[%s7767 + $0x90] sm:$0xff]
  %v7781 = vld [vmem:[%s7767 + $0x98] sm:$0xff]
  %v7782 = vld [vmem:[%s7767 + $0xa8] sm:$0xff]
  %v7783 = vld [vmem:[%s7767 + $0xb0] sm:$0xff]
  %v7784 = vld [vmem:[%s7767 + $0xc0] sm:$0xff]
  %v7785 = vld [vmem:[%s7767 + $0xc8] sm:$0xff]
  %v7786 = vld [vmem:[%s7767 + $0xd8] sm:$0xff]
  %v7787 = vld [vmem:[%s7767 + $0xe0] sm:$0xff]
  %v7788 = vld [vmem:[%s7767 + $0xf0] sm:$0xff]
  %v7789 = vld [vmem:[%s7767 + $0xf8] sm:$0xff]
  %v7790 = vld [vmem:[%s7767 + $0x108] sm:$0xff]
  %v7791 = vld [vmem:[%s7767 + $0x110] sm:$0xff]
  %v7792 = vld [vmem:[%s7767 + $0x120] sm:$0xff]
  %v7793 = vld [vmem:[%s7767 + $0x128] sm:$0xff]
  %v7794 = vld [vmem:[%s7767 + $0x138] sm:$0xff]
  %v7795 = vld [vmem:[%s7767 + $0x140] sm:$0xff]
  %v7796 = vld [vmem:[%s7767 + $0x150] sm:$0xff]
  %v7797 = vld [vmem:[%s7767 + $0x158] sm:$0xff]
  %v7798 = vld [vmem:[%s7767 + $0x168] sm:$0xff]
  %v7799 = vld [vmem:[%s7767 + $0x170] sm:$0xff]
  %s7800 = scalar_lea.vmem %s5, 48
  %v7801 = vld [vmem:[%s7800] sm:$0xff]
  %v7803 = vsel %vm136, %v7768, 0
  %v7806 = vsel %vm136, %v7769, 0
  %v7809 = vsel %vm136, %v7770, 0
  %v7812 = vsel %vm136, %v7771, 0
  %v7815 = vsel %vm136, %v7772, 0
  %v7818 = vsel %vm136, %v7773, 0
  %v7821 = vsel %vm136, %v7774, 0
  %v7824 = vsel %vm136, %v7775, 0
  %v7827 = vsel %vm136, %v7776, 0
  %v7830 = vsel %vm136, %v7777, 0
  %v7833 = vsel %vm136, %v7778, 0
  %v7836 = vsel %vm136, %v7779, 0
  %v7839 = vsel %vm136, %v7780, 0
  %v7842 = vsel %vm136, %v7781, 0
  %v7845 = vsel %vm136, %v7782, 0
  %v7848 = vsel %vm136, %v7783, 0
  %v7851 = vsel %vm136, %v7784, 0
  %v7854 = vsel %vm136, %v7785, 0
  %v7857 = vsel %vm136, %v7786, 0
  %v7860 = vsel %vm136, %v7787, 0
  %v7863 = vsel %vm136, %v7788, 0
  %v7866 = vsel %vm136, %v7789, 0
  %v7869 = vsel %vm136, %v7790, 0
  %v7872 = vsel %vm136, %v7791, 0
  %v7875 = vsel %vm136, %v7792, 0
  %v7878 = vsel %vm136, %v7793, 0
  %v7881 = vsel %vm136, %v7794, 0
  %v7884 = vsel %vm136, %v7795, 0
  %v7887 = vsel %vm136, %v7796, 0
  %v7890 = vsel %vm136, %v7797, 0
  %v7893 = vsel %vm136, %v7798, 0
  %v7896 = vsel %vm136, %v7799, 0
  %7898 = vmatpush.msra.mxu0 0.0
  %7899 = vmatpush.msra.mxu0 0.0
  %7900 = vmatpush.msra.mxu0 0.0
  %7901 = vmatpush.msra.mxu0 0.0
  %7902 = vmatpush.msra.mxu0 0.0
  %7903 = vmatpush.msra.mxu0 0.0
  %7904 = vmatpush.msra.mxu0 0.0
  %7905 = vmatpush.msra.mxu0 0.0
  %7906 = vmatpush.msra.mxu0 0.0
  %7907 = vmatpush.msra.mxu0 0.0
  %7908 = vmatpush.msra.mxu0 0.0
  %7909 = vmatpush.msra.mxu0 0.0
  %7910 = vmatpush.msra.mxu0 0.0
  %7911 = vmatpush.msra.mxu0 0.0
  %7912 = vmatpush.msra.mxu0 0.0
  %7913 = vmatpush.msra.mxu0 %v7801
  %7914 = vmatmul.f32.gmra.mxu0 %v7803
  %v7915 = vpop.f32.mrf.mxu0
  %v7916 = vadd.f32 0.0, %v7915
  %7917 = vmatmul.f32.gmra.mxu0 %v7806
  %v7918 = vpop.f32.mrf.mxu0
  %v7919 = vadd.f32 0.0, %v7918
  %7920 = vmatmul.f32.gmra.mxu0 %v7809
  %v7921 = vpop.f32.mrf.mxu0
  %v7922 = vadd.f32 0.0, %v7921
  %7923 = vmatmul.f32.gmra.mxu0 %v7812
  %v7924 = vpop.f32.mrf.mxu0
  %v7925 = vadd.f32 0.0, %v7924
  %7926 = vmatmul.f32.gmra.mxu0 %v7815
  %v7927 = vpop.f32.mrf.mxu0
  %v7928 = vadd.f32 0.0, %v7927
  %7929 = vmatmul.f32.gmra.mxu0 %v7818
  %v7930 = vpop.f32.mrf.mxu0
  %v7931 = vadd.f32 0.0, %v7930
  %7932 = vmatmul.f32.gmra.mxu0 %v7821
  %v7933 = vpop.f32.mrf.mxu0
  %v7934 = vadd.f32 0.0, %v7933
  %7935 = vmatmul.f32.gmra.mxu0 %v7824
  %v7936 = vpop.f32.mrf.mxu0
  %v7937 = vadd.f32 0.0, %v7936
  %7938 = vmatmul.f32.gmra.mxu0 %v7827
  %v7939 = vpop.f32.mrf.mxu0
  %v7940 = vadd.f32 0.0, %v7939
  %7941 = vmatmul.f32.gmra.mxu0 %v7830
  %v7942 = vpop.f32.mrf.mxu0
  %v7943 = vadd.f32 0.0, %v7942
  %7944 = vmatmul.f32.gmra.mxu0 %v7833
  %v7945 = vpop.f32.mrf.mxu0
  %v7946 = vadd.f32 0.0, %v7945
  %7947 = vmatmul.f32.gmra.mxu0 %v7836
  %v7948 = vpop.f32.mrf.mxu0
  %v7949 = vadd.f32 0.0, %v7948
  %7950 = vmatmul.f32.gmra.mxu0 %v7839
  %v7951 = vpop.f32.mrf.mxu0
  %v7952 = vadd.f32 0.0, %v7951
  %7953 = vmatmul.f32.gmra.mxu0 %v7842
  %v7954 = vpop.f32.mrf.mxu0
  %v7955 = vadd.f32 0.0, %v7954
  %7956 = vmatmul.f32.gmra.mxu0 %v7845
  %v7957 = vpop.f32.mrf.mxu0
  %v7958 = vadd.f32 0.0, %v7957
  %7959 = vmatmul.f32.gmra.mxu0 %v7848
  %v7960 = vpop.f32.mrf.mxu0
  %v7961 = vadd.f32 0.0, %v7960
  %7962 = vmatmul.f32.gmra.mxu0 %v7851
  %v7963 = vpop.f32.mrf.mxu0
  %v7964 = vadd.f32 0.0, %v7963
  %7965 = vmatmul.f32.gmra.mxu0 %v7854
  %v7966 = vpop.f32.mrf.mxu0
  %v7967 = vadd.f32 0.0, %v7966
  %7968 = vmatmul.f32.gmra.mxu0 %v7857
  %v7969 = vpop.f32.mrf.mxu0
  %v7970 = vadd.f32 0.0, %v7969
  %7971 = vmatmul.f32.gmra.mxu0 %v7860
  %v7972 = vpop.f32.mrf.mxu0
  %v7973 = vadd.f32 0.0, %v7972
  %7974 = vmatmul.f32.gmra.mxu0 %v7863
  %v7975 = vpop.f32.mrf.mxu0
  %v7976 = vadd.f32 0.0, %v7975
  %7977 = vmatmul.f32.gmra.mxu0 %v7866
  %v7978 = vpop.f32.mrf.mxu0
  %v7979 = vadd.f32 0.0, %v7978
  %7980 = vmatmul.f32.gmra.mxu0 %v7869
  %v7981 = vpop.f32.mrf.mxu0
  %v7982 = vadd.f32 0.0, %v7981
  %7983 = vmatmul.f32.gmra.mxu0 %v7872
  %v7984 = vpop.f32.mrf.mxu0
  %v7985 = vadd.f32 0.0, %v7984
  %7986 = vmatmul.f32.gmra.mxu0 %v7875
  %v7987 = vpop.f32.mrf.mxu0
  %v7988 = vadd.f32 0.0, %v7987
  %7989 = vmatmul.f32.gmra.mxu0 %v7878
  %v7990 = vpop.f32.mrf.mxu0
  %v7991 = vadd.f32 0.0, %v7990
  %7992 = vmatmul.f32.gmra.mxu0 %v7881
  %v7993 = vpop.f32.mrf.mxu0
  %v7994 = vadd.f32 0.0, %v7993
  %7995 = vmatmul.f32.gmra.mxu0 %v7884
  %v7996 = vpop.f32.mrf.mxu0
  %v7997 = vadd.f32 0.0, %v7996
  %7998 = vmatmul.f32.gmra.mxu0 %v7887
  %v7999 = vpop.f32.mrf.mxu0
  %v8000 = vadd.f32 0.0, %v7999
  %8001 = vmatmul.f32.gmra.mxu0 %v7890
  %v8002 = vpop.f32.mrf.mxu0
  %v8003 = vadd.f32 0.0, %v8002
  %8004 = vmatmul.f32.gmra.mxu0 %v7893
  %v8005 = vpop.f32.mrf.mxu0
  %v8006 = vadd.f32 0.0, %v8005
  %8007 = vmatmul.f32.gmra.mxu0 %v7896
  %v8008 = vpop.f32.mrf.mxu0
  %v8009 = vadd.f32 0.0, %v8008
  %8010 = vdwg.mxu0
  %v8011 = vadd.f32 %v7735, %v7916
  %v8012 = vadd.f32 %v7736, %v7919
  %v8013 = vadd.f32 %v7737, %v7922
  %v8014 = vadd.f32 %v7738, %v7925
  %v8015 = vadd.f32 %v7739, %v7928
  %v8016 = vadd.f32 %v7740, %v7931
  %v8017 = vadd.f32 %v7741, %v7934
  %v8018 = vadd.f32 %v7742, %v7937
  %v8019 = vadd.f32 %v7743, %v7940
  %v8020 = vadd.f32 %v7744, %v7943
  %v8021 = vadd.f32 %v7745, %v7946
  %v8022 = vadd.f32 %v7746, %v7949
  %v8023 = vadd.f32 %v7747, %v7952
  %v8024 = vadd.f32 %v7748, %v7955
  %v8025 = vadd.f32 %v7749, %v7958
  %v8026 = vadd.f32 %v7750, %v7961
  %v8027 = vadd.f32 %v7751, %v7964
  %v8028 = vadd.f32 %v7752, %v7967
  %v8029 = vadd.f32 %v7753, %v7970
  %v8030 = vadd.f32 %v7754, %v7973
  %v8031 = vadd.f32 %v7755, %v7976
  %v8032 = vadd.f32 %v7756, %v7979
  %v8033 = vadd.f32 %v7757, %v7982
  %v8034 = vadd.f32 %v7758, %v7985
  %v8035 = vadd.f32 %v7759, %v7988
  %v8036 = vadd.f32 %v7760, %v7991
  %v8037 = vadd.f32 %v7761, %v7994
  %v8038 = vadd.f32 %v7762, %v7997
  %v8039 = vadd.f32 %v7763, %v8000
  %v8040 = vadd.f32 %v7764, %v8003
  %v8041 = vadd.f32 %v7765, %v8006
  %v8042 = vadd.f32 %v7766, %v8009
  %v8043 = vld [vmem:[%s7767 + $0x1] sm:$0xff]
  %v8044 = vld [vmem:[%s7767 + $0x9] sm:$0xff]
  %v8045 = vld [vmem:[%s7767 + $0x19] sm:$0xff]
  %v8046 = vld [vmem:[%s7767 + $0x21] sm:$0xff]
  %v8047 = vld [vmem:[%s7767 + $0x31] sm:$0xff]
  %v8048 = vld [vmem:[%s7767 + $0x39] sm:$0xff]
  %v8049 = vld [vmem:[%s7767 + $0x49] sm:$0xff]
  %v8050 = vld [vmem:[%s7767 + $0x51] sm:$0xff]
  %v8051 = vld [vmem:[%s7767 + $0x61] sm:$0xff]
  %v8052 = vld [vmem:[%s7767 + $0x69] sm:$0xff]
  %v8053 = vld [vmem:[%s7767 + $0x79] sm:$0xff]
  %v8054 = vld [vmem:[%s7767 + $0x81] sm:$0xff]
  %v8055 = vld [vmem:[%s7767 + $0x91] sm:$0xff]
  %v8056 = vld [vmem:[%s7767 + $0x99] sm:$0xff]
  %v8057 = vld [vmem:[%s7767 + $0xa9] sm:$0xff]
  %v8058 = vld [vmem:[%s7767 + $0xb1] sm:$0xff]
  %v8059 = vld [vmem:[%s7767 + $0xc1] sm:$0xff]
  %v8060 = vld [vmem:[%s7767 + $0xc9] sm:$0xff]
  %v8061 = vld [vmem:[%s7767 + $0xd9] sm:$0xff]
  %v8062 = vld [vmem:[%s7767 + $0xe1] sm:$0xff]
  %v8063 = vld [vmem:[%s7767 + $0xf1] sm:$0xff]
  %v8064 = vld [vmem:[%s7767 + $0xf9] sm:$0xff]
  %v8065 = vld [vmem:[%s7767 + $0x109] sm:$0xff]
  %v8066 = vld [vmem:[%s7767 + $0x111] sm:$0xff]
  %v8067 = vld [vmem:[%s7767 + $0x121] sm:$0xff]
  %v8068 = vld [vmem:[%s7767 + $0x129] sm:$0xff]
  %v8069 = vld [vmem:[%s7767 + $0x139] sm:$0xff]
  %v8070 = vld [vmem:[%s7767 + $0x141] sm:$0xff]
  %v8071 = vld [vmem:[%s7767 + $0x151] sm:$0xff]
  %v8072 = vld [vmem:[%s7767 + $0x159] sm:$0xff]
  %v8073 = vld [vmem:[%s7767 + $0x169] sm:$0xff]
  %v8074 = vld [vmem:[%s7767 + $0x171] sm:$0xff]
  %s8075 = scalar_lea.vmem %s5, 56
  %v8076 = vld [vmem:[%s8075] sm:$0xff]
  %v8078 = vsel %vm136, %v8043, 0
  %v8081 = vsel %vm136, %v8044, 0
  %v8084 = vsel %vm136, %v8045, 0
  %v8087 = vsel %vm136, %v8046, 0
  %v8090 = vsel %vm136, %v8047, 0
  %v8093 = vsel %vm136, %v8048, 0
  %v8096 = vsel %vm136, %v8049, 0
  %v8099 = vsel %vm136, %v8050, 0
  %v8102 = vsel %vm136, %v8051, 0
  %v8105 = vsel %vm136, %v8052, 0
  %v8108 = vsel %vm136, %v8053, 0
  %v8111 = vsel %vm136, %v8054, 0
  %v8114 = vsel %vm136, %v8055, 0
  %v8117 = vsel %vm136, %v8056, 0
  %v8120 = vsel %vm136, %v8057, 0
  %v8123 = vsel %vm136, %v8058, 0
  %v8126 = vsel %vm136, %v8059, 0
  %v8129 = vsel %vm136, %v8060, 0
  %v8132 = vsel %vm136, %v8061, 0
  %v8135 = vsel %vm136, %v8062, 0
  %v8138 = vsel %vm136, %v8063, 0
  %v8141 = vsel %vm136, %v8064, 0
  %v8144 = vsel %vm136, %v8065, 0
  %v8147 = vsel %vm136, %v8066, 0
  %v8150 = vsel %vm136, %v8067, 0
  %v8153 = vsel %vm136, %v8068, 0
  %v8156 = vsel %vm136, %v8069, 0
  %v8159 = vsel %vm136, %v8070, 0
  %v8162 = vsel %vm136, %v8071, 0
  %v8165 = vsel %vm136, %v8072, 0
  %v8168 = vsel %vm136, %v8073, 0
  %v8171 = vsel %vm136, %v8074, 0
  %8173 = vmatpush.msra.mxu0 0.0
  %8174 = vmatpush.msra.mxu0 0.0
  %8175 = vmatpush.msra.mxu0 0.0
  %8176 = vmatpush.msra.mxu0 0.0
  %8177 = vmatpush.msra.mxu0 0.0
  %8178 = vmatpush.msra.mxu0 0.0
  %8179 = vmatpush.msra.mxu0 0.0
  %8180 = vmatpush.msra.mxu0 0.0
  %8181 = vmatpush.msra.mxu0 0.0
  %8182 = vmatpush.msra.mxu0 0.0
  %8183 = vmatpush.msra.mxu0 0.0
  %8184 = vmatpush.msra.mxu0 0.0
  %8185 = vmatpush.msra.mxu0 0.0
  %8186 = vmatpush.msra.mxu0 0.0
  %8187 = vmatpush.msra.mxu0 0.0
  %8188 = vmatpush.msra.mxu0 %v8076
  %8189 = vmatmul.f32.gmra.mxu0 %v8078
  %v8190 = vpop.f32.mrf.mxu0
  %v8191 = vadd.f32 0.0, %v8190
  %8192 = vmatmul.f32.gmra.mxu0 %v8081
  %v8193 = vpop.f32.mrf.mxu0
  %v8194 = vadd.f32 0.0, %v8193
  %8195 = vmatmul.f32.gmra.mxu0 %v8084
  %v8196 = vpop.f32.mrf.mxu0
  %v8197 = vadd.f32 0.0, %v8196
  %8198 = vmatmul.f32.gmra.mxu0 %v8087
  %v8199 = vpop.f32.mrf.mxu0
  %v8200 = vadd.f32 0.0, %v8199
  %8201 = vmatmul.f32.gmra.mxu0 %v8090
  %v8202 = vpop.f32.mrf.mxu0
  %v8203 = vadd.f32 0.0, %v8202
  %8204 = vmatmul.f32.gmra.mxu0 %v8093
  %v8205 = vpop.f32.mrf.mxu0
  %v8206 = vadd.f32 0.0, %v8205
  %8207 = vmatmul.f32.gmra.mxu0 %v8096
  %v8208 = vpop.f32.mrf.mxu0
  %v8209 = vadd.f32 0.0, %v8208
  %8210 = vmatmul.f32.gmra.mxu0 %v8099
  %v8211 = vpop.f32.mrf.mxu0
  %v8212 = vadd.f32 0.0, %v8211
  %8213 = vmatmul.f32.gmra.mxu0 %v8102
  %v8214 = vpop.f32.mrf.mxu0
  %v8215 = vadd.f32 0.0, %v8214
  %8216 = vmatmul.f32.gmra.mxu0 %v8105
  %v8217 = vpop.f32.mrf.mxu0
  %v8218 = vadd.f32 0.0, %v8217
  %8219 = vmatmul.f32.gmra.mxu0 %v8108
  %v8220 = vpop.f32.mrf.mxu0
  %v8221 = vadd.f32 0.0, %v8220
  %8222 = vmatmul.f32.gmra.mxu0 %v8111
  %v8223 = vpop.f32.mrf.mxu0
  %v8224 = vadd.f32 0.0, %v8223
  %8225 = vmatmul.f32.gmra.mxu0 %v8114
  %v8226 = vpop.f32.mrf.mxu0
  %v8227 = vadd.f32 0.0, %v8226
  %8228 = vmatmul.f32.gmra.mxu0 %v8117
  %v8229 = vpop.f32.mrf.mxu0
  %v8230 = vadd.f32 0.0, %v8229
  %8231 = vmatmul.f32.gmra.mxu0 %v8120
  %v8232 = vpop.f32.mrf.mxu0
  %v8233 = vadd.f32 0.0, %v8232
  %8234 = vmatmul.f32.gmra.mxu0 %v8123
  %v8235 = vpop.f32.mrf.mxu0
  %v8236 = vadd.f32 0.0, %v8235
  %8237 = vmatmul.f32.gmra.mxu0 %v8126
  %v8238 = vpop.f32.mrf.mxu0
  %v8239 = vadd.f32 0.0, %v8238
  %8240 = vmatmul.f32.gmra.mxu0 %v8129
  %v8241 = vpop.f32.mrf.mxu0
  %v8242 = vadd.f32 0.0, %v8241
  %8243 = vmatmul.f32.gmra.mxu0 %v8132
  %v8244 = vpop.f32.mrf.mxu0
  %v8245 = vadd.f32 0.0, %v8244
  %8246 = vmatmul.f32.gmra.mxu0 %v8135
  %v8247 = vpop.f32.mrf.mxu0
  %v8248 = vadd.f32 0.0, %v8247
  %8249 = vmatmul.f32.gmra.mxu0 %v8138
  %v8250 = vpop.f32.mrf.mxu0
  %v8251 = vadd.f32 0.0, %v8250
  %8252 = vmatmul.f32.gmra.mxu0 %v8141
  %v8253 = vpop.f32.mrf.mxu0
  %v8254 = vadd.f32 0.0, %v8253
  %8255 = vmatmul.f32.gmra.mxu0 %v8144
  %v8256 = vpop.f32.mrf.mxu0
  %v8257 = vadd.f32 0.0, %v8256
  %8258 = vmatmul.f32.gmra.mxu0 %v8147
  %v8259 = vpop.f32.mrf.mxu0
  %v8260 = vadd.f32 0.0, %v8259
  %8261 = vmatmul.f32.gmra.mxu0 %v8150
  %v8262 = vpop.f32.mrf.mxu0
  %v8263 = vadd.f32 0.0, %v8262
  %8264 = vmatmul.f32.gmra.mxu0 %v8153
  %v8265 = vpop.f32.mrf.mxu0
  %v8266 = vadd.f32 0.0, %v8265
  %8267 = vmatmul.f32.gmra.mxu0 %v8156
  %v8268 = vpop.f32.mrf.mxu0
  %v8269 = vadd.f32 0.0, %v8268
  %8270 = vmatmul.f32.gmra.mxu0 %v8159
  %v8271 = vpop.f32.mrf.mxu0
  %v8272 = vadd.f32 0.0, %v8271
  %8273 = vmatmul.f32.gmra.mxu0 %v8162
  %v8274 = vpop.f32.mrf.mxu0
  %v8275 = vadd.f32 0.0, %v8274
  %8276 = vmatmul.f32.gmra.mxu0 %v8165
  %v8277 = vpop.f32.mrf.mxu0
  %v8278 = vadd.f32 0.0, %v8277
  %8279 = vmatmul.f32.gmra.mxu0 %v8168
  %v8280 = vpop.f32.mrf.mxu0
  %v8281 = vadd.f32 0.0, %v8280
  %8282 = vmatmul.f32.gmra.mxu0 %v8171
  %v8283 = vpop.f32.mrf.mxu0
  %v8284 = vadd.f32 0.0, %v8283
  %8285 = vdwg.mxu0
  %v8286 = vadd.f32 %v8011, %v8191
  %v8287 = vadd.f32 %v8012, %v8194
  %v8288 = vadd.f32 %v8013, %v8197
  %v8289 = vadd.f32 %v8014, %v8200
  %v8290 = vadd.f32 %v8015, %v8203
  %v8291 = vadd.f32 %v8016, %v8206
  %v8292 = vadd.f32 %v8017, %v8209
  %v8293 = vadd.f32 %v8018, %v8212
  %v8294 = vadd.f32 %v8019, %v8215
  %v8295 = vadd.f32 %v8020, %v8218
  %v8296 = vadd.f32 %v8021, %v8221
  %v8297 = vadd.f32 %v8022, %v8224
  %v8298 = vadd.f32 %v8023, %v8227
  %v8299 = vadd.f32 %v8024, %v8230
  %v8300 = vadd.f32 %v8025, %v8233
  %v8301 = vadd.f32 %v8026, %v8236
  %v8302 = vadd.f32 %v8027, %v8239
  %v8303 = vadd.f32 %v8028, %v8242
  %v8304 = vadd.f32 %v8029, %v8245
  %v8305 = vadd.f32 %v8030, %v8248
  %v8306 = vadd.f32 %v8031, %v8251
  %v8307 = vadd.f32 %v8032, %v8254
  %v8308 = vadd.f32 %v8033, %v8257
  %v8309 = vadd.f32 %v8034, %v8260
  %v8310 = vadd.f32 %v8035, %v8263
  %v8311 = vadd.f32 %v8036, %v8266
  %v8312 = vadd.f32 %v8037, %v8269
  %v8313 = vadd.f32 %v8038, %v8272
  %v8314 = vadd.f32 %v8039, %v8275
  %v8315 = vadd.f32 %v8040, %v8278
  %v8316 = vadd.f32 %v8041, %v8281
  %v8317 = vadd.f32 %v8042, %v8284
  %v8318 = vld [vmem:[%s7767 + $0x2] sm:$0xff]
  %v8319 = vld [vmem:[%s7767 + $0xa] sm:$0xff]
  %v8320 = vld [vmem:[%s7767 + $0x1a] sm:$0xff]
  %v8321 = vld [vmem:[%s7767 + $0x22] sm:$0xff]
  %v8322 = vld [vmem:[%s7767 + $0x32] sm:$0xff]
  %v8323 = vld [vmem:[%s7767 + $0x3a] sm:$0xff]
  %v8324 = vld [vmem:[%s7767 + $0x4a] sm:$0xff]
  %v8325 = vld [vmem:[%s7767 + $0x52] sm:$0xff]
  %v8326 = vld [vmem:[%s7767 + $0x62] sm:$0xff]
  %v8327 = vld [vmem:[%s7767 + $0x6a] sm:$0xff]
  %v8328 = vld [vmem:[%s7767 + $0x7a] sm:$0xff]
  %v8329 = vld [vmem:[%s7767 + $0x82] sm:$0xff]
  %v8330 = vld [vmem:[%s7767 + $0x92] sm:$0xff]
  %v8331 = vld [vmem:[%s7767 + $0x9a] sm:$0xff]
  %v8332 = vld [vmem:[%s7767 + $0xaa] sm:$0xff]
  %v8333 = vld [vmem:[%s7767 + $0xb2] sm:$0xff]
  %v8334 = vld [vmem:[%s7767 + $0xc2] sm:$0xff]
  %v8335 = vld [vmem:[%s7767 + $0xca] sm:$0xff]
  %v8336 = vld [vmem:[%s7767 + $0xda] sm:$0xff]
  %v8337 = vld [vmem:[%s7767 + $0xe2] sm:$0xff]
  %v8338 = vld [vmem:[%s7767 + $0xf2] sm:$0xff]
  %v8339 = vld [vmem:[%s7767 + $0xfa] sm:$0xff]
  %v8340 = vld [vmem:[%s7767 + $0x10a] sm:$0xff]
  %v8341 = vld [vmem:[%s7767 + $0x112] sm:$0xff]
  %v8342 = vld [vmem:[%s7767 + $0x122] sm:$0xff]
  %v8343 = vld [vmem:[%s7767 + $0x12a] sm:$0xff]
  %v8344 = vld [vmem:[%s7767 + $0x13a] sm:$0xff]
  %v8345 = vld [vmem:[%s7767 + $0x142] sm:$0xff]
  %v8346 = vld [vmem:[%s7767 + $0x152] sm:$0xff]
  %v8347 = vld [vmem:[%s7767 + $0x15a] sm:$0xff]
  %v8348 = vld [vmem:[%s7767 + $0x16a] sm:$0xff]
  %v8349 = vld [vmem:[%s7767 + $0x172] sm:$0xff]
  %s8350 = scalar_lea.vmem %s5, 64
  %v8351 = vld [vmem:[%s8350] sm:$0xff]
  %v8353 = vsel %vm136, %v8318, 0
  %v8356 = vsel %vm136, %v8319, 0
  %v8359 = vsel %vm136, %v8320, 0
  %v8362 = vsel %vm136, %v8321, 0
  %v8365 = vsel %vm136, %v8322, 0
  %v8368 = vsel %vm136, %v8323, 0
  %v8371 = vsel %vm136, %v8324, 0
  %v8374 = vsel %vm136, %v8325, 0
  %v8377 = vsel %vm136, %v8326, 0
  %v8380 = vsel %vm136, %v8327, 0
  %v8383 = vsel %vm136, %v8328, 0
  %v8386 = vsel %vm136, %v8329, 0
  %v8389 = vsel %vm136, %v8330, 0
  %v8392 = vsel %vm136, %v8331, 0
  %v8395 = vsel %vm136, %v8332, 0
  %v8398 = vsel %vm136, %v8333, 0
  %v8401 = vsel %vm136, %v8334, 0
  %v8404 = vsel %vm136, %v8335, 0
  %v8407 = vsel %vm136, %v8336, 0
  %v8410 = vsel %vm136, %v8337, 0
  %v8413 = vsel %vm136, %v8338, 0
  %v8416 = vsel %vm136, %v8339, 0
  %v8419 = vsel %vm136, %v8340, 0
  %v8422 = vsel %vm136, %v8341, 0
  %v8425 = vsel %vm136, %v8342, 0
  %v8428 = vsel %vm136, %v8343, 0
  %v8431 = vsel %vm136, %v8344, 0
  %v8434 = vsel %vm136, %v8345, 0
  %v8437 = vsel %vm136, %v8346, 0
  %v8440 = vsel %vm136, %v8347, 0
  %v8443 = vsel %vm136, %v8348, 0
  %v8446 = vsel %vm136, %v8349, 0
  %8448 = vmatpush.msra.mxu0 0.0
  %8449 = vmatpush.msra.mxu0 0.0
  %8450 = vmatpush.msra.mxu0 0.0
  %8451 = vmatpush.msra.mxu0 0.0
  %8452 = vmatpush.msra.mxu0 0.0
  %8453 = vmatpush.msra.mxu0 0.0
  %8454 = vmatpush.msra.mxu0 0.0
  %8455 = vmatpush.msra.mxu0 0.0
  %8456 = vmatpush.msra.mxu0 0.0
  %8457 = vmatpush.msra.mxu0 0.0
  %8458 = vmatpush.msra.mxu0 0.0
  %8459 = vmatpush.msra.mxu0 0.0
  %8460 = vmatpush.msra.mxu0 0.0
  %8461 = vmatpush.msra.mxu0 0.0
  %8462 = vmatpush.msra.mxu0 0.0
  %8463 = vmatpush.msra.mxu0 %v8351
  %8464 = vmatmul.f32.gmra.mxu0 %v8353
  %v8465 = vpop.f32.mrf.mxu0
  %v8466 = vadd.f32 0.0, %v8465
  %8467 = vmatmul.f32.gmra.mxu0 %v8356
  %v8468 = vpop.f32.mrf.mxu0
  %v8469 = vadd.f32 0.0, %v8468
  %8470 = vmatmul.f32.gmra.mxu0 %v8359
  %v8471 = vpop.f32.mrf.mxu0
  %v8472 = vadd.f32 0.0, %v8471
  %8473 = vmatmul.f32.gmra.mxu0 %v8362
  %v8474 = vpop.f32.mrf.mxu0
  %v8475 = vadd.f32 0.0, %v8474
  %8476 = vmatmul.f32.gmra.mxu0 %v8365
  %v8477 = vpop.f32.mrf.mxu0
  %v8478 = vadd.f32 0.0, %v8477
  %8479 = vmatmul.f32.gmra.mxu0 %v8368
  %v8480 = vpop.f32.mrf.mxu0
  %v8481 = vadd.f32 0.0, %v8480
  %8482 = vmatmul.f32.gmra.mxu0 %v8371
  %v8483 = vpop.f32.mrf.mxu0
  %v8484 = vadd.f32 0.0, %v8483
  %8485 = vmatmul.f32.gmra.mxu0 %v8374
  %v8486 = vpop.f32.mrf.mxu0
  %v8487 = vadd.f32 0.0, %v8486
  %8488 = vmatmul.f32.gmra.mxu0 %v8377
  %v8489 = vpop.f32.mrf.mxu0
  %v8490 = vadd.f32 0.0, %v8489
  %8491 = vmatmul.f32.gmra.mxu0 %v8380
  %v8492 = vpop.f32.mrf.mxu0
  %v8493 = vadd.f32 0.0, %v8492
  %8494 = vmatmul.f32.gmra.mxu0 %v8383
  %v8495 = vpop.f32.mrf.mxu0
  %v8496 = vadd.f32 0.0, %v8495
  %8497 = vmatmul.f32.gmra.mxu0 %v8386
  %v8498 = vpop.f32.mrf.mxu0
  %v8499 = vadd.f32 0.0, %v8498
  %8500 = vmatmul.f32.gmra.mxu0 %v8389
  %v8501 = vpop.f32.mrf.mxu0
  %v8502 = vadd.f32 0.0, %v8501
  %8503 = vmatmul.f32.gmra.mxu0 %v8392
  %v8504 = vpop.f32.mrf.mxu0
  %v8505 = vadd.f32 0.0, %v8504
  %8506 = vmatmul.f32.gmra.mxu0 %v8395
  %v8507 = vpop.f32.mrf.mxu0
  %v8508 = vadd.f32 0.0, %v8507
  %8509 = vmatmul.f32.gmra.mxu0 %v8398
  %v8510 = vpop.f32.mrf.mxu0
  %v8511 = vadd.f32 0.0, %v8510
  %8512 = vmatmul.f32.gmra.mxu0 %v8401
  %v8513 = vpop.f32.mrf.mxu0
  %v8514 = vadd.f32 0.0, %v8513
  %8515 = vmatmul.f32.gmra.mxu0 %v8404
  %v8516 = vpop.f32.mrf.mxu0
  %v8517 = vadd.f32 0.0, %v8516
  %8518 = vmatmul.f32.gmra.mxu0 %v8407
  %v8519 = vpop.f32.mrf.mxu0
  %v8520 = vadd.f32 0.0, %v8519
  %8521 = vmatmul.f32.gmra.mxu0 %v8410
  %v8522 = vpop.f32.mrf.mxu0
  %v8523 = vadd.f32 0.0, %v8522
  %8524 = vmatmul.f32.gmra.mxu0 %v8413
  %v8525 = vpop.f32.mrf.mxu0
  %v8526 = vadd.f32 0.0, %v8525
  %8527 = vmatmul.f32.gmra.mxu0 %v8416
  %v8528 = vpop.f32.mrf.mxu0
  %v8529 = vadd.f32 0.0, %v8528
  %8530 = vmatmul.f32.gmra.mxu0 %v8419
  %v8531 = vpop.f32.mrf.mxu0
  %v8532 = vadd.f32 0.0, %v8531
  %8533 = vmatmul.f32.gmra.mxu0 %v8422
  %v8534 = vpop.f32.mrf.mxu0
  %v8535 = vadd.f32 0.0, %v8534
  %8536 = vmatmul.f32.gmra.mxu0 %v8425
  %v8537 = vpop.f32.mrf.mxu0
  %v8538 = vadd.f32 0.0, %v8537
  %8539 = vmatmul.f32.gmra.mxu0 %v8428
  %v8540 = vpop.f32.mrf.mxu0
  %v8541 = vadd.f32 0.0, %v8540
  %8542 = vmatmul.f32.gmra.mxu0 %v8431
  %v8543 = vpop.f32.mrf.mxu0
  %v8544 = vadd.f32 0.0, %v8543
  %8545 = vmatmul.f32.gmra.mxu0 %v8434
  %v8546 = vpop.f32.mrf.mxu0
  %v8547 = vadd.f32 0.0, %v8546
  %8548 = vmatmul.f32.gmra.mxu0 %v8437
  %v8549 = vpop.f32.mrf.mxu0
  %v8550 = vadd.f32 0.0, %v8549
  %8551 = vmatmul.f32.gmra.mxu0 %v8440
  %v8552 = vpop.f32.mrf.mxu0
  %v8553 = vadd.f32 0.0, %v8552
  %8554 = vmatmul.f32.gmra.mxu0 %v8443
  %v8555 = vpop.f32.mrf.mxu0
  %v8556 = vadd.f32 0.0, %v8555
  %8557 = vmatmul.f32.gmra.mxu0 %v8446
  %v8558 = vpop.f32.mrf.mxu0
  %v8559 = vadd.f32 0.0, %v8558
  %8560 = vdwg.mxu0
  %v8561 = vadd.f32 %v8286, %v8466
  %v8562 = vadd.f32 %v8287, %v8469
  %v8563 = vadd.f32 %v8288, %v8472
  %v8564 = vadd.f32 %v8289, %v8475
  %v8565 = vadd.f32 %v8290, %v8478
  %v8566 = vadd.f32 %v8291, %v8481
  %v8567 = vadd.f32 %v8292, %v8484
  %v8568 = vadd.f32 %v8293, %v8487
  %v8569 = vadd.f32 %v8294, %v8490
  %v8570 = vadd.f32 %v8295, %v8493
  %v8571 = vadd.f32 %v8296, %v8496
  %v8572 = vadd.f32 %v8297, %v8499
  %v8573 = vadd.f32 %v8298, %v8502
  %v8574 = vadd.f32 %v8299, %v8505
  %v8575 = vadd.f32 %v8300, %v8508
  %v8576 = vadd.f32 %v8301, %v8511
  %v8577 = vadd.f32 %v8302, %v8514
  %v8578 = vadd.f32 %v8303, %v8517
  %v8579 = vadd.f32 %v8304, %v8520
  %v8580 = vadd.f32 %v8305, %v8523
  %v8581 = vadd.f32 %v8306, %v8526
  %v8582 = vadd.f32 %v8307, %v8529
  %v8583 = vadd.f32 %v8308, %v8532
  %v8584 = vadd.f32 %v8309, %v8535
  %v8585 = vadd.f32 %v8310, %v8538
  %v8586 = vadd.f32 %v8311, %v8541
  %v8587 = vadd.f32 %v8312, %v8544
  %v8588 = vadd.f32 %v8313, %v8547
  %v8589 = vadd.f32 %v8314, %v8550
  %v8590 = vadd.f32 %v8315, %v8553
  %v8591 = vadd.f32 %v8316, %v8556
  %v8592 = vadd.f32 %v8317, %v8559
  %v8593 = vld [vmem:[%s6] sm:$0x1]
  %v8595 = vperm.slane %v8593, 0
  %v8597 = vadd.f32 %v8561, %v8595
  %v8598 = vadd.f32 %v8562, %v8595
  %v8599 = vadd.f32 %v8563, %v8595
  %v8600 = vadd.f32 %v8564, %v8595
  %v8601 = vadd.f32 %v8565, %v8595
  %v8602 = vadd.f32 %v8566, %v8595
  %v8603 = vadd.f32 %v8567, %v8595
  %v8604 = vadd.f32 %v8568, %v8595
  %v8605 = vadd.f32 %v8569, %v8595
  %v8606 = vadd.f32 %v8570, %v8595
  %v8607 = vadd.f32 %v8571, %v8595
  %v8608 = vadd.f32 %v8572, %v8595
  %v8609 = vadd.f32 %v8573, %v8595
  %v8610 = vadd.f32 %v8574, %v8595
  %v8611 = vadd.f32 %v8575, %v8595
  %v8612 = vadd.f32 %v8576, %v8595
  %v8613 = vadd.f32 %v8577, %v8595
  %v8614 = vadd.f32 %v8578, %v8595
  %v8615 = vadd.f32 %v8579, %v8595
  %v8616 = vadd.f32 %v8580, %v8595
  %v8617 = vadd.f32 %v8581, %v8595
  %v8618 = vadd.f32 %v8582, %v8595
  %v8619 = vadd.f32 %v8583, %v8595
  %v8620 = vadd.f32 %v8584, %v8595
  %v8621 = vadd.f32 %v8585, %v8595
  %v8622 = vadd.f32 %v8586, %v8595
  %v8623 = vadd.f32 %v8587, %v8595
  %v8624 = vadd.f32 %v8588, %v8595
  %v8625 = vadd.f32 %v8589, %v8595
  %v8626 = vadd.f32 %v8590, %v8595
  %v8627 = vadd.f32 %v8591, %v8595
  %v8628 = vadd.f32 %v8592, %v8595
  %vm8629 = vcmp.ge.f32.partialorder %v8597, 0.0
  %vm8630 = vcmp.ge.f32.partialorder %v8598, 0.0
  %vm8631 = vcmp.ge.f32.partialorder %v8599, 0.0
  %vm8632 = vcmp.ge.f32.partialorder %v8600, 0.0
  %vm8633 = vcmp.ge.f32.partialorder %v8601, 0.0
  %vm8634 = vcmp.ge.f32.partialorder %v8602, 0.0
  %vm8635 = vcmp.ge.f32.partialorder %v8603, 0.0
  %vm8636 = vcmp.ge.f32.partialorder %v8604, 0.0
  %vm8637 = vcmp.ge.f32.partialorder %v8605, 0.0
  %vm8638 = vcmp.ge.f32.partialorder %v8606, 0.0
  %vm8639 = vcmp.ge.f32.partialorder %v8607, 0.0
  %vm8640 = vcmp.ge.f32.partialorder %v8608, 0.0
  %vm8641 = vcmp.ge.f32.partialorder %v8609, 0.0
  %vm8642 = vcmp.ge.f32.partialorder %v8610, 0.0
  %vm8643 = vcmp.ge.f32.partialorder %v8611, 0.0
  %vm8644 = vcmp.ge.f32.partialorder %v8612, 0.0
  %vm8645 = vcmp.ge.f32.partialorder %v8613, 0.0
  %vm8646 = vcmp.ge.f32.partialorder %v8614, 0.0
  %vm8647 = vcmp.ge.f32.partialorder %v8615, 0.0
  %vm8648 = vcmp.ge.f32.partialorder %v8616, 0.0
  %vm8649 = vcmp.ge.f32.partialorder %v8617, 0.0
  %vm8650 = vcmp.ge.f32.partialorder %v8618, 0.0
  %vm8651 = vcmp.ge.f32.partialorder %v8619, 0.0
  %vm8652 = vcmp.ge.f32.partialorder %v8620, 0.0
  %vm8653 = vcmp.ge.f32.partialorder %v8621, 0.0
  %vm8654 = vcmp.ge.f32.partialorder %v8622, 0.0
  %vm8655 = vcmp.ge.f32.partialorder %v8623, 0.0
  %vm8656 = vcmp.ge.f32.partialorder %v8624, 0.0
  %vm8657 = vcmp.ge.f32.partialorder %v8625, 0.0
  %vm8658 = vcmp.ge.f32.partialorder %v8626, 0.0
  %vm8659 = vcmp.ge.f32.partialorder %v8627, 0.0
  %vm8660 = vcmp.ge.f32.partialorder %v8628, 0.0
  %v8661 = vmul.f32 %v8597, 0.2
  %v8662 = vmul.f32 %v8598, 0.2
  %v8663 = vmul.f32 %v8599, 0.2
  %v8664 = vmul.f32 %v8600, 0.2
  %v8665 = vmul.f32 %v8601, 0.2
  %v8666 = vmul.f32 %v8602, 0.2
  %v8667 = vmul.f32 %v8603, 0.2
  %v8668 = vmul.f32 %v8604, 0.2
  %v8669 = vmul.f32 %v8605, 0.2
  %v8670 = vmul.f32 %v8606, 0.2
  %v8671 = vmul.f32 %v8607, 0.2
  %v8672 = vmul.f32 %v8608, 0.2
  %v8673 = vmul.f32 %v8609, 0.2
  %v8674 = vmul.f32 %v8610, 0.2
  %v8675 = vmul.f32 %v8611, 0.2
  %v8676 = vmul.f32 %v8612, 0.2
  %v8677 = vmul.f32 %v8613, 0.2
  %v8678 = vmul.f32 %v8614, 0.2
  %v8679 = vmul.f32 %v8615, 0.2
  %v8680 = vmul.f32 %v8616, 0.2
  %v8681 = vmul.f32 %v8617, 0.2
  %v8682 = vmul.f32 %v8618, 0.2
  %v8683 = vmul.f32 %v8619, 0.2
  %v8684 = vmul.f32 %v8620, 0.2
  %v8685 = vmul.f32 %v8621, 0.2
  %v8686 = vmul.f32 %v8622, 0.2
  %v8687 = vmul.f32 %v8623, 0.2
  %v8688 = vmul.f32 %v8624, 0.2
  %v8689 = vmul.f32 %v8625, 0.2
  %v8690 = vmul.f32 %v8626, 0.2
  %v8691 = vmul.f32 %v8627, 0.2
  %v8692 = vmul.f32 %v8628, 0.2
  %v8693 = vsel %vm8629, %v8597, %v8661
  %v8694 = vsel %vm8630, %v8598, %v8662
  %v8695 = vsel %vm8631, %v8599, %v8663
  %v8696 = vsel %vm8632, %v8600, %v8664
  %v8697 = vsel %vm8633, %v8601, %v8665
  %v8698 = vsel %vm8634, %v8602, %v8666
  %v8699 = vsel %vm8635, %v8603, %v8667
  %v8700 = vsel %vm8636, %v8604, %v8668
  %v8701 = vsel %vm8637, %v8605, %v8669
  %v8702 = vsel %vm8638, %v8606, %v8670
  %v8703 = vsel %vm8639, %v8607, %v8671
  %v8704 = vsel %vm8640, %v8608, %v8672
  %v8705 = vsel %vm8641, %v8609, %v8673
  %v8706 = vsel %vm8642, %v8610, %v8674
  %v8707 = vsel %vm8643, %v8611, %v8675
  %v8708 = vsel %vm8644, %v8612, %v8676
  %v8709 = vsel %vm8645, %v8613, %v8677
  %v8710 = vsel %vm8646, %v8614, %v8678
  %v8711 = vsel %vm8647, %v8615, %v8679
  %v8712 = vsel %vm8648, %v8616, %v8680
  %v8713 = vsel %vm8649, %v8617, %v8681
  %v8714 = vsel %vm8650, %v8618, %v8682
  %v8715 = vsel %vm8651, %v8619, %v8683
  %v8716 = vsel %vm8652, %v8620, %v8684
  %v8717 = vsel %vm8653, %v8621, %v8685
  %v8718 = vsel %vm8654, %v8622, %v8686
  %v8719 = vsel %vm8655, %v8623, %v8687
  %v8720 = vsel %vm8656, %v8624, %v8688
  %v8721 = vsel %vm8657, %v8625, %v8689
  %v8722 = vsel %vm8658, %v8626, %v8690
  %v8723 = vsel %vm8659, %v8627, %v8691
  %v8724 = vsel %vm8660, %v8628, %v8692
  %8725 = vxpose.xlu0.b32.start [1/16] %v8693, 128
  %8726 = vxpose.xlu0.b32.cont [2/16] %v8694, 128
  %8727 = vxpose.xlu0.b32.cont [3/16] %v8695, 128
  %8728 = vxpose.xlu0.b32.cont [4/16] %v8696, 128
  %8729 = vxpose.xlu0.b32.cont [5/16] %v8697, 128
  %8730 = vxpose.xlu0.b32.cont [6/16] %v8698, 128
  %8731 = vxpose.xlu0.b32.cont [7/16] %v8699, 128
  %8732 = vxpose.xlu0.b32.cont [8/16] %v8700, 128
  %8733 = vxpose.xlu0.b32.cont [9/16] %v8701, 128
  %8734 = vxpose.xlu0.b32.cont [10/16] %v8702, 128
  %8735 = vxpose.xlu0.b32.cont [11/16] %v8703, 128
  %8736 = vxpose.xlu0.b32.cont [12/16] %v8704, 128
  %8737 = vxpose.xlu0.b32.cont [13/16] %v8705, 128
  %8738 = vxpose.xlu0.b32.cont [14/16] %v8706, 128
  %8739 = vxpose.xlu0.b32.cont [15/16] %v8707, 128
  %8740 = vxpose.xlu0.b32.end [16/16] %v8708, 128
  %v8741 = vpop.trf.xlu0
  %v8742 = vpop.trf.xlu0
  %v8743 = vpop.trf.xlu0
  %v8744 = vpop.trf.xlu0
  %v8745 = vpop.trf.xlu0
  %v8746 = vpop.trf.xlu0
  %v8747 = vpop.trf.xlu0
  %v8748 = vpop.trf.xlu0
  %v8749 = vpop.trf.xlu0
  %v8750 = vpop.trf.xlu0
  %v8751 = vpop.trf.xlu0
  %v8752 = vpop.trf.xlu0
  %v8753 = vpop.trf.xlu0
  %v8754 = vpop.trf.xlu0
  %v8755 = vpop.trf.xlu0
  %v8756 = vpop.trf.xlu0
  %8757 = vxpose.xlu0.b32.start [1/16] %v8709, 128
  %8758 = vxpose.xlu0.b32.cont [2/16] %v8710, 128
  %8759 = vxpose.xlu0.b32.cont [3/16] %v8711, 128
  %8760 = vxpose.xlu0.b32.cont [4/16] %v8712, 128
  %8761 = vxpose.xlu0.b32.cont [5/16] %v8713, 128
  %8762 = vxpose.xlu0.b32.cont [6/16] %v8714, 128
  %8763 = vxpose.xlu0.b32.cont [7/16] %v8715, 128
  %8764 = vxpose.xlu0.b32.cont [8/16] %v8716, 128
  %8765 = vxpose.xlu0.b32.cont [9/16] %v8717, 128
  %8766 = vxpose.xlu0.b32.cont [10/16] %v8718, 128
  %8767 = vxpose.xlu0.b32.cont [11/16] %v8719, 128
  %8768 = vxpose.xlu0.b32.cont [12/16] %v8720, 128
  %8769 = vxpose.xlu0.b32.cont [13/16] %v8721, 128
  %8770 = vxpose.xlu0.b32.cont [14/16] %v8722, 128
  %8771 = vxpose.xlu0.b32.cont [15/16] %v8723, 128
  %8772 = vxpose.xlu0.b32.end [16/16] %v8724, 128
  %v8773 = vpop.trf.xlu0
  %v8774 = vpop.trf.xlu0
  %v8775 = vpop.trf.xlu0
  %v8776 = vpop.trf.xlu0
  %v8777 = vpop.trf.xlu0
  %v8778 = vpop.trf.xlu0
  %v8779 = vpop.trf.xlu0
  %v8780 = vpop.trf.xlu0
  %v8781 = vpop.trf.xlu0
  %v8782 = vpop.trf.xlu0
  %v8783 = vpop.trf.xlu0
  %v8784 = vpop.trf.xlu0
  %v8785 = vpop.trf.xlu0
  %v8786 = vpop.trf.xlu0
  %v8787 = vpop.trf.xlu0
  %v8788 = vpop.trf.xlu0
  %8789 = vst [vmem:[%s7] sm:$0xff] %v8741
  %8790 = vst [vmem:[%s7 + $0x8] sm:$0xff] %v8773
  %s8791 = scalar_lea.vmem [#allocation3], 432
  %v8792 = vld [vmem:[%s8791] sm:$0xff]
  %v8793 = vld [vmem:[%s8791 + $0x8] sm:$0xff]
  %v8794 = vld [vmem:[%s8791 + $0x18] sm:$0xff]
  %v8795 = vld [vmem:[%s8791 + $0x20] sm:$0xff]
  %v8796 = vld [vmem:[%s8791 + $0x30] sm:$0xff]
  %v8797 = vld [vmem:[%s8791 + $0x38] sm:$0xff]
  %v8798 = vld [vmem:[%s8791 + $0x48] sm:$0xff]
  %v8799 = vld [vmem:[%s8791 + $0x50] sm:$0xff]
  %v8800 = vld [vmem:[%s8791 + $0x60] sm:$0xff]
  %v8801 = vld [vmem:[%s8791 + $0x68] sm:$0xff]
  %v8802 = vld [vmem:[%s8791 + $0x78] sm:$0xff]
  %v8803 = vld [vmem:[%s8791 + $0x80] sm:$0xff]
  %v8804 = vld [vmem:[%s8791 + $0x90] sm:$0xff]
  %v8805 = vld [vmem:[%s8791 + $0x98] sm:$0xff]
  %v8806 = vld [vmem:[%s8791 + $0xa8] sm:$0xff]
  %v8807 = vld [vmem:[%s8791 + $0xb0] sm:$0xff]
  %v8808 = vld [vmem:[%s8791 + $0xc0] sm:$0xff]
  %v8809 = vld [vmem:[%s8791 + $0xc8] sm:$0xff]
  %v8810 = vld [vmem:[%s8791 + $0xd8] sm:$0xff]
  %v8811 = vld [vmem:[%s8791 + $0xe0] sm:$0xff]
  %v8812 = vld [vmem:[%s8791 + $0xf0] sm:$0xff]
  %v8813 = vld [vmem:[%s8791 + $0xf8] sm:$0xff]
  %v8814 = vld [vmem:[%s8791 + $0x108] sm:$0xff]
  %v8815 = vld [vmem:[%s8791 + $0x110] sm:$0xff]
  %v8816 = vld [vmem:[%s8791 + $0x120] sm:$0xff]
  %v8817 = vld [vmem:[%s8791 + $0x128] sm:$0xff]
  %v8818 = vld [vmem:[%s8791 + $0x138] sm:$0xff]
  %v8819 = vld [vmem:[%s8791 + $0x140] sm:$0xff]
  %v8820 = vld [vmem:[%s8791 + $0x150] sm:$0xff]
  %v8821 = vld [vmem:[%s8791 + $0x158] sm:$0xff]
  %v8822 = vld [vmem:[%s8791 + $0x168] sm:$0xff]
  %v8823 = vld [vmem:[%s8791 + $0x170] sm:$0xff]
  %v8824 = vld [vmem:[%s5] sm:$0xff]
  %v8825 = vld [vmem:[%s8791 + $0x1] sm:$0xff]
  %v8826 = vld [vmem:[%s8791 + $0x9] sm:$0xff]
  %v8827 = vld [vmem:[%s8791 + $0x19] sm:$0xff]
  %v8828 = vld [vmem:[%s8791 + $0x21] sm:$0xff]
  %v8829 = vld [vmem:[%s8791 + $0x31] sm:$0xff]
  %v8830 = vld [vmem:[%s8791 + $0x39] sm:$0xff]
  %v8831 = vld [vmem:[%s8791 + $0x49] sm:$0xff]
  %v8832 = vld [vmem:[%s8791 + $0x51] sm:$0xff]
  %v8833 = vld [vmem:[%s8791 + $0x61] sm:$0xff]
  %v8834 = vld [vmem:[%s8791 + $0x69] sm:$0xff]
  %v8835 = vld [vmem:[%s8791 + $0x79] sm:$0xff]
  %v8836 = vld [vmem:[%s8791 + $0x81] sm:$0xff]
  %v8837 = vld [vmem:[%s8791 + $0x91] sm:$0xff]
  %v8838 = vld [vmem:[%s8791 + $0x99] sm:$0xff]
  %v8839 = vld [vmem:[%s8791 + $0xa9] sm:$0xff]
  %v8840 = vld [vmem:[%s8791 + $0xb1] sm:$0xff]
  %v8841 = vld [vmem:[%s8791 + $0xc1] sm:$0xff]
  %v8842 = vld [vmem:[%s8791 + $0xc9] sm:$0xff]
  %v8843 = vld [vmem:[%s8791 + $0xd9] sm:$0xff]
  %v8844 = vld [vmem:[%s8791 + $0xe1] sm:$0xff]
  %v8845 = vld [vmem:[%s8791 + $0xf1] sm:$0xff]
  %v8846 = vld [vmem:[%s8791 + $0xf9] sm:$0xff]
  %v8847 = vld [vmem:[%s8791 + $0x109] sm:$0xff]
  %v8848 = vld [vmem:[%s8791 + $0x111] sm:$0xff]
  %v8849 = vld [vmem:[%s8791 + $0x121] sm:$0xff]
  %v8850 = vld [vmem:[%s8791 + $0x129] sm:$0xff]
  %v8851 = vld [vmem:[%s8791 + $0x139] sm:$0xff]
  %v8852 = vld [vmem:[%s8791 + $0x141] sm:$0xff]
  %v8853 = vld [vmem:[%s8791 + $0x151] sm:$0xff]
  %v8854 = vld [vmem:[%s8791 + $0x159] sm:$0xff]
  %v8855 = vld [vmem:[%s8791 + $0x169] sm:$0xff]
  %v8856 = vld [vmem:[%s8791 + $0x171] sm:$0xff]
  %v8857 = vld [vmem:[%s6247] sm:$0xff]
  %v8859 = vsel %vm136, %v8825, 0
  %v8862 = vsel %vm136, %v8826, 0
  %v8865 = vsel %vm136, %v8827, 0
  %v8868 = vsel %vm136, %v8828, 0
  %v8871 = vsel %vm136, %v8829, 0
  %v8874 = vsel %vm136, %v8830, 0
  %v8877 = vsel %vm136, %v8831, 0
  %v8880 = vsel %vm136, %v8832, 0
  %v8883 = vsel %vm136, %v8833, 0
  %v8886 = vsel %vm136, %v8834, 0
  %v8889 = vsel %vm136, %v8835, 0
  %v8892 = vsel %vm136, %v8836, 0
  %v8895 = vsel %vm136, %v8837, 0
  %v8898 = vsel %vm136, %v8838, 0
  %v8901 = vsel %vm136, %v8839, 0
  %v8904 = vsel %vm136, %v8840, 0
  %v8907 = vsel %vm136, %v8841, 0
  %v8910 = vsel %vm136, %v8842, 0
  %v8913 = vsel %vm136, %v8843, 0
  %v8916 = vsel %vm136, %v8844, 0
  %v8919 = vsel %vm136, %v8845, 0
  %v8922 = vsel %vm136, %v8846, 0
  %v8925 = vsel %vm136, %v8847, 0
  %v8928 = vsel %vm136, %v8848, 0
  %v8931 = vsel %vm136, %v8849, 0
  %v8934 = vsel %vm136, %v8850, 0
  %v8937 = vsel %vm136, %v8851, 0
  %v8940 = vsel %vm136, %v8852, 0
  %v8943 = vsel %vm136, %v8853, 0
  %v8946 = vsel %vm136, %v8854, 0
  %v8949 = vsel %vm136, %v8855, 0
  %v8952 = vsel %vm136, %v8856, 0
  %8954 = vmatpush.msra.mxu0 0.0
  %8955 = vmatpush.msra.mxu0 0.0
  %8956 = vmatpush.msra.mxu0 0.0
  %8957 = vmatpush.msra.mxu0 0.0
  %8958 = vmatpush.msra.mxu0 0.0
  %8959 = vmatpush.msra.mxu0 0.0
  %8960 = vmatpush.msra.mxu0 0.0
  %8961 = vmatpush.msra.mxu0 0.0
  %8962 = vmatpush.msra.mxu0 0.0
  %8963 = vmatpush.msra.mxu0 0.0
  %8964 = vmatpush.msra.mxu0 0.0
  %8965 = vmatpush.msra.mxu0 0.0
  %8966 = vmatpush.msra.mxu0 0.0
  %8967 = vmatpush.msra.mxu0 0.0
  %8968 = vmatpush.msra.mxu0 0.0
  %8969 = vmatpush.msra.mxu0 %v8857
  %8970 = vmatmul.f32.gmra.mxu0 %v8859
  %v8971 = vpop.f32.mrf.mxu0
  %v8972 = vadd.f32 0.0, %v8971
  %8973 = vmatmul.f32.gmra.mxu0 %v8862
  %v8974 = vpop.f32.mrf.mxu0
  %v8975 = vadd.f32 0.0, %v8974
  %8976 = vmatmul.f32.gmra.mxu0 %v8865
  %v8977 = vpop.f32.mrf.mxu0
  %v8978 = vadd.f32 0.0, %v8977
  %8979 = vmatmul.f32.gmra.mxu0 %v8868
  %v8980 = vpop.f32.mrf.mxu0
  %v8981 = vadd.f32 0.0, %v8980
  %8982 = vmatmul.f32.gmra.mxu0 %v8871
  %v8983 = vpop.f32.mrf.mxu0
  %v8984 = vadd.f32 0.0, %v8983
  %8985 = vmatmul.f32.gmra.mxu0 %v8874
  %v8986 = vpop.f32.mrf.mxu0
  %v8987 = vadd.f32 0.0, %v8986
  %8988 = vmatmul.f32.gmra.mxu0 %v8877
  %v8989 = vpop.f32.mrf.mxu0
  %v8990 = vadd.f32 0.0, %v8989
  %8991 = vmatmul.f32.gmra.mxu0 %v8880
  %v8992 = vpop.f32.mrf.mxu0
  %v8993 = vadd.f32 0.0, %v8992
  %8994 = vmatmul.f32.gmra.mxu0 %v8883
  %v8995 = vpop.f32.mrf.mxu0
  %v8996 = vadd.f32 0.0, %v8995
  %8997 = vmatmul.f32.gmra.mxu0 %v8886
  %v8998 = vpop.f32.mrf.mxu0
  %v8999 = vadd.f32 0.0, %v8998
  %9000 = vmatmul.f32.gmra.mxu0 %v8889
  %v9001 = vpop.f32.mrf.mxu0
  %v9002 = vadd.f32 0.0, %v9001
  %9003 = vmatmul.f32.gmra.mxu0 %v8892
  %v9004 = vpop.f32.mrf.mxu0
  %v9005 = vadd.f32 0.0, %v9004
  %9006 = vmatmul.f32.gmra.mxu0 %v8895
  %v9007 = vpop.f32.mrf.mxu0
  %v9008 = vadd.f32 0.0, %v9007
  %9009 = vmatmul.f32.gmra.mxu0 %v8898
  %v9010 = vpop.f32.mrf.mxu0
  %v9011 = vadd.f32 0.0, %v9010
  %9012 = vmatmul.f32.gmra.mxu0 %v8901
  %v9013 = vpop.f32.mrf.mxu0
  %v9014 = vadd.f32 0.0, %v9013
  %9015 = vmatmul.f32.gmra.mxu0 %v8904
  %v9016 = vpop.f32.mrf.mxu0
  %v9017 = vadd.f32 0.0, %v9016
  %9018 = vmatmul.f32.gmra.mxu0 %v8907
  %v9019 = vpop.f32.mrf.mxu0
  %v9020 = vadd.f32 0.0, %v9019
  %9021 = vmatmul.f32.gmra.mxu0 %v8910
  %v9022 = vpop.f32.mrf.mxu0
  %v9023 = vadd.f32 0.0, %v9022
  %9024 = vmatmul.f32.gmra.mxu0 %v8913
  %v9025 = vpop.f32.mrf.mxu0
  %v9026 = vadd.f32 0.0, %v9025
  %9027 = vmatmul.f32.gmra.mxu0 %v8916
  %v9028 = vpop.f32.mrf.mxu0
  %v9029 = vadd.f32 0.0, %v9028
  %9030 = vmatmul.f32.gmra.mxu0 %v8919
  %v9031 = vpop.f32.mrf.mxu0
  %v9032 = vadd.f32 0.0, %v9031
  %9033 = vmatmul.f32.gmra.mxu0 %v8922
  %v9034 = vpop.f32.mrf.mxu0
  %v9035 = vadd.f32 0.0, %v9034
  %9036 = vmatmul.f32.gmra.mxu0 %v8925
  %v9037 = vpop.f32.mrf.mxu0
  %v9038 = vadd.f32 0.0, %v9037
  %9039 = vmatmul.f32.gmra.mxu0 %v8928
  %v9040 = vpop.f32.mrf.mxu0
  %v9041 = vadd.f32 0.0, %v9040
  %9042 = vmatmul.f32.gmra.mxu0 %v8931
  %v9043 = vpop.f32.mrf.mxu0
  %v9044 = vadd.f32 0.0, %v9043
  %9045 = vmatmul.f32.gmra.mxu0 %v8934
  %v9046 = vpop.f32.mrf.mxu0
  %v9047 = vadd.f32 0.0, %v9046
  %9048 = vmatmul.f32.gmra.mxu0 %v8937
  %v9049 = vpop.f32.mrf.mxu0
  %v9050 = vadd.f32 0.0, %v9049
  %9051 = vmatmul.f32.gmra.mxu0 %v8940
  %v9052 = vpop.f32.mrf.mxu0
  %v9053 = vadd.f32 0.0, %v9052
  %9054 = vmatmul.f32.gmra.mxu0 %v8943
  %v9055 = vpop.f32.mrf.mxu0
  %v9056 = vadd.f32 0.0, %v9055
  %9057 = vmatmul.f32.gmra.mxu0 %v8946
  %v9058 = vpop.f32.mrf.mxu0
  %v9059 = vadd.f32 0.0, %v9058
  %9060 = vmatmul.f32.gmra.mxu0 %v8949
  %v9061 = vpop.f32.mrf.mxu0
  %v9062 = vadd.f32 0.0, %v9061
  %9063 = vmatmul.f32.gmra.mxu0 %v8952
  %v9064 = vpop.f32.mrf.mxu0
  %v9065 = vadd.f32 0.0, %v9064
  %9066 = vdwg.mxu0
  %v9068 = vsel %vm136, %v8792, 0
  %v9071 = vsel %vm136, %v8793, 0
  %v9074 = vsel %vm136, %v8794, 0
  %v9077 = vsel %vm136, %v8795, 0
  %v9080 = vsel %vm136, %v8796, 0
  %v9083 = vsel %vm136, %v8797, 0
  %v9086 = vsel %vm136, %v8798, 0
  %v9089 = vsel %vm136, %v8799, 0
  %v9092 = vsel %vm136, %v8800, 0
  %v9095 = vsel %vm136, %v8801, 0
  %v9098 = vsel %vm136, %v8802, 0
  %v9101 = vsel %vm136, %v8803, 0
  %v9104 = vsel %vm136, %v8804, 0
  %v9107 = vsel %vm136, %v8805, 0
  %v9110 = vsel %vm136, %v8806, 0
  %v9113 = vsel %vm136, %v8807, 0
  %v9116 = vsel %vm136, %v8808, 0
  %v9119 = vsel %vm136, %v8809, 0
  %v9122 = vsel %vm136, %v8810, 0
  %v9125 = vsel %vm136, %v8811, 0
  %v9128 = vsel %vm136, %v8812, 0
  %v9131 = vsel %vm136, %v8813, 0
  %v9134 = vsel %vm136, %v8814, 0
  %v9137 = vsel %vm136, %v8815, 0
  %v9140 = vsel %vm136, %v8816, 0
  %v9143 = vsel %vm136, %v8817, 0
  %v9146 = vsel %vm136, %v8818, 0
  %v9149 = vsel %vm136, %v8819, 0
  %v9152 = vsel %vm136, %v8820, 0
  %v9155 = vsel %vm136, %v8821, 0
  %v9158 = vsel %vm136, %v8822, 0
  %v9161 = vsel %vm136, %v8823, 0
  %9163 = vmatpush.msra.mxu0 0.0
  %9164 = vmatpush.msra.mxu0 0.0
  %9165 = vmatpush.msra.mxu0 0.0
  %9166 = vmatpush.msra.mxu0 0.0
  %9167 = vmatpush.msra.mxu0 0.0
  %9168 = vmatpush.msra.mxu0 0.0
  %9169 = vmatpush.msra.mxu0 0.0
  %9170 = vmatpush.msra.mxu0 0.0
  %9171 = vmatpush.msra.mxu0 0.0
  %9172 = vmatpush.msra.mxu0 0.0
  %9173 = vmatpush.msra.mxu0 0.0
  %9174 = vmatpush.msra.mxu0 0.0
  %9175 = vmatpush.msra.mxu0 0.0
  %9176 = vmatpush.msra.mxu0 0.0
  %9177 = vmatpush.msra.mxu0 0.0
  %9178 = vmatpush.msra.mxu0 %v8824
  %9179 = vmatmul.f32.gmra.mxu0 %v9068
  %v9180 = vpop.f32.mrf.mxu0
  %v9181 = vadd.f32 %v8972, %v9180
  %9182 = vmatmul.f32.gmra.mxu0 %v9071
  %v9183 = vpop.f32.mrf.mxu0
  %v9184 = vadd.f32 %v8975, %v9183
  %9185 = vmatmul.f32.gmra.mxu0 %v9074
  %v9186 = vpop.f32.mrf.mxu0
  %v9187 = vadd.f32 %v8978, %v9186
  %9188 = vmatmul.f32.gmra.mxu0 %v9077
  %v9189 = vpop.f32.mrf.mxu0
  %v9190 = vadd.f32 %v8981, %v9189
  %9191 = vmatmul.f32.gmra.mxu0 %v9080
  %v9192 = vpop.f32.mrf.mxu0
  %v9193 = vadd.f32 %v8984, %v9192
  %9194 = vmatmul.f32.gmra.mxu0 %v9083
  %v9195 = vpop.f32.mrf.mxu0
  %v9196 = vadd.f32 %v8987, %v9195
  %9197 = vmatmul.f32.gmra.mxu0 %v9086
  %v9198 = vpop.f32.mrf.mxu0
  %v9199 = vadd.f32 %v8990, %v9198
  %9200 = vmatmul.f32.gmra.mxu0 %v9089
  %v9201 = vpop.f32.mrf.mxu0
  %v9202 = vadd.f32 %v8993, %v9201
  %9203 = vmatmul.f32.gmra.mxu0 %v9092
  %v9204 = vpop.f32.mrf.mxu0
  %v9205 = vadd.f32 %v8996, %v9204
  %9206 = vmatmul.f32.gmra.mxu0 %v9095
  %v9207 = vpop.f32.mrf.mxu0
  %v9208 = vadd.f32 %v8999, %v9207
  %9209 = vmatmul.f32.gmra.mxu0 %v9098
  %v9210 = vpop.f32.mrf.mxu0
  %v9211 = vadd.f32 %v9002, %v9210
  %9212 = vmatmul.f32.gmra.mxu0 %v9101
  %v9213 = vpop.f32.mrf.mxu0
  %v9214 = vadd.f32 %v9005, %v9213
  %9215 = vmatmul.f32.gmra.mxu0 %v9104
  %v9216 = vpop.f32.mrf.mxu0
  %v9217 = vadd.f32 %v9008, %v9216
  %9218 = vmatmul.f32.gmra.mxu0 %v9107
  %v9219 = vpop.f32.mrf.mxu0
  %v9220 = vadd.f32 %v9011, %v9219
  %9221 = vmatmul.f32.gmra.mxu0 %v9110
  %v9222 = vpop.f32.mrf.mxu0
  %v9223 = vadd.f32 %v9014, %v9222
  %9224 = vmatmul.f32.gmra.mxu0 %v9113
  %v9225 = vpop.f32.mrf.mxu0
  %v9226 = vadd.f32 %v9017, %v9225
  %9227 = vmatmul.f32.gmra.mxu0 %v9116
  %v9228 = vpop.f32.mrf.mxu0
  %v9229 = vadd.f32 %v9020, %v9228
  %9230 = vmatmul.f32.gmra.mxu0 %v9119
  %v9231 = vpop.f32.mrf.mxu0
  %v9232 = vadd.f32 %v9023, %v9231
  %9233 = vmatmul.f32.gmra.mxu0 %v9122
  %v9234 = vpop.f32.mrf.mxu0
  %v9235 = vadd.f32 %v9026, %v9234
  %9236 = vmatmul.f32.gmra.mxu0 %v9125
  %v9237 = vpop.f32.mrf.mxu0
  %v9238 = vadd.f32 %v9029, %v9237
  %9239 = vmatmul.f32.gmra.mxu0 %v9128
  %v9240 = vpop.f32.mrf.mxu0
  %v9241 = vadd.f32 %v9032, %v9240
  %9242 = vmatmul.f32.gmra.mxu0 %v9131
  %v9243 = vpop.f32.mrf.mxu0
  %v9244 = vadd.f32 %v9035, %v9243
  %9245 = vmatmul.f32.gmra.mxu0 %v9134
  %v9246 = vpop.f32.mrf.mxu0
  %v9247 = vadd.f32 %v9038, %v9246
  %9248 = vmatmul.f32.gmra.mxu0 %v9137
  %v9249 = vpop.f32.mrf.mxu0
  %v9250 = vadd.f32 %v9041, %v9249
  %9251 = vmatmul.f32.gmra.mxu0 %v9140
  %v9252 = vpop.f32.mrf.mxu0
  %v9253 = vadd.f32 %v9044, %v9252
  %9254 = vmatmul.f32.gmra.mxu0 %v9143
  %v9255 = vpop.f32.mrf.mxu0
  %v9256 = vadd.f32 %v9047, %v9255
  %9257 = vmatmul.f32.gmra.mxu0 %v9146
  %v9258 = vpop.f32.mrf.mxu0
  %v9259 = vadd.f32 %v9050, %v9258
  %9260 = vmatmul.f32.gmra.mxu0 %v9149
  %v9261 = vpop.f32.mrf.mxu0
  %v9262 = vadd.f32 %v9053, %v9261
  %9263 = vmatmul.f32.gmra.mxu0 %v9152
  %v9264 = vpop.f32.mrf.mxu0
  %v9265 = vadd.f32 %v9056, %v9264
  %9266 = vmatmul.f32.gmra.mxu0 %v9155
  %v9267 = vpop.f32.mrf.mxu0
  %v9268 = vadd.f32 %v9059, %v9267
  %9269 = vmatmul.f32.gmra.mxu0 %v9158
  %v9270 = vpop.f32.mrf.mxu0
  %v9271 = vadd.f32 %v9062, %v9270
  %9272 = vmatmul.f32.gmra.mxu0 %v9161
  %v9273 = vpop.f32.mrf.mxu0
  %v9274 = vadd.f32 %v9065, %v9273
  %9275 = vdwg.mxu0
  %v9276 = vld [vmem:[%s8791 + $0x2] sm:$0xff]
  %v9277 = vld [vmem:[%s8791 + $0xa] sm:$0xff]
  %v9278 = vld [vmem:[%s8791 + $0x1a] sm:$0xff]
  %v9279 = vld [vmem:[%s8791 + $0x22] sm:$0xff]
  %v9280 = vld [vmem:[%s8791 + $0x32] sm:$0xff]
  %v9281 = vld [vmem:[%s8791 + $0x3a] sm:$0xff]
  %v9282 = vld [vmem:[%s8791 + $0x4a] sm:$0xff]
  %v9283 = vld [vmem:[%s8791 + $0x52] sm:$0xff]
  %v9284 = vld [vmem:[%s8791 + $0x62] sm:$0xff]
  %v9285 = vld [vmem:[%s8791 + $0x6a] sm:$0xff]
  %v9286 = vld [vmem:[%s8791 + $0x7a] sm:$0xff]
  %v9287 = vld [vmem:[%s8791 + $0x82] sm:$0xff]
  %v9288 = vld [vmem:[%s8791 + $0x92] sm:$0xff]
  %v9289 = vld [vmem:[%s8791 + $0x9a] sm:$0xff]
  %v9290 = vld [vmem:[%s8791 + $0xaa] sm:$0xff]
  %v9291 = vld [vmem:[%s8791 + $0xb2] sm:$0xff]
  %v9292 = vld [vmem:[%s8791 + $0xc2] sm:$0xff]
  %v9293 = vld [vmem:[%s8791 + $0xca] sm:$0xff]
  %v9294 = vld [vmem:[%s8791 + $0xda] sm:$0xff]
  %v9295 = vld [vmem:[%s8791 + $0xe2] sm:$0xff]
  %v9296 = vld [vmem:[%s8791 + $0xf2] sm:$0xff]
  %v9297 = vld [vmem:[%s8791 + $0xfa] sm:$0xff]
  %v9298 = vld [vmem:[%s8791 + $0x10a] sm:$0xff]
  %v9299 = vld [vmem:[%s8791 + $0x112] sm:$0xff]
  %v9300 = vld [vmem:[%s8791 + $0x122] sm:$0xff]
  %v9301 = vld [vmem:[%s8791 + $0x12a] sm:$0xff]
  %v9302 = vld [vmem:[%s8791 + $0x13a] sm:$0xff]
  %v9303 = vld [vmem:[%s8791 + $0x142] sm:$0xff]
  %v9304 = vld [vmem:[%s8791 + $0x152] sm:$0xff]
  %v9305 = vld [vmem:[%s8791 + $0x15a] sm:$0xff]
  %v9306 = vld [vmem:[%s8791 + $0x16a] sm:$0xff]
  %v9307 = vld [vmem:[%s8791 + $0x172] sm:$0xff]
  %v9308 = vld [vmem:[%s6699] sm:$0xff]
  %v9310 = vsel %vm136, %v9276, 0
  %v9313 = vsel %vm136, %v9277, 0
  %v9316 = vsel %vm136, %v9278, 0
  %v9319 = vsel %vm136, %v9279, 0
  %v9322 = vsel %vm136, %v9280, 0
  %v9325 = vsel %vm136, %v9281, 0
  %v9328 = vsel %vm136, %v9282, 0
  %v9331 = vsel %vm136, %v9283, 0
  %v9334 = vsel %vm136, %v9284, 0
  %v9337 = vsel %vm136, %v9285, 0
  %v9340 = vsel %vm136, %v9286, 0
  %v9343 = vsel %vm136, %v9287, 0
  %v9346 = vsel %vm136, %v9288, 0
  %v9349 = vsel %vm136, %v9289, 0
  %v9352 = vsel %vm136, %v9290, 0
  %v9355 = vsel %vm136, %v9291, 0
  %v9358 = vsel %vm136, %v9292, 0
  %v9361 = vsel %vm136, %v9293, 0
  %v9364 = vsel %vm136, %v9294, 0
  %v9367 = vsel %vm136, %v9295, 0
  %v9370 = vsel %vm136, %v9296, 0
  %v9373 = vsel %vm136, %v9297, 0
  %v9376 = vsel %vm136, %v9298, 0
  %v9379 = vsel %vm136, %v9299, 0
  %v9382 = vsel %vm136, %v9300, 0
  %v9385 = vsel %vm136, %v9301, 0
  %v9388 = vsel %vm136, %v9302, 0
  %v9391 = vsel %vm136, %v9303, 0
  %v9394 = vsel %vm136, %v9304, 0
  %v9397 = vsel %vm136, %v9305, 0
  %v9400 = vsel %vm136, %v9306, 0
  %v9403 = vsel %vm136, %v9307, 0
  %9405 = vmatpush.msra.mxu0 0.0
  %9406 = vmatpush.msra.mxu0 0.0
  %9407 = vmatpush.msra.mxu0 0.0
  %9408 = vmatpush.msra.mxu0 0.0
  %9409 = vmatpush.msra.mxu0 0.0
  %9410 = vmatpush.msra.mxu0 0.0
  %9411 = vmatpush.msra.mxu0 0.0
  %9412 = vmatpush.msra.mxu0 0.0
  %9413 = vmatpush.msra.mxu0 0.0
  %9414 = vmatpush.msra.mxu0 0.0
  %9415 = vmatpush.msra.mxu0 0.0
  %9416 = vmatpush.msra.mxu0 0.0
  %9417 = vmatpush.msra.mxu0 0.0
  %9418 = vmatpush.msra.mxu0 0.0
  %9419 = vmatpush.msra.mxu0 0.0
  %9420 = vmatpush.msra.mxu0 %v9308
  %9421 = vmatmul.f32.gmra.mxu0 %v9310
  %v9422 = vpop.f32.mrf.mxu0
  %v9423 = vadd.f32 0.0, %v9422
  %9424 = vmatmul.f32.gmra.mxu0 %v9313
  %v9425 = vpop.f32.mrf.mxu0
  %v9426 = vadd.f32 0.0, %v9425
  %9427 = vmatmul.f32.gmra.mxu0 %v9316
  %v9428 = vpop.f32.mrf.mxu0
  %v9429 = vadd.f32 0.0, %v9428
  %9430 = vmatmul.f32.gmra.mxu0 %v9319
  %v9431 = vpop.f32.mrf.mxu0
  %v9432 = vadd.f32 0.0, %v9431
  %9433 = vmatmul.f32.gmra.mxu0 %v9322
  %v9434 = vpop.f32.mrf.mxu0
  %v9435 = vadd.f32 0.0, %v9434
  %9436 = vmatmul.f32.gmra.mxu0 %v9325
  %v9437 = vpop.f32.mrf.mxu0
  %v9438 = vadd.f32 0.0, %v9437
  %9439 = vmatmul.f32.gmra.mxu0 %v9328
  %v9440 = vpop.f32.mrf.mxu0
  %v9441 = vadd.f32 0.0, %v9440
  %9442 = vmatmul.f32.gmra.mxu0 %v9331
  %v9443 = vpop.f32.mrf.mxu0
  %v9444 = vadd.f32 0.0, %v9443
  %9445 = vmatmul.f32.gmra.mxu0 %v9334
  %v9446 = vpop.f32.mrf.mxu0
  %v9447 = vadd.f32 0.0, %v9446
  %9448 = vmatmul.f32.gmra.mxu0 %v9337
  %v9449 = vpop.f32.mrf.mxu0
  %v9450 = vadd.f32 0.0, %v9449
  %9451 = vmatmul.f32.gmra.mxu0 %v9340
  %v9452 = vpop.f32.mrf.mxu0
  %v9453 = vadd.f32 0.0, %v9452
  %9454 = vmatmul.f32.gmra.mxu0 %v9343
  %v9455 = vpop.f32.mrf.mxu0
  %v9456 = vadd.f32 0.0, %v9455
  %9457 = vmatmul.f32.gmra.mxu0 %v9346
  %v9458 = vpop.f32.mrf.mxu0
  %v9459 = vadd.f32 0.0, %v9458
  %9460 = vmatmul.f32.gmra.mxu0 %v9349
  %v9461 = vpop.f32.mrf.mxu0
  %v9462 = vadd.f32 0.0, %v9461
  %9463 = vmatmul.f32.gmra.mxu0 %v9352
  %v9464 = vpop.f32.mrf.mxu0
  %v9465 = vadd.f32 0.0, %v9464
  %9466 = vmatmul.f32.gmra.mxu0 %v9355
  %v9467 = vpop.f32.mrf.mxu0
  %v9468 = vadd.f32 0.0, %v9467
  %9469 = vmatmul.f32.gmra.mxu0 %v9358
  %v9470 = vpop.f32.mrf.mxu0
  %v9471 = vadd.f32 0.0, %v9470
  %9472 = vmatmul.f32.gmra.mxu0 %v9361
  %v9473 = vpop.f32.mrf.mxu0
  %v9474 = vadd.f32 0.0, %v9473
  %9475 = vmatmul.f32.gmra.mxu0 %v9364
  %v9476 = vpop.f32.mrf.mxu0
  %v9477 = vadd.f32 0.0, %v9476
  %9478 = vmatmul.f32.gmra.mxu0 %v9367
  %v9479 = vpop.f32.mrf.mxu0
  %v9480 = vadd.f32 0.0, %v9479
  %9481 = vmatmul.f32.gmra.mxu0 %v9370
  %v9482 = vpop.f32.mrf.mxu0
  %v9483 = vadd.f32 0.0, %v9482
  %9484 = vmatmul.f32.gmra.mxu0 %v9373
  %v9485 = vpop.f32.mrf.mxu0
  %v9486 = vadd.f32 0.0, %v9485
  %9487 = vmatmul.f32.gmra.mxu0 %v9376
  %v9488 = vpop.f32.mrf.mxu0
  %v9489 = vadd.f32 0.0, %v9488
  %9490 = vmatmul.f32.gmra.mxu0 %v9379
  %v9491 = vpop.f32.mrf.mxu0
  %v9492 = vadd.f32 0.0, %v9491
  %9493 = vmatmul.f32.gmra.mxu0 %v9382
  %v9494 = vpop.f32.mrf.mxu0
  %v9495 = vadd.f32 0.0, %v9494
  %9496 = vmatmul.f32.gmra.mxu0 %v9385
  %v9497 = vpop.f32.mrf.mxu0
  %v9498 = vadd.f32 0.0, %v9497
  %9499 = vmatmul.f32.gmra.mxu0 %v9388
  %v9500 = vpop.f32.mrf.mxu0
  %v9501 = vadd.f32 0.0, %v9500
  %9502 = vmatmul.f32.gmra.mxu0 %v9391
  %v9503 = vpop.f32.mrf.mxu0
  %v9504 = vadd.f32 0.0, %v9503
  %9505 = vmatmul.f32.gmra.mxu0 %v9394
  %v9506 = vpop.f32.mrf.mxu0
  %v9507 = vadd.f32 0.0, %v9506
  %9508 = vmatmul.f32.gmra.mxu0 %v9397
  %v9509 = vpop.f32.mrf.mxu0
  %v9510 = vadd.f32 0.0, %v9509
  %9511 = vmatmul.f32.gmra.mxu0 %v9400
  %v9512 = vpop.f32.mrf.mxu0
  %v9513 = vadd.f32 0.0, %v9512
  %9514 = vmatmul.f32.gmra.mxu0 %v9403
  %v9515 = vpop.f32.mrf.mxu0
  %v9516 = vadd.f32 0.0, %v9515
  %9517 = vdwg.mxu0
  %v9518 = vadd.f32 %v9181, %v9423
  %v9519 = vadd.f32 %v9184, %v9426
  %v9520 = vadd.f32 %v9187, %v9429
  %v9521 = vadd.f32 %v9190, %v9432
  %v9522 = vadd.f32 %v9193, %v9435
  %v9523 = vadd.f32 %v9196, %v9438
  %v9524 = vadd.f32 %v9199, %v9441
  %v9525 = vadd.f32 %v9202, %v9444
  %v9526 = vadd.f32 %v9205, %v9447
  %v9527 = vadd.f32 %v9208, %v9450
  %v9528 = vadd.f32 %v9211, %v9453
  %v9529 = vadd.f32 %v9214, %v9456
  %v9530 = vadd.f32 %v9217, %v9459
  %v9531 = vadd.f32 %v9220, %v9462
  %v9532 = vadd.f32 %v9223, %v9465
  %v9533 = vadd.f32 %v9226, %v9468
  %v9534 = vadd.f32 %v9229, %v9471
  %v9535 = vadd.f32 %v9232, %v9474
  %v9536 = vadd.f32 %v9235, %v9477
  %v9537 = vadd.f32 %v9238, %v9480
  %v9538 = vadd.f32 %v9241, %v9483
  %v9539 = vadd.f32 %v9244, %v9486
  %v9540 = vadd.f32 %v9247, %v9489
  %v9541 = vadd.f32 %v9250, %v9492
  %v9542 = vadd.f32 %v9253, %v9495
  %v9543 = vadd.f32 %v9256, %v9498
  %v9544 = vadd.f32 %v9259, %v9501
  %v9545 = vadd.f32 %v9262, %v9504
  %v9546 = vadd.f32 %v9265, %v9507
  %v9547 = vadd.f32 %v9268, %v9510
  %v9548 = vadd.f32 %v9271, %v9513
  %v9549 = vadd.f32 %v9274, %v9516
  %v9550 = vld [vmem:[%s6149] sm:$0xff]
  %v9551 = vld [vmem:[%s6149 + $0x8] sm:$0xff]
  %v9552 = vld [vmem:[%s6149 + $0x18] sm:$0xff]
  %v9553 = vld [vmem:[%s6149 + $0x20] sm:$0xff]
  %v9554 = vld [vmem:[%s6149 + $0x30] sm:$0xff]
  %v9555 = vld [vmem:[%s6149 + $0x38] sm:$0xff]
  %v9556 = vld [vmem:[%s6149 + $0x48] sm:$0xff]
  %v9557 = vld [vmem:[%s6149 + $0x50] sm:$0xff]
  %v9558 = vld [vmem:[%s6149 + $0x60] sm:$0xff]
  %v9559 = vld [vmem:[%s6149 + $0x68] sm:$0xff]
  %v9560 = vld [vmem:[%s6149 + $0x78] sm:$0xff]
  %v9561 = vld [vmem:[%s6149 + $0x80] sm:$0xff]
  %v9562 = vld [vmem:[%s6149 + $0x90] sm:$0xff]
  %v9563 = vld [vmem:[%s6149 + $0x98] sm:$0xff]
  %v9564 = vld [vmem:[%s6149 + $0xa8] sm:$0xff]
  %v9565 = vld [vmem:[%s6149 + $0xb0] sm:$0xff]
  %v9566 = vld [vmem:[%s6149 + $0xc0] sm:$0xff]
  %v9567 = vld [vmem:[%s6149 + $0xc8] sm:$0xff]
  %v9568 = vld [vmem:[%s6149 + $0xd8] sm:$0xff]
  %v9569 = vld [vmem:[%s6149 + $0xe0] sm:$0xff]
  %v9570 = vld [vmem:[%s6149 + $0xf0] sm:$0xff]
  %v9571 = vld [vmem:[%s6149 + $0xf8] sm:$0xff]
  %v9572 = vld [vmem:[%s6149 + $0x108] sm:$0xff]
  %v9573 = vld [vmem:[%s6149 + $0x110] sm:$0xff]
  %v9574 = vld [vmem:[%s6149 + $0x120] sm:$0xff]
  %v9575 = vld [vmem:[%s6149 + $0x128] sm:$0xff]
  %v9576 = vld [vmem:[%s6149 + $0x138] sm:$0xff]
  %v9577 = vld [vmem:[%s6149 + $0x140] sm:$0xff]
  %v9578 = vld [vmem:[%s6149 + $0x150] sm:$0xff]
  %v9579 = vld [vmem:[%s6149 + $0x158] sm:$0xff]
  %v9580 = vld [vmem:[%s6149 + $0x168] sm:$0xff]
  %v9581 = vld [vmem:[%s6149 + $0x170] sm:$0xff]
  %v9582 = vld [vmem:[%s6974] sm:$0xff]
  %v9584 = vsel %vm136, %v9550, 0
  %v9587 = vsel %vm136, %v9551, 0
  %v9590 = vsel %vm136, %v9552, 0
  %v9593 = vsel %vm136, %v9553, 0
  %v9596 = vsel %vm136, %v9554, 0
  %v9599 = vsel %vm136, %v9555, 0
  %v9602 = vsel %vm136, %v9556, 0
  %v9605 = vsel %vm136, %v9557, 0
  %v9608 = vsel %vm136, %v9558, 0
  %v9611 = vsel %vm136, %v9559, 0
  %v9614 = vsel %vm136, %v9560, 0
  %v9617 = vsel %vm136, %v9561, 0
  %v9620 = vsel %vm136, %v9562, 0
  %v9623 = vsel %vm136, %v9563, 0
  %v9626 = vsel %vm136, %v9564, 0
  %v9629 = vsel %vm136, %v9565, 0
  %v9632 = vsel %vm136, %v9566, 0
  %v9635 = vsel %vm136, %v9567, 0
  %v9638 = vsel %vm136, %v9568, 0
  %v9641 = vsel %vm136, %v9569, 0
  %v9644 = vsel %vm136, %v9570, 0
  %v9647 = vsel %vm136, %v9571, 0
  %v9650 = vsel %vm136, %v9572, 0
  %v9653 = vsel %vm136, %v9573, 0
  %v9656 = vsel %vm136, %v9574, 0
  %v9659 = vsel %vm136, %v9575, 0
  %v9662 = vsel %vm136, %v9576, 0
  %v9665 = vsel %vm136, %v9577, 0
  %v9668 = vsel %vm136, %v9578, 0
  %v9671 = vsel %vm136, %v9579, 0
  %v9674 = vsel %vm136, %v9580, 0
  %v9677 = vsel %vm136, %v9581, 0
  %9679 = vmatpush.msra.mxu0 0.0
  %9680 = vmatpush.msra.mxu0 0.0
  %9681 = vmatpush.msra.mxu0 0.0
  %9682 = vmatpush.msra.mxu0 0.0
  %9683 = vmatpush.msra.mxu0 0.0
  %9684 = vmatpush.msra.mxu0 0.0
  %9685 = vmatpush.msra.mxu0 0.0
  %9686 = vmatpush.msra.mxu0 0.0
  %9687 = vmatpush.msra.mxu0 0.0
  %9688 = vmatpush.msra.mxu0 0.0
  %9689 = vmatpush.msra.mxu0 0.0
  %9690 = vmatpush.msra.mxu0 0.0
  %9691 = vmatpush.msra.mxu0 0.0
  %9692 = vmatpush.msra.mxu0 0.0
  %9693 = vmatpush.msra.mxu0 0.0
  %9694 = vmatpush.msra.mxu0 %v9582
  %9695 = vmatmul.f32.gmra.mxu0 %v9584
  %v9696 = vpop.f32.mrf.mxu0
  %v9697 = vadd.f32 0.0, %v9696
  %9698 = vmatmul.f32.gmra.mxu0 %v9587
  %v9699 = vpop.f32.mrf.mxu0
  %v9700 = vadd.f32 0.0, %v9699
  %9701 = vmatmul.f32.gmra.mxu0 %v9590
  %v9702 = vpop.f32.mrf.mxu0
  %v9703 = vadd.f32 0.0, %v9702
  %9704 = vmatmul.f32.gmra.mxu0 %v9593
  %v9705 = vpop.f32.mrf.mxu0
  %v9706 = vadd.f32 0.0, %v9705
  %9707 = vmatmul.f32.gmra.mxu0 %v9596
  %v9708 = vpop.f32.mrf.mxu0
  %v9709 = vadd.f32 0.0, %v9708
  %9710 = vmatmul.f32.gmra.mxu0 %v9599
  %v9711 = vpop.f32.mrf.mxu0
  %v9712 = vadd.f32 0.0, %v9711
  %9713 = vmatmul.f32.gmra.mxu0 %v9602
  %v9714 = vpop.f32.mrf.mxu0
  %v9715 = vadd.f32 0.0, %v9714
  %9716 = vmatmul.f32.gmra.mxu0 %v9605
  %v9717 = vpop.f32.mrf.mxu0
  %v9718 = vadd.f32 0.0, %v9717
  %9719 = vmatmul.f32.gmra.mxu0 %v9608
  %v9720 = vpop.f32.mrf.mxu0
  %v9721 = vadd.f32 0.0, %v9720
  %9722 = vmatmul.f32.gmra.mxu0 %v9611
  %v9723 = vpop.f32.mrf.mxu0
  %v9724 = vadd.f32 0.0, %v9723
  %9725 = vmatmul.f32.gmra.mxu0 %v9614
  %v9726 = vpop.f32.mrf.mxu0
  %v9727 = vadd.f32 0.0, %v9726
  %9728 = vmatmul.f32.gmra.mxu0 %v9617
  %v9729 = vpop.f32.mrf.mxu0
  %v9730 = vadd.f32 0.0, %v9729
  %9731 = vmatmul.f32.gmra.mxu0 %v9620
  %v9732 = vpop.f32.mrf.mxu0
  %v9733 = vadd.f32 0.0, %v9732
  %9734 = vmatmul.f32.gmra.mxu0 %v9623
  %v9735 = vpop.f32.mrf.mxu0
  %v9736 = vadd.f32 0.0, %v9735
  %9737 = vmatmul.f32.gmra.mxu0 %v9626
  %v9738 = vpop.f32.mrf.mxu0
  %v9739 = vadd.f32 0.0, %v9738
  %9740 = vmatmul.f32.gmra.mxu0 %v9629
  %v9741 = vpop.f32.mrf.mxu0
  %v9742 = vadd.f32 0.0, %v9741
  %9743 = vmatmul.f32.gmra.mxu0 %v9632
  %v9744 = vpop.f32.mrf.mxu0
  %v9745 = vadd.f32 0.0, %v9744
  %9746 = vmatmul.f32.gmra.mxu0 %v9635
  %v9747 = vpop.f32.mrf.mxu0
  %v9748 = vadd.f32 0.0, %v9747
  %9749 = vmatmul.f32.gmra.mxu0 %v9638
  %v9750 = vpop.f32.mrf.mxu0
  %v9751 = vadd.f32 0.0, %v9750
  %9752 = vmatmul.f32.gmra.mxu0 %v9641
  %v9753 = vpop.f32.mrf.mxu0
  %v9754 = vadd.f32 0.0, %v9753
  %9755 = vmatmul.f32.gmra.mxu0 %v9644
  %v9756 = vpop.f32.mrf.mxu0
  %v9757 = vadd.f32 0.0, %v9756
  %9758 = vmatmul.f32.gmra.mxu0 %v9647
  %v9759 = vpop.f32.mrf.mxu0
  %v9760 = vadd.f32 0.0, %v9759
  %9761 = vmatmul.f32.gmra.mxu0 %v9650
  %v9762 = vpop.f32.mrf.mxu0
  %v9763 = vadd.f32 0.0, %v9762
  %9764 = vmatmul.f32.gmra.mxu0 %v9653
  %v9765 = vpop.f32.mrf.mxu0
  %v9766 = vadd.f32 0.0, %v9765
  %9767 = vmatmul.f32.gmra.mxu0 %v9656
  %v9768 = vpop.f32.mrf.mxu0
  %v9769 = vadd.f32 0.0, %v9768
  %9770 = vmatmul.f32.gmra.mxu0 %v9659
  %v9771 = vpop.f32.mrf.mxu0
  %v9772 = vadd.f32 0.0, %v9771
  %9773 = vmatmul.f32.gmra.mxu0 %v9662
  %v9774 = vpop.f32.mrf.mxu0
  %v9775 = vadd.f32 0.0, %v9774
  %9776 = vmatmul.f32.gmra.mxu0 %v9665
  %v9777 = vpop.f32.mrf.mxu0
  %v9778 = vadd.f32 0.0, %v9777
  %9779 = vmatmul.f32.gmra.mxu0 %v9668
  %v9780 = vpop.f32.mrf.mxu0
  %v9781 = vadd.f32 0.0, %v9780
  %9782 = vmatmul.f32.gmra.mxu0 %v9671
  %v9783 = vpop.f32.mrf.mxu0
  %v9784 = vadd.f32 0.0, %v9783
  %9785 = vmatmul.f32.gmra.mxu0 %v9674
  %v9786 = vpop.f32.mrf.mxu0
  %v9787 = vadd.f32 0.0, %v9786
  %9788 = vmatmul.f32.gmra.mxu0 %v9677
  %v9789 = vpop.f32.mrf.mxu0
  %v9790 = vadd.f32 0.0, %v9789
  %9791 = vdwg.mxu0
  %v9792 = vadd.f32 %v9518, %v9697
  %v9793 = vadd.f32 %v9519, %v9700
  %v9794 = vadd.f32 %v9520, %v9703
  %v9795 = vadd.f32 %v9521, %v9706
  %v9796 = vadd.f32 %v9522, %v9709
  %v9797 = vadd.f32 %v9523, %v9712
  %v9798 = vadd.f32 %v9524, %v9715
  %v9799 = vadd.f32 %v9525, %v9718
  %v9800 = vadd.f32 %v9526, %v9721
  %v9801 = vadd.f32 %v9527, %v9724
  %v9802 = vadd.f32 %v9528, %v9727
  %v9803 = vadd.f32 %v9529, %v9730
  %v9804 = vadd.f32 %v9530, %v9733
  %v9805 = vadd.f32 %v9531, %v9736
  %v9806 = vadd.f32 %v9532, %v9739
  %v9807 = vadd.f32 %v9533, %v9742
  %v9808 = vadd.f32 %v9534, %v9745
  %v9809 = vadd.f32 %v9535, %v9748
  %v9810 = vadd.f32 %v9536, %v9751
  %v9811 = vadd.f32 %v9537, %v9754
  %v9812 = vadd.f32 %v9538, %v9757
  %v9813 = vadd.f32 %v9539, %v9760
  %v9814 = vadd.f32 %v9540, %v9763
  %v9815 = vadd.f32 %v9541, %v9766
  %v9816 = vadd.f32 %v9542, %v9769
  %v9817 = vadd.f32 %v9543, %v9772
  %v9818 = vadd.f32 %v9544, %v9775
  %v9819 = vadd.f32 %v9545, %v9778
  %v9820 = vadd.f32 %v9546, %v9781
  %v9821 = vadd.f32 %v9547, %v9784
  %v9822 = vadd.f32 %v9548, %v9787
  %v9823 = vadd.f32 %v9549, %v9790
  %v9824 = vld [vmem:[%s6149 + $0x1] sm:$0xff]
  %v9825 = vld [vmem:[%s6149 + $0x9] sm:$0xff]
  %v9826 = vld [vmem:[%s6149 + $0x19] sm:$0xff]
  %v9827 = vld [vmem:[%s6149 + $0x21] sm:$0xff]
  %v9828 = vld [vmem:[%s6149 + $0x31] sm:$0xff]
  %v9829 = vld [vmem:[%s6149 + $0x39] sm:$0xff]
  %v9830 = vld [vmem:[%s6149 + $0x49] sm:$0xff]
  %v9831 = vld [vmem:[%s6149 + $0x51] sm:$0xff]
  %v9832 = vld [vmem:[%s6149 + $0x61] sm:$0xff]
  %v9833 = vld [vmem:[%s6149 + $0x69] sm:$0xff]
  %v9834 = vld [vmem:[%s6149 + $0x79] sm:$0xff]
  %v9835 = vld [vmem:[%s6149 + $0x81] sm:$0xff]
  %v9836 = vld [vmem:[%s6149 + $0x91] sm:$0xff]
  %v9837 = vld [vmem:[%s6149 + $0x99] sm:$0xff]
  %v9838 = vld [vmem:[%s6149 + $0xa9] sm:$0xff]
  %v9839 = vld [vmem:[%s6149 + $0xb1] sm:$0xff]
  %v9840 = vld [vmem:[%s6149 + $0xc1] sm:$0xff]
  %v9841 = vld [vmem:[%s6149 + $0xc9] sm:$0xff]
  %v9842 = vld [vmem:[%s6149 + $0xd9] sm:$0xff]
  %v9843 = vld [vmem:[%s6149 + $0xe1] sm:$0xff]
  %v9844 = vld [vmem:[%s6149 + $0xf1] sm:$0xff]
  %v9845 = vld [vmem:[%s6149 + $0xf9] sm:$0xff]
  %v9846 = vld [vmem:[%s6149 + $0x109] sm:$0xff]
  %v9847 = vld [vmem:[%s6149 + $0x111] sm:$0xff]
  %v9848 = vld [vmem:[%s6149 + $0x121] sm:$0xff]
  %v9849 = vld [vmem:[%s6149 + $0x129] sm:$0xff]
  %v9850 = vld [vmem:[%s6149 + $0x139] sm:$0xff]
  %v9851 = vld [vmem:[%s6149 + $0x141] sm:$0xff]
  %v9852 = vld [vmem:[%s6149 + $0x151] sm:$0xff]
  %v9853 = vld [vmem:[%s6149 + $0x159] sm:$0xff]
  %v9854 = vld [vmem:[%s6149 + $0x169] sm:$0xff]
  %v9855 = vld [vmem:[%s6149 + $0x171] sm:$0xff]
  %v9856 = vld [vmem:[%s7249] sm:$0xff]
  %v9858 = vsel %vm136, %v9824, 0
  %v9861 = vsel %vm136, %v9825, 0
  %v9864 = vsel %vm136, %v9826, 0
  %v9867 = vsel %vm136, %v9827, 0
  %v9870 = vsel %vm136, %v9828, 0
  %v9873 = vsel %vm136, %v9829, 0
  %v9876 = vsel %vm136, %v9830, 0
  %v9879 = vsel %vm136, %v9831, 0
  %v9882 = vsel %vm136, %v9832, 0
  %v9885 = vsel %vm136, %v9833, 0
  %v9888 = vsel %vm136, %v9834, 0
  %v9891 = vsel %vm136, %v9835, 0
  %v9894 = vsel %vm136, %v9836, 0
  %v9897 = vsel %vm136, %v9837, 0
  %v9900 = vsel %vm136, %v9838, 0
  %v9903 = vsel %vm136, %v9839, 0
  %v9906 = vsel %vm136, %v9840, 0
  %v9909 = vsel %vm136, %v9841, 0
  %v9912 = vsel %vm136, %v9842, 0
  %v9915 = vsel %vm136, %v9843, 0
  %v9918 = vsel %vm136, %v9844, 0
  %v9921 = vsel %vm136, %v9845, 0
  %v9924 = vsel %vm136, %v9846, 0
  %v9927 = vsel %vm136, %v9847, 0
  %v9930 = vsel %vm136, %v9848, 0
  %v9933 = vsel %vm136, %v9849, 0
  %v9936 = vsel %vm136, %v9850, 0
  %v9939 = vsel %vm136, %v9851, 0
  %v9942 = vsel %vm136, %v9852, 0
  %v9945 = vsel %vm136, %v9853, 0
  %v9948 = vsel %vm136, %v9854, 0
  %v9951 = vsel %vm136, %v9855, 0
  %9953 = vmatpush.msra.mxu0 0.0
  %9954 = vmatpush.msra.mxu0 0.0
  %9955 = vmatpush.msra.mxu0 0.0
  %9956 = vmatpush.msra.mxu0 0.0
  %9957 = vmatpush.msra.mxu0 0.0
  %9958 = vmatpush.msra.mxu0 0.0
  %9959 = vmatpush.msra.mxu0 0.0
  %9960 = vmatpush.msra.mxu0 0.0
  %9961 = vmatpush.msra.mxu0 0.0
  %9962 = vmatpush.msra.mxu0 0.0
  %9963 = vmatpush.msra.mxu0 0.0
  %9964 = vmatpush.msra.mxu0 0.0
  %9965 = vmatpush.msra.mxu0 0.0
  %9966 = vmatpush.msra.mxu0 0.0
  %9967 = vmatpush.msra.mxu0 0.0
  %9968 = vmatpush.msra.mxu0 %v9856
  %9969 = vmatmul.f32.gmra.mxu0 %v9858
  %v9970 = vpop.f32.mrf.mxu0
  %v9971 = vadd.f32 0.0, %v9970
  %9972 = vmatmul.f32.gmra.mxu0 %v9861
  %v9973 = vpop.f32.mrf.mxu0
  %v9974 = vadd.f32 0.0, %v9973
  %9975 = vmatmul.f32.gmra.mxu0 %v9864
  %v9976 = vpop.f32.mrf.mxu0
  %v9977 = vadd.f32 0.0, %v9976
  %9978 = vmatmul.f32.gmra.mxu0 %v9867
  %v9979 = vpop.f32.mrf.mxu0
  %v9980 = vadd.f32 0.0, %v9979
  %9981 = vmatmul.f32.gmra.mxu0 %v9870
  %v9982 = vpop.f32.mrf.mxu0
  %v9983 = vadd.f32 0.0, %v9982
  %9984 = vmatmul.f32.gmra.mxu0 %v9873
  %v9985 = vpop.f32.mrf.mxu0
  %v9986 = vadd.f32 0.0, %v9985
  %9987 = vmatmul.f32.gmra.mxu0 %v9876
  %v9988 = vpop.f32.mrf.mxu0
  %v9989 = vadd.f32 0.0, %v9988
  %9990 = vmatmul.f32.gmra.mxu0 %v9879
  %v9991 = vpop.f32.mrf.mxu0
  %v9992 = vadd.f32 0.0, %v9991
  %9993 = vmatmul.f32.gmra.mxu0 %v9882
  %v9994 = vpop.f32.mrf.mxu0
  %v9995 = vadd.f32 0.0, %v9994
  %9996 = vmatmul.f32.gmra.mxu0 %v9885
  %v9997 = vpop.f32.mrf.mxu0
  %v9998 = vadd.f32 0.0, %v9997
  %9999 = vmatmul.f32.gmra.mxu0 %v9888
  %v10000 = vpop.f32.mrf.mxu0
  %v10001 = vadd.f32 0.0, %v10000
  %10002 = vmatmul.f32.gmra.mxu0 %v9891
  %v10003 = vpop.f32.mrf.mxu0
  %v10004 = vadd.f32 0.0, %v10003
  %10005 = vmatmul.f32.gmra.mxu0 %v9894
  %v10006 = vpop.f32.mrf.mxu0
  %v10007 = vadd.f32 0.0, %v10006
  %10008 = vmatmul.f32.gmra.mxu0 %v9897
  %v10009 = vpop.f32.mrf.mxu0
  %v10010 = vadd.f32 0.0, %v10009
  %10011 = vmatmul.f32.gmra.mxu0 %v9900
  %v10012 = vpop.f32.mrf.mxu0
  %v10013 = vadd.f32 0.0, %v10012
  %10014 = vmatmul.f32.gmra.mxu0 %v9903
  %v10015 = vpop.f32.mrf.mxu0
  %v10016 = vadd.f32 0.0, %v10015
  %10017 = vmatmul.f32.gmra.mxu0 %v9906
  %v10018 = vpop.f32.mrf.mxu0
  %v10019 = vadd.f32 0.0, %v10018
  %10020 = vmatmul.f32.gmra.mxu0 %v9909
  %v10021 = vpop.f32.mrf.mxu0
  %v10022 = vadd.f32 0.0, %v10021
  %10023 = vmatmul.f32.gmra.mxu0 %v9912
  %v10024 = vpop.f32.mrf.mxu0
  %v10025 = vadd.f32 0.0, %v10024
  %10026 = vmatmul.f32.gmra.mxu0 %v9915
  %v10027 = vpop.f32.mrf.mxu0
  %v10028 = vadd.f32 0.0, %v10027
  %10029 = vmatmul.f32.gmra.mxu0 %v9918
  %v10030 = vpop.f32.mrf.mxu0
  %v10031 = vadd.f32 0.0, %v10030
  %10032 = vmatmul.f32.gmra.mxu0 %v9921
  %v10033 = vpop.f32.mrf.mxu0
  %v10034 = vadd.f32 0.0, %v10033
  %10035 = vmatmul.f32.gmra.mxu0 %v9924
  %v10036 = vpop.f32.mrf.mxu0
  %v10037 = vadd.f32 0.0, %v10036
  %10038 = vmatmul.f32.gmra.mxu0 %v9927
  %v10039 = vpop.f32.mrf.mxu0
  %v10040 = vadd.f32 0.0, %v10039
  %10041 = vmatmul.f32.gmra.mxu0 %v9930
  %v10042 = vpop.f32.mrf.mxu0
  %v10043 = vadd.f32 0.0, %v10042
  %10044 = vmatmul.f32.gmra.mxu0 %v9933
  %v10045 = vpop.f32.mrf.mxu0
  %v10046 = vadd.f32 0.0, %v10045
  %10047 = vmatmul.f32.gmra.mxu0 %v9936
  %v10048 = vpop.f32.mrf.mxu0
  %v10049 = vadd.f32 0.0, %v10048
  %10050 = vmatmul.f32.gmra.mxu0 %v9939
  %v10051 = vpop.f32.mrf.mxu0
  %v10052 = vadd.f32 0.0, %v10051
  %10053 = vmatmul.f32.gmra.mxu0 %v9942
  %v10054 = vpop.f32.mrf.mxu0
  %v10055 = vadd.f32 0.0, %v10054
  %10056 = vmatmul.f32.gmra.mxu0 %v9945
  %v10057 = vpop.f32.mrf.mxu0
  %v10058 = vadd.f32 0.0, %v10057
  %10059 = vmatmul.f32.gmra.mxu0 %v9948
  %v10060 = vpop.f32.mrf.mxu0
  %v10061 = vadd.f32 0.0, %v10060
  %10062 = vmatmul.f32.gmra.mxu0 %v9951
  %v10063 = vpop.f32.mrf.mxu0
  %v10064 = vadd.f32 0.0, %v10063
  %10065 = vdwg.mxu0
  %v10066 = vadd.f32 %v9792, %v9971
  %v10067 = vadd.f32 %v9793, %v9974
  %v10068 = vadd.f32 %v9794, %v9977
  %v10069 = vadd.f32 %v9795, %v9980
  %v10070 = vadd.f32 %v9796, %v9983
  %v10071 = vadd.f32 %v9797, %v9986
  %v10072 = vadd.f32 %v9798, %v9989
  %v10073 = vadd.f32 %v9799, %v9992
  %v10074 = vadd.f32 %v9800, %v9995
  %v10075 = vadd.f32 %v9801, %v9998
  %v10076 = vadd.f32 %v9802, %v10001
  %v10077 = vadd.f32 %v9803, %v10004
  %v10078 = vadd.f32 %v9804, %v10007
  %v10079 = vadd.f32 %v9805, %v10010
  %v10080 = vadd.f32 %v9806, %v10013
  %v10081 = vadd.f32 %v9807, %v10016
  %v10082 = vadd.f32 %v9808, %v10019
  %v10083 = vadd.f32 %v9809, %v10022
  %v10084 = vadd.f32 %v9810, %v10025
  %v10085 = vadd.f32 %v9811, %v10028
  %v10086 = vadd.f32 %v9812, %v10031
  %v10087 = vadd.f32 %v9813, %v10034
  %v10088 = vadd.f32 %v9814, %v10037
  %v10089 = vadd.f32 %v9815, %v10040
  %v10090 = vadd.f32 %v9816, %v10043
  %v10091 = vadd.f32 %v9817, %v10046
  %v10092 = vadd.f32 %v9818, %v10049
  %v10093 = vadd.f32 %v9819, %v10052
  %v10094 = vadd.f32 %v9820, %v10055
  %v10095 = vadd.f32 %v9821, %v10058
  %v10096 = vadd.f32 %v9822, %v10061
  %v10097 = vadd.f32 %v9823, %v10064
  %v10098 = vld [vmem:[%s6149 + $0x2] sm:$0xff]
  %v10099 = vld [vmem:[%s6149 + $0xa] sm:$0xff]
  %v10100 = vld [vmem:[%s6149 + $0x1a] sm:$0xff]
  %v10101 = vld [vmem:[%s6149 + $0x22] sm:$0xff]
  %v10102 = vld [vmem:[%s6149 + $0x32] sm:$0xff]
  %v10103 = vld [vmem:[%s6149 + $0x3a] sm:$0xff]
  %v10104 = vld [vmem:[%s6149 + $0x4a] sm:$0xff]
  %v10105 = vld [vmem:[%s6149 + $0x52] sm:$0xff]
  %v10106 = vld [vmem:[%s6149 + $0x62] sm:$0xff]
  %v10107 = vld [vmem:[%s6149 + $0x6a] sm:$0xff]
  %v10108 = vld [vmem:[%s6149 + $0x7a] sm:$0xff]
  %v10109 = vld [vmem:[%s6149 + $0x82] sm:$0xff]
  %v10110 = vld [vmem:[%s6149 + $0x92] sm:$0xff]
  %v10111 = vld [vmem:[%s6149 + $0x9a] sm:$0xff]
  %v10112 = vld [vmem:[%s6149 + $0xaa] sm:$0xff]
  %v10113 = vld [vmem:[%s6149 + $0xb2] sm:$0xff]
  %v10114 = vld [vmem:[%s6149 + $0xc2] sm:$0xff]
  %v10115 = vld [vmem:[%s6149 + $0xca] sm:$0xff]
  %v10116 = vld [vmem:[%s6149 + $0xda] sm:$0xff]
  %v10117 = vld [vmem:[%s6149 + $0xe2] sm:$0xff]
  %v10118 = vld [vmem:[%s6149 + $0xf2] sm:$0xff]
  %v10119 = vld [vmem:[%s6149 + $0xfa] sm:$0xff]
  %v10120 = vld [vmem:[%s6149 + $0x10a] sm:$0xff]
  %v10121 = vld [vmem:[%s6149 + $0x112] sm:$0xff]
  %v10122 = vld [vmem:[%s6149 + $0x122] sm:$0xff]
  %v10123 = vld [vmem:[%s6149 + $0x12a] sm:$0xff]
  %v10124 = vld [vmem:[%s6149 + $0x13a] sm:$0xff]
  %v10125 = vld [vmem:[%s6149 + $0x142] sm:$0xff]
  %v10126 = vld [vmem:[%s6149 + $0x152] sm:$0xff]
  %v10127 = vld [vmem:[%s6149 + $0x15a] sm:$0xff]
  %v10128 = vld [vmem:[%s6149 + $0x16a] sm:$0xff]
  %v10129 = vld [vmem:[%s6149 + $0x172] sm:$0xff]
  %v10130 = vld [vmem:[%s7524] sm:$0xff]
  %v10132 = vsel %vm136, %v10098, 0
  %v10135 = vsel %vm136, %v10099, 0
  %v10138 = vsel %vm136, %v10100, 0
  %v10141 = vsel %vm136, %v10101, 0
  %v10144 = vsel %vm136, %v10102, 0
  %v10147 = vsel %vm136, %v10103, 0
  %v10150 = vsel %vm136, %v10104, 0
  %v10153 = vsel %vm136, %v10105, 0
  %v10156 = vsel %vm136, %v10106, 0
  %v10159 = vsel %vm136, %v10107, 0
  %v10162 = vsel %vm136, %v10108, 0
  %v10165 = vsel %vm136, %v10109, 0
  %v10168 = vsel %vm136, %v10110, 0
  %v10171 = vsel %vm136, %v10111, 0
  %v10174 = vsel %vm136, %v10112, 0
  %v10177 = vsel %vm136, %v10113, 0
  %v10180 = vsel %vm136, %v10114, 0
  %v10183 = vsel %vm136, %v10115, 0
  %v10186 = vsel %vm136, %v10116, 0
  %v10189 = vsel %vm136, %v10117, 0
  %v10192 = vsel %vm136, %v10118, 0
  %v10195 = vsel %vm136, %v10119, 0
  %v10198 = vsel %vm136, %v10120, 0
  %v10201 = vsel %vm136, %v10121, 0
  %v10204 = vsel %vm136, %v10122, 0
  %v10207 = vsel %vm136, %v10123, 0
  %v10210 = vsel %vm136, %v10124, 0
  %v10213 = vsel %vm136, %v10125, 0
  %v10216 = vsel %vm136, %v10126, 0
  %v10219 = vsel %vm136, %v10127, 0
  %v10222 = vsel %vm136, %v10128, 0
  %v10225 = vsel %vm136, %v10129, 0
  %10227 = vmatpush.msra.mxu0 0.0
  %10228 = vmatpush.msra.mxu0 0.0
  %10229 = vmatpush.msra.mxu0 0.0
  %10230 = vmatpush.msra.mxu0 0.0
  %10231 = vmatpush.msra.mxu0 0.0
  %10232 = vmatpush.msra.mxu0 0.0
  %10233 = vmatpush.msra.mxu0 0.0
  %10234 = vmatpush.msra.mxu0 0.0
  %10235 = vmatpush.msra.mxu0 0.0
  %10236 = vmatpush.msra.mxu0 0.0
  %10237 = vmatpush.msra.mxu0 0.0
  %10238 = vmatpush.msra.mxu0 0.0
  %10239 = vmatpush.msra.mxu0 0.0
  %10240 = vmatpush.msra.mxu0 0.0
  %10241 = vmatpush.msra.mxu0 0.0
  %10242 = vmatpush.msra.mxu0 %v10130
  %10243 = vmatmul.f32.gmra.mxu0 %v10132
  %v10244 = vpop.f32.mrf.mxu0
  %v10245 = vadd.f32 0.0, %v10244
  %10246 = vmatmul.f32.gmra.mxu0 %v10135
  %v10247 = vpop.f32.mrf.mxu0
  %v10248 = vadd.f32 0.0, %v10247
  %10249 = vmatmul.f32.gmra.mxu0 %v10138
  %v10250 = vpop.f32.mrf.mxu0
  %v10251 = vadd.f32 0.0, %v10250
  %10252 = vmatmul.f32.gmra.mxu0 %v10141
  %v10253 = vpop.f32.mrf.mxu0
  %v10254 = vadd.f32 0.0, %v10253
  %10255 = vmatmul.f32.gmra.mxu0 %v10144
  %v10256 = vpop.f32.mrf.mxu0
  %v10257 = vadd.f32 0.0, %v10256
  %10258 = vmatmul.f32.gmra.mxu0 %v10147
  %v10259 = vpop.f32.mrf.mxu0
  %v10260 = vadd.f32 0.0, %v10259
  %10261 = vmatmul.f32.gmra.mxu0 %v10150
  %v10262 = vpop.f32.mrf.mxu0
  %v10263 = vadd.f32 0.0, %v10262
  %10264 = vmatmul.f32.gmra.mxu0 %v10153
  %v10265 = vpop.f32.mrf.mxu0
  %v10266 = vadd.f32 0.0, %v10265
  %10267 = vmatmul.f32.gmra.mxu0 %v10156
  %v10268 = vpop.f32.mrf.mxu0
  %v10269 = vadd.f32 0.0, %v10268
  %10270 = vmatmul.f32.gmra.mxu0 %v10159
  %v10271 = vpop.f32.mrf.mxu0
  %v10272 = vadd.f32 0.0, %v10271
  %10273 = vmatmul.f32.gmra.mxu0 %v10162
  %v10274 = vpop.f32.mrf.mxu0
  %v10275 = vadd.f32 0.0, %v10274
  %10276 = vmatmul.f32.gmra.mxu0 %v10165
  %v10277 = vpop.f32.mrf.mxu0
  %v10278 = vadd.f32 0.0, %v10277
  %10279 = vmatmul.f32.gmra.mxu0 %v10168
  %v10280 = vpop.f32.mrf.mxu0
  %v10281 = vadd.f32 0.0, %v10280
  %10282 = vmatmul.f32.gmra.mxu0 %v10171
  %v10283 = vpop.f32.mrf.mxu0
  %v10284 = vadd.f32 0.0, %v10283
  %10285 = vmatmul.f32.gmra.mxu0 %v10174
  %v10286 = vpop.f32.mrf.mxu0
  %v10287 = vadd.f32 0.0, %v10286
  %10288 = vmatmul.f32.gmra.mxu0 %v10177
  %v10289 = vpop.f32.mrf.mxu0
  %v10290 = vadd.f32 0.0, %v10289
  %10291 = vmatmul.f32.gmra.mxu0 %v10180
  %v10292 = vpop.f32.mrf.mxu0
  %v10293 = vadd.f32 0.0, %v10292
  %10294 = vmatmul.f32.gmra.mxu0 %v10183
  %v10295 = vpop.f32.mrf.mxu0
  %v10296 = vadd.f32 0.0, %v10295
  %10297 = vmatmul.f32.gmra.mxu0 %v10186
  %v10298 = vpop.f32.mrf.mxu0
  %v10299 = vadd.f32 0.0, %v10298
  %10300 = vmatmul.f32.gmra.mxu0 %v10189
  %v10301 = vpop.f32.mrf.mxu0
  %v10302 = vadd.f32 0.0, %v10301
  %10303 = vmatmul.f32.gmra.mxu0 %v10192
  %v10304 = vpop.f32.mrf.mxu0
  %v10305 = vadd.f32 0.0, %v10304
  %10306 = vmatmul.f32.gmra.mxu0 %v10195
  %v10307 = vpop.f32.mrf.mxu0
  %v10308 = vadd.f32 0.0, %v10307
  %10309 = vmatmul.f32.gmra.mxu0 %v10198
  %v10310 = vpop.f32.mrf.mxu0
  %v10311 = vadd.f32 0.0, %v10310
  %10312 = vmatmul.f32.gmra.mxu0 %v10201
  %v10313 = vpop.f32.mrf.mxu0
  %v10314 = vadd.f32 0.0, %v10313
  %10315 = vmatmul.f32.gmra.mxu0 %v10204
  %v10316 = vpop.f32.mrf.mxu0
  %v10317 = vadd.f32 0.0, %v10316
  %10318 = vmatmul.f32.gmra.mxu0 %v10207
  %v10319 = vpop.f32.mrf.mxu0
  %v10320 = vadd.f32 0.0, %v10319
  %10321 = vmatmul.f32.gmra.mxu0 %v10210
  %v10322 = vpop.f32.mrf.mxu0
  %v10323 = vadd.f32 0.0, %v10322
  %10324 = vmatmul.f32.gmra.mxu0 %v10213
  %v10325 = vpop.f32.mrf.mxu0
  %v10326 = vadd.f32 0.0, %v10325
  %10327 = vmatmul.f32.gmra.mxu0 %v10216
  %v10328 = vpop.f32.mrf.mxu0
  %v10329 = vadd.f32 0.0, %v10328
  %10330 = vmatmul.f32.gmra.mxu0 %v10219
  %v10331 = vpop.f32.mrf.mxu0
  %v10332 = vadd.f32 0.0, %v10331
  %10333 = vmatmul.f32.gmra.mxu0 %v10222
  %v10334 = vpop.f32.mrf.mxu0
  %v10335 = vadd.f32 0.0, %v10334
  %10336 = vmatmul.f32.gmra.mxu0 %v10225
  %v10337 = vpop.f32.mrf.mxu0
  %v10338 = vadd.f32 0.0, %v10337
  %10339 = vdwg.mxu0
  %v10340 = vadd.f32 %v10066, %v10245
  %v10341 = vadd.f32 %v10067, %v10248
  %v10342 = vadd.f32 %v10068, %v10251
  %v10343 = vadd.f32 %v10069, %v10254
  %v10344 = vadd.f32 %v10070, %v10257
  %v10345 = vadd.f32 %v10071, %v10260
  %v10346 = vadd.f32 %v10072, %v10263
  %v10347 = vadd.f32 %v10073, %v10266
  %v10348 = vadd.f32 %v10074, %v10269
  %v10349 = vadd.f32 %v10075, %v10272
  %v10350 = vadd.f32 %v10076, %v10275
  %v10351 = vadd.f32 %v10077, %v10278
  %v10352 = vadd.f32 %v10078, %v10281
  %v10353 = vadd.f32 %v10079, %v10284
  %v10354 = vadd.f32 %v10080, %v10287
  %v10355 = vadd.f32 %v10081, %v10290
  %v10356 = vadd.f32 %v10082, %v10293
  %v10357 = vadd.f32 %v10083, %v10296
  %v10358 = vadd.f32 %v10084, %v10299
  %v10359 = vadd.f32 %v10085, %v10302
  %v10360 = vadd.f32 %v10086, %v10305
  %v10361 = vadd.f32 %v10087, %v10308
  %v10362 = vadd.f32 %v10088, %v10311
  %v10363 = vadd.f32 %v10089, %v10314
  %v10364 = vadd.f32 %v10090, %v10317
  %v10365 = vadd.f32 %v10091, %v10320
  %v10366 = vadd.f32 %v10092, %v10323
  %v10367 = vadd.f32 %v10093, %v10326
  %v10368 = vadd.f32 %v10094, %v10329
  %v10369 = vadd.f32 %v10095, %v10332
  %v10370 = vadd.f32 %v10096, %v10335
  %v10371 = vadd.f32 %v10097, %v10338
  %s10372 = scalar_lea.vmem [#allocation3], 480
  %v10373 = vld [vmem:[%s10372] sm:$0xff]
  %v10374 = vld [vmem:[%s10372 + $0x8] sm:$0xff]
  %v10375 = vld [vmem:[%s10372 + $0x18] sm:$0xff]
  %v10376 = vld [vmem:[%s10372 + $0x20] sm:$0xff]
  %v10377 = vld [vmem:[%s10372 + $0x30] sm:$0xff]
  %v10378 = vld [vmem:[%s10372 + $0x38] sm:$0xff]
  %v10379 = vld [vmem:[%s10372 + $0x48] sm:$0xff]
  %v10380 = vld [vmem:[%s10372 + $0x50] sm:$0xff]
  %v10381 = vld [vmem:[%s10372 + $0x60] sm:$0xff]
  %v10382 = vld [vmem:[%s10372 + $0x68] sm:$0xff]
  %v10383 = vld [vmem:[%s10372 + $0x78] sm:$0xff]
  %v10384 = vld [vmem:[%s10372 + $0x80] sm:$0xff]
  %v10385 = vld [vmem:[%s10372 + $0x90] sm:$0xff]
  %v10386 = vld [vmem:[%s10372 + $0x98] sm:$0xff]
  %v10387 = vld [vmem:[%s10372 + $0xa8] sm:$0xff]
  %v10388 = vld [vmem:[%s10372 + $0xb0] sm:$0xff]
  %v10389 = vld [vmem:[%s10372 + $0xc0] sm:$0xff]
  %v10390 = vld [vmem:[%s10372 + $0xc8] sm:$0xff]
  %v10391 = vld [vmem:[%s10372 + $0xd8] sm:$0xff]
  %v10392 = vld [vmem:[%s10372 + $0xe0] sm:$0xff]
  %v10393 = vld [vmem:[%s10372 + $0xf0] sm:$0xff]
  %v10394 = vld [vmem:[%s10372 + $0xf8] sm:$0xff]
  %v10395 = vld [vmem:[%s10372 + $0x108] sm:$0xff]
  %v10396 = vld [vmem:[%s10372 + $0x110] sm:$0xff]
  %v10397 = vld [vmem:[%s10372 + $0x120] sm:$0xff]
  %v10398 = vld [vmem:[%s10372 + $0x128] sm:$0xff]
  %v10399 = vld [vmem:[%s10372 + $0x138] sm:$0xff]
  %v10400 = vld [vmem:[%s10372 + $0x140] sm:$0xff]
  %v10401 = vld [vmem:[%s10372 + $0x150] sm:$0xff]
  %v10402 = vld [vmem:[%s10372 + $0x158] sm:$0xff]
  %v10403 = vld [vmem:[%s10372 + $0x168] sm:$0xff]
  %v10404 = vld [vmem:[%s10372 + $0x170] sm:$0xff]
  %v10405 = vld [vmem:[%s7800] sm:$0xff]
  %v10407 = vsel %vm136, %v10373, 0
  %v10410 = vsel %vm136, %v10374, 0
  %v10413 = vsel %vm136, %v10375, 0
  %v10416 = vsel %vm136, %v10376, 0
  %v10419 = vsel %vm136, %v10377, 0
  %v10422 = vsel %vm136, %v10378, 0
  %v10425 = vsel %vm136, %v10379, 0
  %v10428 = vsel %vm136, %v10380, 0
  %v10431 = vsel %vm136, %v10381, 0
  %v10434 = vsel %vm136, %v10382, 0
  %v10437 = vsel %vm136, %v10383, 0
  %v10440 = vsel %vm136, %v10384, 0
  %v10443 = vsel %vm136, %v10385, 0
  %v10446 = vsel %vm136, %v10386, 0
  %v10449 = vsel %vm136, %v10387, 0
  %v10452 = vsel %vm136, %v10388, 0
  %v10455 = vsel %vm136, %v10389, 0
  %v10458 = vsel %vm136, %v10390, 0
  %v10461 = vsel %vm136, %v10391, 0
  %v10464 = vsel %vm136, %v10392, 0
  %v10467 = vsel %vm136, %v10393, 0
  %v10470 = vsel %vm136, %v10394, 0
  %v10473 = vsel %vm136, %v10395, 0
  %v10476 = vsel %vm136, %v10396, 0
  %v10479 = vsel %vm136, %v10397, 0
  %v10482 = vsel %vm136, %v10398, 0
  %v10485 = vsel %vm136, %v10399, 0
  %v10488 = vsel %vm136, %v10400, 0
  %v10491 = vsel %vm136, %v10401, 0
  %v10494 = vsel %vm136, %v10402, 0
  %v10497 = vsel %vm136, %v10403, 0
  %v10500 = vsel %vm136, %v10404, 0
  %10502 = vmatpush.msra.mxu0 0.0
  %10503 = vmatpush.msra.mxu0 0.0
  %10504 = vmatpush.msra.mxu0 0.0
  %10505 = vmatpush.msra.mxu0 0.0
  %10506 = vmatpush.msra.mxu0 0.0
  %10507 = vmatpush.msra.mxu0 0.0
  %10508 = vmatpush.msra.mxu0 0.0
  %10509 = vmatpush.msra.mxu0 0.0
  %10510 = vmatpush.msra.mxu0 0.0
  %10511 = vmatpush.msra.mxu0 0.0
  %10512 = vmatpush.msra.mxu0 0.0
  %10513 = vmatpush.msra.mxu0 0.0
  %10514 = vmatpush.msra.mxu0 0.0
  %10515 = vmatpush.msra.mxu0 0.0
  %10516 = vmatpush.msra.mxu0 0.0
  %10517 = vmatpush.msra.mxu0 %v10405
  %10518 = vmatmul.f32.gmra.mxu0 %v10407
  %v10519 = vpop.f32.mrf.mxu0
  %v10520 = vadd.f32 0.0, %v10519
  %10521 = vmatmul.f32.gmra.mxu0 %v10410
  %v10522 = vpop.f32.mrf.mxu0
  %v10523 = vadd.f32 0.0, %v10522
  %10524 = vmatmul.f32.gmra.mxu0 %v10413
  %v10525 = vpop.f32.mrf.mxu0
  %v10526 = vadd.f32 0.0, %v10525
  %10527 = vmatmul.f32.gmra.mxu0 %v10416
  %v10528 = vpop.f32.mrf.mxu0
  %v10529 = vadd.f32 0.0, %v10528
  %10530 = vmatmul.f32.gmra.mxu0 %v10419
  %v10531 = vpop.f32.mrf.mxu0
  %v10532 = vadd.f32 0.0, %v10531
  %10533 = vmatmul.f32.gmra.mxu0 %v10422
  %v10534 = vpop.f32.mrf.mxu0
  %v10535 = vadd.f32 0.0, %v10534
  %10536 = vmatmul.f32.gmra.mxu0 %v10425
  %v10537 = vpop.f32.mrf.mxu0
  %v10538 = vadd.f32 0.0, %v10537
  %10539 = vmatmul.f32.gmra.mxu0 %v10428
  %v10540 = vpop.f32.mrf.mxu0
  %v10541 = vadd.f32 0.0, %v10540
  %10542 = vmatmul.f32.gmra.mxu0 %v10431
  %v10543 = vpop.f32.mrf.mxu0
  %v10544 = vadd.f32 0.0, %v10543
  %10545 = vmatmul.f32.gmra.mxu0 %v10434
  %v10546 = vpop.f32.mrf.mxu0
  %v10547 = vadd.f32 0.0, %v10546
  %10548 = vmatmul.f32.gmra.mxu0 %v10437
  %v10549 = vpop.f32.mrf.mxu0
  %v10550 = vadd.f32 0.0, %v10549
  %10551 = vmatmul.f32.gmra.mxu0 %v10440
  %v10552 = vpop.f32.mrf.mxu0
  %v10553 = vadd.f32 0.0, %v10552
  %10554 = vmatmul.f32.gmra.mxu0 %v10443
  %v10555 = vpop.f32.mrf.mxu0
  %v10556 = vadd.f32 0.0, %v10555
  %10557 = vmatmul.f32.gmra.mxu0 %v10446
  %v10558 = vpop.f32.mrf.mxu0
  %v10559 = vadd.f32 0.0, %v10558
  %10560 = vmatmul.f32.gmra.mxu0 %v10449
  %v10561 = vpop.f32.mrf.mxu0
  %v10562 = vadd.f32 0.0, %v10561
  %10563 = vmatmul.f32.gmra.mxu0 %v10452
  %v10564 = vpop.f32.mrf.mxu0
  %v10565 = vadd.f32 0.0, %v10564
  %10566 = vmatmul.f32.gmra.mxu0 %v10455
  %v10567 = vpop.f32.mrf.mxu0
  %v10568 = vadd.f32 0.0, %v10567
  %10569 = vmatmul.f32.gmra.mxu0 %v10458
  %v10570 = vpop.f32.mrf.mxu0
  %v10571 = vadd.f32 0.0, %v10570
  %10572 = vmatmul.f32.gmra.mxu0 %v10461
  %v10573 = vpop.f32.mrf.mxu0
  %v10574 = vadd.f32 0.0, %v10573
  %10575 = vmatmul.f32.gmra.mxu0 %v10464
  %v10576 = vpop.f32.mrf.mxu0
  %v10577 = vadd.f32 0.0, %v10576
  %10578 = vmatmul.f32.gmra.mxu0 %v10467
  %v10579 = vpop.f32.mrf.mxu0
  %v10580 = vadd.f32 0.0, %v10579
  %10581 = vmatmul.f32.gmra.mxu0 %v10470
  %v10582 = vpop.f32.mrf.mxu0
  %v10583 = vadd.f32 0.0, %v10582
  %10584 = vmatmul.f32.gmra.mxu0 %v10473
  %v10585 = vpop.f32.mrf.mxu0
  %v10586 = vadd.f32 0.0, %v10585
  %10587 = vmatmul.f32.gmra.mxu0 %v10476
  %v10588 = vpop.f32.mrf.mxu0
  %v10589 = vadd.f32 0.0, %v10588
  %10590 = vmatmul.f32.gmra.mxu0 %v10479
  %v10591 = vpop.f32.mrf.mxu0
  %v10592 = vadd.f32 0.0, %v10591
  %10593 = vmatmul.f32.gmra.mxu0 %v10482
  %v10594 = vpop.f32.mrf.mxu0
  %v10595 = vadd.f32 0.0, %v10594
  %10596 = vmatmul.f32.gmra.mxu0 %v10485
  %v10597 = vpop.f32.mrf.mxu0
  %v10598 = vadd.f32 0.0, %v10597
  %10599 = vmatmul.f32.gmra.mxu0 %v10488
  %v10600 = vpop.f32.mrf.mxu0
  %v10601 = vadd.f32 0.0, %v10600
  %10602 = vmatmul.f32.gmra.mxu0 %v10491
  %v10603 = vpop.f32.mrf.mxu0
  %v10604 = vadd.f32 0.0, %v10603
  %10605 = vmatmul.f32.gmra.mxu0 %v10494
  %v10606 = vpop.f32.mrf.mxu0
  %v10607 = vadd.f32 0.0, %v10606
  %10608 = vmatmul.f32.gmra.mxu0 %v10497
  %v10609 = vpop.f32.mrf.mxu0
  %v10610 = vadd.f32 0.0, %v10609
  %10611 = vmatmul.f32.gmra.mxu0 %v10500
  %v10612 = vpop.f32.mrf.mxu0
  %v10613 = vadd.f32 0.0, %v10612
  %10614 = vdwg.mxu0
  %v10615 = vadd.f32 %v10340, %v10520
  %v10616 = vadd.f32 %v10341, %v10523
  %v10617 = vadd.f32 %v10342, %v10526
  %v10618 = vadd.f32 %v10343, %v10529
  %v10619 = vadd.f32 %v10344, %v10532
  %v10620 = vadd.f32 %v10345, %v10535
  %v10621 = vadd.f32 %v10346, %v10538
  %v10622 = vadd.f32 %v10347, %v10541
  %v10623 = vadd.f32 %v10348, %v10544
  %v10624 = vadd.f32 %v10349, %v10547
  %v10625 = vadd.f32 %v10350, %v10550
  %v10626 = vadd.f32 %v10351, %v10553
  %v10627 = vadd.f32 %v10352, %v10556
  %v10628 = vadd.f32 %v10353, %v10559
  %v10629 = vadd.f32 %v10354, %v10562
  %v10630 = vadd.f32 %v10355, %v10565
  %v10631 = vadd.f32 %v10356, %v10568
  %v10632 = vadd.f32 %v10357, %v10571
  %v10633 = vadd.f32 %v10358, %v10574
  %v10634 = vadd.f32 %v10359, %v10577
  %v10635 = vadd.f32 %v10360, %v10580
  %v10636 = vadd.f32 %v10361, %v10583
  %v10637 = vadd.f32 %v10362, %v10586
  %v10638 = vadd.f32 %v10363, %v10589
  %v10639 = vadd.f32 %v10364, %v10592
  %v10640 = vadd.f32 %v10365, %v10595
  %v10641 = vadd.f32 %v10366, %v10598
  %v10642 = vadd.f32 %v10367, %v10601
  %v10643 = vadd.f32 %v10368, %v10604
  %v10644 = vadd.f32 %v10369, %v10607
  %v10645 = vadd.f32 %v10370, %v10610
  %v10646 = vadd.f32 %v10371, %v10613
  %v10647 = vld [vmem:[%s10372 + $0x1] sm:$0xff]
  %v10648 = vld [vmem:[%s10372 + $0x9] sm:$0xff]
  %v10649 = vld [vmem:[%s10372 + $0x19] sm:$0xff]
  %v10650 = vld [vmem:[%s10372 + $0x21] sm:$0xff]
  %v10651 = vld [vmem:[%s10372 + $0x31] sm:$0xff]
  %v10652 = vld [vmem:[%s10372 + $0x39] sm:$0xff]
  %v10653 = vld [vmem:[%s10372 + $0x49] sm:$0xff]
  %v10654 = vld [vmem:[%s10372 + $0x51] sm:$0xff]
  %v10655 = vld [vmem:[%s10372 + $0x61] sm:$0xff]
  %v10656 = vld [vmem:[%s10372 + $0x69] sm:$0xff]
  %v10657 = vld [vmem:[%s10372 + $0x79] sm:$0xff]
  %v10658 = vld [vmem:[%s10372 + $0x81] sm:$0xff]
  %v10659 = vld [vmem:[%s10372 + $0x91] sm:$0xff]
  %v10660 = vld [vmem:[%s10372 + $0x99] sm:$0xff]
  %v10661 = vld [vmem:[%s10372 + $0xa9] sm:$0xff]
  %v10662 = vld [vmem:[%s10372 + $0xb1] sm:$0xff]
  %v10663 = vld [vmem:[%s10372 + $0xc1] sm:$0xff]
  %v10664 = vld [vmem:[%s10372 + $0xc9] sm:$0xff]
  %v10665 = vld [vmem:[%s10372 + $0xd9] sm:$0xff]
  %v10666 = vld [vmem:[%s10372 + $0xe1] sm:$0xff]
  %v10667 = vld [vmem:[%s10372 + $0xf1] sm:$0xff]
  %v10668 = vld [vmem:[%s10372 + $0xf9] sm:$0xff]
  %v10669 = vld [vmem:[%s10372 + $0x109] sm:$0xff]
  %v10670 = vld [vmem:[%s10372 + $0x111] sm:$0xff]
  %v10671 = vld [vmem:[%s10372 + $0x121] sm:$0xff]
  %v10672 = vld [vmem:[%s10372 + $0x129] sm:$0xff]
  %v10673 = vld [vmem:[%s10372 + $0x139] sm:$0xff]
  %v10674 = vld [vmem:[%s10372 + $0x141] sm:$0xff]
  %v10675 = vld [vmem:[%s10372 + $0x151] sm:$0xff]
  %v10676 = vld [vmem:[%s10372 + $0x159] sm:$0xff]
  %v10677 = vld [vmem:[%s10372 + $0x169] sm:$0xff]
  %v10678 = vld [vmem:[%s10372 + $0x171] sm:$0xff]
  %v10679 = vld [vmem:[%s8075] sm:$0xff]
  %v10681 = vsel %vm136, %v10647, 0
  %v10684 = vsel %vm136, %v10648, 0
  %v10687 = vsel %vm136, %v10649, 0
  %v10690 = vsel %vm136, %v10650, 0
  %v10693 = vsel %vm136, %v10651, 0
  %v10696 = vsel %vm136, %v10652, 0
  %v10699 = vsel %vm136, %v10653, 0
  %v10702 = vsel %vm136, %v10654, 0
  %v10705 = vsel %vm136, %v10655, 0
  %v10708 = vsel %vm136, %v10656, 0
  %v10711 = vsel %vm136, %v10657, 0
  %v10714 = vsel %vm136, %v10658, 0
  %v10717 = vsel %vm136, %v10659, 0
  %v10720 = vsel %vm136, %v10660, 0
  %v10723 = vsel %vm136, %v10661, 0
  %v10726 = vsel %vm136, %v10662, 0
  %v10729 = vsel %vm136, %v10663, 0
  %v10732 = vsel %vm136, %v10664, 0
  %v10735 = vsel %vm136, %v10665, 0
  %v10738 = vsel %vm136, %v10666, 0
  %v10741 = vsel %vm136, %v10667, 0
  %v10744 = vsel %vm136, %v10668, 0
  %v10747 = vsel %vm136, %v10669, 0
  %v10750 = vsel %vm136, %v10670, 0
  %v10753 = vsel %vm136, %v10671, 0
  %v10756 = vsel %vm136, %v10672, 0
  %v10759 = vsel %vm136, %v10673, 0
  %v10762 = vsel %vm136, %v10674, 0
  %v10765 = vsel %vm136, %v10675, 0
  %v10768 = vsel %vm136, %v10676, 0
  %v10771 = vsel %vm136, %v10677, 0
  %v10774 = vsel %vm136, %v10678, 0
  %10776 = vmatpush.msra.mxu0 0.0
  %10777 = vmatpush.msra.mxu0 0.0
  %10778 = vmatpush.msra.mxu0 0.0
  %10779 = vmatpush.msra.mxu0 0.0
  %10780 = vmatpush.msra.mxu0 0.0
  %10781 = vmatpush.msra.mxu0 0.0
  %10782 = vmatpush.msra.mxu0 0.0
  %10783 = vmatpush.msra.mxu0 0.0
  %10784 = vmatpush.msra.mxu0 0.0
  %10785 = vmatpush.msra.mxu0 0.0
  %10786 = vmatpush.msra.mxu0 0.0
  %10787 = vmatpush.msra.mxu0 0.0
  %10788 = vmatpush.msra.mxu0 0.0
  %10789 = vmatpush.msra.mxu0 0.0
  %10790 = vmatpush.msra.mxu0 0.0
  %10791 = vmatpush.msra.mxu0 %v10679
  %10792 = vmatmul.f32.gmra.mxu0 %v10681
  %v10793 = vpop.f32.mrf.mxu0
  %v10794 = vadd.f32 0.0, %v10793
  %10795 = vmatmul.f32.gmra.mxu0 %v10684
  %v10796 = vpop.f32.mrf.mxu0
  %v10797 = vadd.f32 0.0, %v10796
  %10798 = vmatmul.f32.gmra.mxu0 %v10687
  %v10799 = vpop.f32.mrf.mxu0
  %v10800 = vadd.f32 0.0, %v10799
  %10801 = vmatmul.f32.gmra.mxu0 %v10690
  %v10802 = vpop.f32.mrf.mxu0
  %v10803 = vadd.f32 0.0, %v10802
  %10804 = vmatmul.f32.gmra.mxu0 %v10693
  %v10805 = vpop.f32.mrf.mxu0
  %v10806 = vadd.f32 0.0, %v10805
  %10807 = vmatmul.f32.gmra.mxu0 %v10696
  %v10808 = vpop.f32.mrf.mxu0
  %v10809 = vadd.f32 0.0, %v10808
  %10810 = vmatmul.f32.gmra.mxu0 %v10699
  %v10811 = vpop.f32.mrf.mxu0
  %v10812 = vadd.f32 0.0, %v10811
  %10813 = vmatmul.f32.gmra.mxu0 %v10702
  %v10814 = vpop.f32.mrf.mxu0
  %v10815 = vadd.f32 0.0, %v10814
  %10816 = vmatmul.f32.gmra.mxu0 %v10705
  %v10817 = vpop.f32.mrf.mxu0
  %v10818 = vadd.f32 0.0, %v10817
  %10819 = vmatmul.f32.gmra.mxu0 %v10708
  %v10820 = vpop.f32.mrf.mxu0
  %v10821 = vadd.f32 0.0, %v10820
  %10822 = vmatmul.f32.gmra.mxu0 %v10711
  %v10823 = vpop.f32.mrf.mxu0
  %v10824 = vadd.f32 0.0, %v10823
  %10825 = vmatmul.f32.gmra.mxu0 %v10714
  %v10826 = vpop.f32.mrf.mxu0
  %v10827 = vadd.f32 0.0, %v10826
  %10828 = vmatmul.f32.gmra.mxu0 %v10717
  %v10829 = vpop.f32.mrf.mxu0
  %v10830 = vadd.f32 0.0, %v10829
  %10831 = vmatmul.f32.gmra.mxu0 %v10720
  %v10832 = vpop.f32.mrf.mxu0
  %v10833 = vadd.f32 0.0, %v10832
  %10834 = vmatmul.f32.gmra.mxu0 %v10723
  %v10835 = vpop.f32.mrf.mxu0
  %v10836 = vadd.f32 0.0, %v10835
  %10837 = vmatmul.f32.gmra.mxu0 %v10726
  %v10838 = vpop.f32.mrf.mxu0
  %v10839 = vadd.f32 0.0, %v10838
  %10840 = vmatmul.f32.gmra.mxu0 %v10729
  %v10841 = vpop.f32.mrf.mxu0
  %v10842 = vadd.f32 0.0, %v10841
  %10843 = vmatmul.f32.gmra.mxu0 %v10732
  %v10844 = vpop.f32.mrf.mxu0
  %v10845 = vadd.f32 0.0, %v10844
  %10846 = vmatmul.f32.gmra.mxu0 %v10735
  %v10847 = vpop.f32.mrf.mxu0
  %v10848 = vadd.f32 0.0, %v10847
  %10849 = vmatmul.f32.gmra.mxu0 %v10738
  %v10850 = vpop.f32.mrf.mxu0
  %v10851 = vadd.f32 0.0, %v10850
  %10852 = vmatmul.f32.gmra.mxu0 %v10741
  %v10853 = vpop.f32.mrf.mxu0
  %v10854 = vadd.f32 0.0, %v10853
  %10855 = vmatmul.f32.gmra.mxu0 %v10744
  %v10856 = vpop.f32.mrf.mxu0
  %v10857 = vadd.f32 0.0, %v10856
  %10858 = vmatmul.f32.gmra.mxu0 %v10747
  %v10859 = vpop.f32.mrf.mxu0
  %v10860 = vadd.f32 0.0, %v10859
  %10861 = vmatmul.f32.gmra.mxu0 %v10750
  %v10862 = vpop.f32.mrf.mxu0
  %v10863 = vadd.f32 0.0, %v10862
  %10864 = vmatmul.f32.gmra.mxu0 %v10753
  %v10865 = vpop.f32.mrf.mxu0
  %v10866 = vadd.f32 0.0, %v10865
  %10867 = vmatmul.f32.gmra.mxu0 %v10756
  %v10868 = vpop.f32.mrf.mxu0
  %v10869 = vadd.f32 0.0, %v10868
  %10870 = vmatmul.f32.gmra.mxu0 %v10759
  %v10871 = vpop.f32.mrf.mxu0
  %v10872 = vadd.f32 0.0, %v10871
  %10873 = vmatmul.f32.gmra.mxu0 %v10762
  %v10874 = vpop.f32.mrf.mxu0
  %v10875 = vadd.f32 0.0, %v10874
  %10876 = vmatmul.f32.gmra.mxu0 %v10765
  %v10877 = vpop.f32.mrf.mxu0
  %v10878 = vadd.f32 0.0, %v10877
  %10879 = vmatmul.f32.gmra.mxu0 %v10768
  %v10880 = vpop.f32.mrf.mxu0
  %v10881 = vadd.f32 0.0, %v10880
  %10882 = vmatmul.f32.gmra.mxu0 %v10771
  %v10883 = vpop.f32.mrf.mxu0
  %v10884 = vadd.f32 0.0, %v10883
  %10885 = vmatmul.f32.gmra.mxu0 %v10774
  %v10886 = vpop.f32.mrf.mxu0
  %v10887 = vadd.f32 0.0, %v10886
  %10888 = vdwg.mxu0
  %v10889 = vadd.f32 %v10615, %v10794
  %v10890 = vadd.f32 %v10616, %v10797
  %v10891 = vadd.f32 %v10617, %v10800
  %v10892 = vadd.f32 %v10618, %v10803
  %v10893 = vadd.f32 %v10619, %v10806
  %v10894 = vadd.f32 %v10620, %v10809
  %v10895 = vadd.f32 %v10621, %v10812
  %v10896 = vadd.f32 %v10622, %v10815
  %v10897 = vadd.f32 %v10623, %v10818
  %v10898 = vadd.f32 %v10624, %v10821
  %v10899 = vadd.f32 %v10625, %v10824
  %v10900 = vadd.f32 %v10626, %v10827
  %v10901 = vadd.f32 %v10627, %v10830
  %v10902 = vadd.f32 %v10628, %v10833
  %v10903 = vadd.f32 %v10629, %v10836
  %v10904 = vadd.f32 %v10630, %v10839
  %v10905 = vadd.f32 %v10631, %v10842
  %v10906 = vadd.f32 %v10632, %v10845
  %v10907 = vadd.f32 %v10633, %v10848
  %v10908 = vadd.f32 %v10634, %v10851
  %v10909 = vadd.f32 %v10635, %v10854
  %v10910 = vadd.f32 %v10636, %v10857
  %v10911 = vadd.f32 %v10637, %v10860
  %v10912 = vadd.f32 %v10638, %v10863
  %v10913 = vadd.f32 %v10639, %v10866
  %v10914 = vadd.f32 %v10640, %v10869
  %v10915 = vadd.f32 %v10641, %v10872
  %v10916 = vadd.f32 %v10642, %v10875
  %v10917 = vadd.f32 %v10643, %v10878
  %v10918 = vadd.f32 %v10644, %v10881
  %v10919 = vadd.f32 %v10645, %v10884
  %v10920 = vadd.f32 %v10646, %v10887
  %v10921 = vld [vmem:[%s10372 + $0x2] sm:$0xff]
  %v10922 = vld [vmem:[%s10372 + $0xa] sm:$0xff]
  %v10923 = vld [vmem:[%s10372 + $0x1a] sm:$0xff]
  %v10924 = vld [vmem:[%s10372 + $0x22] sm:$0xff]
  %v10925 = vld [vmem:[%s10372 + $0x32] sm:$0xff]
  %v10926 = vld [vmem:[%s10372 + $0x3a] sm:$0xff]
  %v10927 = vld [vmem:[%s10372 + $0x4a] sm:$0xff]
  %v10928 = vld [vmem:[%s10372 + $0x52] sm:$0xff]
  %v10929 = vld [vmem:[%s10372 + $0x62] sm:$0xff]
  %v10930 = vld [vmem:[%s10372 + $0x6a] sm:$0xff]
  %v10931 = vld [vmem:[%s10372 + $0x7a] sm:$0xff]
  %v10932 = vld [vmem:[%s10372 + $0x82] sm:$0xff]
  %v10933 = vld [vmem:[%s10372 + $0x92] sm:$0xff]
  %v10934 = vld [vmem:[%s10372 + $0x9a] sm:$0xff]
  %v10935 = vld [vmem:[%s10372 + $0xaa] sm:$0xff]
  %v10936 = vld [vmem:[%s10372 + $0xb2] sm:$0xff]
  %v10937 = vld [vmem:[%s10372 + $0xc2] sm:$0xff]
  %v10938 = vld [vmem:[%s10372 + $0xca] sm:$0xff]
  %v10939 = vld [vmem:[%s10372 + $0xda] sm:$0xff]
  %v10940 = vld [vmem:[%s10372 + $0xe2] sm:$0xff]
  %v10941 = vld [vmem:[%s10372 + $0xf2] sm:$0xff]
  %v10942 = vld [vmem:[%s10372 + $0xfa] sm:$0xff]
  %v10943 = vld [vmem:[%s10372 + $0x10a] sm:$0xff]
  %v10944 = vld [vmem:[%s10372 + $0x112] sm:$0xff]
  %v10945 = vld [vmem:[%s10372 + $0x122] sm:$0xff]
  %v10946 = vld [vmem:[%s10372 + $0x12a] sm:$0xff]
  %v10947 = vld [vmem:[%s10372 + $0x13a] sm:$0xff]
  %v10948 = vld [vmem:[%s10372 + $0x142] sm:$0xff]
  %v10949 = vld [vmem:[%s10372 + $0x152] sm:$0xff]
  %v10950 = vld [vmem:[%s10372 + $0x15a] sm:$0xff]
  %v10951 = vld [vmem:[%s10372 + $0x16a] sm:$0xff]
  %v10952 = vld [vmem:[%s10372 + $0x172] sm:$0xff]
  %v10953 = vld [vmem:[%s8350] sm:$0xff]
  %v10955 = vsel %vm136, %v10921, 0
  %v10958 = vsel %vm136, %v10922, 0
  %v10961 = vsel %vm136, %v10923, 0
  %v10964 = vsel %vm136, %v10924, 0
  %v10967 = vsel %vm136, %v10925, 0
  %v10970 = vsel %vm136, %v10926, 0
  %v10973 = vsel %vm136, %v10927, 0
  %v10976 = vsel %vm136, %v10928, 0
  %v10979 = vsel %vm136, %v10929, 0
  %v10982 = vsel %vm136, %v10930, 0
  %v10985 = vsel %vm136, %v10931, 0
  %v10988 = vsel %vm136, %v10932, 0
  %v10991 = vsel %vm136, %v10933, 0
  %v10994 = vsel %vm136, %v10934, 0
  %v10997 = vsel %vm136, %v10935, 0
  %v11000 = vsel %vm136, %v10936, 0
  %v11003 = vsel %vm136, %v10937, 0
  %v11006 = vsel %vm136, %v10938, 0
  %v11009 = vsel %vm136, %v10939, 0
  %v11012 = vsel %vm136, %v10940, 0
  %v11015 = vsel %vm136, %v10941, 0
  %v11018 = vsel %vm136, %v10942, 0
  %v11021 = vsel %vm136, %v10943, 0
  %v11024 = vsel %vm136, %v10944, 0
  %v11027 = vsel %vm136, %v10945, 0
  %v11030 = vsel %vm136, %v10946, 0
  %v11033 = vsel %vm136, %v10947, 0
  %v11036 = vsel %vm136, %v10948, 0
  %v11039 = vsel %vm136, %v10949, 0
  %v11042 = vsel %vm136, %v10950, 0
  %v11045 = vsel %vm136, %v10951, 0
  %v11048 = vsel %vm136, %v10952, 0
  %11050 = vmatpush.msra.mxu0 0.0
  %11051 = vmatpush.msra.mxu0 0.0
  %11052 = vmatpush.msra.mxu0 0.0
  %11053 = vmatpush.msra.mxu0 0.0
  %11054 = vmatpush.msra.mxu0 0.0
  %11055 = vmatpush.msra.mxu0 0.0
  %11056 = vmatpush.msra.mxu0 0.0
  %11057 = vmatpush.msra.mxu0 0.0
  %11058 = vmatpush.msra.mxu0 0.0
  %11059 = vmatpush.msra.mxu0 0.0
  %11060 = vmatpush.msra.mxu0 0.0
  %11061 = vmatpush.msra.mxu0 0.0
  %11062 = vmatpush.msra.mxu0 0.0
  %11063 = vmatpush.msra.mxu0 0.0
  %11064 = vmatpush.msra.mxu0 0.0
  %11065 = vmatpush.msra.mxu0 %v10953
  %11066 = vmatmul.f32.gmra.mxu0 %v10955
  %v11067 = vpop.f32.mrf.mxu0
  %v11068 = vadd.f32 0.0, %v11067
  %11069 = vmatmul.f32.gmra.mxu0 %v10958
  %v11070 = vpop.f32.mrf.mxu0
  %v11071 = vadd.f32 0.0, %v11070
  %11072 = vmatmul.f32.gmra.mxu0 %v10961
  %v11073 = vpop.f32.mrf.mxu0
  %v11074 = vadd.f32 0.0, %v11073
  %11075 = vmatmul.f32.gmra.mxu0 %v10964
  %v11076 = vpop.f32.mrf.mxu0
  %v11077 = vadd.f32 0.0, %v11076
  %11078 = vmatmul.f32.gmra.mxu0 %v10967
  %v11079 = vpop.f32.mrf.mxu0
  %v11080 = vadd.f32 0.0, %v11079
  %11081 = vmatmul.f32.gmra.mxu0 %v10970
  %v11082 = vpop.f32.mrf.mxu0
  %v11083 = vadd.f32 0.0, %v11082
  %11084 = vmatmul.f32.gmra.mxu0 %v10973
  %v11085 = vpop.f32.mrf.mxu0
  %v11086 = vadd.f32 0.0, %v11085
  %11087 = vmatmul.f32.gmra.mxu0 %v10976
  %v11088 = vpop.f32.mrf.mxu0
  %v11089 = vadd.f32 0.0, %v11088
  %11090 = vmatmul.f32.gmra.mxu0 %v10979
  %v11091 = vpop.f32.mrf.mxu0
  %v11092 = vadd.f32 0.0, %v11091
  %11093 = vmatmul.f32.gmra.mxu0 %v10982
  %v11094 = vpop.f32.mrf.mxu0
  %v11095 = vadd.f32 0.0, %v11094
  %11096 = vmatmul.f32.gmra.mxu0 %v10985
  %v11097 = vpop.f32.mrf.mxu0
  %v11098 = vadd.f32 0.0, %v11097
  %11099 = vmatmul.f32.gmra.mxu0 %v10988
  %v11100 = vpop.f32.mrf.mxu0
  %v11101 = vadd.f32 0.0, %v11100
  %11102 = vmatmul.f32.gmra.mxu0 %v10991
  %v11103 = vpop.f32.mrf.mxu0
  %v11104 = vadd.f32 0.0, %v11103
  %11105 = vmatmul.f32.gmra.mxu0 %v10994
  %v11106 = vpop.f32.mrf.mxu0
  %v11107 = vadd.f32 0.0, %v11106
  %11108 = vmatmul.f32.gmra.mxu0 %v10997
  %v11109 = vpop.f32.mrf.mxu0
  %v11110 = vadd.f32 0.0, %v11109
  %11111 = vmatmul.f32.gmra.mxu0 %v11000
  %v11112 = vpop.f32.mrf.mxu0
  %v11113 = vadd.f32 0.0, %v11112
  %11114 = vmatmul.f32.gmra.mxu0 %v11003
  %v11115 = vpop.f32.mrf.mxu0
  %v11116 = vadd.f32 0.0, %v11115
  %11117 = vmatmul.f32.gmra.mxu0 %v11006
  %v11118 = vpop.f32.mrf.mxu0
  %v11119 = vadd.f32 0.0, %v11118
  %11120 = vmatmul.f32.gmra.mxu0 %v11009
  %v11121 = vpop.f32.mrf.mxu0
  %v11122 = vadd.f32 0.0, %v11121
  %11123 = vmatmul.f32.gmra.mxu0 %v11012
  %v11124 = vpop.f32.mrf.mxu0
  %v11125 = vadd.f32 0.0, %v11124
  %11126 = vmatmul.f32.gmra.mxu0 %v11015
  %v11127 = vpop.f32.mrf.mxu0
  %v11128 = vadd.f32 0.0, %v11127
  %11129 = vmatmul.f32.gmra.mxu0 %v11018
  %v11130 = vpop.f32.mrf.mxu0
  %v11131 = vadd.f32 0.0, %v11130
  %11132 = vmatmul.f32.gmra.mxu0 %v11021
  %v11133 = vpop.f32.mrf.mxu0
  %v11134 = vadd.f32 0.0, %v11133
  %11135 = vmatmul.f32.gmra.mxu0 %v11024
  %v11136 = vpop.f32.mrf.mxu0
  %v11137 = vadd.f32 0.0, %v11136
  %11138 = vmatmul.f32.gmra.mxu0 %v11027
  %v11139 = vpop.f32.mrf.mxu0
  %v11140 = vadd.f32 0.0, %v11139
  %11141 = vmatmul.f32.gmra.mxu0 %v11030
  %v11142 = vpop.f32.mrf.mxu0
  %v11143 = vadd.f32 0.0, %v11142
  %11144 = vmatmul.f32.gmra.mxu0 %v11033
  %v11145 = vpop.f32.mrf.mxu0
  %v11146 = vadd.f32 0.0, %v11145
  %11147 = vmatmul.f32.gmra.mxu0 %v11036
  %v11148 = vpop.f32.mrf.mxu0
  %v11149 = vadd.f32 0.0, %v11148
  %11150 = vmatmul.f32.gmra.mxu0 %v11039
  %v11151 = vpop.f32.mrf.mxu0
  %v11152 = vadd.f32 0.0, %v11151
  %11153 = vmatmul.f32.gmra.mxu0 %v11042
  %v11154 = vpop.f32.mrf.mxu0
  %v11155 = vadd.f32 0.0, %v11154
  %11156 = vmatmul.f32.gmra.mxu0 %v11045
  %v11157 = vpop.f32.mrf.mxu0
  %v11158 = vadd.f32 0.0, %v11157
  %11159 = vmatmul.f32.gmra.mxu0 %v11048
  %v11160 = vpop.f32.mrf.mxu0
  %v11161 = vadd.f32 0.0, %v11160
  %11162 = vdwg.mxu0
  %v11163 = vadd.f32 %v10889, %v11068
  %v11164 = vadd.f32 %v10890, %v11071
  %v11165 = vadd.f32 %v10891, %v11074
  %v11166 = vadd.f32 %v10892, %v11077
  %v11167 = vadd.f32 %v10893, %v11080
  %v11168 = vadd.f32 %v10894, %v11083
  %v11169 = vadd.f32 %v10895, %v11086
  %v11170 = vadd.f32 %v10896, %v11089
  %v11171 = vadd.f32 %v10897, %v11092
  %v11172 = vadd.f32 %v10898, %v11095
  %v11173 = vadd.f32 %v10899, %v11098
  %v11174 = vadd.f32 %v10900, %v11101
  %v11175 = vadd.f32 %v10901, %v11104
  %v11176 = vadd.f32 %v10902, %v11107
  %v11177 = vadd.f32 %v10903, %v11110
  %v11178 = vadd.f32 %v10904, %v11113
  %v11179 = vadd.f32 %v10905, %v11116
  %v11180 = vadd.f32 %v10906, %v11119
  %v11181 = vadd.f32 %v10907, %v11122
  %v11182 = vadd.f32 %v10908, %v11125
  %v11183 = vadd.f32 %v10909, %v11128
  %v11184 = vadd.f32 %v10910, %v11131
  %v11185 = vadd.f32 %v10911, %v11134
  %v11186 = vadd.f32 %v10912, %v11137
  %v11187 = vadd.f32 %v10913, %v11140
  %v11188 = vadd.f32 %v10914, %v11143
  %v11189 = vadd.f32 %v10915, %v11146
  %v11190 = vadd.f32 %v10916, %v11149
  %v11191 = vadd.f32 %v10917, %v11152
  %v11192 = vadd.f32 %v10918, %v11155
  %v11193 = vadd.f32 %v10919, %v11158
  %v11194 = vadd.f32 %v10920, %v11161
  %v11195 = vld [vmem:[%s6] sm:$0x1]
  %v11197 = vperm.slane %v11195, 0
  %v11199 = vadd.f32 %v11163, %v11197
  %v11200 = vadd.f32 %v11164, %v11197
  %v11201 = vadd.f32 %v11165, %v11197
  %v11202 = vadd.f32 %v11166, %v11197
  %v11203 = vadd.f32 %v11167, %v11197
  %v11204 = vadd.f32 %v11168, %v11197
  %v11205 = vadd.f32 %v11169, %v11197
  %v11206 = vadd.f32 %v11170, %v11197
  %v11207 = vadd.f32 %v11171, %v11197
  %v11208 = vadd.f32 %v11172, %v11197
  %v11209 = vadd.f32 %v11173, %v11197
  %v11210 = vadd.f32 %v11174, %v11197
  %v11211 = vadd.f32 %v11175, %v11197
  %v11212 = vadd.f32 %v11176, %v11197
  %v11213 = vadd.f32 %v11177, %v11197
  %v11214 = vadd.f32 %v11178, %v11197
  %v11215 = vadd.f32 %v11179, %v11197
  %v11216 = vadd.f32 %v11180, %v11197
  %v11217 = vadd.f32 %v11181, %v11197
  %v11218 = vadd.f32 %v11182, %v11197
  %v11219 = vadd.f32 %v11183, %v11197
  %v11220 = vadd.f32 %v11184, %v11197
  %v11221 = vadd.f32 %v11185, %v11197
  %v11222 = vadd.f32 %v11186, %v11197
  %v11223 = vadd.f32 %v11187, %v11197
  %v11224 = vadd.f32 %v11188, %v11197
  %v11225 = vadd.f32 %v11189, %v11197
  %v11226 = vadd.f32 %v11190, %v11197
  %v11227 = vadd.f32 %v11191, %v11197
  %v11228 = vadd.f32 %v11192, %v11197
  %v11229 = vadd.f32 %v11193, %v11197
  %v11230 = vadd.f32 %v11194, %v11197
  %vm11231 = vcmp.ge.f32.partialorder %v11199, 0.0
  %vm11232 = vcmp.ge.f32.partialorder %v11200, 0.0
  %vm11233 = vcmp.ge.f32.partialorder %v11201, 0.0
  %vm11234 = vcmp.ge.f32.partialorder %v11202, 0.0
  %vm11235 = vcmp.ge.f32.partialorder %v11203, 0.0
  %vm11236 = vcmp.ge.f32.partialorder %v11204, 0.0
  %vm11237 = vcmp.ge.f32.partialorder %v11205, 0.0
  %vm11238 = vcmp.ge.f32.partialorder %v11206, 0.0
  %vm11239 = vcmp.ge.f32.partialorder %v11207, 0.0
  %vm11240 = vcmp.ge.f32.partialorder %v11208, 0.0
  %vm11241 = vcmp.ge.f32.partialorder %v11209, 0.0
  %vm11242 = vcmp.ge.f32.partialorder %v11210, 0.0
  %vm11243 = vcmp.ge.f32.partialorder %v11211, 0.0
  %vm11244 = vcmp.ge.f32.partialorder %v11212, 0.0
  %vm11245 = vcmp.ge.f32.partialorder %v11213, 0.0
  %vm11246 = vcmp.ge.f32.partialorder %v11214, 0.0
  %vm11247 = vcmp.ge.f32.partialorder %v11215, 0.0
  %vm11248 = vcmp.ge.f32.partialorder %v11216, 0.0
  %vm11249 = vcmp.ge.f32.partialorder %v11217, 0.0
  %vm11250 = vcmp.ge.f32.partialorder %v11218, 0.0
  %vm11251 = vcmp.ge.f32.partialorder %v11219, 0.0
  %vm11252 = vcmp.ge.f32.partialorder %v11220, 0.0
  %vm11253 = vcmp.ge.f32.partialorder %v11221, 0.0
  %vm11254 = vcmp.ge.f32.partialorder %v11222, 0.0
  %vm11255 = vcmp.ge.f32.partialorder %v11223, 0.0
  %vm11256 = vcmp.ge.f32.partialorder %v11224, 0.0
  %vm11257 = vcmp.ge.f32.partialorder %v11225, 0.0
  %vm11258 = vcmp.ge.f32.partialorder %v11226, 0.0
  %vm11259 = vcmp.ge.f32.partialorder %v11227, 0.0
  %vm11260 = vcmp.ge.f32.partialorder %v11228, 0.0
  %vm11261 = vcmp.ge.f32.partialorder %v11229, 0.0
  %vm11262 = vcmp.ge.f32.partialorder %v11230, 0.0
  %v11263 = vmul.f32 %v11199, 0.2
  %v11264 = vmul.f32 %v11200, 0.2
  %v11265 = vmul.f32 %v11201, 0.2
  %v11266 = vmul.f32 %v11202, 0.2
  %v11267 = vmul.f32 %v11203, 0.2
  %v11268 = vmul.f32 %v11204, 0.2
  %v11269 = vmul.f32 %v11205, 0.2
  %v11270 = vmul.f32 %v11206, 0.2
  %v11271 = vmul.f32 %v11207, 0.2
  %v11272 = vmul.f32 %v11208, 0.2
  %v11273 = vmul.f32 %v11209, 0.2
  %v11274 = vmul.f32 %v11210, 0.2
  %v11275 = vmul.f32 %v11211, 0.2
  %v11276 = vmul.f32 %v11212, 0.2
  %v11277 = vmul.f32 %v11213, 0.2
  %v11278 = vmul.f32 %v11214, 0.2
  %v11279 = vmul.f32 %v11215, 0.2
  %v11280 = vmul.f32 %v11216, 0.2
  %v11281 = vmul.f32 %v11217, 0.2
  %v11282 = vmul.f32 %v11218, 0.2
  %v11283 = vmul.f32 %v11219, 0.2
  %v11284 = vmul.f32 %v11220, 0.2
  %v11285 = vmul.f32 %v11221, 0.2
  %v11286 = vmul.f32 %v11222, 0.2
  %v11287 = vmul.f32 %v11223, 0.2
  %v11288 = vmul.f32 %v11224, 0.2
  %v11289 = vmul.f32 %v11225, 0.2
  %v11290 = vmul.f32 %v11226, 0.2
  %v11291 = vmul.f32 %v11227, 0.2
  %v11292 = vmul.f32 %v11228, 0.2
  %v11293 = vmul.f32 %v11229, 0.2
  %v11294 = vmul.f32 %v11230, 0.2
  %v11295 = vsel %vm11231, %v11199, %v11263
  %v11296 = vsel %vm11232, %v11200, %v11264
  %v11297 = vsel %vm11233, %v11201, %v11265
  %v11298 = vsel %vm11234, %v11202, %v11266
  %v11299 = vsel %vm11235, %v11203, %v11267
  %v11300 = vsel %vm11236, %v11204, %v11268
  %v11301 = vsel %vm11237, %v11205, %v11269
  %v11302 = vsel %vm11238, %v11206, %v11270
  %v11303 = vsel %vm11239, %v11207, %v11271
  %v11304 = vsel %vm11240, %v11208, %v11272
  %v11305 = vsel %vm11241, %v11209, %v11273
  %v11306 = vsel %vm11242, %v11210, %v11274
  %v11307 = vsel %vm11243, %v11211, %v11275
  %v11308 = vsel %vm11244, %v11212, %v11276
  %v11309 = vsel %vm11245, %v11213, %v11277
  %v11310 = vsel %vm11246, %v11214, %v11278
  %v11311 = vsel %vm11247, %v11215, %v11279
  %v11312 = vsel %vm11248, %v11216, %v11280
  %v11313 = vsel %vm11249, %v11217, %v11281
  %v11314 = vsel %vm11250, %v11218, %v11282
  %v11315 = vsel %vm11251, %v11219, %v11283
  %v11316 = vsel %vm11252, %v11220, %v11284
  %v11317 = vsel %vm11253, %v11221, %v11285
  %v11318 = vsel %vm11254, %v11222, %v11286
  %v11319 = vsel %vm11255, %v11223, %v11287
  %v11320 = vsel %vm11256, %v11224, %v11288
  %v11321 = vsel %vm11257, %v11225, %v11289
  %v11322 = vsel %vm11258, %v11226, %v11290
  %v11323 = vsel %vm11259, %v11227, %v11291
  %v11324 = vsel %vm11260, %v11228, %v11292
  %v11325 = vsel %vm11261, %v11229, %v11293
  %v11326 = vsel %vm11262, %v11230, %v11294
  %11327 = vxpose.xlu0.b32.start [1/16] %v11295, 128
  %11328 = vxpose.xlu0.b32.cont [2/16] %v11296, 128
  %11329 = vxpose.xlu0.b32.cont [3/16] %v11297, 128
  %11330 = vxpose.xlu0.b32.cont [4/16] %v11298, 128
  %11331 = vxpose.xlu0.b32.cont [5/16] %v11299, 128
  %11332 = vxpose.xlu0.b32.cont [6/16] %v11300, 128
  %11333 = vxpose.xlu0.b32.cont [7/16] %v11301, 128
  %11334 = vxpose.xlu0.b32.cont [8/16] %v11302, 128
  %11335 = vxpose.xlu0.b32.cont [9/16] %v11303, 128
  %11336 = vxpose.xlu0.b32.cont [10/16] %v11304, 128
  %11337 = vxpose.xlu0.b32.cont [11/16] %v11305, 128
  %11338 = vxpose.xlu0.b32.cont [12/16] %v11306, 128
  %11339 = vxpose.xlu0.b32.cont [13/16] %v11307, 128
  %11340 = vxpose.xlu0.b32.cont [14/16] %v11308, 128
  %11341 = vxpose.xlu0.b32.cont [15/16] %v11309, 128
  %11342 = vxpose.xlu0.b32.end [16/16] %v11310, 128
  %v11343 = vpop.trf.xlu0
  %v11344 = vpop.trf.xlu0
  %v11345 = vpop.trf.xlu0
  %v11346 = vpop.trf.xlu0
  %v11347 = vpop.trf.xlu0
  %v11348 = vpop.trf.xlu0
  %v11349 = vpop.trf.xlu0
  %v11350 = vpop.trf.xlu0
  %v11351 = vpop.trf.xlu0
  %v11352 = vpop.trf.xlu0
  %v11353 = vpop.trf.xlu0
  %v11354 = vpop.trf.xlu0
  %v11355 = vpop.trf.xlu0
  %v11356 = vpop.trf.xlu0
  %v11357 = vpop.trf.xlu0
  %v11358 = vpop.trf.xlu0
  %11359 = vxpose.xlu0.b32.start [1/16] %v11311, 128
  %11360 = vxpose.xlu0.b32.cont [2/16] %v11312, 128
  %11361 = vxpose.xlu0.b32.cont [3/16] %v11313, 128
  %11362 = vxpose.xlu0.b32.cont [4/16] %v11314, 128
  %11363 = vxpose.xlu0.b32.cont [5/16] %v11315, 128
  %11364 = vxpose.xlu0.b32.cont [6/16] %v11316, 128
  %11365 = vxpose.xlu0.b32.cont [7/16] %v11317, 128
  %11366 = vxpose.xlu0.b32.cont [8/16] %v11318, 128
  %11367 = vxpose.xlu0.b32.cont [9/16] %v11319, 128
  %11368 = vxpose.xlu0.b32.cont [10/16] %v11320, 128
  %11369 = vxpose.xlu0.b32.cont [11/16] %v11321, 128
  %11370 = vxpose.xlu0.b32.cont [12/16] %v11322, 128
  %11371 = vxpose.xlu0.b32.cont [13/16] %v11323, 128
  %11372 = vxpose.xlu0.b32.cont [14/16] %v11324, 128
  %11373 = vxpose.xlu0.b32.cont [15/16] %v11325, 128
  %11374 = vxpose.xlu0.b32.end [16/16] %v11326, 128
  %v11375 = vpop.trf.xlu0
  %v11376 = vpop.trf.xlu0
  %v11377 = vpop.trf.xlu0
  %v11378 = vpop.trf.xlu0
  %v11379 = vpop.trf.xlu0
  %v11380 = vpop.trf.xlu0
  %v11381 = vpop.trf.xlu0
  %v11382 = vpop.trf.xlu0
  %v11383 = vpop.trf.xlu0
  %v11384 = vpop.trf.xlu0
  %v11385 = vpop.trf.xlu0
  %v11386 = vpop.trf.xlu0
  %v11387 = vpop.trf.xlu0
  %v11388 = vpop.trf.xlu0
  %v11389 = vpop.trf.xlu0
  %v11390 = vpop.trf.xlu0
  %s11391 = scalar_lea.vmem %s7, 16
  %11392 = vst [vmem:[%s11391] sm:$0xff] %v11343
  %11393 = vst [vmem:[%s11391 + $0x8] sm:$0xff] %v11375
  // Predicated region
  $region30: #{residual_block_forward.1} parent=0 // pred_check
    _
  $region31: #{residual_block_forward.1} parent=0 // pred_check_branch
    %11395 = sbr.rel (0) target = $region33
  $region32: #{residual_block_forward.1} parent=0 // pred_region
    _
  $region33: #{residual_block_forward.1} parent=0 // pred_fallthru
    _
  // Predicated region
  $region34: #{residual_block_forward.1} parent=0 // pred_check
    _
  $region35: #{residual_block_forward.1} parent=0 // pred_check_branch
    %11397 = sbr.rel (0) target = $region37
  $region36: #{residual_block_forward.1} parent=0 // pred_region
    _
  $region37: #{residual_block_forward.1} parent=0 // pred_fallthru
    _

</llo_original>
